<compile_context>
chip_gen: v7x
topology: tpu7x:2x2x1
jax: 0.10.0
libtpu: 0.0.40
codegen_flags: <defaults>
</compile_context>

<pallas_src>
import functools

import jax
import jax.numpy as jnp
from jax import lax
from jax.experimental import pallas as pl
from jax.experimental.pallas import tpu as pltpu


def _bottleneck_kernel(x_ref, x_hbm_ref, w1_ref, w2_ref, w3_ref,
                       b1_ref, b2_ref, b3_ref, o_ref,
                       pad_ref, halo_ref, halo_sem,
                       *, H, W, CIN, P, D, TH, RT):
    # x_ref:     (1, TH, W, CIN)      auto-pipelined row tile of x
    # x_hbm_ref: (N, H, W, CIN)       raw HBM alias of x (halo DMA source)
    # w1_ref:    (CIN, P)   bf16      BN1 scale folded
    # w2_ref:    (9, P, P)  bf16      tap-major, BN2 scale folded
    # w3_ref:    (P, CIN)   bf16      BN3 scale folded
    # b*_ref:    (1, C)     f32       folded BN biases
    # o_ref:     (1, TH, W, CIN) f32  output row tile
    # pad_ref:   (TH+2D, W+2D, P) bf16 zero-padded h1 tile (scratch)
    # halo_ref:  (2D, W, CIN)          top D rows then bottom D rows of x halo
    # halo_sem:  DMA semaphores (2,)
    n = pl.program_id(0)
    r = pl.program_id(1)
    nrt = pl.num_programs(1)
    row0 = r * TH

    # ---- kick off halo DMAs (clamped to stay in-bounds; gated at writes) ----
    if RT > 1:
        top_start = jnp.maximum(row0 - D, 0)
        bot_start = jnp.minimum(row0 + TH, H - D)
        top_cp = pltpu.make_async_copy(
            x_hbm_ref.at[n, pl.ds(top_start, D), :, :],
            halo_ref.at[pl.ds(0, D), :, :], halo_sem.at[0])
        bot_cp = pltpu.make_async_copy(
            x_hbm_ref.at[n, pl.ds(bot_start, D), :, :],
            halo_ref.at[pl.ds(D, D), :, :], halo_sem.at[1])
        top_cp.start()
        bot_cp.start()

    w1 = w1_ref[...]                      # (CIN, P) bf16
    b1 = b1_ref[...]                      # (1, P)   f32

    def conv1(xm):
        # 1x1 conv + BN1 + ReLU on (M, CIN) rows -> (M, P) f32
        h = jnp.dot(xm.astype(jnp.bfloat16), w1,
                    preferred_element_type=jnp.float32) + b1
        return jnp.maximum(h, 0.0)

    # ---- zero left/right borders of the padded conv1 scratch (bf16) --------
    zcol = jnp.zeros((TH + 2 * D, D, P), jnp.bfloat16)
    pad_ref[:, 0:D, :] = zcol
    pad_ref[:, D + W:W + 2 * D, :] = zcol

    # ---- conv1 on the interior row tile: one (TH*W, CIN) matmul ------------
    x_tile = x_ref[0]                                            # (TH, W, CIN)
    h1 = conv1(x_tile.reshape(TH * W, CIN))
    pad_ref[D:D + TH, D:D + W, :] = h1.reshape(TH, W, P).astype(jnp.bfloat16)

    # ---- conv1 on both halos: one fused (2*D*W, CIN) matmul, pl.when gated --
    zrow = jnp.zeros((D, W, P), jnp.bfloat16)
    if RT > 1:
        top_cp.wait()
        bot_cp.wait()
        h1h = conv1(halo_ref[...].reshape(2 * D * W, CIN))
        h1h = h1h.reshape(2 * D, W, P).astype(jnp.bfloat16)

        @pl.when(r > 0)
        def _():
            pad_ref[0:D, D:D + W, :] = h1h[0:D]

        @pl.when(r == 0)
        def _():
            pad_ref[0:D, D:D + W, :] = zrow

        @pl.when(r < nrt - 1)
        def _():
            pad_ref[D + TH:TH + 2 * D, D:D + W, :] = h1h[D:2 * D]

        @pl.when(r == nrt - 1)
        def _():
            pad_ref[D + TH:TH + 2 * D, D:D + W, :] = zrow
    else:
        pad_ref[0:D, D:D + W, :] = zrow
        pad_ref[D + TH:TH + 2 * D, D:D + W, :] = zrow

    # ---- conv2 (3x3 dilated): nine (TH*W,P)x(P,P) MXU accumulations ---------
    acc = b2_ref[...]                                            # (1, P) f32
    for ky in range(3):
        for kx in range(3):
            win = pad_ref[ky * D:ky * D + TH, kx * D:kx * D + W, :]
            acc = acc + jnp.dot(win.reshape(TH * W, P),
                                w2_ref[ky * 3 + kx],
                                preferred_element_type=jnp.float32)
    h2 = jnp.maximum(acc, 0.0)                                   # (TH*W, P) f32

    # ---- conv3 (1x1) + BN3 + residual + ReLU --------------------------------
    h3 = jnp.dot(h2.astype(jnp.bfloat16), w3_ref[...],
                 preferred_element_type=jnp.float32) + b3_ref[...]   # (TH*W, CIN)
    res = x_tile.reshape(TH * W, CIN).astype(jnp.float32)
    out = jnp.maximum(h3 + res, 0.0)
    o_ref[...] = out.reshape(1, TH, W, CIN).astype(o_ref.dtype)


def bottleneck_pad(x, w1, w2, w3, bn1, bn2, bn3, *, dilation=1, eps=1e-5,
                   row_tile=None, io_dtype=jnp.float32):
    """BottleneckPad forward (stride=1, downsample=None, inference BN).

    x:  (N, Cin, H, W) f32, NCHW (PyTorch layout), Cin == 4*planes
    w1: (planes, Cin, 1, 1)   w2: (planes, planes, 3, 3)   w3: (Cin, planes, 1, 1)
    bn*: dicts with 1-D 'gamma', 'beta', 'mean', 'var' (running stats).
    io_dtype: dtype of x as seen by the kernel; jnp.bfloat16 halves x HBM
              traffic (useful when HBM-bound, e.g. v6e) at the cost of the
              residual add carrying bf16 precision.
    Returns (N, Cin, H, W) f32.
    """
    N, CIN, H, W = x.shape
    P = w1.shape[0]
    assert CIN == 4 * P, "residual add requires inplanes == 4*planes (no downsample)"
    D = int(dilation)
    assert 1 <= D <= H

    # ---- fold BN into conv weights / per-channel biases ---------------------
    def fold(bn, c):
        s = (bn["gamma"] / jnp.sqrt(bn["var"] + eps)).astype(jnp.float32)
        b = (bn["beta"] - bn["mean"] * s).reshape(1, c).astype(jnp.float32)
        return s, b

    s1, b1 = fold(bn1, P)
    s2, b2 = fold(bn2, P)
    s3, b3 = fold(bn3, CIN)

    w1m = (w1[:, :, 0, 0].T * s1[None, :]).astype(jnp.bfloat16)            # (CIN, P)
    w2h = jnp.transpose(w2, (2, 3, 1, 0)) * s2[None, None, None, :]        # HWIO
    w2m = w2h.reshape(9, P, P).astype(jnp.bfloat16)                        # tap-major stack
    w3m = (w3[:, :, 0, 0].T * s3[None, :]).astype(jnp.bfloat16)            # (P, CIN)

    xh = jnp.transpose(x, (0, 2, 3, 1)).astype(io_dtype)                   # NHWC

    # ---- generation-aware VMEM budget & row-tile choice ----------------------
    try:
        info = pltpu.get_tpu_info()
        vmem_cap = int(getattr(info, "vmem_capacity_bytes", 64 * 2**20))
    except Exception:
        vmem_cap = 64 * 2**20                 # conservative (v7x per-TC size)
    vmem_budget = (vmem_cap * 3) // 4         # ~48 MiB on v7x, ~96 MiB on v5e/v6e

    xbytes = jnp.dtype(io_dtype).itemsize

    def vmem_est(th):
        xb = 2 * th * W * CIN * xbytes                      # x tile (double-buffered)
        ob = 2 * th * W * CIN * 4                           # out tile (double-buffered)
        wts = (CIN * P + 9 * P * P + P * CIN) * 2 + (2 * P + CIN) * 4
        pad = (th + 2 * D) * (W + 2 * D) * P * 2            # bf16 padded h1 scratch
        halo = 2 * D * W * CIN * xbytes                     # halo DMA buffer
        tmp = 2 * th * W * P * 4                            # f32 conv1/conv2 temporaries
        return xb + ob + wts + pad + halo + tmp

    if row_tile is None:
        divs = [d for d in range(1, H + 1) if H % d == 0 and d >= D]
        assert divs, "no valid row tile (need a divisor of H that is >= dilation)"
        fit = [d for d in divs if vmem_est(d) <= vmem_budget] or [min(divs)]
        good = [d for d in fit if d * W <= 1024]            # ~512-1024 MXU rows/tile
        row_tile = max(good) if good else min(fit)
    TH = int(row_tile)
    assert H % TH == 0 and TH >= D, "row tile must divide H and be >= dilation"
    RT = H // TH

    vmem_limit = int(min(vmem_budget, max(vmem_est(TH) + (8 << 20), 16 << 20)))

    kernel = functools.partial(_bottleneck_kernel,
                               H=H, W=W, CIN=CIN, P=P, D=D, TH=TH, RT=RT)

    def run(single_buffer_weights):
        # Constant operands (weights/biases) never change block index; request
        # single buffering to avoid a second resident copy in VMEM.
        wkw = {"pipeline_mode": pl.Buffered(1)} if single_buffer_weights else {}
        grid_spec = pltpu.PrefetchScalarGridSpec(
            num_scalar_prefetch=0,
            grid=(N, RT),
            in_specs=[
                pl.BlockSpec((1, TH, W, CIN), lambda b, rr: (b, rr, 0, 0)),   # x row tile
                pl.BlockSpec(memory_space=pl.ANY),                            # x (HBM, halo DMA)
                pl.BlockSpec((CIN, P), lambda b, rr: (0, 0), **wkw),          # w1
                pl.BlockSpec((9, P, P), lambda b, rr: (0, 0, 0), **wkw),      # w2 (9 x PxP)
                pl.BlockSpec((P, CIN), lambda b, rr: (0, 0), **wkw),          # w3
                pl.BlockSpec((1, P), lambda b, rr: (0, 0), **wkw),            # b1
                pl.BlockSpec((1, P), lambda b, rr: (0, 0), **wkw),            # b2
                pl.BlockSpec((1, CIN), lambda b, rr: (0, 0), **wkw),          # b3
            ],
            out_specs=pl.BlockSpec((1, TH, W, CIN), lambda b, rr: (b, rr, 0, 0)),
            scratch_shapes=[
                pltpu.VMEM((TH + 2 * D, W + 2 * D, P), jnp.bfloat16),   # padded h1 tile
                pltpu.VMEM((2 * D, W, CIN), xh.dtype),                  # x halo rows
                pltpu.SemaphoreType.DMA((2,)),
            ],
        )
        return pl.pallas_call(
            kernel,
            out_shape=jax.ShapeDtypeStruct((N, H, W, CIN), jnp.float32),
            grid_spec=grid_spec,
            compiler_params=pltpu.CompilerParams(
                dimension_semantics=("parallel", "parallel"),
                vmem_limit_bytes=vmem_limit,
            ),
        )(xh, xh, w1m, w2m, w3m, b1, b2, b3)

    try:
        out_nhwc = run(True)
    except Exception:
        # Fallback if single-buffering via pl.Buffered(1) is unsupported here.
        out_nhwc = run(False)

    return jnp.transpose(out_nhwc, (0, 3, 1, 2))                           # back to NCHW


# ---------------------------- pure-JAX reference ---------------------------
def _reference(x, w1, w2, w3, bn1, bn2, bn3, dilation, eps=1e-5):
    dn = ("NCHW", "OIHW", "NCHW")

    def bn(h, p):
        c = h.shape[1]
        rs = lambda v: v.reshape(1, c, 1, 1)
        return (h - rs(p["mean"])) / jnp.sqrt(rs(p["var"]) + eps) * rs(p["gamma"]) + rs(p["beta"])

    hp = lax.Precision.HIGHEST
    h = lax.conv_general_dilated(x, w1, (1, 1), "VALID", dimension_numbers=dn,
                                 precision=hp)
    h = jax.nn.relu(bn(h, bn1))
    h = lax.conv_general_dilated(h, w2, (1, 1),
                                 [(dilation, dilation), (dilation, dilation)],
                                 rhs_dilation=(dilation, dilation),
                                 dimension_numbers=dn, precision=hp)
    h = jax.nn.relu(bn(h, bn2))
    h = lax.conv_general_dilated(h, w3, (1, 1), "VALID", dimension_numbers=dn,
                                 precision=hp)
    h = bn(h, bn3)
    return jax.nn.relu(h + x)


if __name__ == "__main__":
    key = jax.random.PRNGKey(0)
    N, H, W = 2, 16, 16
    planes = 32
    inplanes = planes * 4          # 128 -> lane-dense residual/output channels
    dilation = 2                   # conv2 padding == dilation (spatial size kept)

    ks = jax.random.split(key, 8)
    x = jax.random.normal(ks[0], (N, inplanes, H, W), jnp.float32)
    w1 = jax.random.normal(ks[1], (planes, inplanes, 1, 1), jnp.float32) * 0.1
    w2 = jax.random.normal(ks[2], (planes, planes, 3, 3), jnp.float32) * 0.1
    w3 = jax.random.normal(ks[3], (inplanes, planes, 1, 1), jnp.float32) * 0.1

    def make_bn(c, k):
        ka, kb, kc, kd = jax.random.split(k, 4)
        return {
            "gamma": jax.random.uniform(ka, (c,), jnp.float32, 0.5, 1.5),
            "beta": jax.random.normal(kb, (c,), jnp.float32) * 0.1,
            "mean": jax.random.normal(kc, (c,), jnp.float32) * 0.1,
            "var": jax.random.uniform(kd, (c,), jnp.float32, 0.5, 1.5),
        }

    bn1 = make_bn(planes, ks[4])
    bn2 = make_bn(planes, ks[5])
    bn3 = make_bn(inplanes, ks[6])

    out = bottleneck_pad(x, w1, w2, w3, bn1, bn2, bn3,
                         dilation=dilation, row_tile=8)   # 2 row tiles -> halo DMA path used
    out = jax.block_until_ready(out)

    ref = _reference(x, w1, w2, w3, bn1, bn2, bn3, dilation)
    max_err = float(jnp.max(jnp.abs(out - ref)))
    mean_err = float(jnp.mean(jnp.abs(out - ref)))
    # bf16 MXU operands with f32 accumulation -> bf16-level tolerance.
    assert max_err < 0.2 and mean_err < 0.02, (max_err, mean_err)
    print("KERNEL_OK")
</pallas_src>

<mosaic_0001>
module attributes {stable_mosaic.version = 11 : i64} {
  func.func @_bottleneck_kernel(%arg0: i32, %arg1: i32, %arg2: memref<1x8x16x128xf32, #tpu.memory_space<vmem>>, %arg3: memref<2x16x16x128xf32, #tpu.memory_space<any>>, %arg4: memref<128x32xbf16, #tpu.memory_space<vmem>>, %arg5: memref<9x32x32xbf16, #tpu.memory_space<vmem>>, %arg6: memref<32x128xbf16, #tpu.memory_space<vmem>>, %arg7: memref<1x32xf32, #tpu.memory_space<vmem>>, %arg8: memref<1x32xf32, #tpu.memory_space<vmem>>, %arg9: memref<1x128xf32, #tpu.memory_space<vmem>>, %arg10: memref<1x8x16x128xf32, #tpu.memory_space<vmem>>, %arg11: memref<12x20x32xbf16, #tpu.memory_space<vmem>>, %arg12: memref<4x16x128xf32, #tpu.memory_space<vmem>>, %arg13: memref<2x!tpu.dma_semaphore, #tpu.memory_space<semaphore_mem>>) attributes {dimension_semantics = [#tpu.dimension_semantics<parallel>, #tpu.dimension_semantics<parallel>], iteration_bounds = array<i64: 2, 2>, scalar_prefetch = 0 : i64, scratch_operands = 3 : i64, tpu.core_type = #tpu.core_type<tc>, window_params = [{transform_indices = @transform_0, window_bounds = array<i64: 1, 8, 16, 128>}, {}, {pipeline_mode = #tpu.pipeline_mode<synchronous>, transform_indices = @transform_2, window_bounds = array<i64: 128, 32>}, {pipeline_mode = #tpu.pipeline_mode<synchronous>, transform_indices = @transform_3, window_bounds = array<i64: 9, 32, 32>}, {pipeline_mode = #tpu.pipeline_mode<synchronous>, transform_indices = @transform_4, window_bounds = array<i64: 32, 128>}, {pipeline_mode = #tpu.pipeline_mode<synchronous>, transform_indices = @transform_5, window_bounds = array<i64: 1, 32>}, {pipeline_mode = #tpu.pipeline_mode<synchronous>, transform_indices = @transform_6, window_bounds = array<i64: 1, 32>}, {pipeline_mode = #tpu.pipeline_mode<synchronous>, transform_indices = @transform_7, window_bounds = array<i64: 1, 128>}, {transform_indices = @transform_8, window_bounds = array<i64: 1, 8, 16, 128>}]} {
    %c8_i32 = arith.constant 8 : i32
    %0 = arith.muli %arg1, %c8_i32 : i32
    %c2_i32 = arith.constant 2 : i32
    %1 = arith.subi %0, %c2_i32 : i32
    %c0_i32 = arith.constant 0 : i32
    %2 = arith.maxsi %1, %c0_i32 : i32
    %c8_i32_0 = arith.constant 8 : i32
    %3 = arith.addi %0, %c8_i32_0 : i32
    %c14_i32 = arith.constant 14 : i32
    %4 = arith.minsi %3, %c14_i32 : i32
    %c0_i32_1 = arith.constant 0 : i32
    %c0_i32_2 = arith.constant 0 : i32
    %c0_i32_3 = arith.constant 0 : i32
    %5 = tpu.memref_slice %arg3[%arg0, %2, %c0_i32_2, %c0_i32_3] : memref<2x16x16x128xf32, #tpu.memory_space<any>> -> memref<1x2x16x128xf32, #tpu.memory_space<any>>
    %6 = tpu.memref_squeeze %5 : memref<1x2x16x128xf32, #tpu.memory_space<any>> -> memref<2x16x128xf32, #tpu.memory_space<any>>
    %c0_i32_4 = arith.constant 0 : i32
    %c0_i32_5 = arith.constant 0 : i32
    %c0_i32_6 = arith.constant 0 : i32
    %7 = tpu.memref_slice %arg12[%c0_i32_4, %c0_i32_5, %c0_i32_6] : memref<4x16x128xf32, #tpu.memory_space<vmem>> -> memref<2x16x128xf32, #tpu.memory_space<vmem>>
    %8 = tpu.memref_slice %arg13[%c0_i32_1] : memref<2x!tpu.dma_semaphore, #tpu.memory_space<semaphore_mem>> -> memref<1x!tpu.dma_semaphore, #tpu.memory_space<semaphore_mem>>
    %9 = tpu.memref_squeeze %8 : memref<1x!tpu.dma_semaphore, #tpu.memory_space<semaphore_mem>> -> memref<!tpu.dma_semaphore, #tpu.memory_space<semaphore_mem>>
    tpu.enqueue_dma source(%6 : memref<2x16x128xf32, #tpu.memory_space<any>>) target(%7 : memref<2x16x128xf32, #tpu.memory_space<vmem>>) target_semaphore(%9 : memref<!tpu.dma_semaphore, #tpu.memory_space<semaphore_mem>>)
    %c1_i32 = arith.constant 1 : i32
    %c0_i32_7 = arith.constant 0 : i32
    %c0_i32_8 = arith.constant 0 : i32
    %10 = tpu.memref_slice %arg3[%arg0, %4, %c0_i32_7, %c0_i32_8] : memref<2x16x16x128xf32, #tpu.memory_space<any>> -> memref<1x2x16x128xf32, #tpu.memory_space<any>>
    %11 = tpu.memref_squeeze %10 : memref<1x2x16x128xf32, #tpu.memory_space<any>> -> memref<2x16x128xf32, #tpu.memory_space<any>>
    %c2_i32_9 = arith.constant 2 : i32
    %c0_i32_10 = arith.constant 0 : i32
    %c0_i32_11 = arith.constant 0 : i32
    %12 = tpu.memref_slice %arg12[%c2_i32_9, %c0_i32_10, %c0_i32_11] : memref<4x16x128xf32, #tpu.memory_space<vmem>> -> memref<2x16x128xf32, #tpu.memory_space<vmem>>
    %13 = tpu.memref_slice %arg13[%c1_i32] : memref<2x!tpu.dma_semaphore, #tpu.memory_space<semaphore_mem>> -> memref<1x!tpu.dma_semaphore, #tpu.memory_space<semaphore_mem>>
    %14 = tpu.memref_squeeze %13 : memref<1x!tpu.dma_semaphore, #tpu.memory_space<semaphore_mem>> -> memref<!tpu.dma_semaphore, #tpu.memory_space<semaphore_mem>>
    tpu.enqueue_dma source(%11 : memref<2x16x128xf32, #tpu.memory_space<any>>) target(%12 : memref<2x16x128xf32, #tpu.memory_space<vmem>>) target_semaphore(%14 : memref<!tpu.dma_semaphore, #tpu.memory_space<semaphore_mem>>)
    %c0 = arith.constant 0 : index
    %c0_12 = arith.constant 0 : index
    %15 = vector.load %arg4[%c0, %c0_12] : memref<128x32xbf16, #tpu.memory_space<vmem>>, vector<128x32xbf16>
    %c0_13 = arith.constant 0 : index
    %c0_14 = arith.constant 0 : index
    %16 = vector.load %arg7[%c0_13, %c0_14] : memref<1x32xf32, #tpu.memory_space<vmem>>, vector<1x32xf32>
    %cst = arith.constant 0.000000e+00 : bf16
    %17 = vector.broadcast %cst : bf16 to vector<12x2x32xbf16>
    %c0_15 = arith.constant 0 : index
    %c0_16 = arith.constant 0 : index
    %c0_17 = arith.constant 0 : index
    %18 = vector.load %arg11[%c0_15, %c0_16, %c0_17] : memref<12x20x32xbf16, #tpu.memory_space<vmem>>, vector<12x2x32xbf16>
    tpu.vector_store %arg11[%c0_15, %c0_16, %c0_17], %17 {strides = array<i32>} : memref<12x20x32xbf16, #tpu.memory_space<vmem>>, vector<12x2x32xbf16>,
    %c0_18 = arith.constant 0 : index
    %c18 = arith.constant 18 : index
    %c0_19 = arith.constant 0 : index
    %19 = vector.load %arg11[%c0_18, %c18, %c0_19] : memref<12x20x32xbf16, #tpu.memory_space<vmem>>, vector<12x2x32xbf16>
    tpu.vector_store %arg11[%c0_18, %c18, %c0_19], %17 {strides = array<i32>} : memref<12x20x32xbf16, #tpu.memory_space<vmem>>, vector<12x2x32xbf16>,
    %c0_20 = arith.constant 0 : index
    %c0_21 = arith.constant 0 : index
    %c0_22 = arith.constant 0 : index
    %c0_23 = arith.constant 0 : index
    %20 = vector.load %arg2[%c0_20, %c0_21, %c0_22, %c0_23] : memref<1x8x16x128xf32, #tpu.memory_space<vmem>>, vector<1x8x16x128xf32>
    %21 = vector.shape_cast %20 : vector<1x8x16x128xf32> to vector<8x16x128xf32>
    %22 = vector.shape_cast %21 : vector<8x16x128xf32> to vector<128x128xf32>
    %23 = arith.truncf %22 : vector<128x128xf32> to vector<128x128xbf16>
    %cst_24 = arith.constant dense<0.000000e+00> : vector<128x32xf32>
    %24 = tpu.matmul %23, %15, %cst_24 {dimension_numbers = #tpu.dot_dimension_numbers<[1], [0], [0], [1], [0, 0, 1, 1], [], []>} : vector<128x128xbf16>, vector<128x32xbf16>, vector<128x32xf32> -> vector<128x32xf32>
    %25 = vector.broadcast %16 : vector<1x32xf32> to vector<128x32xf32>
    %26 = arith.addf %24, %25 : vector<128x32xf32>
    %cst_25 = arith.constant 0.000000e+00 : f32
    %27 = vector.broadcast %cst_25 : f32 to vector<128x32xf32>
    %28 = arith.maximumf %26, %27 : vector<128x32xf32>
    %29 = vector.shape_cast %28 : vector<128x32xf32> to vector<8x16x32xf32>
    %30 = arith.truncf %29 : vector<8x16x32xf32> to vector<8x16x32xbf16>
    %c2 = arith.constant 2 : index
    %c2_26 = arith.constant 2 : index
    %c0_27 = arith.constant 0 : index
    %31 = vector.load %arg11[%c2, %c2_26, %c0_27] : memref<12x20x32xbf16, #tpu.memory_space<vmem>>, vector<8x16x32xbf16>
    tpu.vector_store %arg11[%c2, %c2_26, %c0_27], %30 {strides = array<i32>} : memref<12x20x32xbf16, #tpu.memory_space<vmem>>, vector<8x16x32xbf16>,
    %cst_28 = arith.constant 0.000000e+00 : bf16
    %32 = vector.broadcast %cst_28 : bf16 to vector<2x16x32xbf16>
    %c0_i32_29 = arith.constant 0 : i32
    %c0_i32_30 = arith.constant 0 : i32
    %c0_i32_31 = arith.constant 0 : i32
    %33 = tpu.memref_slice %arg3[%arg0, %2, %c0_i32_30, %c0_i32_31] : memref<2x16x16x128xf32, #tpu.memory_space<any>> -> memref<1x2x16x128xf32, #tpu.memory_space<any>>
    %34 = tpu.memref_squeeze %33 : memref<1x2x16x128xf32, #tpu.memory_space<any>> -> memref<2x16x128xf32, #tpu.memory_space<any>>
    %c0_i32_32 = arith.constant 0 : i32
    %c0_i32_33 = arith.constant 0 : i32
    %c0_i32_34 = arith.constant 0 : i32
    %35 = tpu.memref_slice %arg12[%c0_i32_32, %c0_i32_33, %c0_i32_34] : memref<4x16x128xf32, #tpu.memory_space<vmem>> -> memref<2x16x128xf32, #tpu.memory_space<vmem>>
    %36 = tpu.memref_slice %arg13[%c0_i32_29] : memref<2x!tpu.dma_semaphore, #tpu.memory_space<semaphore_mem>> -> memref<1x!tpu.dma_semaphore, #tpu.memory_space<semaphore_mem>>
    %37 = tpu.memref_squeeze %36 : memref<1x!tpu.dma_semaphore, #tpu.memory_space<semaphore_mem>> -> memref<!tpu.dma_semaphore, #tpu.memory_space<semaphore_mem>>
    tpu.wait_dma2 semaphore(%37 : memref<!tpu.dma_semaphore, #tpu.memory_space<semaphore_mem>>) src(%34 : memref<2x16x128xf32, #tpu.memory_space<any>>) dst(%35 : memref<2x16x128xf32, #tpu.memory_space<vmem>>)
    %c1_i32_35 = arith.constant 1 : i32
    %c0_i32_36 = arith.constant 0 : i32
    %c0_i32_37 = arith.constant 0 : i32
    %38 = tpu.memref_slice %arg3[%arg0, %4, %c0_i32_36, %c0_i32_37] : memref<2x16x16x128xf32, #tpu.memory_space<any>> -> memref<1x2x16x128xf32, #tpu.memory_space<any>>
    %39 = tpu.memref_squeeze %38 : memref<1x2x16x128xf32, #tpu.memory_space<any>> -> memref<2x16x128xf32, #tpu.memory_space<any>>
    %c2_i32_38 = arith.constant 2 : i32
    %c0_i32_39 = arith.constant 0 : i32
    %c0_i32_40 = arith.constant 0 : i32
    %40 = tpu.memref_slice %arg12[%c2_i32_38, %c0_i32_39, %c0_i32_40] : memref<4x16x128xf32, #tpu.memory_space<vmem>> -> memref<2x16x128xf32, #tpu.memory_space<vmem>>
    %41 = tpu.memref_slice %arg13[%c1_i32_35] : memref<2x!tpu.dma_semaphore, #tpu.memory_space<semaphore_mem>> -> memref<1x!tpu.dma_semaphore, #tpu.memory_space<semaphore_mem>>
    %42 = tpu.memref_squeeze %41 : memref<1x!tpu.dma_semaphore, #tpu.memory_space<semaphore_mem>> -> memref<!tpu.dma_semaphore, #tpu.memory_space<semaphore_mem>>
    tpu.wait_dma2 semaphore(%42 : memref<!tpu.dma_semaphore, #tpu.memory_space<semaphore_mem>>) src(%39 : memref<2x16x128xf32, #tpu.memory_space<any>>) dst(%40 : memref<2x16x128xf32, #tpu.memory_space<vmem>>)
    %c0_41 = arith.constant 0 : index
    %c0_42 = arith.constant 0 : index
    %c0_43 = arith.constant 0 : index
    %43 = vector.load %arg12[%c0_41, %c0_42, %c0_43] : memref<4x16x128xf32, #tpu.memory_space<vmem>>, vector<4x16x128xf32>
    %44 = vector.shape_cast %43 : vector<4x16x128xf32> to vector<64x128xf32>
    %45 = arith.truncf %44 : vector<64x128xf32> to vector<64x128xbf16>
    %cst_44 = arith.constant dense<0.000000e+00> : vector<64x32xf32>
    %46 = tpu.matmul %45, %15, %cst_44 {dimension_numbers = #tpu.dot_dimension_numbers<[1], [0], [0], [1], [0, 0, 1, 1], [], []>} : vector<64x128xbf16>, vector<128x32xbf16>, vector<64x32xf32> -> vector<64x32xf32>
    %47 = vector.broadcast %16 : vector<1x32xf32> to vector<64x32xf32>
    %48 = arith.addf %46, %47 : vector<64x32xf32>
    %cst_45 = arith.constant 0.000000e+00 : f32
    %49 = vector.broadcast %cst_45 : f32 to vector<64x32xf32>
    %50 = arith.maximumf %48, %49 : vector<64x32xf32>
    %51 = vector.shape_cast %50 : vector<64x32xf32> to vector<4x16x32xf32>
    %52 = arith.truncf %51 : vector<4x16x32xf32> to vector<4x16x32xbf16>
    %c0_i32_46 = arith.constant 0 : i32
    %53 = arith.cmpi sgt, %arg1, %c0_i32_46 : i32
    %54 = arith.extui %53 : i1 to i32
    %c0_i32_47 = arith.constant 0 : i32
    %55 = arith.cmpi ne, %54, %c0_i32_47 : i32
    scf.if %55 {
      %135 = vector.extract_strided_slice %52 {offsets = [0, 0, 0], sizes = [2, 16, 32], strides = [1, 1, 1]} : vector<4x16x32xbf16> to vector<2x16x32xbf16>
      %c0_123 = arith.constant 0 : index
      %c2_124 = arith.constant 2 : index
      %c0_125 = arith.constant 0 : index
      %136 = vector.load %arg11[%c0_123, %c2_124, %c0_125] : memref<12x20x32xbf16, #tpu.memory_space<vmem>>, vector<2x16x32xbf16>
      tpu.vector_store %arg11[%c0_123, %c2_124, %c0_125], %135 {strides = array<i32>} : memref<12x20x32xbf16, #tpu.memory_space<vmem>>, vector<2x16x32xbf16>,
    } else {
    }
    %c0_i32_48 = arith.constant 0 : i32
    %56 = arith.cmpi eq, %arg1, %c0_i32_48 : i32
    %57 = arith.extui %56 : i1 to i32
    %c0_i32_49 = arith.constant 0 : i32
    %58 = arith.cmpi ne, %57, %c0_i32_49 : i32
    scf.if %58 {
      %c0_123 = arith.constant 0 : index
      %c2_124 = arith.constant 2 : index
      %c0_125 = arith.constant 0 : index
      %135 = vector.load %arg11[%c0_123, %c2_124, %c0_125] : memref<12x20x32xbf16, #tpu.memory_space<vmem>>, vector<2x16x32xbf16>
      tpu.vector_store %arg11[%c0_123, %c2_124, %c0_125], %32 {strides = array<i32>} : memref<12x20x32xbf16, #tpu.memory_space<vmem>>, vector<2x16x32xbf16>,
    } else {
    }
    %c1_i32_50 = arith.constant 1 : i32
    %59 = arith.cmpi slt, %arg1, %c1_i32_50 : i32
    %60 = arith.extui %59 : i1 to i32
    %c0_i32_51 = arith.constant 0 : i32
    %61 = arith.cmpi ne, %60, %c0_i32_51 : i32
    scf.if %61 {
      %135 = vector.extract_strided_slice %52 {offsets = [2, 0, 0], sizes = [2, 16, 32], strides = [1, 1, 1]} : vector<4x16x32xbf16> to vector<2x16x32xbf16>
      %c10 = arith.constant 10 : index
      %c2_123 = arith.constant 2 : index
      %c0_124 = arith.constant 0 : index
      %136 = vector.load %arg11[%c10, %c2_123, %c0_124] : memref<12x20x32xbf16, #tpu.memory_space<vmem>>, vector<2x16x32xbf16>
      tpu.vector_store %arg11[%c10, %c2_123, %c0_124], %135 {strides = array<i32>} : memref<12x20x32xbf16, #tpu.memory_space<vmem>>, vector<2x16x32xbf16>,
    } else {
    }
    %c1_i32_52 = arith.constant 1 : i32
    %62 = arith.cmpi eq, %arg1, %c1_i32_52 : i32
    %63 = arith.extui %62 : i1 to i32
    %c0_i32_53 = arith.constant 0 : i32
    %64 = arith.cmpi ne, %63, %c0_i32_53 : i32
    scf.if %64 {
      %c10 = arith.constant 10 : index
      %c2_123 = arith.constant 2 : index
      %c0_124 = arith.constant 0 : index
      %135 = vector.load %arg11[%c10, %c2_123, %c0_124] : memref<12x20x32xbf16, #tpu.memory_space<vmem>>, vector<2x16x32xbf16>
      tpu.vector_store %arg11[%c10, %c2_123, %c0_124], %32 {strides = array<i32>} : memref<12x20x32xbf16, #tpu.memory_space<vmem>>, vector<2x16x32xbf16>,
    } else {
    }
    %c0_54 = arith.constant 0 : index
    %c0_55 = arith.constant 0 : index
    %65 = vector.load %arg8[%c0_54, %c0_55] : memref<1x32xf32, #tpu.memory_space<vmem>>, vector<1x32xf32>
    %c0_56 = arith.constant 0 : index
    %c0_57 = arith.constant 0 : index
    %c0_58 = arith.constant 0 : index
    %66 = vector.load %arg11[%c0_56, %c0_57, %c0_58] : memref<12x20x32xbf16, #tpu.memory_space<vmem>>, vector<8x16x32xbf16>
    %67 = vector.shape_cast %66 : vector<8x16x32xbf16> to vector<128x32xbf16>
    %c0_59 = arith.constant 0 : index
    %c0_60 = arith.constant 0 : index
    %c0_61 = arith.constant 0 : index
    %68 = vector.load %arg5[%c0_59, %c0_60, %c0_61] : memref<9x32x32xbf16, #tpu.memory_space<vmem>>, vector<1x32x32xbf16>
    %69 = vector.shape_cast %68 : vector<1x32x32xbf16> to vector<32x32xbf16>
    %cst_62 = arith.constant dense<0.000000e+00> : vector<128x32xf32>
    %70 = tpu.matmul %67, %69, %cst_62 {dimension_numbers = #tpu.dot_dimension_numbers<[1], [0], [0], [1], [0, 0, 1, 1], [], []>} : vector<128x32xbf16>, vector<32x32xbf16>, vector<128x32xf32> -> vector<128x32xf32>
    %71 = vector.broadcast %65 : vector<1x32xf32> to vector<128x32xf32>
    %72 = arith.addf %71, %70 : vector<128x32xf32>
    %c0_63 = arith.constant 0 : index
    %c2_64 = arith.constant 2 : index
    %c0_65 = arith.constant 0 : index
    %73 = vector.load %arg11[%c0_63, %c2_64, %c0_65] : memref<12x20x32xbf16, #tpu.memory_space<vmem>>, vector<8x16x32xbf16>
    %74 = vector.shape_cast %73 : vector<8x16x32xbf16> to vector<128x32xbf16>
    %c1 = arith.constant 1 : index
    %c0_66 = arith.constant 0 : index
    %c0_67 = arith.constant 0 : index
    %75 = vector.load %arg5[%c1, %c0_66, %c0_67] : memref<9x32x32xbf16, #tpu.memory_space<vmem>>, vector<1x32x32xbf16>
    %76 = vector.shape_cast %75 : vector<1x32x32xbf16> to vector<32x32xbf16>
    %cst_68 = arith.constant dense<0.000000e+00> : vector<128x32xf32>
    %77 = tpu.matmul %74, %76, %cst_68 {dimension_numbers = #tpu.dot_dimension_numbers<[1], [0], [0], [1], [0, 0, 1, 1], [], []>} : vector<128x32xbf16>, vector<32x32xbf16>, vector<128x32xf32> -> vector<128x32xf32>
    %78 = arith.addf %72, %77 : vector<128x32xf32>
    %c0_69 = arith.constant 0 : index
    %c4 = arith.constant 4 : index
    %c0_70 = arith.constant 0 : index
    %79 = vector.load %arg11[%c0_69, %c4, %c0_70] : memref<12x20x32xbf16, #tpu.memory_space<vmem>>, vector<8x16x32xbf16>
    %80 = vector.shape_cast %79 : vector<8x16x32xbf16> to vector<128x32xbf16>
    %c2_71 = arith.constant 2 : index
    %c0_72 = arith.constant 0 : index
    %c0_73 = arith.constant 0 : index
    %81 = vector.load %arg5[%c2_71, %c0_72, %c0_73] : memref<9x32x32xbf16, #tpu.memory_space<vmem>>, vector<1x32x32xbf16>
    %82 = vector.shape_cast %81 : vector<1x32x32xbf16> to vector<32x32xbf16>
    %cst_74 = arith.constant dense<0.000000e+00> : vector<128x32xf32>
    %83 = tpu.matmul %80, %82, %cst_74 {dimension_numbers = #tpu.dot_dimension_numbers<[1], [0], [0], [1], [0, 0, 1, 1], [], []>} : vector<128x32xbf16>, vector<32x32xbf16>, vector<128x32xf32> -> vector<128x32xf32>
    %84 = arith.addf %78, %83 : vector<128x32xf32>
    %c2_75 = arith.constant 2 : index
    %c0_76 = arith.constant 0 : index
    %c0_77 = arith.constant 0 : index
    %85 = vector.load %arg11[%c2_75, %c0_76, %c0_77] : memref<12x20x32xbf16, #tpu.memory_space<vmem>>, vector<8x16x32xbf16>
    %86 = vector.shape_cast %85 : vector<8x16x32xbf16> to vector<128x32xbf16>
    %c3 = arith.constant 3 : index
    %c0_78 = arith.constant 0 : index
    %c0_79 = arith.constant 0 : index
    %87 = vector.load %arg5[%c3, %c0_78, %c0_79] : memref<9x32x32xbf16, #tpu.memory_space<vmem>>, vector<1x32x32xbf16>
    %88 = vector.shape_cast %87 : vector<1x32x32xbf16> to vector<32x32xbf16>
    %cst_80 = arith.constant dense<0.000000e+00> : vector<128x32xf32>
    %89 = tpu.matmul %86, %88, %cst_80 {dimension_numbers = #tpu.dot_dimension_numbers<[1], [0], [0], [1], [0, 0, 1, 1], [], []>} : vector<128x32xbf16>, vector<32x32xbf16>, vector<128x32xf32> -> vector<128x32xf32>
    %90 = arith.addf %84, %89 : vector<128x32xf32>
    %c2_81 = arith.constant 2 : index
    %c2_82 = arith.constant 2 : index
    %c0_83 = arith.constant 0 : index
    %91 = vector.load %arg11[%c2_81, %c2_82, %c0_83] : memref<12x20x32xbf16, #tpu.memory_space<vmem>>, vector<8x16x32xbf16>
    %92 = vector.shape_cast %91 : vector<8x16x32xbf16> to vector<128x32xbf16>
    %c4_84 = arith.constant 4 : index
    %c0_85 = arith.constant 0 : index
    %c0_86 = arith.constant 0 : index
    %93 = vector.load %arg5[%c4_84, %c0_85, %c0_86] : memref<9x32x32xbf16, #tpu.memory_space<vmem>>, vector<1x32x32xbf16>
    %94 = vector.shape_cast %93 : vector<1x32x32xbf16> to vector<32x32xbf16>
    %cst_87 = arith.constant dense<0.000000e+00> : vector<128x32xf32>
    %95 = tpu.matmul %92, %94, %cst_87 {dimension_numbers = #tpu.dot_dimension_numbers<[1], [0], [0], [1], [0, 0, 1, 1], [], []>} : vector<128x32xbf16>, vector<32x32xbf16>, vector<128x32xf32> -> vector<128x32xf32>
    %96 = arith.addf %90, %95 : vector<128x32xf32>
    %c2_88 = arith.constant 2 : index
    %c4_89 = arith.constant 4 : index
    %c0_90 = arith.constant 0 : index
    %97 = vector.load %arg11[%c2_88, %c4_89, %c0_90] : memref<12x20x32xbf16, #tpu.memory_space<vmem>>, vector<8x16x32xbf16>
    %98 = vector.shape_cast %97 : vector<8x16x32xbf16> to vector<128x32xbf16>
    %c5 = arith.constant 5 : index
    %c0_91 = arith.constant 0 : index
    %c0_92 = arith.constant 0 : index
    %99 = vector.load %arg5[%c5, %c0_91, %c0_92] : memref<9x32x32xbf16, #tpu.memory_space<vmem>>, vector<1x32x32xbf16>
    %100 = vector.shape_cast %99 : vector<1x32x32xbf16> to vector<32x32xbf16>
    %cst_93 = arith.constant dense<0.000000e+00> : vector<128x32xf32>
    %101 = tpu.matmul %98, %100, %cst_93 {dimension_numbers = #tpu.dot_dimension_numbers<[1], [0], [0], [1], [0, 0, 1, 1], [], []>} : vector<128x32xbf16>, vector<32x32xbf16>, vector<128x32xf32> -> vector<128x32xf32>
    %102 = arith.addf %96, %101 : vector<128x32xf32>
    %c4_94 = arith.constant 4 : index
    %c0_95 = arith.constant 0 : index
    %c0_96 = arith.constant 0 : index
    %103 = vector.load %arg11[%c4_94, %c0_95, %c0_96] : memref<12x20x32xbf16, #tpu.memory_space<vmem>>, vector<8x16x32xbf16>
    %104 = vector.shape_cast %103 : vector<8x16x32xbf16> to vector<128x32xbf16>
    %c6 = arith.constant 6 : index
    %c0_97 = arith.constant 0 : index
    %c0_98 = arith.constant 0 : index
    %105 = vector.load %arg5[%c6, %c0_97, %c0_98] : memref<9x32x32xbf16, #tpu.memory_space<vmem>>, vector<1x32x32xbf16>
    %106 = vector.shape_cast %105 : vector<1x32x32xbf16> to vector<32x32xbf16>
    %cst_99 = arith.constant dense<0.000000e+00> : vector<128x32xf32>
    %107 = tpu.matmul %104, %106, %cst_99 {dimension_numbers = #tpu.dot_dimension_numbers<[1], [0], [0], [1], [0, 0, 1, 1], [], []>} : vector<128x32xbf16>, vector<32x32xbf16>, vector<128x32xf32> -> vector<128x32xf32>
    %108 = arith.addf %102, %107 : vector<128x32xf32>
    %c4_100 = arith.constant 4 : index
    %c2_101 = arith.constant 2 : index
    %c0_102 = arith.constant 0 : index
    %109 = vector.load %arg11[%c4_100, %c2_101, %c0_102] : memref<12x20x32xbf16, #tpu.memory_space<vmem>>, vector<8x16x32xbf16>
    %110 = vector.shape_cast %109 : vector<8x16x32xbf16> to vector<128x32xbf16>
    %c7 = arith.constant 7 : index
    %c0_103 = arith.constant 0 : index
    %c0_104 = arith.constant 0 : index
    %111 = vector.load %arg5[%c7, %c0_103, %c0_104] : memref<9x32x32xbf16, #tpu.memory_space<vmem>>, vector<1x32x32xbf16>
    %112 = vector.shape_cast %111 : vector<1x32x32xbf16> to vector<32x32xbf16>
    %cst_105 = arith.constant dense<0.000000e+00> : vector<128x32xf32>
    %113 = tpu.matmul %110, %112, %cst_105 {dimension_numbers = #tpu.dot_dimension_numbers<[1], [0], [0], [1], [0, 0, 1, 1], [], []>} : vector<128x32xbf16>, vector<32x32xbf16>, vector<128x32xf32> -> vector<128x32xf32>
    %114 = arith.addf %108, %113 : vector<128x32xf32>
    %c4_106 = arith.constant 4 : index
    %c4_107 = arith.constant 4 : index
    %c0_108 = arith.constant 0 : index
    %115 = vector.load %arg11[%c4_106, %c4_107, %c0_108] : memref<12x20x32xbf16, #tpu.memory_space<vmem>>, vector<8x16x32xbf16>
    %116 = vector.shape_cast %115 : vector<8x16x32xbf16> to vector<128x32xbf16>
    %c8 = arith.constant 8 : index
    %c0_109 = arith.constant 0 : index
    %c0_110 = arith.constant 0 : index
    %117 = vector.load %arg5[%c8, %c0_109, %c0_110] : memref<9x32x32xbf16, #tpu.memory_space<vmem>>, vector<1x32x32xbf16>
    %118 = vector.shape_cast %117 : vector<1x32x32xbf16> to vector<32x32xbf16>
    %cst_111 = arith.constant dense<0.000000e+00> : vector<128x32xf32>
    %119 = tpu.matmul %116, %118, %cst_111 {dimension_numbers = #tpu.dot_dimension_numbers<[1], [0], [0], [1], [0, 0, 1, 1], [], []>} : vector<128x32xbf16>, vector<32x32xbf16>, vector<128x32xf32> -> vector<128x32xf32>
    %120 = arith.addf %114, %119 : vector<128x32xf32>
    %cst_112 = arith.constant 0.000000e+00 : f32
    %121 = vector.broadcast %cst_112 : f32 to vector<128x32xf32>
    %122 = arith.maximumf %120, %121 : vector<128x32xf32>
    %123 = arith.truncf %122 : vector<128x32xf32> to vector<128x32xbf16>
    %c0_113 = arith.constant 0 : index
    %c0_114 = arith.constant 0 : index
    %124 = vector.load %arg6[%c0_113, %c0_114] : memref<32x128xbf16, #tpu.memory_space<vmem>>, vector<32x128xbf16>
    %cst_115 = arith.constant dense<0.000000e+00> : vector<128x128xf32>
    %125 = tpu.matmul %123, %124, %cst_115 {dimension_numbers = #tpu.dot_dimension_numbers<[1], [0], [0], [1], [0, 0, 1, 1], [], []>} : vector<128x32xbf16>, vector<32x128xbf16>, vector<128x128xf32> -> vector<128x128xf32>
    %c0_116 = arith.constant 0 : index
    %c0_117 = arith.constant 0 : index
    %126 = vector.load %arg9[%c0_116, %c0_117] : memref<1x128xf32, #tpu.memory_space<vmem>>, vector<1x128xf32>
    %127 = vector.broadcast %126 : vector<1x128xf32> to vector<128x128xf32>
    %128 = arith.addf %125, %127 : vector<128x128xf32>
    %129 = vector.shape_cast %21 : vector<8x16x128xf32> to vector<128x128xf32>
    %130 = arith.addf %128, %129 : vector<128x128xf32>
    %cst_118 = arith.constant 0.000000e+00 : f32
    %131 = vector.broadcast %cst_118 : f32 to vector<128x128xf32>
    %132 = arith.maximumf %130, %131 : vector<128x128xf32>
    %133 = vector.shape_cast %132 : vector<128x128xf32> to vector<1x8x16x128xf32>
    %c0_119 = arith.constant 0 : index
    %c0_120 = arith.constant 0 : index
    %c0_121 = arith.constant 0 : index
    %c0_122 = arith.constant 0 : index
    %134 = vector.load %arg10[%c0_119, %c0_120, %c0_121, %c0_122] : memref<1x8x16x128xf32, #tpu.memory_space<vmem>>, vector<1x8x16x128xf32>
    tpu.vector_store %arg10[%c0_119, %c0_120, %c0_121, %c0_122], %133 {strides = array<i32>} : memref<1x8x16x128xf32, #tpu.memory_space<vmem>>, vector<1x8x16x128xf32>,
    return
  }
  func.func @transform_0(%arg0: i32, %arg1: i32) -> (i32, i32, i32, i32) {
    %c0_i32 = arith.constant 0 : i32
    %c0_i32_0 = arith.constant 0 : i32
    %c0_i32_1 = arith.constant 0 : i32
    return %arg0, %arg1, %c0_i32, %c0_i32_0 : i32, i32, i32, i32
  }
  func.func @transform_2(%arg0: i32, %arg1: i32) -> (i32, i32) {
    %c0_i32 = arith.constant 0 : i32
    %c0_i32_0 = arith.constant 0 : i32
    %c0_i32_1 = arith.constant 0 : i32
    return %c0_i32, %c0_i32_0 : i32, i32
  }
  func.func @transform_3(%arg0: i32, %arg1: i32) -> (i32, i32, i32) {
    %c0_i32 = arith.constant 0 : i32
    %c0_i32_0 = arith.constant 0 : i32
    %c0_i32_1 = arith.constant 0 : i32
    %c0_i32_2 = arith.constant 0 : i32
    return %c0_i32, %c0_i32_0, %c0_i32_1 : i32, i32, i32
  }
  func.func @transform_4(%arg0: i32, %arg1: i32) -> (i32, i32) {
    %c0_i32 = arith.constant 0 : i32
    %c0_i32_0 = arith.constant 0 : i32
    %c0_i32_1 = arith.constant 0 : i32
    return %c0_i32, %c0_i32_0 : i32, i32
  }
  func.func @transform_5(%arg0: i32, %arg1: i32) -> (i32, i32) {
    %c0_i32 = arith.constant 0 : i32
    %c0_i32_0 = arith.constant 0 : i32
    %c0_i32_1 = arith.constant 0 : i32
    return %c0_i32, %c0_i32_0 : i32, i32
  }
  func.func @transform_6(%arg0: i32, %arg1: i32) -> (i32, i32) {
    %c0_i32 = arith.constant 0 : i32
    %c0_i32_0 = arith.constant 0 : i32
    %c0_i32_1 = arith.constant 0 : i32
    return %c0_i32, %c0_i32_0 : i32, i32
  }
  func.func @transform_7(%arg0: i32, %arg1: i32) -> (i32, i32) {
    %c0_i32 = arith.constant 0 : i32
    %c0_i32_0 = arith.constant 0 : i32
    %c0_i32_1 = arith.constant 0 : i32
    return %c0_i32, %c0_i32_0 : i32, i32
  }
  func.func @transform_8(%arg0: i32, %arg1: i32) -> (i32, i32, i32, i32) {
    %c0_i32 = arith.constant 0 : i32
    %c0_i32_0 = arith.constant 0 : i32
    %c0_i32_1 = arith.constant 0 : i32
    return %arg0, %arg1, %c0_i32, %c0_i32_0 : i32, i32, i32, i32
  }
}

module attributes {stable_mosaic.version = 11 : i64} {
  func.func @_bottleneck_kernel(%arg0: i32, %arg1: i32, %arg2: memref<1x8x16x128xf32, #tpu.memory_space<vmem>>, %arg3: memref<2x16x16x128xf32, #tpu.memory_space<any>>, %arg4: memref<128x32xbf16, #tpu.memory_space<vmem>>, %arg5: memref<9x32x32xbf16, #tpu.memory_space<vmem>>, %arg6: memref<32x128xbf16, #tpu.memory_space<vmem>>, %arg7: memref<1x32xf32, #tpu.memory_space<vmem>>, %arg8: memref<1x32xf32, #tpu.memory_space<vmem>>, %arg9: memref<1x128xf32, #tpu.memory_space<vmem>>, %arg10: memref<1x8x16x128xf32, #tpu.memory_space<vmem>>, %arg11: memref<12x20x32xbf16, #tpu.memory_space<vmem>>, %arg12: memref<4x16x128xf32, #tpu.memory_space<vmem>>, %arg13: memref<2x!tpu.dma_semaphore, #tpu.memory_space<semaphore_mem>>) attributes {dimension_semantics = [#tpu.dimension_semantics<parallel>, #tpu.dimension_semantics<parallel>], iteration_bounds = array<i64: 2, 2>, scalar_prefetch = 0 : i64, scratch_operands = 3 : i64, tpu.core_type = #tpu.core_type<tc>, window_params = [{transform_indices = @transform_0, window_bounds = array<i64: 1, 8, 16, 128>}, {}, {pipeline_mode = #tpu.pipeline_mode<synchronous>, transform_indices = @transform_2, window_bounds = array<i64: 128, 32>}, {pipeline_mode = #tpu.pipeline_mode<synchronous>, transform_indices = @transform_3, window_bounds = array<i64: 9, 32, 32>}, {pipeline_mode = #tpu.pipeline_mode<synchronous>, transform_indices = @transform_4, window_bounds = array<i64: 32, 128>}, {pipeline_mode = #tpu.pipeline_mode<synchronous>, transform_indices = @transform_5, window_bounds = array<i64: 1, 32>}, {pipeline_mode = #tpu.pipeline_mode<synchronous>, transform_indices = @transform_6, window_bounds = array<i64: 1, 32>}, {pipeline_mode = #tpu.pipeline_mode<synchronous>, transform_indices = @transform_7, window_bounds = array<i64: 1, 128>}, {transform_indices = @transform_8, window_bounds = array<i64: 1, 8, 16, 128>}]} {
    %c8_i32 = arith.constant 8 : i32
    %0 = arith.muli %arg1, %c8_i32 : i32
    %c2_i32 = arith.constant 2 : i32
    %1 = arith.subi %0, %c2_i32 : i32
    %c0_i32 = arith.constant 0 : i32
    %2 = arith.maxsi %1, %c0_i32 : i32
    %c8_i32_0 = arith.constant 8 : i32
    %3 = arith.addi %0, %c8_i32_0 : i32
    %c14_i32 = arith.constant 14 : i32
    %4 = arith.minsi %3, %c14_i32 : i32
    %c0_i32_1 = arith.constant 0 : i32
    %c0_i32_2 = arith.constant 0 : i32
    %c0_i32_3 = arith.constant 0 : i32
    %5 = tpu.memref_slice %arg3[%arg0, %2, %c0_i32_2, %c0_i32_3] : memref<2x16x16x128xf32, #tpu.memory_space<any>> -> memref<1x2x16x128xf32, #tpu.memory_space<any>>
    %6 = tpu.memref_squeeze %5 : memref<1x2x16x128xf32, #tpu.memory_space<any>> -> memref<2x16x128xf32, #tpu.memory_space<any>>
    %c0_i32_4 = arith.constant 0 : i32
    %c0_i32_5 = arith.constant 0 : i32
    %c0_i32_6 = arith.constant 0 : i32
    %7 = tpu.memref_slice %arg12[%c0_i32_4, %c0_i32_5, %c0_i32_6] : memref<4x16x128xf32, #tpu.memory_space<vmem>> -> memref<2x16x128xf32, #tpu.memory_space<vmem>>
    %8 = tpu.memref_slice %arg13[%c0_i32_1] : memref<2x!tpu.dma_semaphore, #tpu.memory_space<semaphore_mem>> -> memref<1x!tpu.dma_semaphore, #tpu.memory_space<semaphore_mem>>
    %9 = tpu.memref_squeeze %8 : memref<1x!tpu.dma_semaphore, #tpu.memory_space<semaphore_mem>> -> memref<!tpu.dma_semaphore, #tpu.memory_space<semaphore_mem>>
    tpu.enqueue_dma source(%6 : memref<2x16x128xf32, #tpu.memory_space<any>>) target(%7 : memref<2x16x128xf32, #tpu.memory_space<vmem>>) target_semaphore(%9 : memref<!tpu.dma_semaphore, #tpu.memory_space<semaphore_mem>>)
    %c1_i32 = arith.constant 1 : i32
    %c0_i32_7 = arith.constant 0 : i32
    %c0_i32_8 = arith.constant 0 : i32
    %10 = tpu.memref_slice %arg3[%arg0, %4, %c0_i32_7, %c0_i32_8] : memref<2x16x16x128xf32, #tpu.memory_space<any>> -> memref<1x2x16x128xf32, #tpu.memory_space<any>>
    %11 = tpu.memref_squeeze %10 : memref<1x2x16x128xf32, #tpu.memory_space<any>> -> memref<2x16x128xf32, #tpu.memory_space<any>>
    %c2_i32_9 = arith.constant 2 : i32
    %c0_i32_10 = arith.constant 0 : i32
    %c0_i32_11 = arith.constant 0 : i32
    %12 = tpu.memref_slice %arg12[%c2_i32_9, %c0_i32_10, %c0_i32_11] : memref<4x16x128xf32, #tpu.memory_space<vmem>> -> memref<2x16x128xf32, #tpu.memory_space<vmem>>
    %13 = tpu.memref_slice %arg13[%c1_i32] : memref<2x!tpu.dma_semaphore, #tpu.memory_space<semaphore_mem>> -> memref<1x!tpu.dma_semaphore, #tpu.memory_space<semaphore_mem>>
    %14 = tpu.memref_squeeze %13 : memref<1x!tpu.dma_semaphore, #tpu.memory_space<semaphore_mem>> -> memref<!tpu.dma_semaphore, #tpu.memory_space<semaphore_mem>>
    tpu.enqueue_dma source(%11 : memref<2x16x128xf32, #tpu.memory_space<any>>) target(%12 : memref<2x16x128xf32, #tpu.memory_space<vmem>>) target_semaphore(%14 : memref<!tpu.dma_semaphore, #tpu.memory_space<semaphore_mem>>)
    %c0 = arith.constant 0 : index
    %c0_12 = arith.constant 0 : index
    %15 = vector.load %arg4[%c0, %c0_12] : memref<128x32xbf16, #tpu.memory_space<vmem>>, vector<128x32xbf16>
    %c0_13 = arith.constant 0 : index
    %c0_14 = arith.constant 0 : index
    %16 = vector.load %arg7[%c0_13, %c0_14] : memref<1x32xf32, #tpu.memory_space<vmem>>, vector<1x32xf32>
    %cst = arith.constant 0.000000e+00 : bf16
    %17 = vector.broadcast %cst : bf16 to vector<12x2x32xbf16>
    %c0_15 = arith.constant 0 : index
    %c0_16 = arith.constant 0 : index
    %c0_17 = arith.constant 0 : index
    %18 = vector.load %arg11[%c0_15, %c0_16, %c0_17] : memref<12x20x32xbf16, #tpu.memory_space<vmem>>, vector<12x2x32xbf16>
    tpu.vector_store %arg11[%c0_15, %c0_16, %c0_17], %17 {strides = array<i32>} : memref<12x20x32xbf16, #tpu.memory_space<vmem>>, vector<12x2x32xbf16>,
    %c0_18 = arith.constant 0 : index
    %c18 = arith.constant 18 : index
    %c0_19 = arith.constant 0 : index
    %19 = vector.load %arg11[%c0_18, %c18, %c0_19] : memref<12x20x32xbf16, #tpu.memory_space<vmem>>, vector<12x2x32xbf16>
    tpu.vector_store %arg11[%c0_18, %c18, %c0_19], %17 {strides = array<i32>} : memref<12x20x32xbf16, #tpu.memory_space<vmem>>, vector<12x2x32xbf16>,
    %c0_20 = arith.constant 0 : index
    %c0_21 = arith.constant 0 : index
    %c0_22 = arith.constant 0 : index
    %c0_23 = arith.constant 0 : index
    %20 = vector.load %arg2[%c0_20, %c0_21, %c0_22, %c0_23] : memref<1x8x16x128xf32, #tpu.memory_space<vmem>>, vector<1x8x16x128xf32>
    %21 = vector.shape_cast %20 : vector<1x8x16x128xf32> to vector<8x16x128xf32>
    %22 = vector.shape_cast %21 : vector<8x16x128xf32> to vector<128x128xf32>
    %23 = arith.truncf %22 : vector<128x128xf32> to vector<128x128xbf16>
    %cst_24 = arith.constant dense<0.000000e+00> : vector<128x32xf32>
    %24 = tpu.matmul %23, %15, %cst_24 {dimension_numbers = #tpu.dot_dimension_numbers<[1], [0], [0], [1], [0, 0, 1, 1], [], []>} : vector<128x128xbf16>, vector<128x32xbf16>, vector<128x32xf32> -> vector<128x32xf32>
    %25 = vector.broadcast %16 : vector<1x32xf32> to vector<128x32xf32>
    %26 = arith.addf %24, %25 : vector<128x32xf32>
    %cst_25 = arith.constant 0.000000e+00 : f32
    %27 = vector.broadcast %cst_25 : f32 to vector<128x32xf32>
    %28 = arith.maximumf %26, %27 : vector<128x32xf32>
    %29 = vector.shape_cast %28 : vector<128x32xf32> to vector<8x16x32xf32>
    %30 = arith.truncf %29 : vector<8x16x32xf32> to vector<8x16x32xbf16>
    %c2 = arith.constant 2 : index
    %c2_26 = arith.constant 2 : index
    %c0_27 = arith.constant 0 : index
    %31 = vector.load %arg11[%c2, %c2_26, %c0_27] : memref<12x20x32xbf16, #tpu.memory_space<vmem>>, vector<8x16x32xbf16>
    tpu.vector_store %arg11[%c2, %c2_26, %c0_27], %30 {strides = array<i32>} : memref<12x20x32xbf16, #tpu.memory_space<vmem>>, vector<8x16x32xbf16>,
    %cst_28 = arith.constant 0.000000e+00 : bf16
    %32 = vector.broadcast %cst_28 : bf16 to vector<2x16x32xbf16>
    %c0_i32_29 = arith.constant 0 : i32
    %c0_i32_30 = arith.constant 0 : i32
    %c0_i32_31 = arith.constant 0 : i32
    %33 = tpu.memref_slice %arg3[%arg0, %2, %c0_i32_30, %c0_i32_31] : memref<2x16x16x128xf32, #tpu.memory_space<any>> -> memref<1x2x16x128xf32, #tpu.memory_space<any>>
    %34 = tpu.memref_squeeze %33 : memref<1x2x16x128xf32, #tpu.memory_space<any>> -> memref<2x16x128xf32, #tpu.memory_space<any>>
    %c0_i32_32 = arith.constant 0 : i32
    %c0_i32_33 = arith.constant 0 : i32
    %c0_i32_34 = arith.constant 0 : i32
    %35 = tpu.memref_slice %arg12[%c0_i32_32, %c0_i32_33, %c0_i32_34] : memref<4x16x128xf32, #tpu.memory_space<vmem>> -> memref<2x16x128xf32, #tpu.memory_space<vmem>>
    %36 = tpu.memref_slice %arg13[%c0_i32_29] : memref<2x!tpu.dma_semaphore, #tpu.memory_space<semaphore_mem>> -> memref<1x!tpu.dma_semaphore, #tpu.memory_space<semaphore_mem>>
    %37 = tpu.memref_squeeze %36 : memref<1x!tpu.dma_semaphore, #tpu.memory_space<semaphore_mem>> -> memref<!tpu.dma_semaphore, #tpu.memory_space<semaphore_mem>>
    tpu.wait_dma2 semaphore(%37 : memref<!tpu.dma_semaphore, #tpu.memory_space<semaphore_mem>>) src(%34 : memref<2x16x128xf32, #tpu.memory_space<any>>) dst(%35 : memref<2x16x128xf32, #tpu.memory_space<vmem>>)
    %c1_i32_35 = arith.constant 1 : i32
    %c0_i32_36 = arith.constant 0 : i32
    %c0_i32_37 = arith.constant 0 : i32
    %38 = tpu.memref_slice %arg3[%arg0, %4, %c0_i32_36, %c0_i32_37] : memref<2x16x16x128xf32, #tpu.memory_space<any>> -> memref<1x2x16x128xf32, #tpu.memory_space<any>>
    %39 = tpu.memref_squeeze %38 : memref<1x2x16x128xf32, #tpu.memory_space<any>> -> memref<2x16x128xf32, #tpu.memory_space<any>>
    %c2_i32_38 = arith.constant 2 : i32
    %c0_i32_39 = arith.constant 0 : i32
    %c0_i32_40 = arith.constant 0 : i32
    %40 = tpu.memref_slice %arg12[%c2_i32_38, %c0_i32_39, %c0_i32_40] : memref<4x16x128xf32, #tpu.memory_space<vmem>> -> memref<2x16x128xf32, #tpu.memory_space<vmem>>
    %41 = tpu.memref_slice %arg13[%c1_i32_35] : memref<2x!tpu.dma_semaphore, #tpu.memory_space<semaphore_mem>> -> memref<1x!tpu.dma_semaphore, #tpu.memory_space<semaphore_mem>>
    %42 = tpu.memref_squeeze %41 : memref<1x!tpu.dma_semaphore, #tpu.memory_space<semaphore_mem>> -> memref<!tpu.dma_semaphore, #tpu.memory_space<semaphore_mem>>
    tpu.wait_dma2 semaphore(%42 : memref<!tpu.dma_semaphore, #tpu.memory_space<semaphore_mem>>) src(%39 : memref<2x16x128xf32, #tpu.memory_space<any>>) dst(%40 : memref<2x16x128xf32, #tpu.memory_space<vmem>>)
    %c0_41 = arith.constant 0 : index
    %c0_42 = arith.constant 0 : index
    %c0_43 = arith.constant 0 : index
    %43 = vector.load %arg12[%c0_41, %c0_42, %c0_43] : memref<4x16x128xf32, #tpu.memory_space<vmem>>, vector<4x16x128xf32>
    %44 = vector.shape_cast %43 : vector<4x16x128xf32> to vector<64x128xf32>
    %45 = arith.truncf %44 : vector<64x128xf32> to vector<64x128xbf16>
    %cst_44 = arith.constant dense<0.000000e+00> : vector<64x32xf32>
    %46 = tpu.matmul %45, %15, %cst_44 {dimension_numbers = #tpu.dot_dimension_numbers<[1], [0], [0], [1], [0, 0, 1, 1], [], []>} : vector<64x128xbf16>, vector<128x32xbf16>, vector<64x32xf32> -> vector<64x32xf32>
    %47 = vector.broadcast %16 : vector<1x32xf32> to vector<64x32xf32>
    %48 = arith.addf %46, %47 : vector<64x32xf32>
    %cst_45 = arith.constant 0.000000e+00 : f32
    %49 = vector.broadcast %cst_45 : f32 to vector<64x32xf32>
    %50 = arith.maximumf %48, %49 : vector<64x32xf32>
    %51 = vector.shape_cast %50 : vector<64x32xf32> to vector<4x16x32xf32>
    %52 = arith.truncf %51 : vector<4x16x32xf32> to vector<4x16x32xbf16>
    %c0_i32_46 = arith.constant 0 : i32
    %53 = arith.cmpi sgt, %arg1, %c0_i32_46 : i32
    %54 = arith.extui %53 : i1 to i32
    %c0_i32_47 = arith.constant 0 : i32
    %55 = arith.cmpi ne, %54, %c0_i32_47 : i32
    scf.if %55 {
      %135 = vector.extract_strided_slice %52 {offsets = [0, 0, 0], sizes = [2, 16, 32], strides = [1, 1, 1]} : vector<4x16x32xbf16> to vector<2x16x32xbf16>
      %c0_123 = arith.constant 0 : index
      %c2_124 = arith.constant 2 : index
      %c0_125 = arith.constant 0 : index
      %136 = vector.load %arg11[%c0_123, %c2_124, %c0_125] : memref<12x20x32xbf16, #tpu.memory_space<vmem>>, vector<2x16x32xbf16>
      tpu.vector_store %arg11[%c0_123, %c2_124, %c0_125], %135 {strides = array<i32>} : memref<12x20x32xbf16, #tpu.memory_space<vmem>>, vector<2x16x32xbf16>,
    } else {
    }
    %c0_i32_48 = arith.constant 0 : i32
    %56 = arith.cmpi eq, %arg1, %c0_i32_48 : i32
    %57 = arith.extui %56 : i1 to i32
    %c0_i32_49 = arith.constant 0 : i32
    %58 = arith.cmpi ne, %57, %c0_i32_49 : i32
    scf.if %58 {
      %c0_123 = arith.constant 0 : index
      %c2_124 = arith.constant 2 : index
      %c0_125 = arith.constant 0 : index
      %135 = vector.load %arg11[%c0_123, %c2_124, %c0_125] : memref<12x20x32xbf16, #tpu.memory_space<vmem>>, vector<2x16x32xbf16>
      tpu.vector_store %arg11[%c0_123, %c2_124, %c0_125], %32 {strides = array<i32>} : memref<12x20x32xbf16, #tpu.memory_space<vmem>>, vector<2x16x32xbf16>,
    } else {
    }
    %c1_i32_50 = arith.constant 1 : i32
    %59 = arith.cmpi slt, %arg1, %c1_i32_50 : i32
    %60 = arith.extui %59 : i1 to i32
    %c0_i32_51 = arith.constant 0 : i32
    %61 = arith.cmpi ne, %60, %c0_i32_51 : i32
    scf.if %61 {
      %135 = vector.extract_strided_slice %52 {offsets = [2, 0, 0], sizes = [2, 16, 32], strides = [1, 1, 1]} : vector<4x16x32xbf16> to vector<2x16x32xbf16>
      %c10 = arith.constant 10 : index
      %c2_123 = arith.constant 2 : index
      %c0_124 = arith.constant 0 : index
      %136 = vector.load %arg11[%c10, %c2_123, %c0_124] : memref<12x20x32xbf16, #tpu.memory_space<vmem>>, vector<2x16x32xbf16>
      tpu.vector_store %arg11[%c10, %c2_123, %c0_124], %135 {strides = array<i32>} : memref<12x20x32xbf16, #tpu.memory_space<vmem>>, vector<2x16x32xbf16>,
    } else {
    }
    %c1_i32_52 = arith.constant 1 : i32
    %62 = arith.cmpi eq, %arg1, %c1_i32_52 : i32
    %63 = arith.extui %62 : i1 to i32
    %c0_i32_53 = arith.constant 0 : i32
    %64 = arith.cmpi ne, %63, %c0_i32_53 : i32
    scf.if %64 {
      %c10 = arith.constant 10 : index
      %c2_123 = arith.constant 2 : index
      %c0_124 = arith.constant 0 : index
      %135 = vector.load %arg11[%c10, %c2_123, %c0_124] : memref<12x20x32xbf16, #tpu.memory_space<vmem>>, vector<2x16x32xbf16>
      tpu.vector_store %arg11[%c10, %c2_123, %c0_124], %32 {strides = array<i32>} : memref<12x20x32xbf16, #tpu.memory_space<vmem>>, vector<2x16x32xbf16>,
    } else {
    }
    %c0_54 = arith.constant 0 : index
    %c0_55 = arith.constant 0 : index
    %65 = vector.load %arg8[%c0_54, %c0_55] : memref<1x32xf32, #tpu.memory_space<vmem>>, vector<1x32xf32>
    %c0_56 = arith.constant 0 : index
    %c0_57 = arith.constant 0 : index
    %c0_58 = arith.constant 0 : index
    %66 = vector.load %arg11[%c0_56, %c0_57, %c0_58] : memref<12x20x32xbf16, #tpu.memory_space<vmem>>, vector<8x16x32xbf16>
    %67 = vector.shape_cast %66 : vector<8x16x32xbf16> to vector<128x32xbf16>
    %c0_59 = arith.constant 0 : index
    %c0_60 = arith.constant 0 : index
    %c0_61 = arith.constant 0 : index
    %68 = vector.load %arg5[%c0_59, %c0_60, %c0_61] : memref<9x32x32xbf16, #tpu.memory_space<vmem>>, vector<1x32x32xbf16>
    %69 = vector.shape_cast %68 : vector<1x32x32xbf16> to vector<32x32xbf16>
    %cst_62 = arith.constant dense<0.000000e+00> : vector<128x32xf32>
    %70 = tpu.matmul %67, %69, %cst_62 {dimension_numbers = #tpu.dot_dimension_numbers<[1], [0], [0], [1], [0, 0, 1, 1], [], []>} : vector<128x32xbf16>, vector<32x32xbf16>, vector<128x32xf32> -> vector<128x32xf32>
    %71 = vector.broadcast %65 : vector<1x32xf32> to vector<128x32xf32>
    %72 = arith.addf %71, %70 : vector<128x32xf32>
    %c0_63 = arith.constant 0 : index
    %c2_64 = arith.constant 2 : index
    %c0_65 = arith.constant 0 : index
    %73 = vector.load %arg11[%c0_63, %c2_64, %c0_65] : memref<12x20x32xbf16, #tpu.memory_space<vmem>>, vector<8x16x32xbf16>
    %74 = vector.shape_cast %73 : vector<8x16x32xbf16> to vector<128x32xbf16>
    %c1 = arith.constant 1 : index
    %c0_66 = arith.constant 0 : index
    %c0_67 = arith.constant 0 : index
    %75 = vector.load %arg5[%c1, %c0_66, %c0_67] : memref<9x32x32xbf16, #tpu.memory_space<vmem>>, vector<1x32x32xbf16>
    %76 = vector.shape_cast %75 : vector<1x32x32xbf16> to vector<32x32xbf16>
    %cst_68 = arith.constant dense<0.000000e+00> : vector<128x32xf32>
    %77 = tpu.matmul %74, %76, %cst_68 {dimension_numbers = #tpu.dot_dimension_numbers<[1], [0], [0], [1], [0, 0, 1, 1], [], []>} : vector<128x32xbf16>, vector<32x32xbf16>, vector<128x32xf32> -> vector<128x32xf32>
    %78 = arith.addf %72, %77 : vector<128x32xf32>
    %c0_69 = arith.constant 0 : index
    %c4 = arith.constant 4 : index
    %c0_70 = arith.constant 0 : index
    %79 = vector.load %arg11[%c0_69, %c4, %c0_70] : memref<12x20x32xbf16, #tpu.memory_space<vmem>>, vector<8x16x32xbf16>
    %80 = vector.shape_cast %79 : vector<8x16x32xbf16> to vector<128x32xbf16>
    %c2_71 = arith.constant 2 : index
    %c0_72 = arith.constant 0 : index
    %c0_73 = arith.constant 0 : index
    %81 = vector.load %arg5[%c2_71, %c0_72, %c0_73] : memref<9x32x32xbf16, #tpu.memory_space<vmem>>, vector<1x32x32xbf16>
    %82 = vector.shape_cast %81 : vector<1x32x32xbf16> to vector<32x32xbf16>
    %cst_74 = arith.constant dense<0.000000e+00> : vector<128x32xf32>
    %83 = tpu.matmul %80, %82, %cst_74 {dimension_numbers = #tpu.dot_dimension_numbers<[1], [0], [0], [1], [0, 0, 1, 1], [], []>} : vector<128x32xbf16>, vector<32x32xbf16>, vector<128x32xf32> -> vector<128x32xf32>
    %84 = arith.addf %78, %83 : vector<128x32xf32>
    %c2_75 = arith.constant 2 : index
    %c0_76 = arith.constant 0 : index
    %c0_77 = arith.constant 0 : index
    %85 = vector.load %arg11[%c2_75, %c0_76, %c0_77] : memref<12x20x32xbf16, #tpu.memory_space<vmem>>, vector<8x16x32xbf16>
    %86 = vector.shape_cast %85 : vector<8x16x32xbf16> to vector<128x32xbf16>
    %c3 = arith.constant 3 : index
    %c0_78 = arith.constant 0 : index
    %c0_79 = arith.constant 0 : index
    %87 = vector.load %arg5[%c3, %c0_78, %c0_79] : memref<9x32x32xbf16, #tpu.memory_space<vmem>>, vector<1x32x32xbf16>
    %88 = vector.shape_cast %87 : vector<1x32x32xbf16> to vector<32x32xbf16>
    %cst_80 = arith.constant dense<0.000000e+00> : vector<128x32xf32>
    %89 = tpu.matmul %86, %88, %cst_80 {dimension_numbers = #tpu.dot_dimension_numbers<[1], [0], [0], [1], [0, 0, 1, 1], [], []>} : vector<128x32xbf16>, vector<32x32xbf16>, vector<128x32xf32> -> vector<128x32xf32>
    %90 = arith.addf %84, %89 : vector<128x32xf32>
    %c2_81 = arith.constant 2 : index
    %c2_82 = arith.constant 2 : index
    %c0_83 = arith.constant 0 : index
    %91 = vector.load %arg11[%c2_81, %c2_82, %c0_83] : memref<12x20x32xbf16, #tpu.memory_space<vmem>>, vector<8x16x32xbf16>
    %92 = vector.shape_cast %91 : vector<8x16x32xbf16> to vector<128x32xbf16>
    %c4_84 = arith.constant 4 : index
    %c0_85 = arith.constant 0 : index
    %c0_86 = arith.constant 0 : index
    %93 = vector.load %arg5[%c4_84, %c0_85, %c0_86] : memref<9x32x32xbf16, #tpu.memory_space<vmem>>, vector<1x32x32xbf16>
    %94 = vector.shape_cast %93 : vector<1x32x32xbf16> to vector<32x32xbf16>
    %cst_87 = arith.constant dense<0.000000e+00> : vector<128x32xf32>
    %95 = tpu.matmul %92, %94, %cst_87 {dimension_numbers = #tpu.dot_dimension_numbers<[1], [0], [0], [1], [0, 0, 1, 1], [], []>} : vector<128x32xbf16>, vector<32x32xbf16>, vector<128x32xf32> -> vector<128x32xf32>
    %96 = arith.addf %90, %95 : vector<128x32xf32>
    %c2_88 = arith.constant 2 : index
    %c4_89 = arith.constant 4 : index
    %c0_90 = arith.constant 0 : index
    %97 = vector.load %arg11[%c2_88, %c4_89, %c0_90] : memref<12x20x32xbf16, #tpu.memory_space<vmem>>, vector<8x16x32xbf16>
    %98 = vector.shape_cast %97 : vector<8x16x32xbf16> to vector<128x32xbf16>
    %c5 = arith.constant 5 : index
    %c0_91 = arith.constant 0 : index
    %c0_92 = arith.constant 0 : index
    %99 = vector.load %arg5[%c5, %c0_91, %c0_92] : memref<9x32x32xbf16, #tpu.memory_space<vmem>>, vector<1x32x32xbf16>
    %100 = vector.shape_cast %99 : vector<1x32x32xbf16> to vector<32x32xbf16>
    %cst_93 = arith.constant dense<0.000000e+00> : vector<128x32xf32>
    %101 = tpu.matmul %98, %100, %cst_93 {dimension_numbers = #tpu.dot_dimension_numbers<[1], [0], [0], [1], [0, 0, 1, 1], [], []>} : vector<128x32xbf16>, vector<32x32xbf16>, vector<128x32xf32> -> vector<128x32xf32>
    %102 = arith.addf %96, %101 : vector<128x32xf32>
    %c4_94 = arith.constant 4 : index
    %c0_95 = arith.constant 0 : index
    %c0_96 = arith.constant 0 : index
    %103 = vector.load %arg11[%c4_94, %c0_95, %c0_96] : memref<12x20x32xbf16, #tpu.memory_space<vmem>>, vector<8x16x32xbf16>
    %104 = vector.shape_cast %103 : vector<8x16x32xbf16> to vector<128x32xbf16>
    %c6 = arith.constant 6 : index
    %c0_97 = arith.constant 0 : index
    %c0_98 = arith.constant 0 : index
    %105 = vector.load %arg5[%c6, %c0_97, %c0_98] : memref<9x32x32xbf16, #tpu.memory_space<vmem>>, vector<1x32x32xbf16>
    %106 = vector.shape_cast %105 : vector<1x32x32xbf16> to vector<32x32xbf16>
    %cst_99 = arith.constant dense<0.000000e+00> : vector<128x32xf32>
    %107 = tpu.matmul %104, %106, %cst_99 {dimension_numbers = #tpu.dot_dimension_numbers<[1], [0], [0], [1], [0, 0, 1, 1], [], []>} : vector<128x32xbf16>, vector<32x32xbf16>, vector<128x32xf32> -> vector<128x32xf32>
    %108 = arith.addf %102, %107 : vector<128x32xf32>
    %c4_100 = arith.constant 4 : index
    %c2_101 = arith.constant 2 : index
    %c0_102 = arith.constant 0 : index
    %109 = vector.load %arg11[%c4_100, %c2_101, %c0_102] : memref<12x20x32xbf16, #tpu.memory_space<vmem>>, vector<8x16x32xbf16>
    %110 = vector.shape_cast %109 : vector<8x16x32xbf16> to vector<128x32xbf16>
    %c7 = arith.constant 7 : index
    %c0_103 = arith.constant 0 : index
    %c0_104 = arith.constant 0 : index
    %111 = vector.load %arg5[%c7, %c0_103, %c0_104] : memref<9x32x32xbf16, #tpu.memory_space<vmem>>, vector<1x32x32xbf16>
    %112 = vector.shape_cast %111 : vector<1x32x32xbf16> to vector<32x32xbf16>
    %cst_105 = arith.constant dense<0.000000e+00> : vector<128x32xf32>
    %113 = tpu.matmul %110, %112, %cst_105 {dimension_numbers = #tpu.dot_dimension_numbers<[1], [0], [0], [1], [0, 0, 1, 1], [], []>} : vector<128x32xbf16>, vector<32x32xbf16>, vector<128x32xf32> -> vector<128x32xf32>
    %114 = arith.addf %108, %113 : vector<128x32xf32>
    %c4_106 = arith.constant 4 : index
    %c4_107 = arith.constant 4 : index
    %c0_108 = arith.constant 0 : index
    %115 = vector.load %arg11[%c4_106, %c4_107, %c0_108] : memref<12x20x32xbf16, #tpu.memory_space<vmem>>, vector<8x16x32xbf16>
    %116 = vector.shape_cast %115 : vector<8x16x32xbf16> to vector<128x32xbf16>
    %c8 = arith.constant 8 : index
    %c0_109 = arith.constant 0 : index
    %c0_110 = arith.constant 0 : index
    %117 = vector.load %arg5[%c8, %c0_109, %c0_110] : memref<9x32x32xbf16, #tpu.memory_space<vmem>>, vector<1x32x32xbf16>
    %118 = vector.shape_cast %117 : vector<1x32x32xbf16> to vector<32x32xbf16>
    %cst_111 = arith.constant dense<0.000000e+00> : vector<128x32xf32>
    %119 = tpu.matmul %116, %118, %cst_111 {dimension_numbers = #tpu.dot_dimension_numbers<[1], [0], [0], [1], [0, 0, 1, 1], [], []>} : vector<128x32xbf16>, vector<32x32xbf16>, vector<128x32xf32> -> vector<128x32xf32>
    %120 = arith.addf %114, %119 : vector<128x32xf32>
    %cst_112 = arith.constant 0.000000e+00 : f32
    %121 = vector.broadcast %cst_112 : f32 to vector<128x32xf32>
    %122 = arith.maximumf %120, %121 : vector<128x32xf32>
    %123 = arith.truncf %122 : vector<128x32xf32> to vector<128x32xbf16>
    %c0_113 = arith.constant 0 : index
    %c0_114 = arith.constant 0 : index
    %124 = vector.load %arg6[%c0_113, %c0_114] : memref<32x128xbf16, #tpu.memory_space<vmem>>, vector<32x128xbf16>
    %cst_115 = arith.constant dense<0.000000e+00> : vector<128x128xf32>
    %125 = tpu.matmul %123, %124, %cst_115 {dimension_numbers = #tpu.dot_dimension_numbers<[1], [0], [0], [1], [0, 0, 1, 1], [], []>} : vector<128x32xbf16>, vector<32x128xbf16>, vector<128x128xf32> -> vector<128x128xf32>
    %c0_116 = arith.constant 0 : index
    %c0_117 = arith.constant 0 : index
    %126 = vector.load %arg9[%c0_116, %c0_117] : memref<1x128xf32, #tpu.memory_space<vmem>>, vector<1x128xf32>
    %127 = vector.broadcast %126 : vector<1x128xf32> to vector<128x128xf32>
    %128 = arith.addf %125, %127 : vector<128x128xf32>
    %129 = vector.shape_cast %21 : vector<8x16x128xf32> to vector<128x128xf32>
    %130 = arith.addf %128, %129 : vector<128x128xf32>
    %cst_118 = arith.constant 0.000000e+00 : f32
    %131 = vector.broadcast %cst_118 : f32 to vector<128x128xf32>
    %132 = arith.maximumf %130, %131 : vector<128x128xf32>
    %133 = vector.shape_cast %132 : vector<128x128xf32> to vector<1x8x16x128xf32>
    %c0_119 = arith.constant 0 : index
    %c0_120 = arith.constant 0 : index
    %c0_121 = arith.constant 0 : index
    %c0_122 = arith.constant 0 : index
    %134 = vector.load %arg10[%c0_119, %c0_120, %c0_121, %c0_122] : memref<1x8x16x128xf32, #tpu.memory_space<vmem>>, vector<1x8x16x128xf32>
    tpu.vector_store %arg10[%c0_119, %c0_120, %c0_121, %c0_122], %133 {strides = array<i32>} : memref<1x8x16x128xf32, #tpu.memory_space<vmem>>, vector<1x8x16x128xf32>,
    return
  }
  func.func @transform_0(%arg0: i32, %arg1: i32) -> (i32, i32, i32, i32) {
    %c0_i32 = arith.constant 0 : i32
    %c0_i32_0 = arith.constant 0 : i32
    %c0_i32_1 = arith.constant 0 : i32
    return %arg0, %arg1, %c0_i32, %c0_i32_0 : i32, i32, i32, i32
  }
  func.func @transform_2(%arg0: i32, %arg1: i32) -> (i32, i32) {
    %c0_i32 = arith.constant 0 : i32
    %c0_i32_0 = arith.constant 0 : i32
    %c0_i32_1 = arith.constant 0 : i32
    return %c0_i32, %c0_i32_0 : i32, i32
  }
  func.func @transform_3(%arg0: i32, %arg1: i32) -> (i32, i32, i32) {
    %c0_i32 = arith.constant 0 : i32
    %c0_i32_0 = arith.constant 0 : i32
    %c0_i32_1 = arith.constant 0 : i32
    %c0_i32_2 = arith.constant 0 : i32
    return %c0_i32, %c0_i32_0, %c0_i32_1 : i32, i32, i32
  }
  func.func @transform_4(%arg0: i32, %arg1: i32) -> (i32, i32) {
    %c0_i32 = arith.constant 0 : i32
    %c0_i32_0 = arith.constant 0 : i32
    %c0_i32_1 = arith.constant 0 : i32
    return %c0_i32, %c0_i32_0 : i32, i32
  }
  func.func @transform_5(%arg0: i32, %arg1: i32) -> (i32, i32) {
    %c0_i32 = arith.constant 0 : i32
    %c0_i32_0 = arith.constant 0 : i32
    %c0_i32_1 = arith.constant 0 : i32
    return %c0_i32, %c0_i32_0 : i32, i32
  }
  func.func @transform_6(%arg0: i32, %arg1: i32) -> (i32, i32) {
    %c0_i32 = arith.constant 0 : i32
    %c0_i32_0 = arith.constant 0 : i32
    %c0_i32_1 = arith.constant 0 : i32
    return %c0_i32, %c0_i32_0 : i32, i32
  }
  func.func @transform_7(%arg0: i32, %arg1: i32) -> (i32, i32) {
    %c0_i32 = arith.constant 0 : i32
    %c0_i32_0 = arith.constant 0 : i32
    %c0_i32_1 = arith.constant 0 : i32
    return %c0_i32, %c0_i32_0 : i32, i32
  }
  func.func @transform_8(%arg0: i32, %arg1: i32) -> (i32, i32, i32, i32) {
    %c0_i32 = arith.constant 0 : i32
    %c0_i32_0 = arith.constant 0 : i32
    %c0_i32_1 = arith.constant 0 : i32
    return %arg0, %arg1, %c0_i32, %c0_i32_0 : i32, i32, i32, i32
  }
}

</mosaic_0001>

<llo_original>
// kernel: tpu_custom_call.1
$region0: #{tpu_custom_call.1}
  #allocation0 [shape = 'u32[]', space=smem, size = 0x4, offset = 0x4, fixed_abs, tag = 'smem constant byte address 0x4 - core index']
  #allocation1 [shape = 'u32[144,128]{1,0:T(1,128)}', space=vmem, size = 0x12000, scoped, tag = 'internal scratch']
  #allocation2 [shape = 'bf16[12,20,32]{2,1,0:T(8,128)(2,1)}', space=vmem, size = 0x12000, scoped, tag = 'scratch operand']
  #allocation3 [shape = 'f32[4,16,128]{2,1,0:T(8,128)}', space=vmem, size = 0x8000, scoped, tag = 'scratch operand']
  #allocation4 [shape = 's32[2]{0}', space=sflag, size = 0x8, scoped, tag = 'scratch operand']
  #allocation11 [shape = 's32[]', space=sflag, size = 0x4, offset = 0, fixed_abs, tag = 'sflag constant byte address 0x0 - dummy sync flag']
  #allocation12 [shape = 's32[]', space=sflag, size = 0x4, offset = 0, fixed_abs, tag = 'sflag constant byte address 0x0 - dummy sync flag']
  #allocation13 [shape = 'u32[]', space=smem, size = 0x4, offset = 0x44, fixed_abs, tag = 'smem constant byte address 0x44 - assertion arg 0']
  #allocation14 [shape = 'u32[]', space=smem, size = 0x4, offset = 0x48, fixed_abs, tag = 'smem constant byte address 0x48 - assertion arg 1']
  #allocation15 [shape = 's32[]', space=sflag, size = 0x4, offset = 0, fixed_abs, tag = 'sflag constant byte address 0x0 - dummy sync flag']
  #allocation16 [shape = 's32[]', space=sflag, size = 0x4, offset = 0, fixed_abs, tag = 'sflag constant byte address 0x0 - dummy sync flag']
  %s0 = inlined_call_operand.hbm [shape: f32[2,16,16,128], index: 0, kind: input, shape index: {}]
  %s1 = inlined_call_operand.hbm [shape: f32[2,16,16,128], index: 1, kind: input, shape index: {}]
  %s2 = inlined_call_operand.vmem [shape: bf16[128,32], index: 2, kind: input, shape index: {}]
  %s3 = inlined_call_operand.hbm [shape: bf16[9,32,32], index: 3, kind: input, shape index: {}]
  %s4 = inlined_call_operand.vmem [shape: bf16[32,128], index: 4, kind: input, shape index: {}]
  %s5 = inlined_call_operand.vmem [shape: f32[1,32], index: 5, kind: input, shape index: {}]
  %s6 = inlined_call_operand.vmem [shape: f32[1,32], index: 6, kind: input, shape index: {}]
  %s7 = inlined_call_operand.vmem [shape: f32[1,128], index: 7, kind: input, shape index: {}]
  %s8 = inlined_call_operand.hbm [shape: f32[2,16,16,128], index: 8, kind: output, shape index: {}]
  %s9 = sld [smem:[#allocation0]]
  $region93: #{tpu_custom_call.1} parent=0
    _
  %s11 = ssub.s32 1, %s9
  %s12 = scalar_select 0, %s11, %s9
  $region1: #{tpu_custom_call.1} parent=0
    #allocation5 [shape = 'u8[131072]{0}', space=vmem, size = 0x20000, scoped, tag = 'input window, operand 0']
    #allocation6 [shape = 's32[2]{0}', space=sflag, size = 0x8, scoped, tag = 'scoped memory for tpu_custom_call.1']
    #allocation7 [shape = 's32[2]{0}', space=sflag, size = 0x8, scoped, tag = 'scoped memory for tpu_custom_call.1']
    #allocation8 [shape = 'u8[73728]{0}', space=vmem, size = 0x12000, scoped, tag = 'input window, operand 3, single buffered']
    #allocation9 [shape = 's32[1]{0}', space=sflag, size = 0x4, scoped, tag = 'scoped memory for tpu_custom_call.1']
    #allocation10 [shape = 'u8[131072]{0}', space=vmem, size = 0x20000, scoped, tag = 'output window, operand 0']
    %13 = vsyncpa [#allocation6], 0
    %s14 = scalar_lea.sflag [#allocation6], 1
    %15 = vsyncpa %s14, 0
    %16 = vsyncpa [#allocation9], 0
    %17 = vsyncpa [#allocation7], 0
    %s18 = scalar_lea.sflag [#allocation7], 1
    %19 = vsyncpa %s18, 0
    loop: start=0, step=1, limit=6
    $region2: #{tpu_custom_call.1} parent=1 // loop_pre_header
      _
    $region3: #{tpu_custom_call.1} parent=1 // loop_header
      %s21 = sphi 0, %s25
      %p22 = scmp.ge.s32.totalorder %s21, 6
      %s28 = sphi 0, %s40
      %s29 = sphi 0, %s36
      %s30 = sphi 0, %s28
      %s31 = sphi 0, %s29
      %s32 = sphi 0, %s30
      %s33 = sphi 0, %s31
      %s45 = sphi 0, %s47
      %s48 = sphi 0, %s45
      %s49 = sphi 0, %s48
      %s65 = sphi 0, %s49
      %s69 = sphi 0, %s69
      %s71 = sphi 0, %s69
      %s72 = sphi 0, %s71
      %s86 = sphi 0, %s72
      %s90 = sphi 0, %s90
      %s92 = sphi 0, %s90
      %s93 = sphi 0, %s92
      %s107 = sphi 0, %s93
      %s111 = sphi 0, %s111
      %s113 = sphi 0, %s111
      %s114 = sphi 0, %s113
      %s128 = sphi 0, %s114
      %s132 = sphi 0, %s132
      %s134 = sphi 0, %s132
      %s135 = sphi 0, %s134
      %s149 = sphi 0, %s135
      %s153 = sphi 0, %s153
      %s155 = sphi 0, %s153
      %s156 = sphi 0, %s155
      %s170 = sphi 0, %s156
      %s174 = sphi 0, %s174
      %s176 = sphi 0, %s174
      %s177 = sphi 0, %s176
      %s191 = sphi 0, %s177
      %s199 = sphi 0, %s201
      %s202 = sphi 0, %s199
      %s203 = sphi 0, %s202
      %s219 = sphi 0, %s203
    $region4: #{tpu_custom_call.1} parent=1 // loop_header_branch
      %24 = sbr.rel (%p22) target = $region8
    $region5: #{tpu_custom_call.1} parent=1 // loop_body
      %s26 = ssub.s32 %s21, 1
      %s27 = ssub.s32 %s21, 2
      %s34 = sadd.s32 1, %s29
      %p35 = scmp.ge.s32.totalorder %s34, 2
      %s36 = scalar_select %p35, 0, %s34
      %s37 = sadd.s32 1, %s28
      %s38 = scalar_select %p35, %s37, %s28
      %p39 = scmp.ge.s32.totalorder %s38, 2
      %s40 = scalar_select %p39, 0, %s38
      %s41 = ssub.s32 %s28, %s40
      %s42 = ssub.s32 %s29, %s36
      %s43 = sor.u32 %s41, %s42
      %p44 = scmp.eq.s32.totalorder %s43, 0
      %s46 = sadd.s32 %s45, 1
      %s47 = scalar_select %p44, %s45, %s46
      %p50 = pneg %p44
      %p51 = scmp.eq.s32.totalorder %s21, 3
      %p52 = por %p50, %p51
      %p53 = scmp.ne.s32.totalorder %s45, %s48
      %p54 = scmp.eq.s32.totalorder %s21, 0
      %p55 = por %p53, %p54
      %p56 = scmp.ne.s32.totalorder %s45, %s48
      %p57 = scmp.eq.s32.totalorder %s26, 3
      %p58 = por %p56, %p57
      %p59 = scmp.ne.s32.totalorder %s48, %s49
      %p60 = scmp.eq.s32.totalorder %s26, 0
      %p61 = por %p59, %p60
      %p62 = scmp.ne.s32.totalorder %s48, %s49
      %p63 = scmp.eq.s32.totalorder %s27, 3
      %p64 = por %p62, %p63
      %p66 = scmp.ne.s32.totalorder %s49, %s65
      %p67 = scmp.eq.s32.totalorder %s27, 0
      %p68 = por %p66, %p67
      %s70 = sadd.s32 %s69, 1
      %p73 = scmp.eq.s32.totalorder %s21, 3
      %p74 = scmp.ne.s32.totalorder %s69, %s71
      %p75 = scmp.eq.s32.totalorder %s21, 0
      %p76 = por %p74, %p75
      %p77 = scmp.ne.s32.totalorder %s69, %s71
      %p78 = scmp.eq.s32.totalorder %s26, 3
      %p79 = por %p77, %p78
      %p80 = scmp.ne.s32.totalorder %s71, %s72
      %p81 = scmp.eq.s32.totalorder %s26, 0
      %p82 = por %p80, %p81
      %p83 = scmp.ne.s32.totalorder %s71, %s72
      %p84 = scmp.eq.s32.totalorder %s27, 3
      %p85 = por %p83, %p84
      %p87 = scmp.ne.s32.totalorder %s72, %s86
      %p88 = scmp.eq.s32.totalorder %s27, 0
      %p89 = por %p87, %p88
      %s91 = sadd.s32 %s90, 1
      %p94 = scmp.eq.s32.totalorder %s21, 3
      %p95 = scmp.ne.s32.totalorder %s90, %s92
      %p96 = scmp.eq.s32.totalorder %s21, 0
      %p97 = por %p95, %p96
      %p98 = scmp.ne.s32.totalorder %s90, %s92
      %p99 = scmp.eq.s32.totalorder %s26, 3
      %p100 = por %p98, %p99
      %p101 = scmp.ne.s32.totalorder %s92, %s93
      %p102 = scmp.eq.s32.totalorder %s26, 0
      %p103 = por %p101, %p102
      %p104 = scmp.ne.s32.totalorder %s92, %s93
      %p105 = scmp.eq.s32.totalorder %s27, 3
      %p106 = por %p104, %p105
      %p108 = scmp.ne.s32.totalorder %s93, %s107
      %p109 = scmp.eq.s32.totalorder %s27, 0
      %p110 = por %p108, %p109
      %s112 = sadd.s32 %s111, 1
      %p115 = scmp.eq.s32.totalorder %s21, 3
      %p116 = scmp.ne.s32.totalorder %s111, %s113
      %p117 = scmp.eq.s32.totalorder %s21, 0
      %p118 = por %p116, %p117
      %p119 = scmp.ne.s32.totalorder %s111, %s113
      %p120 = scmp.eq.s32.totalorder %s26, 3
      %p121 = por %p119, %p120
      %p122 = scmp.ne.s32.totalorder %s113, %s114
      %p123 = scmp.eq.s32.totalorder %s26, 0
      %p124 = por %p122, %p123
      %p125 = scmp.ne.s32.totalorder %s113, %s114
      %p126 = scmp.eq.s32.totalorder %s27, 3
      %p127 = por %p125, %p126
      %p129 = scmp.ne.s32.totalorder %s114, %s128
      %p130 = scmp.eq.s32.totalorder %s27, 0
      %p131 = por %p129, %p130
      %s133 = sadd.s32 %s132, 1
      %p136 = scmp.eq.s32.totalorder %s21, 3
      %p137 = scmp.ne.s32.totalorder %s132, %s134
      %p138 = scmp.eq.s32.totalorder %s21, 0
      %p139 = por %p137, %p138
      %p140 = scmp.ne.s32.totalorder %s132, %s134
      %p141 = scmp.eq.s32.totalorder %s26, 3
      %p142 = por %p140, %p141
      %p143 = scmp.ne.s32.totalorder %s134, %s135
      %p144 = scmp.eq.s32.totalorder %s26, 0
      %p145 = por %p143, %p144
      %p146 = scmp.ne.s32.totalorder %s134, %s135
      %p147 = scmp.eq.s32.totalorder %s27, 3
      %p148 = por %p146, %p147
      %p150 = scmp.ne.s32.totalorder %s135, %s149
      %p151 = scmp.eq.s32.totalorder %s27, 0
      %p152 = por %p150, %p151
      %s154 = sadd.s32 %s153, 1
      %p157 = scmp.eq.s32.totalorder %s21, 3
      %p158 = scmp.ne.s32.totalorder %s153, %s155
      %p159 = scmp.eq.s32.totalorder %s21, 0
      %p160 = por %p158, %p159
      %p161 = scmp.ne.s32.totalorder %s153, %s155
      %p162 = scmp.eq.s32.totalorder %s26, 3
      %p163 = por %p161, %p162
      %p164 = scmp.ne.s32.totalorder %s155, %s156
      %p165 = scmp.eq.s32.totalorder %s26, 0
      %p166 = por %p164, %p165
      %p167 = scmp.ne.s32.totalorder %s155, %s156
      %p168 = scmp.eq.s32.totalorder %s27, 3
      %p169 = por %p167, %p168
      %p171 = scmp.ne.s32.totalorder %s156, %s170
      %p172 = scmp.eq.s32.totalorder %s27, 0
      %p173 = por %p171, %p172
      %s175 = sadd.s32 %s174, 1
      %p178 = scmp.eq.s32.totalorder %s21, 3
      %p179 = scmp.ne.s32.totalorder %s174, %s176
      %p180 = scmp.eq.s32.totalorder %s21, 0
      %p181 = por %p179, %p180
      %p182 = scmp.ne.s32.totalorder %s174, %s176
      %p183 = scmp.eq.s32.totalorder %s26, 3
      %p184 = por %p182, %p183
      %p185 = scmp.ne.s32.totalorder %s176, %s177
      %p186 = scmp.eq.s32.totalorder %s26, 0
      %p187 = por %p185, %p186
      %p188 = scmp.ne.s32.totalorder %s176, %s177
      %p189 = scmp.eq.s32.totalorder %s27, 3
      %p190 = por %p188, %p189
      %p192 = scmp.ne.s32.totalorder %s177, %s191
      %p193 = scmp.eq.s32.totalorder %s27, 0
      %p194 = por %p192, %p193
      %s195 = ssub.s32 %s28, %s40
      %s196 = ssub.s32 %s29, %s36
      %s197 = sor.u32 %s195, %s196
      %p198 = scmp.eq.s32.totalorder %s197, 0
      %s200 = sadd.s32 %s199, 1
      %s201 = scalar_select %p198, %s199, %s200
      %p204 = pneg %p198
      %p205 = scmp.eq.s32.totalorder %s21, 3
      %p206 = por %p204, %p205
      %p207 = scmp.ne.s32.totalorder %s199, %s202
      %p208 = scmp.eq.s32.totalorder %s21, 0
      %p209 = por %p207, %p208
      %p210 = scmp.ne.s32.totalorder %s199, %s202
      %p211 = scmp.eq.s32.totalorder %s26, 3
      %p212 = por %p210, %p211
      %p213 = scmp.ne.s32.totalorder %s202, %s203
      %p214 = scmp.eq.s32.totalorder %s26, 0
      %p215 = por %p213, %p214
      %p216 = scmp.ne.s32.totalorder %s202, %s203
      %p217 = scmp.eq.s32.totalorder %s27, 3
      %p218 = por %p216, %p217
      %p220 = scmp.ne.s32.totalorder %s203, %s219
      %p221 = scmp.eq.s32.totalorder %s27, 0
      %p222 = por %p220, %p221
      %p223 = scmp.le.s32.totalorder 1, %s21
      %p224 = scmp.lt.s32.totalorder %s21, 5
      %p225 = pnand %p223, %p224
      %p226 = pneg %p225
      // Predicated region
      $region9: #{tpu_custom_call.1} parent=5 // pred_check
        _
      $region10: #{tpu_custom_call.1} parent=5 // pred_check_branch
        %228 = sbr.rel (%p225) target = $region12
      $region11: #{tpu_custom_call.1} parent=5 // pred_region
        %s229 = ssub.s32 %s21, 1
        // Predicated region
        $region13: #{tpu_custom_call.1} parent=11 // pred_check
          %p230 = pneg %p82
        $region14: #{tpu_custom_call.1} parent=11 // pred_check_branch
          %232 = sbr.rel (%p230) target = $region16
        $region15: #{tpu_custom_call.1} parent=11 // pred_region
          _
        $region16: #{tpu_custom_call.1} parent=11 // pred_fallthru
          _
        // Predicated region
        $region17: #{tpu_custom_call.1} parent=11 // pred_check
          %p233 = pneg %p103
        $region18: #{tpu_custom_call.1} parent=11 // pred_check_branch
          %235 = sbr.rel (%p233) target = $region20
        $region19: #{tpu_custom_call.1} parent=11 // pred_region
          %s237 = ssub.s32 2304, 2304
          %238 = vsyncadd [#allocation9], %s237
          %s239 = sshll.u32 [#allocation8], 4
          %s240 = int_to_ptr.vmem [resolvable:$true] %s239
          %245 = dma.hbm_to_vmem [thread:$0]  %s3, 2304, %s240, [#allocation9], 64, 64, 4
        $region20: #{tpu_custom_call.1} parent=11 // pred_fallthru
          _
        // Predicated region
        $region21: #{tpu_custom_call.1} parent=11 // pred_check
          %p246 = pneg %p124
        $region22: #{tpu_custom_call.1} parent=11 // pred_check_branch
          %248 = sbr.rel (%p246) target = $region24
        $region23: #{tpu_custom_call.1} parent=11 // pred_region
          _
        $region24: #{tpu_custom_call.1} parent=11 // pred_fallthru
          _
        // Predicated region
        $region25: #{tpu_custom_call.1} parent=11 // pred_check
          %p249 = pneg %p145
        $region26: #{tpu_custom_call.1} parent=11 // pred_check_branch
          %251 = sbr.rel (%p249) target = $region28
        $region27: #{tpu_custom_call.1} parent=11 // pred_region
          _
        $region28: #{tpu_custom_call.1} parent=11 // pred_fallthru
          _
        // Predicated region
        $region29: #{tpu_custom_call.1} parent=11 // pred_check
          %p252 = pneg %p166
        $region30: #{tpu_custom_call.1} parent=11 // pred_check_branch
          %254 = sbr.rel (%p252) target = $region32
        $region31: #{tpu_custom_call.1} parent=11 // pred_region
          _
        $region32: #{tpu_custom_call.1} parent=11 // pred_fallthru
          _
        // Predicated region
        $region33: #{tpu_custom_call.1} parent=11 // pred_check
          %p255 = pneg %p187
        $region34: #{tpu_custom_call.1} parent=11 // pred_check_branch
          %257 = sbr.rel (%p255) target = $region36
        $region35: #{tpu_custom_call.1} parent=11 // pred_region
          _
        $region36: #{tpu_custom_call.1} parent=11 // pred_fallthru
          _
      $region12: #{tpu_custom_call.1} parent=5 // pred_fallthru
        _
      %p258 = scmp.lt.s32.totalorder %s21, 4
      // Predicated region
      $region37: #{tpu_custom_call.1} parent=5 // pred_check
        %p259 = pneg %p258
      $region38: #{tpu_custom_call.1} parent=5 // pred_check_branch
        %261 = sbr.rel (%p259) target = $region40
      $region39: #{tpu_custom_call.1} parent=5 // pred_region
        // Predicated region
        $region41: #{tpu_custom_call.1} parent=39 // pred_check
          %p262 = pneg %p55
        $region42: #{tpu_custom_call.1} parent=39 // pred_check_branch
          %264 = sbr.rel (%p262) target = $region44
        $region43: #{tpu_custom_call.1} parent=39 // pred_region
          %s265 = sand.u32 %s45, 1
          %s266 = scalar_lea.sflag [#allocation6], %s265
          %s267 = sand.u32 %s45, 1
          %s268 = smul.addr %s267, 128
          %s269 = scalar_lea.vmem [#allocation5], %s268
          %s270 = smul.u32 8, %s29
          %s272 = ssub.s32 2048, 2048
          %273 = vsyncadd %s266, %s272
          %s274 = smul.addr %s270, 2
          %s275 = smul.addr %s28, 32
          %s276 = sadd.s32 %s274, %s275
          %s277 = smul.addr %s276, 128
          %s278 = scalar_lea.hbm %s0, %s277
          %s279 = sshll.u32 %s269, 4
          %s280 = int_to_ptr.vmem [resolvable:$true] %s279
          %285 = dma.hbm_to_vmem [thread:$0]  %s278, 2048, %s280, %s266, 128, 128, 8
        $region44: #{tpu_custom_call.1} parent=39 // pred_fallthru
          _
      $region40: #{tpu_custom_call.1} parent=5 // pred_fallthru
        _
      %p286 = scmp.le.s32.totalorder 1, %s21
      %p287 = scmp.lt.s32.totalorder %s21, 5
      %p288 = pnand %p286, %p287
      %p289 = pneg %p288
      // Predicated region
      $region45: #{tpu_custom_call.1} parent=5 // pred_check
        _
      $region46: #{tpu_custom_call.1} parent=5 // pred_check_branch
        %291 = sbr.rel (%p288) target = $region48
      $region47: #{tpu_custom_call.1} parent=5 // pred_region
        %s292 = ssub.s32 %s21, 1
        %s293 = sand.u32 %s48, 1
        %s294 = scalar_lea.sflag [#allocation6], %s293
        %s295 = sand.u32 %s48, 1
        %s296 = smul.addr %s295, 128
        %s297 = scalar_lea.vmem [#allocation5], %s296
        // Predicated region
        $region49: #{tpu_custom_call.1} parent=47 // pred_check
          %p298 = pneg %p61
        $region50: #{tpu_custom_call.1} parent=47 // pred_check_branch
          %300 = sbr.rel (%p298) target = $region52
        $region51: #{tpu_custom_call.1} parent=47 // pred_region
          %301 = dma.done %s294, 2048
        $region52: #{tpu_custom_call.1} parent=47 // pred_fallthru
          _
        // Predicated region
        $region53: #{tpu_custom_call.1} parent=47 // pred_check
          %p302 = pneg %p103
        $region54: #{tpu_custom_call.1} parent=47 // pred_check_branch
          %304 = sbr.rel (%p302) target = $region56
        $region55: #{tpu_custom_call.1} parent=47 // pred_region
          %305 = dma.done [#allocation9], 2304
        $region56: #{tpu_custom_call.1} parent=47 // pred_fallthru
          _
        %s306 = sand.u32 %s48, 1
        %s307 = scalar_lea.sflag [#allocation6], %s306
        %s308 = sand.u32 %s48, 1
        %s309 = smul.addr %s308, 128
        %s310 = scalar_lea.vmem [#allocation5], %s309
        %p311 = pneg %p61
        %p312 = pneg %p58
        %p313 = pneg %p82
        %p314 = pneg %p79
        %p315 = pneg %p103
        %p316 = pneg %p100
        %p317 = pneg %p124
        %p318 = pneg %p121
        %p319 = pneg %p145
        %p320 = pneg %p142
        %p321 = pneg %p166
        %p322 = pneg %p163
        %p323 = pneg %p187
        %p324 = pneg %p184
        %p325 = pneg %p215
        %p326 = pneg %p212
        %s327 = sand.u32 %s202, 1
        %s328 = scalar_lea.sflag [#allocation7], %s327
        %s329 = sand.u32 %s202, 1
        %s330 = smul.addr %s329, 128
        %s331 = scalar_lea.vmem [#allocation10], %s330
        %s332 = smul.u32 8, %s31
        %s333 = smul.u32 8, %s31
        %s335 = smul.u32 %s31, 8
        %s336 = ssub.s32 %s335, 2
        %p337 = scmp.gt.s32.totalorder %s336, 0
        %s338 = scalar_select %p337, %s336, 0
        %s339 = sadd.s32 %s335, 8
        %p340 = scmp.lt.s32.totalorder %s339, 14
        %s341 = scalar_select %p340, %s339, 14
        %s342 = smul.u32 %s338, 16
        %s343 = smul.u32 %s30, 256
        %s344 = sadd.s32 %s342, %s343
        %s345 = smul.addr %s344, 16
        %s346 = scalar_lea.hbm %s1, %s345
        // Predicated region
        $region57: #{tpu_custom_call.1} parent=47 // pred_check
          _
        $region58: #{tpu_custom_call.1} parent=47 // pred_check_branch
          %348 = sbr.rel target = $region60
        $region59: #{tpu_custom_call.1} parent=47 // pred_region
          %349 = sst [smem:[#allocation13]] [#allocation12]
          %350 = sst [smem:[#allocation14]] [#allocation11]
        $region60: #{tpu_custom_call.1} parent=47 // pred_fallthru
          _
        %352 = shalt.err (0)
        %s354 = sshll.u32 [#allocation3], 4
        %s355 = int_to_ptr.vmem [resolvable:$true] %s354
        %357 = dma.hbm_to_vmem [thread:$0]  %s346, 512, %s355, [#allocation4]
        %s358 = smul.u32 %s341, 16
        %s359 = sadd.s32 %s358, %s343
        %s360 = smul.addr %s359, 16
        %s361 = scalar_lea.hbm %s1, %s360
        %s362 = scalar_lea.vmem [#allocation3], 32
        %s363 = scalar_lea.sflag [#allocation4], 1
        // Predicated region
        $region61: #{tpu_custom_call.1} parent=47 // pred_check
          _
        $region62: #{tpu_custom_call.1} parent=47 // pred_check_branch
          %365 = sbr.rel target = $region64
        $region63: #{tpu_custom_call.1} parent=47 // pred_region
          %366 = sst [smem:[#allocation13]] [#allocation16]
          %367 = sst [smem:[#allocation14]] [#allocation15]
        $region64: #{tpu_custom_call.1} parent=47 // pred_fallthru
          _
        %369 = shalt.err (0)
        %s371 = sshll.u32 %s362, 4
        %s372 = int_to_ptr.vmem [resolvable:$true] %s371
        %374 = dma.hbm_to_vmem [thread:$0]  %s361, 512, %s372, %s363
        %v375 = vld [vmem:[%s2] sm:$0xf]
        %v376 = vld [vmem:[%s2 + $0x4] sm:$0xf]
        %v377 = vld [vmem:[%s2 + $0x8] sm:$0xf]
        %v378 = vld [vmem:[%s2 + $0xc] sm:$0xf]
        %v379 = vld [vmem:[%s2 + $0x10] sm:$0xf]
        %v380 = vld [vmem:[%s2 + $0x14] sm:$0xf]
        %v381 = vld [vmem:[%s2 + $0x18] sm:$0xf]
        %v382 = vld [vmem:[%s2 + $0x1c] sm:$0xf]
        %v383 = vld [vmem:[%s2 + $0x20] sm:$0xf]
        %v384 = vld [vmem:[%s2 + $0x24] sm:$0xf]
        %v385 = vld [vmem:[%s2 + $0x28] sm:$0xf]
        %v386 = vld [vmem:[%s2 + $0x2c] sm:$0xf]
        %v387 = vld [vmem:[%s2 + $0x30] sm:$0xf]
        %v388 = vld [vmem:[%s2 + $0x34] sm:$0xf]
        %v389 = vld [vmem:[%s2 + $0x38] sm:$0xf]
        %v390 = vld [vmem:[%s2 + $0x3c] sm:$0xf]
        %v391 = vld [vmem:[%s5] sm:$0x1]
        %vm392 = vcmask 253952
        %393 = vst.msk [vmem:[#allocation2] sm:$0x1] %vm392, 0
        %394 = vst.msk [vmem:[#allocation2 + $0xc] sm:$0x1] %vm392, 0
        %395 = vst.msk [vmem:[#allocation2 + $0x18] sm:$0x1] %vm392, 0
        %396 = vst.msk [vmem:[#allocation2 + $0x24] sm:$0x1] %vm392, 0
        %397 = vst.msk [vmem:[#allocation2 + $0x30] sm:$0x1] %vm392, 0
        %398 = vst.msk [vmem:[#allocation2 + $0x3c] sm:$0x1] %vm392, 0
        %399 = vst.msk [vmem:[#allocation2 + $0x48] sm:$0x1] %vm392, 0
        %400 = vst.msk [vmem:[#allocation2 + $0x54] sm:$0x1] %vm392, 0
        %401 = vst.msk [vmem:[#allocation2 + $0x60] sm:$0x1] %vm392, 0
        %402 = vst.msk [vmem:[#allocation2 + $0x6c] sm:$0x1] %vm392, 0
        %403 = vst.msk [vmem:[#allocation2 + $0x78] sm:$0x1] %vm392, 0
        %404 = vst.msk [vmem:[#allocation2 + $0x84] sm:$0x1] %vm392, 0
        %vm405 = vcmask 254977
        %406 = vst.msk [vmem:[#allocation2 + $0x8] sm:$0x2] %vm405, 0
        %407 = vst.msk [vmem:[#allocation2 + $0x14] sm:$0x2] %vm405, 0
        %408 = vst.msk [vmem:[#allocation2 + $0x20] sm:$0x2] %vm405, 0
        %409 = vst.msk [vmem:[#allocation2 + $0x2c] sm:$0x2] %vm405, 0
        %410 = vst.msk [vmem:[#allocation2 + $0x38] sm:$0x2] %vm405, 0
        %411 = vst.msk [vmem:[#allocation2 + $0x44] sm:$0x2] %vm405, 0
        %412 = vst.msk [vmem:[#allocation2 + $0x50] sm:$0x2] %vm405, 0
        %413 = vst.msk [vmem:[#allocation2 + $0x5c] sm:$0x2] %vm405, 0
        %414 = vst.msk [vmem:[#allocation2 + $0x68] sm:$0x2] %vm405, 0
        %415 = vst.msk [vmem:[#allocation2 + $0x74] sm:$0x2] %vm405, 0
        %416 = vst.msk [vmem:[#allocation2 + $0x80] sm:$0x2] %vm405, 0
        %417 = vst.msk [vmem:[#allocation2 + $0x8c] sm:$0x2] %vm405, 0
        %v418 = vld [vmem:[%s297] sm:$0xff]
        %v419 = vld [vmem:[%s297 + $0x8] sm:$0xff]
        %v420 = vld [vmem:[%s297 + $0x10] sm:$0xff]
        %v421 = vld [vmem:[%s297 + $0x18] sm:$0xff]
        %v422 = vld [vmem:[%s297 + $0x20] sm:$0xff]
        %v423 = vld [vmem:[%s297 + $0x28] sm:$0xff]
        %v424 = vld [vmem:[%s297 + $0x30] sm:$0xff]
        %v425 = vld [vmem:[%s297 + $0x38] sm:$0xff]
        %v426 = vld [vmem:[%s297 + $0x40] sm:$0xff]
        %v427 = vld [vmem:[%s297 + $0x48] sm:$0xff]
        %v428 = vld [vmem:[%s297 + $0x50] sm:$0xff]
        %v429 = vld [vmem:[%s297 + $0x58] sm:$0xff]
        %v430 = vld [vmem:[%s297 + $0x60] sm:$0xff]
        %v431 = vld [vmem:[%s297 + $0x68] sm:$0xff]
        %v432 = vld [vmem:[%s297 + $0x70] sm:$0xff]
        %v433 = vld [vmem:[%s297 + $0x78] sm:$0xff]
        %v434 = vpack.c.bf16 %v419, %v418
        %v435 = vpack.c.bf16 %v421, %v420
        %v436 = vpack.c.bf16 %v423, %v422
        %v437 = vpack.c.bf16 %v425, %v424
        %v438 = vpack.c.bf16 %v427, %v426
        %v439 = vpack.c.bf16 %v429, %v428
        %v440 = vpack.c.bf16 %v431, %v430
        %v441 = vpack.c.bf16 %v433, %v432
        %v443 = vlaneseq
        %v444 = vshrl.u32 %v443, 7
        %v445 = vsub.s32 0, %v444
        %v446 = vrot.slane %v391, %v445
        %v464 = vunpack.c.l.b16 %v375
        %v465 = vunpack.c.l.b16 %v376
        %v466 = vunpack.c.l.b16 %v377
        %v467 = vunpack.c.l.b16 %v378
        %v468 = vunpack.c.l.b16 %v379
        %v469 = vunpack.c.l.b16 %v380
        %v470 = vunpack.c.l.b16 %v381
        %v471 = vunpack.c.l.b16 %v382
        %v472 = vunpack.c.l.b16 %v383
        %v473 = vunpack.c.l.b16 %v384
        %v474 = vunpack.c.l.b16 %v385
        %v475 = vunpack.c.l.b16 %v386
        %v476 = vunpack.c.l.b16 %v387
        %v477 = vunpack.c.l.b16 %v388
        %v478 = vunpack.c.l.b16 %v389
        %v479 = vunpack.c.l.b16 %v390
        %v480 = vpack.c.b16 %v465, %v464
        %v481 = vpack.c.b16 %v467, %v466
        %v482 = vpack.c.b16 %v469, %v468
        %v483 = vpack.c.b16 %v471, %v470
        %v484 = vpack.c.b16 %v473, %v472
        %v485 = vpack.c.b16 %v475, %v474
        %v486 = vpack.c.b16 %v477, %v476
        %v487 = vpack.c.b16 %v479, %v478
        %496 = vmatprep.subr.bf16.mxu0 0
        %497 = vmatpush1.bf16.msra.mxu0 %v480
        %498 = vmatprep.subr.bf16.mxu0 0
        %499 = vmatpush1.bf16.msra.mxu0 %v481
        %500 = vmatprep.subr.bf16.mxu0 0
        %501 = vmatpush1.bf16.msra.mxu0 %v482
        %502 = vmatprep.subr.bf16.mxu0 0
        %503 = vmatpush1.bf16.msra.mxu0 %v483
        %504 = vmatprep.subr.bf16.mxu0 0
        %505 = vmatpush1.bf16.msra.mxu0 %v484
        %506 = vmatprep.subr.bf16.mxu0 0
        %507 = vmatpush1.bf16.msra.mxu0 %v485
        %508 = vmatprep.subr.bf16.mxu0 0
        %509 = vmatpush1.bf16.msra.mxu0 %v486
        %510 = vmatprep.subr.bf16.mxu0 0
        %511 = vmatpush1.bf16.msra.mxu0 %v487
        %512 = vmatprep.subr.bf16.mxu0 0
        %513 = vmatpush1.bf16.msra.mxu0 0
        %514 = vmatprep.subr.bf16.mxu0 0
        %515 = vmatpush1.bf16.msra.mxu0 0
        %516 = vmatprep.subr.bf16.mxu0 0
        %517 = vmatpush1.bf16.msra.mxu0 0
        %518 = vmatprep.subr.bf16.mxu0 0
        %519 = vmatpush1.bf16.msra.mxu0 0
        %520 = vmatprep.subr.bf16.mxu0 0
        %521 = vmatpush1.bf16.msra.mxu0 0
        %522 = vmatprep.subr.bf16.mxu0 0
        %523 = vmatpush1.bf16.msra.mxu0 0
        %524 = vmatprep.subr.bf16.mxu0 0
        %525 = vmatpush1.bf16.msra.mxu0 0
        %526 = vmatprep.subr.bf16.mxu0 0
        %527 = vmatpush1.bf16.msra.mxu0 0
        %528 = vmatprep.mubr.bf16.mxu0 0
        %529 = vmatmul.mubr.bf16.gmra.mrb[0].mxu0 %v434
        %v530 = vpop.f32.mrb[0].mxu0
        %v531 = vadd.f32 %v446, %v530
        %v532 = vpop.f32.mrb[0].mxu0
        %v533 = vpop.f32.mrb[0].mxu0
        %v534 = vadd.f32 %v446, %v533
        %v535 = vpop.f32.mrb[0].mxu0
        %536 = vmatprep.mubr.bf16.mxu0 0
        %537 = vmatmul.mubr.bf16.gmra.mrb[0].mxu0 %v435
        %v538 = vpop.f32.mrb[0].mxu0
        %v539 = vadd.f32 %v446, %v538
        %v540 = vpop.f32.mrb[0].mxu0
        %v541 = vpop.f32.mrb[0].mxu0
        %v542 = vadd.f32 %v446, %v541
        %v543 = vpop.f32.mrb[0].mxu0
        %544 = vmatprep.mubr.bf16.mxu0 0
        %545 = vmatmul.mubr.bf16.gmra.mrb[0].mxu0 %v436
        %v546 = vpop.f32.mrb[0].mxu0
        %v547 = vadd.f32 %v446, %v546
        %v548 = vpop.f32.mrb[0].mxu0
        %v549 = vpop.f32.mrb[0].mxu0
        %v550 = vadd.f32 %v446, %v549
        %v551 = vpop.f32.mrb[0].mxu0
        %552 = vmatprep.mubr.bf16.mxu0 0
        %553 = vmatmul.mubr.bf16.gmra.mrb[0].mxu0 %v437
        %v554 = vpop.f32.mrb[0].mxu0
        %v555 = vadd.f32 %v446, %v554
        %v556 = vpop.f32.mrb[0].mxu0
        %v557 = vpop.f32.mrb[0].mxu0
        %v558 = vadd.f32 %v446, %v557
        %v559 = vpop.f32.mrb[0].mxu0
        %560 = vmatprep.mubr.bf16.mxu0 0
        %561 = vmatmul.mubr.bf16.gmra.mrb[0].mxu0 %v438
        %v562 = vpop.f32.mrb[0].mxu0
        %v563 = vadd.f32 %v446, %v562
        %v564 = vpop.f32.mrb[0].mxu0
        %v565 = vpop.f32.mrb[0].mxu0
        %v566 = vadd.f32 %v446, %v565
        %v567 = vpop.f32.mrb[0].mxu0
        %568 = vmatprep.mubr.bf16.mxu0 0
        %569 = vmatmul.mubr.bf16.gmra.mrb[0].mxu0 %v439
        %v570 = vpop.f32.mrb[0].mxu0
        %v571 = vadd.f32 %v446, %v570
        %v572 = vpop.f32.mrb[0].mxu0
        %v573 = vpop.f32.mrb[0].mxu0
        %v574 = vadd.f32 %v446, %v573
        %v575 = vpop.f32.mrb[0].mxu0
        %576 = vmatprep.mubr.bf16.mxu0 0
        %577 = vmatmul.mubr.bf16.gmra.mrb[0].mxu0 %v440
        %v578 = vpop.f32.mrb[0].mxu0
        %v579 = vadd.f32 %v446, %v578
        %v580 = vpop.f32.mrb[0].mxu0
        %v581 = vpop.f32.mrb[0].mxu0
        %v582 = vadd.f32 %v446, %v581
        %v583 = vpop.f32.mrb[0].mxu0
        %584 = vmatprep.mubr.bf16.mxu0 0
        %585 = vmatmul.mubr.bf16.gmra.mrb[0].mxu0 %v441
        %v586 = vpop.f32.mrb[0].mxu0
        %v587 = vadd.f32 %v446, %v586
        %v588 = vpop.f32.mrb[0].mxu0
        %v589 = vpop.f32.mrb[0].mxu0
        %v590 = vadd.f32 %v446, %v589
        %v591 = vpop.f32.mrb[0].mxu0
        %592 = vdwg.mxu0
        %v593 = vmax.f32 %v531, 0.0
        %v594 = vmax.f32 %v534, 0.0
        %v595 = vmax.f32 %v539, 0.0
        %v596 = vmax.f32 %v542, 0.0
        %v597 = vmax.f32 %v547, 0.0
        %v598 = vmax.f32 %v550, 0.0
        %v599 = vmax.f32 %v555, 0.0
        %v600 = vmax.f32 %v558, 0.0
        %v601 = vmax.f32 %v563, 0.0
        %v602 = vmax.f32 %v566, 0.0
        %v603 = vmax.f32 %v571, 0.0
        %v604 = vmax.f32 %v574, 0.0
        %v605 = vmax.f32 %v579, 0.0
        %v606 = vmax.f32 %v582, 0.0
        %v607 = vmax.f32 %v587, 0.0
        %v608 = vmax.f32 %v590, 0.0
        %v609 = vpack.c.bf16 %v594, %v593
        %v610 = vpack.c.bf16 %v596, %v595
        %v611 = vpack.c.bf16 %v598, %v597
        %v612 = vpack.c.bf16 %v600, %v599
        %v613 = vpack.c.bf16 %v602, %v601
        %v614 = vpack.c.bf16 %v604, %v603
        %v615 = vpack.c.bf16 %v606, %v605
        %v616 = vpack.c.bf16 %v608, %v607
        %v625 = vunpack.c.l.b16 %v609
        %v626 = vunpack.c.h.b16 %v609
        %v627 = vunpack.c.l.b16 %v610
        %v628 = vunpack.c.h.b16 %v610
        %v629 = vunpack.c.l.b16 %v611
        %v630 = vunpack.c.h.b16 %v611
        %v631 = vunpack.c.l.b16 %v612
        %v632 = vunpack.c.h.b16 %v612
        %v633 = vunpack.c.l.b16 %v613
        %v634 = vunpack.c.h.b16 %v613
        %v635 = vunpack.c.l.b16 %v614
        %v636 = vunpack.c.h.b16 %v614
        %v637 = vunpack.c.l.b16 %v615
        %v638 = vunpack.c.h.b16 %v615
        %v639 = vunpack.c.l.b16 %v616
        %v640 = vunpack.c.h.b16 %v616
        %v641 = vpack.c.b16 %v625, %v625
        %v642 = vpack.c.b16 %v626, %v626
        %v643 = vpack.c.b16 %v627, %v627
        %v644 = vpack.c.b16 %v628, %v628
        %v645 = vpack.c.b16 %v629, %v629
        %v646 = vpack.c.b16 %v630, %v630
        %v647 = vpack.c.b16 %v631, %v631
        %v648 = vpack.c.b16 %v632, %v632
        %v649 = vpack.c.b16 %v633, %v633
        %v650 = vpack.c.b16 %v634, %v634
        %v651 = vpack.c.b16 %v635, %v635
        %v652 = vpack.c.b16 %v636, %v636
        %v653 = vpack.c.b16 %v637, %v637
        %v654 = vpack.c.b16 %v638, %v638
        %v655 = vpack.c.b16 %v639, %v639
        %v656 = vpack.c.b16 %v640, %v640
        %vm657 = vcmask 1040384
        %vm658 = vcmask 1044484
        %vm659 = vmor %vm657, %vm658
        %v660 = vrot.slane %v641, 7
        %v661 = vrot.slane %v660, 4
        %v662 = vrot.slane %v642, 7
        %v663 = vsel %vm659, %v661, %v662
        %v664 = vrot.slane %v662, 4
        %v665 = vrot.slane %v643, 7
        %v666 = vrot.slane %v665, 4
        %v667 = vrot.slane %v644, 7
        %v668 = vsel %vm659, %v666, %v667
        %v669 = vrot.slane %v667, 4
        %v670 = vrot.slane %v645, 7
        %v671 = vrot.slane %v670, 4
        %v672 = vrot.slane %v646, 7
        %v673 = vsel %vm659, %v671, %v672
        %v674 = vrot.slane %v672, 4
        %v675 = vrot.slane %v647, 7
        %v676 = vrot.slane %v675, 4
        %v677 = vrot.slane %v648, 7
        %v678 = vsel %vm659, %v676, %v677
        %v679 = vrot.slane %v677, 4
        %v680 = vrot.slane %v649, 7
        %v681 = vrot.slane %v680, 4
        %v682 = vrot.slane %v650, 7
        %v683 = vsel %vm659, %v681, %v682
        %v684 = vrot.slane %v682, 4
        %v685 = vrot.slane %v651, 7
        %v686 = vrot.slane %v685, 4
        %v687 = vrot.slane %v652, 7
        %v688 = vsel %vm659, %v686, %v687
        %v689 = vrot.slane %v687, 4
        %v690 = vrot.slane %v653, 7
        %v691 = vrot.slane %v690, 4
        %v692 = vrot.slane %v654, 7
        %v693 = vsel %vm659, %v691, %v692
        %v694 = vrot.slane %v692, 4
        %v695 = vrot.slane %v655, 7
        %v696 = vrot.slane %v695, 4
        %v697 = vrot.slane %v656, 7
        %v698 = vsel %vm659, %v696, %v697
        %v699 = vrot.slane %v697, 4
        %s724 = scalar_lea.vmem [#allocation2], 24
        %vm725 = vcmask 257025
        %726 = vst.msk [vmem:[%s724] sm:$0xe] %vm725, %v660
        %vm727 = vcmask 257024
        %728 = vst.msk [vmem:[%s724 + $0x4] sm:$0xf] %vm727, %v663
        %729 = vst.msk [vmem:[%s724 + $0x8] sm:$0x1] %vm392, %v664
        %730 = vst.msk [vmem:[%s724 + $0xc] sm:$0xe] %vm725, %v665
        %731 = vst.msk [vmem:[%s724 + $0x10] sm:$0xf] %vm727, %v668
        %732 = vst.msk [vmem:[%s724 + $0x14] sm:$0x1] %vm392, %v669
        %733 = vst.msk [vmem:[%s724 + $0x18] sm:$0xe] %vm725, %v670
        %734 = vst.msk [vmem:[%s724 + $0x1c] sm:$0xf] %vm727, %v673
        %735 = vst.msk [vmem:[%s724 + $0x20] sm:$0x1] %vm392, %v674
        %736 = vst.msk [vmem:[%s724 + $0x24] sm:$0xe] %vm725, %v675
        %737 = vst.msk [vmem:[%s724 + $0x28] sm:$0xf] %vm727, %v678
        %738 = vst.msk [vmem:[%s724 + $0x2c] sm:$0x1] %vm392, %v679
        %739 = vst.msk [vmem:[%s724 + $0x30] sm:$0xe] %vm725, %v680
        %740 = vst.msk [vmem:[%s724 + $0x34] sm:$0xf] %vm727, %v683
        %741 = vst.msk [vmem:[%s724 + $0x38] sm:$0x1] %vm392, %v684
        %742 = vst.msk [vmem:[%s724 + $0x3c] sm:$0xe] %vm725, %v685
        %743 = vst.msk [vmem:[%s724 + $0x40] sm:$0xf] %vm727, %v688
        %744 = vst.msk [vmem:[%s724 + $0x44] sm:$0x1] %vm392, %v689
        %745 = vst.msk [vmem:[%s724 + $0x48] sm:$0xe] %vm725, %v690
        %746 = vst.msk [vmem:[%s724 + $0x4c] sm:$0xf] %vm727, %v693
        %747 = vst.msk [vmem:[%s724 + $0x50] sm:$0x1] %vm392, %v694
        %748 = vst.msk [vmem:[%s724 + $0x54] sm:$0xe] %vm725, %v695
        %749 = vst.msk [vmem:[%s724 + $0x58] sm:$0xf] %vm727, %v698
        %750 = vst.msk [vmem:[%s724 + $0x5c] sm:$0x1] %vm392, %v699
        %s751 = smul.u32 2, 16
        %s752 = smul.u32 %s751, 1
        %s753 = sshll.u32 %s752, 4
        %754 = dma.done [#allocation4], %s753
        %s755 = sshll.u32 %s752, 4
        %756 = dma.done %s363, %s755
        %v757 = vld [vmem:[#allocation3] sm:$0xff]
        %v758 = vld [vmem:[#allocation3 + $0x8] sm:$0xff]
        %v759 = vld [vmem:[#allocation3 + $0x10] sm:$0xff]
        %v760 = vld [vmem:[#allocation3 + $0x18] sm:$0xff]
        %v761 = vld [vmem:[#allocation3 + $0x20] sm:$0xff]
        %v762 = vld [vmem:[#allocation3 + $0x28] sm:$0xff]
        %v763 = vld [vmem:[#allocation3 + $0x30] sm:$0xff]
        %v764 = vld [vmem:[#allocation3 + $0x38] sm:$0xff]
        %v765 = vpack.c.bf16 %v758, %v757
        %v766 = vpack.c.bf16 %v760, %v759
        %v767 = vpack.c.bf16 %v762, %v761
        %v768 = vpack.c.bf16 %v764, %v763
        %769 = vmatprep.subr.bf16.mxu0 0
        %770 = vmatpush1.bf16.msra.mxu0 %v480
        %771 = vmatprep.subr.bf16.mxu0 0
        %772 = vmatpush1.bf16.msra.mxu0 %v481
        %773 = vmatprep.subr.bf16.mxu0 0
        %774 = vmatpush1.bf16.msra.mxu0 %v482
        %775 = vmatprep.subr.bf16.mxu0 0
        %776 = vmatpush1.bf16.msra.mxu0 %v483
        %777 = vmatprep.subr.bf16.mxu0 0
        %778 = vmatpush1.bf16.msra.mxu0 %v484
        %779 = vmatprep.subr.bf16.mxu0 0
        %780 = vmatpush1.bf16.msra.mxu0 %v485
        %781 = vmatprep.subr.bf16.mxu0 0
        %782 = vmatpush1.bf16.msra.mxu0 %v486
        %783 = vmatprep.subr.bf16.mxu0 0
        %784 = vmatpush1.bf16.msra.mxu0 %v487
        %785 = vmatprep.subr.bf16.mxu0 0
        %786 = vmatpush1.bf16.msra.mxu0 0
        %787 = vmatprep.subr.bf16.mxu0 0
        %788 = vmatpush1.bf16.msra.mxu0 0
        %789 = vmatprep.subr.bf16.mxu0 0
        %790 = vmatpush1.bf16.msra.mxu0 0
        %791 = vmatprep.subr.bf16.mxu0 0
        %792 = vmatpush1.bf16.msra.mxu0 0
        %793 = vmatprep.subr.bf16.mxu0 0
        %794 = vmatpush1.bf16.msra.mxu0 0
        %795 = vmatprep.subr.bf16.mxu0 0
        %796 = vmatpush1.bf16.msra.mxu0 0
        %797 = vmatprep.subr.bf16.mxu0 0
        %798 = vmatpush1.bf16.msra.mxu0 0
        %799 = vmatprep.subr.bf16.mxu0 0
        %800 = vmatpush1.bf16.msra.mxu0 0
        %801 = vmatprep.mubr.bf16.mxu0 0
        %802 = vmatmul.mubr.bf16.gmra.mrb[0].mxu0 %v765
        %v803 = vpop.f32.mrb[0].mxu0
        %v804 = vadd.f32 %v446, %v803
        %v805 = vpop.f32.mrb[0].mxu0
        %v806 = vpop.f32.mrb[0].mxu0
        %v807 = vadd.f32 %v446, %v806
        %v808 = vpop.f32.mrb[0].mxu0
        %809 = vmatprep.mubr.bf16.mxu0 0
        %810 = vmatmul.mubr.bf16.gmra.mrb[0].mxu0 %v766
        %v811 = vpop.f32.mrb[0].mxu0
        %v812 = vadd.f32 %v446, %v811
        %v813 = vpop.f32.mrb[0].mxu0
        %v814 = vpop.f32.mrb[0].mxu0
        %v815 = vadd.f32 %v446, %v814
        %v816 = vpop.f32.mrb[0].mxu0
        %817 = vmatprep.mubr.bf16.mxu0 0
        %818 = vmatmul.mubr.bf16.gmra.mrb[0].mxu0 %v767
        %v819 = vpop.f32.mrb[0].mxu0
        %v820 = vadd.f32 %v446, %v819
        %v821 = vpop.f32.mrb[0].mxu0
        %v822 = vpop.f32.mrb[0].mxu0
        %v823 = vadd.f32 %v446, %v822
        %v824 = vpop.f32.mrb[0].mxu0
        %825 = vmatprep.mubr.bf16.mxu0 0
        %826 = vmatmul.mubr.bf16.gmra.mrb[0].mxu0 %v768
        %v827 = vpop.f32.mrb[0].mxu0
        %v828 = vadd.f32 %v446, %v827
        %v829 = vpop.f32.mrb[0].mxu0
        %v830 = vpop.f32.mrb[0].mxu0
        %v831 = vadd.f32 %v446, %v830
        %v832 = vpop.f32.mrb[0].mxu0
        %833 = vdwg.mxu0
        %v834 = vmax.f32 %v804, 0.0
        %v835 = vmax.f32 %v807, 0.0
        %v836 = vmax.f32 %v812, 0.0
        %v837 = vmax.f32 %v815, 0.0
        %v838 = vmax.f32 %v820, 0.0
        %v839 = vmax.f32 %v823, 0.0
        %v840 = vmax.f32 %v828, 0.0
        %v841 = vmax.f32 %v831, 0.0
        %v842 = vpack.c.bf16 %v835, %v834
        %v843 = vpack.c.bf16 %v837, %v836
        %v844 = vpack.c.bf16 %v839, %v838
        %v845 = vpack.c.bf16 %v841, %v840
        %p846 = scmp.gt.s32.totalorder %s31, 0
        // Predicated region
        $region65: #{tpu_custom_call.1} parent=47 // pred_check
          %p847 = pneg %p846
        $region66: #{tpu_custom_call.1} parent=47 // pred_check_branch
          %849 = sbr.rel (%p847) target = $region68
        $region67: #{tpu_custom_call.1} parent=47 // pred_region
          %v852 = vunpack.c.l.b16 %v842
          %v853 = vunpack.c.h.b16 %v842
          %v854 = vunpack.c.l.b16 %v843
          %v855 = vunpack.c.h.b16 %v843
          %v856 = vpack.c.b16 %v852, %v852
          %v857 = vpack.c.b16 %v853, %v853
          %v858 = vpack.c.b16 %v854, %v854
          %v859 = vpack.c.b16 %v855, %v855
          %v860 = vrot.slane %v856, 7
          %v861 = vrot.slane %v860, 4
          %v862 = vrot.slane %v857, 7
          %v863 = vsel %vm659, %v861, %v862
          %v864 = vrot.slane %v862, 4
          %v865 = vrot.slane %v858, 7
          %v866 = vrot.slane %v865, 4
          %v867 = vrot.slane %v859, 7
          %v868 = vsel %vm659, %v866, %v867
          %v869 = vrot.slane %v867, 4
          %876 = vst.msk [vmem:[#allocation2] sm:$0xe] %vm725, %v860
          %877 = vst.msk [vmem:[#allocation2 + $0x4] sm:$0xf] %vm727, %v863
          %878 = vst.msk [vmem:[#allocation2 + $0x8] sm:$0x1] %vm392, %v864
          %879 = vst.msk [vmem:[#allocation2 + $0xc] sm:$0xe] %vm725, %v865
          %880 = vst.msk [vmem:[#allocation2 + $0x10] sm:$0xf] %vm727, %v868
          %881 = vst.msk [vmem:[#allocation2 + $0x14] sm:$0x1] %vm392, %v869
        $region68: #{tpu_custom_call.1} parent=47 // pred_fallthru
          _
        %p882 = scmp.eq.s32.totalorder %s31, 0
        // Predicated region
        $region69: #{tpu_custom_call.1} parent=47 // pred_check
          %p883 = pneg %p882
        $region70: #{tpu_custom_call.1} parent=47 // pred_check_branch
          %885 = sbr.rel (%p883) target = $region72
        $region71: #{tpu_custom_call.1} parent=47 // pred_region
          %886 = vst.msk [vmem:[#allocation2] sm:$0xe] %vm725, 0
          %887 = vst.msk [vmem:[#allocation2 + $0x4] sm:$0xf] %vm727, 0
          %888 = vst.msk [vmem:[#allocation2 + $0x8] sm:$0x1] %vm392, 0
          %889 = vst.msk [vmem:[#allocation2 + $0xc] sm:$0xe] %vm725, 0
          %890 = vst.msk [vmem:[#allocation2 + $0x10] sm:$0xf] %vm727, 0
          %891 = vst.msk [vmem:[#allocation2 + $0x14] sm:$0x1] %vm392, 0
        $region72: #{tpu_custom_call.1} parent=47 // pred_fallthru
          _
        %p892 = scmp.lt.s32.totalorder %s31, 1
        // Predicated region
        $region73: #{tpu_custom_call.1} parent=47 // pred_check
          %p893 = pneg %p892
        $region74: #{tpu_custom_call.1} parent=47 // pred_check_branch
          %895 = sbr.rel (%p893) target = $region76
        $region75: #{tpu_custom_call.1} parent=47 // pred_region
          %v898 = vunpack.c.l.b16 %v844
          %v899 = vunpack.c.h.b16 %v844
          %v900 = vunpack.c.l.b16 %v845
          %v901 = vunpack.c.h.b16 %v845
          %v902 = vpack.c.b16 %v898, %v898
          %v903 = vpack.c.b16 %v899, %v899
          %v904 = vpack.c.b16 %v900, %v900
          %v905 = vpack.c.b16 %v901, %v901
          %v906 = vrot.slane %v902, 7
          %v907 = vrot.slane %v906, 4
          %v908 = vrot.slane %v903, 7
          %v909 = vsel %vm659, %v907, %v908
          %v910 = vrot.slane %v908, 4
          %v911 = vrot.slane %v904, 7
          %v912 = vrot.slane %v911, 4
          %v913 = vrot.slane %v905, 7
          %v914 = vsel %vm659, %v912, %v913
          %v915 = vrot.slane %v913, 4
          %s922 = scalar_lea.vmem [#allocation2], 120
          %923 = vst.msk [vmem:[%s922] sm:$0xe] %vm725, %v906
          %924 = vst.msk [vmem:[%s922 + $0x4] sm:$0xf] %vm727, %v909
          %925 = vst.msk [vmem:[%s922 + $0x8] sm:$0x1] %vm392, %v910
          %926 = vst.msk [vmem:[%s922 + $0xc] sm:$0xe] %vm725, %v911
          %927 = vst.msk [vmem:[%s922 + $0x10] sm:$0xf] %vm727, %v914
          %928 = vst.msk [vmem:[%s922 + $0x14] sm:$0x1] %vm392, %v915
        $region76: #{tpu_custom_call.1} parent=47 // pred_fallthru
          _
        %p929 = scmp.eq.s32.totalorder %s31, 1
        // Predicated region
        $region77: #{tpu_custom_call.1} parent=47 // pred_check
          %p930 = pneg %p929
        $region78: #{tpu_custom_call.1} parent=47 // pred_check_branch
          %932 = sbr.rel (%p930) target = $region80
        $region79: #{tpu_custom_call.1} parent=47 // pred_region
          %s933 = scalar_lea.vmem [#allocation2], 120
          %934 = vst.msk [vmem:[%s933] sm:$0xe] %vm725, 0
          %935 = vst.msk [vmem:[%s933 + $0x4] sm:$0xf] %vm727, 0
          %936 = vst.msk [vmem:[%s933 + $0x8] sm:$0x1] %vm392, 0
          %937 = vst.msk [vmem:[%s933 + $0xc] sm:$0xe] %vm725, 0
          %938 = vst.msk [vmem:[%s933 + $0x10] sm:$0xf] %vm727, 0
          %939 = vst.msk [vmem:[%s933 + $0x14] sm:$0x1] %vm392, 0
        $region80: #{tpu_custom_call.1} parent=47 // pred_fallthru
          _
        %v940 = vld [vmem:[%s6] sm:$0x1]
        %v941 = vld [vmem:[#allocation2] sm:$0xf]
        %v942 = vld [vmem:[#allocation2 + $0x4] sm:$0xf]
        %v943 = vld [vmem:[#allocation2 + $0xc] sm:$0xf]
        %v944 = vld [vmem:[#allocation2 + $0x10] sm:$0xf]
        %v945 = vld [vmem:[#allocation2 + $0x18] sm:$0xf]
        %v946 = vld [vmem:[#allocation2 + $0x1c] sm:$0xf]
        %v947 = vld [vmem:[#allocation2 + $0x24] sm:$0xf]
        %v948 = vld [vmem:[#allocation2 + $0x28] sm:$0xf]
        %v949 = vld [vmem:[#allocation2 + $0x30] sm:$0xf]
        %v950 = vld [vmem:[#allocation2 + $0x34] sm:$0xf]
        %v951 = vld [vmem:[#allocation2 + $0x3c] sm:$0xf]
        %v952 = vld [vmem:[#allocation2 + $0x40] sm:$0xf]
        %v953 = vld [vmem:[#allocation2 + $0x48] sm:$0xf]
        %v954 = vld [vmem:[#allocation2 + $0x4c] sm:$0xf]
        %v955 = vld [vmem:[#allocation2 + $0x54] sm:$0xf]
        %v956 = vld [vmem:[#allocation2 + $0x58] sm:$0xf]
        %v957 = vld [vmem:[#allocation8] sm:$0xf]
        %v958 = vld [vmem:[#allocation8 + $0x4] sm:$0xf]
        %v959 = vld [vmem:[#allocation8 + $0x8] sm:$0xf]
        %v960 = vld [vmem:[#allocation8 + $0xc] sm:$0xf]
        %v977 = vunpack.c.l.b16 %v941
        %v978 = vunpack.c.l.b16 %v942
        %v979 = vunpack.c.l.b16 %v943
        %v980 = vunpack.c.l.b16 %v944
        %v981 = vunpack.c.l.b16 %v945
        %v982 = vunpack.c.l.b16 %v946
        %v983 = vunpack.c.l.b16 %v947
        %v984 = vunpack.c.l.b16 %v948
        %v985 = vunpack.c.l.b16 %v949
        %v986 = vunpack.c.l.b16 %v950
        %v987 = vunpack.c.l.b16 %v951
        %v988 = vunpack.c.l.b16 %v952
        %v989 = vunpack.c.l.b16 %v953
        %v990 = vunpack.c.l.b16 %v954
        %v991 = vunpack.c.l.b16 %v955
        %v992 = vunpack.c.l.b16 %v956
        %v993 = vpack.c.b16 %v978, %v977
        %v994 = vpack.c.b16 %v980, %v979
        %v995 = vpack.c.b16 %v982, %v981
        %v996 = vpack.c.b16 %v984, %v983
        %v997 = vpack.c.b16 %v986, %v985
        %v998 = vpack.c.b16 %v988, %v987
        %v999 = vpack.c.b16 %v990, %v989
        %v1000 = vpack.c.b16 %v992, %v991
        %v1005 = vunpack.c.l.b16 %v957
        %v1006 = vunpack.c.l.b16 %v958
        %v1007 = vunpack.c.l.b16 %v959
        %v1008 = vunpack.c.l.b16 %v960
        %v1009 = vpack.c.b16 %v1006, %v1005
        %v1010 = vpack.c.b16 %v1008, %v1007
        %vm1013 = vcmask 261120
        %v1015 = vsel %vm1013, %v993, 0
        %v1018 = vsel %vm1013, %v994, 0
        %v1021 = vsel %vm1013, %v995, 0
        %v1024 = vsel %vm1013, %v996, 0
        %v1027 = vsel %vm1013, %v997, 0
        %v1030 = vsel %vm1013, %v998, 0
        %v1033 = vsel %vm1013, %v999, 0
        %v1036 = vsel %vm1013, %v1000, 0
        %1038 = vmatprep.subr.bf16.mxu0 0
        %1039 = vmatpush1.bf16.msra.mxu0 %v1009
        %1040 = vmatprep.subr.bf16.mxu0 0
        %1041 = vmatpush1.bf16.msra.mxu0 %v1010
        %1042 = vmatprep.subr.bf16.mxu0 0
        %1043 = vmatpush1.bf16.msra.mxu0 0
        %1044 = vmatprep.subr.bf16.mxu0 0
        %1045 = vmatpush1.bf16.msra.mxu0 0
        %1046 = vmatprep.subr.bf16.mxu0 0
        %1047 = vmatpush1.bf16.msra.mxu0 0
        %1048 = vmatprep.subr.bf16.mxu0 0
        %1049 = vmatpush1.bf16.msra.mxu0 0
        %1050 = vmatprep.subr.bf16.mxu0 0
        %1051 = vmatpush1.bf16.msra.mxu0 0
        %1052 = vmatprep.subr.bf16.mxu0 0
        %1053 = vmatpush1.bf16.msra.mxu0 0
        %1054 = vmatprep.subr.bf16.mxu0 0
        %1055 = vmatpush1.bf16.msra.mxu0 0
        %1056 = vmatprep.subr.bf16.mxu0 0
        %1057 = vmatpush1.bf16.msra.mxu0 0
        %1058 = vmatprep.subr.bf16.mxu0 0
        %1059 = vmatpush1.bf16.msra.mxu0 0
        %1060 = vmatprep.subr.bf16.mxu0 0
        %1061 = vmatpush1.bf16.msra.mxu0 0
        %1062 = vmatprep.subr.bf16.mxu0 0
        %1063 = vmatpush1.bf16.msra.mxu0 0
        %1064 = vmatprep.subr.bf16.mxu0 0
        %1065 = vmatpush1.bf16.msra.mxu0 0
        %1066 = vmatprep.subr.bf16.mxu0 0
        %1067 = vmatpush1.bf16.msra.mxu0 0
        %1068 = vmatprep.subr.bf16.mxu0 0
        %1069 = vmatpush1.bf16.msra.mxu0 0
        %1070 = vmatprep.mubr.bf16.mxu0 0
        %1071 = vmatmul.mubr.bf16.gmra.mrb[0].mxu0 %v1015
        %v1072 = vpop.f32.mrb[0].mxu0
        %v1073 = vadd.f32 0.0, %v1072
        %v1074 = vpop.f32.mrb[0].mxu0
        %v1075 = vpop.f32.mrb[0].mxu0
        %v1076 = vadd.f32 0.0, %v1075
        %v1077 = vpop.f32.mrb[0].mxu0
        %1078 = vmatprep.mubr.bf16.mxu0 0
        %1079 = vmatmul.mubr.bf16.gmra.mrb[0].mxu0 %v1018
        %v1080 = vpop.f32.mrb[0].mxu0
        %v1081 = vadd.f32 0.0, %v1080
        %v1082 = vpop.f32.mrb[0].mxu0
        %v1083 = vpop.f32.mrb[0].mxu0
        %v1084 = vadd.f32 0.0, %v1083
        %v1085 = vpop.f32.mrb[0].mxu0
        %1086 = vmatprep.mubr.bf16.mxu0 0
        %1087 = vmatmul.mubr.bf16.gmra.mrb[0].mxu0 %v1021
        %v1088 = vpop.f32.mrb[0].mxu0
        %v1089 = vadd.f32 0.0, %v1088
        %v1090 = vpop.f32.mrb[0].mxu0
        %v1091 = vpop.f32.mrb[0].mxu0
        %v1092 = vadd.f32 0.0, %v1091
        %v1093 = vpop.f32.mrb[0].mxu0
        %1094 = vmatprep.mubr.bf16.mxu0 0
        %1095 = vmatmul.mubr.bf16.gmra.mrb[0].mxu0 %v1024
        %v1096 = vpop.f32.mrb[0].mxu0
        %v1097 = vadd.f32 0.0, %v1096
        %v1098 = vpop.f32.mrb[0].mxu0
        %v1099 = vpop.f32.mrb[0].mxu0
        %v1100 = vadd.f32 0.0, %v1099
        %v1101 = vpop.f32.mrb[0].mxu0
        %1102 = vmatprep.mubr.bf16.mxu0 0
        %1103 = vmatmul.mubr.bf16.gmra.mrb[0].mxu0 %v1027
        %v1104 = vpop.f32.mrb[0].mxu0
        %v1105 = vadd.f32 0.0, %v1104
        %v1106 = vpop.f32.mrb[0].mxu0
        %v1107 = vpop.f32.mrb[0].mxu0
        %v1108 = vadd.f32 0.0, %v1107
        %v1109 = vpop.f32.mrb[0].mxu0
        %1110 = vmatprep.mubr.bf16.mxu0 0
        %1111 = vmatmul.mubr.bf16.gmra.mrb[0].mxu0 %v1030
        %v1112 = vpop.f32.mrb[0].mxu0
        %v1113 = vadd.f32 0.0, %v1112
        %v1114 = vpop.f32.mrb[0].mxu0
        %v1115 = vpop.f32.mrb[0].mxu0
        %v1116 = vadd.f32 0.0, %v1115
        %v1117 = vpop.f32.mrb[0].mxu0
        %1118 = vmatprep.mubr.bf16.mxu0 0
        %1119 = vmatmul.mubr.bf16.gmra.mrb[0].mxu0 %v1033
        %v1120 = vpop.f32.mrb[0].mxu0
        %v1121 = vadd.f32 0.0, %v1120
        %v1122 = vpop.f32.mrb[0].mxu0
        %v1123 = vpop.f32.mrb[0].mxu0
        %v1124 = vadd.f32 0.0, %v1123
        %v1125 = vpop.f32.mrb[0].mxu0
        %1126 = vmatprep.mubr.bf16.mxu0 0
        %1127 = vmatmul.mubr.bf16.gmra.mrb[0].mxu0 %v1036
        %v1128 = vpop.f32.mrb[0].mxu0
        %v1129 = vadd.f32 0.0, %v1128
        %v1130 = vpop.f32.mrb[0].mxu0
        %v1131 = vpop.f32.mrb[0].mxu0
        %v1132 = vadd.f32 0.0, %v1131
        %v1133 = vpop.f32.mrb[0].mxu0
        %1134 = vdwg.mxu0
        %v1136 = vlaneseq
        %v1137 = vshrl.u32 %v1136, 7
        %v1138 = vsub.s32 0, %v1137
        %v1139 = vrot.slane %v940, %v1138
        %v1141 = vadd.f32 %v1139, %v1073
        %v1142 = vadd.f32 %v1139, %v1076
        %v1143 = vadd.f32 %v1139, %v1081
        %v1144 = vadd.f32 %v1139, %v1084
        %v1145 = vadd.f32 %v1139, %v1089
        %v1146 = vadd.f32 %v1139, %v1092
        %v1147 = vadd.f32 %v1139, %v1097
        %v1148 = vadd.f32 %v1139, %v1100
        %v1149 = vadd.f32 %v1139, %v1105
        %v1150 = vadd.f32 %v1139, %v1108
        %v1151 = vadd.f32 %v1139, %v1113
        %v1152 = vadd.f32 %v1139, %v1116
        %v1153 = vadd.f32 %v1139, %v1121
        %v1154 = vadd.f32 %v1139, %v1124
        %v1155 = vadd.f32 %v1139, %v1129
        %v1156 = vadd.f32 %v1139, %v1132
        %v1157 = vld [vmem:[#allocation2] sm:$0xe]
        %v1158 = vld [vmem:[#allocation2 + $0x4] sm:$0xf]
        %v1159 = vld [vmem:[#allocation2 + $0x8] sm:$0x1]
        %v1160 = vld [vmem:[#allocation2 + $0xc] sm:$0xe]
        %v1161 = vld [vmem:[#allocation2 + $0x10] sm:$0xf]
        %v1162 = vld [vmem:[#allocation2 + $0x14] sm:$0x1]
        %v1163 = vld [vmem:[#allocation2 + $0x18] sm:$0xe]
        %v1164 = vld [vmem:[#allocation2 + $0x1c] sm:$0xf]
        %v1165 = vld [vmem:[#allocation2 + $0x20] sm:$0x1]
        %v1166 = vld [vmem:[#allocation2 + $0x24] sm:$0xe]
        %v1167 = vld [vmem:[#allocation2 + $0x28] sm:$0xf]
        %v1168 = vld [vmem:[#allocation2 + $0x2c] sm:$0x1]
        %v1169 = vld [vmem:[#allocation2 + $0x30] sm:$0xe]
        %v1170 = vld [vmem:[#allocation2 + $0x34] sm:$0xf]
        %v1171 = vld [vmem:[#allocation2 + $0x38] sm:$0x1]
        %v1172 = vld [vmem:[#allocation2 + $0x3c] sm:$0xe]
        %v1173 = vld [vmem:[#allocation2 + $0x40] sm:$0xf]
        %v1174 = vld [vmem:[#allocation2 + $0x44] sm:$0x1]
        %v1175 = vld [vmem:[#allocation2 + $0x48] sm:$0xe]
        %v1176 = vld [vmem:[#allocation2 + $0x4c] sm:$0xf]
        %v1177 = vld [vmem:[#allocation2 + $0x50] sm:$0x1]
        %v1178 = vld [vmem:[#allocation2 + $0x54] sm:$0xe]
        %v1179 = vld [vmem:[#allocation2 + $0x58] sm:$0xf]
        %v1180 = vld [vmem:[#allocation2 + $0x5c] sm:$0x1]
        %vm1205 = vcmask 1042432
        %vm1206 = vcmask 1046532
        %vm1207 = vmor %vm1205, %vm1206
        %v1208 = vrot.slane %v1157, 5
        %v1209 = vrot.slane %v1208, 4
        %v1210 = vrot.slane %v1158, 5
        %v1211 = vsel %vm1207, %v1209, %v1210
        %v1212 = vrot.slane %v1210, 4
        %v1213 = vrot.slane %v1159, 5
        %v1214 = vsel %vm1207, %v1212, %v1213
        %v1215 = vrot.slane %v1160, 5
        %v1216 = vrot.slane %v1215, 4
        %v1217 = vrot.slane %v1161, 5
        %v1218 = vsel %vm1207, %v1216, %v1217
        %v1219 = vrot.slane %v1217, 4
        %v1220 = vrot.slane %v1162, 5
        %v1221 = vsel %vm1207, %v1219, %v1220
        %v1222 = vrot.slane %v1163, 5
        %v1223 = vrot.slane %v1222, 4
        %v1224 = vrot.slane %v1164, 5
        %v1225 = vsel %vm1207, %v1223, %v1224
        %v1226 = vrot.slane %v1224, 4
        %v1227 = vrot.slane %v1165, 5
        %v1228 = vsel %vm1207, %v1226, %v1227
        %v1229 = vrot.slane %v1166, 5
        %v1230 = vrot.slane %v1229, 4
        %v1231 = vrot.slane %v1167, 5
        %v1232 = vsel %vm1207, %v1230, %v1231
        %v1233 = vrot.slane %v1231, 4
        %v1234 = vrot.slane %v1168, 5
        %v1235 = vsel %vm1207, %v1233, %v1234
        %v1236 = vrot.slane %v1169, 5
        %v1237 = vrot.slane %v1236, 4
        %v1238 = vrot.slane %v1170, 5
        %v1239 = vsel %vm1207, %v1237, %v1238
        %v1240 = vrot.slane %v1238, 4
        %v1241 = vrot.slane %v1171, 5
        %v1242 = vsel %vm1207, %v1240, %v1241
        %v1243 = vrot.slane %v1172, 5
        %v1244 = vrot.slane %v1243, 4
        %v1245 = vrot.slane %v1173, 5
        %v1246 = vsel %vm1207, %v1244, %v1245
        %v1247 = vrot.slane %v1245, 4
        %v1248 = vrot.slane %v1174, 5
        %v1249 = vsel %vm1207, %v1247, %v1248
        %v1250 = vrot.slane %v1175, 5
        %v1251 = vrot.slane %v1250, 4
        %v1252 = vrot.slane %v1176, 5
        %v1253 = vsel %vm1207, %v1251, %v1252
        %v1254 = vrot.slane %v1252, 4
        %v1255 = vrot.slane %v1177, 5
        %v1256 = vsel %vm1207, %v1254, %v1255
        %v1257 = vrot.slane %v1178, 5
        %v1258 = vrot.slane %v1257, 4
        %v1259 = vrot.slane %v1179, 5
        %v1260 = vsel %vm1207, %v1258, %v1259
        %v1261 = vrot.slane %v1259, 4
        %v1262 = vrot.slane %v1180, 5
        %v1263 = vsel %vm1207, %v1261, %v1262
        %s1264 = scalar_lea.vmem [#allocation8], 16
        %v1265 = vld [vmem:[%s1264] sm:$0xf]
        %v1266 = vld [vmem:[%s1264 + $0x4] sm:$0xf]
        %v1267 = vld [vmem:[%s1264 + $0x8] sm:$0xf]
        %v1268 = vld [vmem:[%s1264 + $0xc] sm:$0xf]
        %v1269 = vunpack.c.l.b16 %v1211
        %v1270 = vunpack.c.l.b16 %v1214
        %v1271 = vunpack.c.l.b16 %v1218
        %v1272 = vunpack.c.l.b16 %v1221
        %v1273 = vunpack.c.l.b16 %v1225
        %v1274 = vunpack.c.l.b16 %v1228
        %v1275 = vunpack.c.l.b16 %v1232
        %v1276 = vunpack.c.l.b16 %v1235
        %v1277 = vunpack.c.l.b16 %v1239
        %v1278 = vunpack.c.l.b16 %v1242
        %v1279 = vunpack.c.l.b16 %v1246
        %v1280 = vunpack.c.l.b16 %v1249
        %v1281 = vunpack.c.l.b16 %v1253
        %v1282 = vunpack.c.l.b16 %v1256
        %v1283 = vunpack.c.l.b16 %v1260
        %v1284 = vunpack.c.l.b16 %v1263
        %v1285 = vpack.c.b16 %v1270, %v1269
        %v1286 = vpack.c.b16 %v1272, %v1271
        %v1287 = vpack.c.b16 %v1274, %v1273
        %v1288 = vpack.c.b16 %v1276, %v1275
        %v1289 = vpack.c.b16 %v1278, %v1277
        %v1290 = vpack.c.b16 %v1280, %v1279
        %v1291 = vpack.c.b16 %v1282, %v1281
        %v1292 = vpack.c.b16 %v1284, %v1283
        %v1297 = vunpack.c.l.b16 %v1265
        %v1298 = vunpack.c.l.b16 %v1266
        %v1299 = vunpack.c.l.b16 %v1267
        %v1300 = vunpack.c.l.b16 %v1268
        %v1301 = vpack.c.b16 %v1298, %v1297
        %v1302 = vpack.c.b16 %v1300, %v1299
        %v1306 = vsel %vm1013, %v1285, 0
        %v1309 = vsel %vm1013, %v1286, 0
        %v1312 = vsel %vm1013, %v1287, 0
        %v1315 = vsel %vm1013, %v1288, 0
        %v1318 = vsel %vm1013, %v1289, 0
        %v1321 = vsel %vm1013, %v1290, 0
        %v1324 = vsel %vm1013, %v1291, 0
        %v1327 = vsel %vm1013, %v1292, 0
        %1329 = vmatprep.subr.bf16.mxu0 0
        %1330 = vmatpush1.bf16.msra.mxu0 %v1301
        %1331 = vmatprep.subr.bf16.mxu0 0
        %1332 = vmatpush1.bf16.msra.mxu0 %v1302
        %1333 = vmatprep.subr.bf16.mxu0 0
        %1334 = vmatpush1.bf16.msra.mxu0 0
        %1335 = vmatprep.subr.bf16.mxu0 0
        %1336 = vmatpush1.bf16.msra.mxu0 0
        %1337 = vmatprep.subr.bf16.mxu0 0
        %1338 = vmatpush1.bf16.msra.mxu0 0
        %1339 = vmatprep.subr.bf16.mxu0 0
        %1340 = vmatpush1.bf16.msra.mxu0 0
        %1341 = vmatprep.subr.bf16.mxu0 0
        %1342 = vmatpush1.bf16.msra.mxu0 0
        %1343 = vmatprep.subr.bf16.mxu0 0
        %1344 = vmatpush1.bf16.msra.mxu0 0
        %1345 = vmatprep.subr.bf16.mxu0 0
        %1346 = vmatpush1.bf16.msra.mxu0 0
        %1347 = vmatprep.subr.bf16.mxu0 0
        %1348 = vmatpush1.bf16.msra.mxu0 0
        %1349 = vmatprep.subr.bf16.mxu0 0
        %1350 = vmatpush1.bf16.msra.mxu0 0
        %1351 = vmatprep.subr.bf16.mxu0 0
        %1352 = vmatpush1.bf16.msra.mxu0 0
        %1353 = vmatprep.subr.bf16.mxu0 0
        %1354 = vmatpush1.bf16.msra.mxu0 0
        %1355 = vmatprep.subr.bf16.mxu0 0
        %1356 = vmatpush1.bf16.msra.mxu0 0
        %1357 = vmatprep.subr.bf16.mxu0 0
        %1358 = vmatpush1.bf16.msra.mxu0 0
        %1359 = vmatprep.subr.bf16.mxu0 0
        %1360 = vmatpush1.bf16.msra.mxu0 0
        %1361 = vmatprep.mubr.bf16.mxu0 0
        %1362 = vmatmul.mubr.bf16.gmra.mrb[0].mxu0 %v1306
        %v1363 = vpop.f32.mrb[0].mxu0
        %v1364 = vadd.f32 0.0, %v1363
        %v1365 = vpop.f32.mrb[0].mxu0
        %v1366 = vpop.f32.mrb[0].mxu0
        %v1367 = vadd.f32 0.0, %v1366
        %v1368 = vpop.f32.mrb[0].mxu0
        %1369 = vmatprep.mubr.bf16.mxu0 0
        %1370 = vmatmul.mubr.bf16.gmra.mrb[0].mxu0 %v1309
        %v1371 = vpop.f32.mrb[0].mxu0
        %v1372 = vadd.f32 0.0, %v1371
        %v1373 = vpop.f32.mrb[0].mxu0
        %v1374 = vpop.f32.mrb[0].mxu0
        %v1375 = vadd.f32 0.0, %v1374
        %v1376 = vpop.f32.mrb[0].mxu0
        %1377 = vmatprep.mubr.bf16.mxu0 0
        %1378 = vmatmul.mubr.bf16.gmra.mrb[0].mxu0 %v1312
        %v1379 = vpop.f32.mrb[0].mxu0
        %v1380 = vadd.f32 0.0, %v1379
        %v1381 = vpop.f32.mrb[0].mxu0
        %v1382 = vpop.f32.mrb[0].mxu0
        %v1383 = vadd.f32 0.0, %v1382
        %v1384 = vpop.f32.mrb[0].mxu0
        %1385 = vmatprep.mubr.bf16.mxu0 0
        %1386 = vmatmul.mubr.bf16.gmra.mrb[0].mxu0 %v1315
        %v1387 = vpop.f32.mrb[0].mxu0
        %v1388 = vadd.f32 0.0, %v1387
        %v1389 = vpop.f32.mrb[0].mxu0
        %v1390 = vpop.f32.mrb[0].mxu0
        %v1391 = vadd.f32 0.0, %v1390
        %v1392 = vpop.f32.mrb[0].mxu0
        %1393 = vmatprep.mubr.bf16.mxu0 0
        %1394 = vmatmul.mubr.bf16.gmra.mrb[0].mxu0 %v1318
        %v1395 = vpop.f32.mrb[0].mxu0
        %v1396 = vadd.f32 0.0, %v1395
        %v1397 = vpop.f32.mrb[0].mxu0
        %v1398 = vpop.f32.mrb[0].mxu0
        %v1399 = vadd.f32 0.0, %v1398
        %v1400 = vpop.f32.mrb[0].mxu0
        %1401 = vmatprep.mubr.bf16.mxu0 0
        %1402 = vmatmul.mubr.bf16.gmra.mrb[0].mxu0 %v1321
        %v1403 = vpop.f32.mrb[0].mxu0
        %v1404 = vadd.f32 0.0, %v1403
        %v1405 = vpop.f32.mrb[0].mxu0
        %v1406 = vpop.f32.mrb[0].mxu0
        %v1407 = vadd.f32 0.0, %v1406
        %v1408 = vpop.f32.mrb[0].mxu0
        %1409 = vmatprep.mubr.bf16.mxu0 0
        %1410 = vmatmul.mubr.bf16.gmra.mrb[0].mxu0 %v1324
        %v1411 = vpop.f32.mrb[0].mxu0
        %v1412 = vadd.f32 0.0, %v1411
        %v1413 = vpop.f32.mrb[0].mxu0
        %v1414 = vpop.f32.mrb[0].mxu0
        %v1415 = vadd.f32 0.0, %v1414
        %v1416 = vpop.f32.mrb[0].mxu0
        %1417 = vmatprep.mubr.bf16.mxu0 0
        %1418 = vmatmul.mubr.bf16.gmra.mrb[0].mxu0 %v1327
        %v1419 = vpop.f32.mrb[0].mxu0
        %v1420 = vadd.f32 0.0, %v1419
        %v1421 = vpop.f32.mrb[0].mxu0
        %v1422 = vpop.f32.mrb[0].mxu0
        %v1423 = vadd.f32 0.0, %v1422
        %v1424 = vpop.f32.mrb[0].mxu0
        %1425 = vdwg.mxu0
        %v1426 = vadd.f32 %v1141, %v1364
        %v1427 = vadd.f32 %v1142, %v1367
        %v1428 = vadd.f32 %v1143, %v1372
        %v1429 = vadd.f32 %v1144, %v1375
        %v1430 = vadd.f32 %v1145, %v1380
        %v1431 = vadd.f32 %v1146, %v1383
        %v1432 = vadd.f32 %v1147, %v1388
        %v1433 = vadd.f32 %v1148, %v1391
        %v1434 = vadd.f32 %v1149, %v1396
        %v1435 = vadd.f32 %v1150, %v1399
        %v1436 = vadd.f32 %v1151, %v1404
        %v1437 = vadd.f32 %v1152, %v1407
        %v1438 = vadd.f32 %v1153, %v1412
        %v1439 = vadd.f32 %v1154, %v1415
        %v1440 = vadd.f32 %v1155, %v1420
        %v1441 = vadd.f32 %v1156, %v1423
        %v1442 = vld [vmem:[#allocation2] sm:$0xc]
        %v1443 = vld [vmem:[#allocation2 + $0x8] sm:$0x3]
        %v1444 = vld [vmem:[#allocation2 + $0xc] sm:$0xc]
        %v1445 = vld [vmem:[#allocation2 + $0x14] sm:$0x3]
        %v1446 = vld [vmem:[#allocation2 + $0x18] sm:$0xc]
        %v1447 = vld [vmem:[#allocation2 + $0x20] sm:$0x3]
        %v1448 = vld [vmem:[#allocation2 + $0x24] sm:$0xc]
        %v1449 = vld [vmem:[#allocation2 + $0x2c] sm:$0x3]
        %v1450 = vld [vmem:[#allocation2 + $0x30] sm:$0xc]
        %v1451 = vld [vmem:[#allocation2 + $0x38] sm:$0x3]
        %v1452 = vld [vmem:[#allocation2 + $0x3c] sm:$0xc]
        %v1453 = vld [vmem:[#allocation2 + $0x44] sm:$0x3]
        %v1454 = vld [vmem:[#allocation2 + $0x48] sm:$0xc]
        %v1455 = vld [vmem:[#allocation2 + $0x50] sm:$0x3]
        %v1456 = vld [vmem:[#allocation2 + $0x54] sm:$0xc]
        %v1457 = vld [vmem:[#allocation2 + $0x5c] sm:$0x3]
        %vm1474 = vcmask 1041408
        %vm1475 = vcmask 1045508
        %vm1476 = vmor %vm1474, %vm1475
        %v1477 = vrot.slane %v1442, 6
        %v1478 = vrot.slane %v1477, 4
        %v1479 = vrot.slane %v1158, 6
        %v1480 = vsel %vm1476, %v1478, %v1479
        %v1481 = vrot.slane %v1479, 4
        %v1482 = vrot.slane %v1443, 6
        %v1483 = vsel %vm1476, %v1481, %v1482
        %v1484 = vrot.slane %v1444, 6
        %v1485 = vrot.slane %v1484, 4
        %v1486 = vrot.slane %v1161, 6
        %v1487 = vsel %vm1476, %v1485, %v1486
        %v1488 = vrot.slane %v1486, 4
        %v1489 = vrot.slane %v1445, 6
        %v1490 = vsel %vm1476, %v1488, %v1489
        %v1491 = vrot.slane %v1446, 6
        %v1492 = vrot.slane %v1491, 4
        %v1493 = vrot.slane %v1164, 6
        %v1494 = vsel %vm1476, %v1492, %v1493
        %v1495 = vrot.slane %v1493, 4
        %v1496 = vrot.slane %v1447, 6
        %v1497 = vsel %vm1476, %v1495, %v1496
        %v1498 = vrot.slane %v1448, 6
        %v1499 = vrot.slane %v1498, 4
        %v1500 = vrot.slane %v1167, 6
        %v1501 = vsel %vm1476, %v1499, %v1500
        %v1502 = vrot.slane %v1500, 4
        %v1503 = vrot.slane %v1449, 6
        %v1504 = vsel %vm1476, %v1502, %v1503
        %v1505 = vrot.slane %v1450, 6
        %v1506 = vrot.slane %v1505, 4
        %v1507 = vrot.slane %v1170, 6
        %v1508 = vsel %vm1476, %v1506, %v1507
        %v1509 = vrot.slane %v1507, 4
        %v1510 = vrot.slane %v1451, 6
        %v1511 = vsel %vm1476, %v1509, %v1510
        %v1512 = vrot.slane %v1452, 6
        %v1513 = vrot.slane %v1512, 4
        %v1514 = vrot.slane %v1173, 6
        %v1515 = vsel %vm1476, %v1513, %v1514
        %v1516 = vrot.slane %v1514, 4
        %v1517 = vrot.slane %v1453, 6
        %v1518 = vsel %vm1476, %v1516, %v1517
        %v1519 = vrot.slane %v1454, 6
        %v1520 = vrot.slane %v1519, 4
        %v1521 = vrot.slane %v1176, 6
        %v1522 = vsel %vm1476, %v1520, %v1521
        %v1523 = vrot.slane %v1521, 4
        %v1524 = vrot.slane %v1455, 6
        %v1525 = vsel %vm1476, %v1523, %v1524
        %v1526 = vrot.slane %v1456, 6
        %v1527 = vrot.slane %v1526, 4
        %v1528 = vrot.slane %v1179, 6
        %v1529 = vsel %vm1476, %v1527, %v1528
        %v1530 = vrot.slane %v1528, 4
        %v1531 = vrot.slane %v1457, 6
        %v1532 = vsel %vm1476, %v1530, %v1531
        %s1533 = scalar_lea.vmem [#allocation8], 32
        %v1534 = vld [vmem:[%s1533] sm:$0xf]
        %v1535 = vld [vmem:[%s1533 + $0x4] sm:$0xf]
        %v1536 = vld [vmem:[%s1533 + $0x8] sm:$0xf]
        %v1537 = vld [vmem:[%s1533 + $0xc] sm:$0xf]
        %v1538 = vunpack.c.l.b16 %v1480
        %v1539 = vunpack.c.l.b16 %v1483
        %v1540 = vunpack.c.l.b16 %v1487
        %v1541 = vunpack.c.l.b16 %v1490
        %v1542 = vunpack.c.l.b16 %v1494
        %v1543 = vunpack.c.l.b16 %v1497
        %v1544 = vunpack.c.l.b16 %v1501
        %v1545 = vunpack.c.l.b16 %v1504
        %v1546 = vunpack.c.l.b16 %v1508
        %v1547 = vunpack.c.l.b16 %v1511
        %v1548 = vunpack.c.l.b16 %v1515
        %v1549 = vunpack.c.l.b16 %v1518
        %v1550 = vunpack.c.l.b16 %v1522
        %v1551 = vunpack.c.l.b16 %v1525
        %v1552 = vunpack.c.l.b16 %v1529
        %v1553 = vunpack.c.l.b16 %v1532
        %v1554 = vpack.c.b16 %v1539, %v1538
        %v1555 = vpack.c.b16 %v1541, %v1540
        %v1556 = vpack.c.b16 %v1543, %v1542
        %v1557 = vpack.c.b16 %v1545, %v1544
        %v1558 = vpack.c.b16 %v1547, %v1546
        %v1559 = vpack.c.b16 %v1549, %v1548
        %v1560 = vpack.c.b16 %v1551, %v1550
        %v1561 = vpack.c.b16 %v1553, %v1552
        %v1566 = vunpack.c.l.b16 %v1534
        %v1567 = vunpack.c.l.b16 %v1535
        %v1568 = vunpack.c.l.b16 %v1536
        %v1569 = vunpack.c.l.b16 %v1537
        %v1570 = vpack.c.b16 %v1567, %v1566
        %v1571 = vpack.c.b16 %v1569, %v1568
        %v1575 = vsel %vm1013, %v1554, 0
        %v1578 = vsel %vm1013, %v1555, 0
        %v1581 = vsel %vm1013, %v1556, 0
        %v1584 = vsel %vm1013, %v1557, 0
        %v1587 = vsel %vm1013, %v1558, 0
        %v1590 = vsel %vm1013, %v1559, 0
        %v1593 = vsel %vm1013, %v1560, 0
        %v1596 = vsel %vm1013, %v1561, 0
        %1598 = vmatprep.subr.bf16.mxu0 0
        %1599 = vmatpush1.bf16.msra.mxu0 %v1570
        %1600 = vmatprep.subr.bf16.mxu0 0
        %1601 = vmatpush1.bf16.msra.mxu0 %v1571
        %1602 = vmatprep.subr.bf16.mxu0 0
        %1603 = vmatpush1.bf16.msra.mxu0 0
        %1604 = vmatprep.subr.bf16.mxu0 0
        %1605 = vmatpush1.bf16.msra.mxu0 0
        %1606 = vmatprep.subr.bf16.mxu0 0
        %1607 = vmatpush1.bf16.msra.mxu0 0
        %1608 = vmatprep.subr.bf16.mxu0 0
        %1609 = vmatpush1.bf16.msra.mxu0 0
        %1610 = vmatprep.subr.bf16.mxu0 0
        %1611 = vmatpush1.bf16.msra.mxu0 0
        %1612 = vmatprep.subr.bf16.mxu0 0
        %1613 = vmatpush1.bf16.msra.mxu0 0
        %1614 = vmatprep.subr.bf16.mxu0 0
        %1615 = vmatpush1.bf16.msra.mxu0 0
        %1616 = vmatprep.subr.bf16.mxu0 0
        %1617 = vmatpush1.bf16.msra.mxu0 0
        %1618 = vmatprep.subr.bf16.mxu0 0
        %1619 = vmatpush1.bf16.msra.mxu0 0
        %1620 = vmatprep.subr.bf16.mxu0 0
        %1621 = vmatpush1.bf16.msra.mxu0 0
        %1622 = vmatprep.subr.bf16.mxu0 0
        %1623 = vmatpush1.bf16.msra.mxu0 0
        %1624 = vmatprep.subr.bf16.mxu0 0
        %1625 = vmatpush1.bf16.msra.mxu0 0
        %1626 = vmatprep.subr.bf16.mxu0 0
        %1627 = vmatpush1.bf16.msra.mxu0 0
        %1628 = vmatprep.subr.bf16.mxu0 0
        %1629 = vmatpush1.bf16.msra.mxu0 0
        %1630 = vmatprep.mubr.bf16.mxu0 0
        %1631 = vmatmul.mubr.bf16.gmra.mrb[0].mxu0 %v1575
        %v1632 = vpop.f32.mrb[0].mxu0
        %v1633 = vadd.f32 0.0, %v1632
        %v1634 = vpop.f32.mrb[0].mxu0
        %v1635 = vpop.f32.mrb[0].mxu0
        %v1636 = vadd.f32 0.0, %v1635
        %v1637 = vpop.f32.mrb[0].mxu0
        %1638 = vmatprep.mubr.bf16.mxu0 0
        %1639 = vmatmul.mubr.bf16.gmra.mrb[0].mxu0 %v1578
        %v1640 = vpop.f32.mrb[0].mxu0
        %v1641 = vadd.f32 0.0, %v1640
        %v1642 = vpop.f32.mrb[0].mxu0
        %v1643 = vpop.f32.mrb[0].mxu0
        %v1644 = vadd.f32 0.0, %v1643
        %v1645 = vpop.f32.mrb[0].mxu0
        %1646 = vmatprep.mubr.bf16.mxu0 0
        %1647 = vmatmul.mubr.bf16.gmra.mrb[0].mxu0 %v1581
        %v1648 = vpop.f32.mrb[0].mxu0
        %v1649 = vadd.f32 0.0, %v1648
        %v1650 = vpop.f32.mrb[0].mxu0
        %v1651 = vpop.f32.mrb[0].mxu0
        %v1652 = vadd.f32 0.0, %v1651
        %v1653 = vpop.f32.mrb[0].mxu0
        %1654 = vmatprep.mubr.bf16.mxu0 0
        %1655 = vmatmul.mubr.bf16.gmra.mrb[0].mxu0 %v1584
        %v1656 = vpop.f32.mrb[0].mxu0
        %v1657 = vadd.f32 0.0, %v1656
        %v1658 = vpop.f32.mrb[0].mxu0
        %v1659 = vpop.f32.mrb[0].mxu0
        %v1660 = vadd.f32 0.0, %v1659
        %v1661 = vpop.f32.mrb[0].mxu0
        %1662 = vmatprep.mubr.bf16.mxu0 0
        %1663 = vmatmul.mubr.bf16.gmra.mrb[0].mxu0 %v1587
        %v1664 = vpop.f32.mrb[0].mxu0
        %v1665 = vadd.f32 0.0, %v1664
        %v1666 = vpop.f32.mrb[0].mxu0
        %v1667 = vpop.f32.mrb[0].mxu0
        %v1668 = vadd.f32 0.0, %v1667
        %v1669 = vpop.f32.mrb[0].mxu0
        %1670 = vmatprep.mubr.bf16.mxu0 0
        %1671 = vmatmul.mubr.bf16.gmra.mrb[0].mxu0 %v1590
        %v1672 = vpop.f32.mrb[0].mxu0
        %v1673 = vadd.f32 0.0, %v1672
        %v1674 = vpop.f32.mrb[0].mxu0
        %v1675 = vpop.f32.mrb[0].mxu0
        %v1676 = vadd.f32 0.0, %v1675
        %v1677 = vpop.f32.mrb[0].mxu0
        %1678 = vmatprep.mubr.bf16.mxu0 0
        %1679 = vmatmul.mubr.bf16.gmra.mrb[0].mxu0 %v1593
        %v1680 = vpop.f32.mrb[0].mxu0
        %v1681 = vadd.f32 0.0, %v1680
        %v1682 = vpop.f32.mrb[0].mxu0
        %v1683 = vpop.f32.mrb[0].mxu0
        %v1684 = vadd.f32 0.0, %v1683
        %v1685 = vpop.f32.mrb[0].mxu0
        %1686 = vmatprep.mubr.bf16.mxu0 0
        %1687 = vmatmul.mubr.bf16.gmra.mrb[0].mxu0 %v1596
        %v1688 = vpop.f32.mrb[0].mxu0
        %v1689 = vadd.f32 0.0, %v1688
        %v1690 = vpop.f32.mrb[0].mxu0
        %v1691 = vpop.f32.mrb[0].mxu0
        %v1692 = vadd.f32 0.0, %v1691
        %v1693 = vpop.f32.mrb[0].mxu0
        %1694 = vdwg.mxu0
        %v1695 = vadd.f32 %v1426, %v1633
        %v1696 = vadd.f32 %v1427, %v1636
        %v1697 = vadd.f32 %v1428, %v1641
        %v1698 = vadd.f32 %v1429, %v1644
        %v1699 = vadd.f32 %v1430, %v1649
        %v1700 = vadd.f32 %v1431, %v1652
        %v1701 = vadd.f32 %v1432, %v1657
        %v1702 = vadd.f32 %v1433, %v1660
        %v1703 = vadd.f32 %v1434, %v1665
        %v1704 = vadd.f32 %v1435, %v1668
        %v1705 = vadd.f32 %v1436, %v1673
        %v1706 = vadd.f32 %v1437, %v1676
        %v1707 = vadd.f32 %v1438, %v1681
        %v1708 = vadd.f32 %v1439, %v1684
        %v1709 = vadd.f32 %v1440, %v1689
        %v1710 = vadd.f32 %v1441, %v1692
        %v1711 = vld [vmem:[%s724] sm:$0xf]
        %v1712 = vld [vmem:[%s724 + $0x4] sm:$0xf]
        %v1713 = vld [vmem:[%s724 + $0xc] sm:$0xf]
        %v1714 = vld [vmem:[%s724 + $0x10] sm:$0xf]
        %v1715 = vld [vmem:[%s724 + $0x18] sm:$0xf]
        %v1716 = vld [vmem:[%s724 + $0x1c] sm:$0xf]
        %v1717 = vld [vmem:[%s724 + $0x24] sm:$0xf]
        %v1718 = vld [vmem:[%s724 + $0x28] sm:$0xf]
        %v1719 = vld [vmem:[%s724 + $0x30] sm:$0xf]
        %v1720 = vld [vmem:[%s724 + $0x34] sm:$0xf]
        %v1721 = vld [vmem:[%s724 + $0x3c] sm:$0xf]
        %v1722 = vld [vmem:[%s724 + $0x40] sm:$0xf]
        %v1723 = vld [vmem:[%s724 + $0x48] sm:$0xf]
        %v1724 = vld [vmem:[%s724 + $0x4c] sm:$0xf]
        %v1725 = vld [vmem:[%s724 + $0x54] sm:$0xf]
        %v1726 = vld [vmem:[%s724 + $0x58] sm:$0xf]
        %s1727 = scalar_lea.vmem [#allocation8], 48
        %v1728 = vld [vmem:[%s1727] sm:$0xf]
        %v1729 = vld [vmem:[%s1727 + $0x4] sm:$0xf]
        %v1730 = vld [vmem:[%s1727 + $0x8] sm:$0xf]
        %v1731 = vld [vmem:[%s1727 + $0xc] sm:$0xf]
        %v1748 = vunpack.c.l.b16 %v1711
        %v1749 = vunpack.c.l.b16 %v1712
        %v1750 = vunpack.c.l.b16 %v1713
        %v1751 = vunpack.c.l.b16 %v1714
        %v1752 = vunpack.c.l.b16 %v1715
        %v1753 = vunpack.c.l.b16 %v1716
        %v1754 = vunpack.c.l.b16 %v1717
        %v1755 = vunpack.c.l.b16 %v1718
        %v1756 = vunpack.c.l.b16 %v1719
        %v1757 = vunpack.c.l.b16 %v1720
        %v1758 = vunpack.c.l.b16 %v1721
        %v1759 = vunpack.c.l.b16 %v1722
        %v1760 = vunpack.c.l.b16 %v1723
        %v1761 = vunpack.c.l.b16 %v1724
        %v1762 = vunpack.c.l.b16 %v1725
        %v1763 = vunpack.c.l.b16 %v1726
        %v1764 = vpack.c.b16 %v1749, %v1748
        %v1765 = vpack.c.b16 %v1751, %v1750
        %v1766 = vpack.c.b16 %v1753, %v1752
        %v1767 = vpack.c.b16 %v1755, %v1754
        %v1768 = vpack.c.b16 %v1757, %v1756
        %v1769 = vpack.c.b16 %v1759, %v1758
        %v1770 = vpack.c.b16 %v1761, %v1760
        %v1771 = vpack.c.b16 %v1763, %v1762
        %v1776 = vunpack.c.l.b16 %v1728
        %v1777 = vunpack.c.l.b16 %v1729
        %v1778 = vunpack.c.l.b16 %v1730
        %v1779 = vunpack.c.l.b16 %v1731
        %v1780 = vpack.c.b16 %v1777, %v1776
        %v1781 = vpack.c.b16 %v1779, %v1778
        %v1785 = vsel %vm1013, %v1764, 0
        %v1788 = vsel %vm1013, %v1765, 0
        %v1791 = vsel %vm1013, %v1766, 0
        %v1794 = vsel %vm1013, %v1767, 0
        %v1797 = vsel %vm1013, %v1768, 0
        %v1800 = vsel %vm1013, %v1769, 0
        %v1803 = vsel %vm1013, %v1770, 0
        %v1806 = vsel %vm1013, %v1771, 0
        %1808 = vmatprep.subr.bf16.mxu0 0
        %1809 = vmatpush1.bf16.msra.mxu0 %v1780
        %1810 = vmatprep.subr.bf16.mxu0 0
        %1811 = vmatpush1.bf16.msra.mxu0 %v1781
        %1812 = vmatprep.subr.bf16.mxu0 0
        %1813 = vmatpush1.bf16.msra.mxu0 0
        %1814 = vmatprep.subr.bf16.mxu0 0
        %1815 = vmatpush1.bf16.msra.mxu0 0
        %1816 = vmatprep.subr.bf16.mxu0 0
        %1817 = vmatpush1.bf16.msra.mxu0 0
        %1818 = vmatprep.subr.bf16.mxu0 0
        %1819 = vmatpush1.bf16.msra.mxu0 0
        %1820 = vmatprep.subr.bf16.mxu0 0
        %1821 = vmatpush1.bf16.msra.mxu0 0
        %1822 = vmatprep.subr.bf16.mxu0 0
        %1823 = vmatpush1.bf16.msra.mxu0 0
        %1824 = vmatprep.subr.bf16.mxu0 0
        %1825 = vmatpush1.bf16.msra.mxu0 0
        %1826 = vmatprep.subr.bf16.mxu0 0
        %1827 = vmatpush1.bf16.msra.mxu0 0
        %1828 = vmatprep.subr.bf16.mxu0 0
        %1829 = vmatpush1.bf16.msra.mxu0 0
        %1830 = vmatprep.subr.bf16.mxu0 0
        %1831 = vmatpush1.bf16.msra.mxu0 0
        %1832 = vmatprep.subr.bf16.mxu0 0
        %1833 = vmatpush1.bf16.msra.mxu0 0
        %1834 = vmatprep.subr.bf16.mxu0 0
        %1835 = vmatpush1.bf16.msra.mxu0 0
        %1836 = vmatprep.subr.bf16.mxu0 0
        %1837 = vmatpush1.bf16.msra.mxu0 0
        %1838 = vmatprep.subr.bf16.mxu0 0
        %1839 = vmatpush1.bf16.msra.mxu0 0
        %1840 = vmatprep.mubr.bf16.mxu0 0
        %1841 = vmatmul.mubr.bf16.gmra.mrb[0].mxu0 %v1785
        %v1842 = vpop.f32.mrb[0].mxu0
        %v1843 = vadd.f32 0.0, %v1842
        %v1844 = vpop.f32.mrb[0].mxu0
        %v1845 = vpop.f32.mrb[0].mxu0
        %v1846 = vadd.f32 0.0, %v1845
        %v1847 = vpop.f32.mrb[0].mxu0
        %1848 = vmatprep.mubr.bf16.mxu0 0
        %1849 = vmatmul.mubr.bf16.gmra.mrb[0].mxu0 %v1788
        %v1850 = vpop.f32.mrb[0].mxu0
        %v1851 = vadd.f32 0.0, %v1850
        %v1852 = vpop.f32.mrb[0].mxu0
        %v1853 = vpop.f32.mrb[0].mxu0
        %v1854 = vadd.f32 0.0, %v1853
        %v1855 = vpop.f32.mrb[0].mxu0
        %1856 = vmatprep.mubr.bf16.mxu0 0
        %1857 = vmatmul.mubr.bf16.gmra.mrb[0].mxu0 %v1791
        %v1858 = vpop.f32.mrb[0].mxu0
        %v1859 = vadd.f32 0.0, %v1858
        %v1860 = vpop.f32.mrb[0].mxu0
        %v1861 = vpop.f32.mrb[0].mxu0
        %v1862 = vadd.f32 0.0, %v1861
        %v1863 = vpop.f32.mrb[0].mxu0
        %1864 = vmatprep.mubr.bf16.mxu0 0
        %1865 = vmatmul.mubr.bf16.gmra.mrb[0].mxu0 %v1794
        %v1866 = vpop.f32.mrb[0].mxu0
        %v1867 = vadd.f32 0.0, %v1866
        %v1868 = vpop.f32.mrb[0].mxu0
        %v1869 = vpop.f32.mrb[0].mxu0
        %v1870 = vadd.f32 0.0, %v1869
        %v1871 = vpop.f32.mrb[0].mxu0
        %1872 = vmatprep.mubr.bf16.mxu0 0
        %1873 = vmatmul.mubr.bf16.gmra.mrb[0].mxu0 %v1797
        %v1874 = vpop.f32.mrb[0].mxu0
        %v1875 = vadd.f32 0.0, %v1874
        %v1876 = vpop.f32.mrb[0].mxu0
        %v1877 = vpop.f32.mrb[0].mxu0
        %v1878 = vadd.f32 0.0, %v1877
        %v1879 = vpop.f32.mrb[0].mxu0
        %1880 = vmatprep.mubr.bf16.mxu0 0
        %1881 = vmatmul.mubr.bf16.gmra.mrb[0].mxu0 %v1800
        %v1882 = vpop.f32.mrb[0].mxu0
        %v1883 = vadd.f32 0.0, %v1882
        %v1884 = vpop.f32.mrb[0].mxu0
        %v1885 = vpop.f32.mrb[0].mxu0
        %v1886 = vadd.f32 0.0, %v1885
        %v1887 = vpop.f32.mrb[0].mxu0
        %1888 = vmatprep.mubr.bf16.mxu0 0
        %1889 = vmatmul.mubr.bf16.gmra.mrb[0].mxu0 %v1803
        %v1890 = vpop.f32.mrb[0].mxu0
        %v1891 = vadd.f32 0.0, %v1890
        %v1892 = vpop.f32.mrb[0].mxu0
        %v1893 = vpop.f32.mrb[0].mxu0
        %v1894 = vadd.f32 0.0, %v1893
        %v1895 = vpop.f32.mrb[0].mxu0
        %1896 = vmatprep.mubr.bf16.mxu0 0
        %1897 = vmatmul.mubr.bf16.gmra.mrb[0].mxu0 %v1806
        %v1898 = vpop.f32.mrb[0].mxu0
        %v1899 = vadd.f32 0.0, %v1898
        %v1900 = vpop.f32.mrb[0].mxu0
        %v1901 = vpop.f32.mrb[0].mxu0
        %v1902 = vadd.f32 0.0, %v1901
        %v1903 = vpop.f32.mrb[0].mxu0
        %1904 = vdwg.mxu0
        %v1905 = vadd.f32 %v1695, %v1843
        %v1906 = vadd.f32 %v1696, %v1846
        %v1907 = vadd.f32 %v1697, %v1851
        %v1908 = vadd.f32 %v1698, %v1854
        %v1909 = vadd.f32 %v1699, %v1859
        %v1910 = vadd.f32 %v1700, %v1862
        %v1911 = vadd.f32 %v1701, %v1867
        %v1912 = vadd.f32 %v1702, %v1870
        %v1913 = vadd.f32 %v1703, %v1875
        %v1914 = vadd.f32 %v1704, %v1878
        %v1915 = vadd.f32 %v1705, %v1883
        %v1916 = vadd.f32 %v1706, %v1886
        %v1917 = vadd.f32 %v1707, %v1891
        %v1918 = vadd.f32 %v1708, %v1894
        %v1919 = vadd.f32 %v1709, %v1899
        %v1920 = vadd.f32 %v1710, %v1902
        %v1921 = vld [vmem:[%s724] sm:$0xe]
        %v1922 = vld [vmem:[%s724 + $0x4] sm:$0xf]
        %v1923 = vld [vmem:[%s724 + $0x8] sm:$0x1]
        %v1924 = vld [vmem:[%s724 + $0xc] sm:$0xe]
        %v1925 = vld [vmem:[%s724 + $0x10] sm:$0xf]
        %v1926 = vld [vmem:[%s724 + $0x14] sm:$0x1]
        %v1927 = vld [vmem:[%s724 + $0x18] sm:$0xe]
        %v1928 = vld [vmem:[%s724 + $0x1c] sm:$0xf]
        %v1929 = vld [vmem:[%s724 + $0x20] sm:$0x1]
        %v1930 = vld [vmem:[%s724 + $0x24] sm:$0xe]
        %v1931 = vld [vmem:[%s724 + $0x28] sm:$0xf]
        %v1932 = vld [vmem:[%s724 + $0x2c] sm:$0x1]
        %v1933 = vld [vmem:[%s724 + $0x30] sm:$0xe]
        %v1934 = vld [vmem:[%s724 + $0x34] sm:$0xf]
        %v1935 = vld [vmem:[%s724 + $0x38] sm:$0x1]
        %v1936 = vld [vmem:[%s724 + $0x3c] sm:$0xe]
        %v1937 = vld [vmem:[%s724 + $0x40] sm:$0xf]
        %v1938 = vld [vmem:[%s724 + $0x44] sm:$0x1]
        %v1939 = vld [vmem:[%s724 + $0x48] sm:$0xe]
        %v1940 = vld [vmem:[%s724 + $0x4c] sm:$0xf]
        %v1941 = vld [vmem:[%s724 + $0x50] sm:$0x1]
        %v1942 = vld [vmem:[%s724 + $0x54] sm:$0xe]
        %v1943 = vld [vmem:[%s724 + $0x58] sm:$0xf]
        %v1944 = vld [vmem:[%s724 + $0x5c] sm:$0x1]
        %v1969 = vrot.slane %v1921, 5
        %v1970 = vrot.slane %v1969, 4
        %v1971 = vrot.slane %v1922, 5
        %v1972 = vsel %vm1207, %v1970, %v1971
        %v1973 = vrot.slane %v1971, 4
        %v1974 = vrot.slane %v1923, 5
        %v1975 = vsel %vm1207, %v1973, %v1974
        %v1976 = vrot.slane %v1924, 5
        %v1977 = vrot.slane %v1976, 4
        %v1978 = vrot.slane %v1925, 5
        %v1979 = vsel %vm1207, %v1977, %v1978
        %v1980 = vrot.slane %v1978, 4
        %v1981 = vrot.slane %v1926, 5
        %v1982 = vsel %vm1207, %v1980, %v1981
        %v1983 = vrot.slane %v1927, 5
        %v1984 = vrot.slane %v1983, 4
        %v1985 = vrot.slane %v1928, 5
        %v1986 = vsel %vm1207, %v1984, %v1985
        %v1987 = vrot.slane %v1985, 4
        %v1988 = vrot.slane %v1929, 5
        %v1989 = vsel %vm1207, %v1987, %v1988
        %v1990 = vrot.slane %v1930, 5
        %v1991 = vrot.slane %v1990, 4
        %v1992 = vrot.slane %v1931, 5
        %v1993 = vsel %vm1207, %v1991, %v1992
        %v1994 = vrot.slane %v1992, 4
        %v1995 = vrot.slane %v1932, 5
        %v1996 = vsel %vm1207, %v1994, %v1995
        %v1997 = vrot.slane %v1933, 5
        %v1998 = vrot.slane %v1997, 4
        %v1999 = vrot.slane %v1934, 5
        %v2000 = vsel %vm1207, %v1998, %v1999
        %v2001 = vrot.slane %v1999, 4
        %v2002 = vrot.slane %v1935, 5
        %v2003 = vsel %vm1207, %v2001, %v2002
        %v2004 = vrot.slane %v1936, 5
        %v2005 = vrot.slane %v2004, 4
        %v2006 = vrot.slane %v1937, 5
        %v2007 = vsel %vm1207, %v2005, %v2006
        %v2008 = vrot.slane %v2006, 4
        %v2009 = vrot.slane %v1938, 5
        %v2010 = vsel %vm1207, %v2008, %v2009
        %v2011 = vrot.slane %v1939, 5
        %v2012 = vrot.slane %v2011, 4
        %v2013 = vrot.slane %v1940, 5
        %v2014 = vsel %vm1207, %v2012, %v2013
        %v2015 = vrot.slane %v2013, 4
        %v2016 = vrot.slane %v1941, 5
        %v2017 = vsel %vm1207, %v2015, %v2016
        %v2018 = vrot.slane %v1942, 5
        %v2019 = vrot.slane %v2018, 4
        %v2020 = vrot.slane %v1943, 5
        %v2021 = vsel %vm1207, %v2019, %v2020
        %v2022 = vrot.slane %v2020, 4
        %v2023 = vrot.slane %v1944, 5
        %v2024 = vsel %vm1207, %v2022, %v2023
        %s2025 = scalar_lea.vmem [#allocation8], 64
        %v2026 = vld [vmem:[%s2025] sm:$0xf]
        %v2027 = vld [vmem:[%s2025 + $0x4] sm:$0xf]
        %v2028 = vld [vmem:[%s2025 + $0x8] sm:$0xf]
        %v2029 = vld [vmem:[%s2025 + $0xc] sm:$0xf]
        %v2030 = vunpack.c.l.b16 %v1972
        %v2031 = vunpack.c.l.b16 %v1975
        %v2032 = vunpack.c.l.b16 %v1979
        %v2033 = vunpack.c.l.b16 %v1982
        %v2034 = vunpack.c.l.b16 %v1986
        %v2035 = vunpack.c.l.b16 %v1989
        %v2036 = vunpack.c.l.b16 %v1993
        %v2037 = vunpack.c.l.b16 %v1996
        %v2038 = vunpack.c.l.b16 %v2000
        %v2039 = vunpack.c.l.b16 %v2003
        %v2040 = vunpack.c.l.b16 %v2007
        %v2041 = vunpack.c.l.b16 %v2010
        %v2042 = vunpack.c.l.b16 %v2014
        %v2043 = vunpack.c.l.b16 %v2017
        %v2044 = vunpack.c.l.b16 %v2021
        %v2045 = vunpack.c.l.b16 %v2024
        %v2046 = vpack.c.b16 %v2031, %v2030
        %v2047 = vpack.c.b16 %v2033, %v2032
        %v2048 = vpack.c.b16 %v2035, %v2034
        %v2049 = vpack.c.b16 %v2037, %v2036
        %v2050 = vpack.c.b16 %v2039, %v2038
        %v2051 = vpack.c.b16 %v2041, %v2040
        %v2052 = vpack.c.b16 %v2043, %v2042
        %v2053 = vpack.c.b16 %v2045, %v2044
        %v2058 = vunpack.c.l.b16 %v2026
        %v2059 = vunpack.c.l.b16 %v2027
        %v2060 = vunpack.c.l.b16 %v2028
        %v2061 = vunpack.c.l.b16 %v2029
        %v2062 = vpack.c.b16 %v2059, %v2058
        %v2063 = vpack.c.b16 %v2061, %v2060
        %v2067 = vsel %vm1013, %v2046, 0
        %v2070 = vsel %vm1013, %v2047, 0
        %v2073 = vsel %vm1013, %v2048, 0
        %v2076 = vsel %vm1013, %v2049, 0
        %v2079 = vsel %vm1013, %v2050, 0
        %v2082 = vsel %vm1013, %v2051, 0
        %v2085 = vsel %vm1013, %v2052, 0
        %v2088 = vsel %vm1013, %v2053, 0
        %2090 = vmatprep.subr.bf16.mxu0 0
        %2091 = vmatpush1.bf16.msra.mxu0 %v2062
        %2092 = vmatprep.subr.bf16.mxu0 0
        %2093 = vmatpush1.bf16.msra.mxu0 %v2063
        %2094 = vmatprep.subr.bf16.mxu0 0
        %2095 = vmatpush1.bf16.msra.mxu0 0
        %2096 = vmatprep.subr.bf16.mxu0 0
        %2097 = vmatpush1.bf16.msra.mxu0 0
        %2098 = vmatprep.subr.bf16.mxu0 0
        %2099 = vmatpush1.bf16.msra.mxu0 0
        %2100 = vmatprep.subr.bf16.mxu0 0
        %2101 = vmatpush1.bf16.msra.mxu0 0
        %2102 = vmatprep.subr.bf16.mxu0 0
        %2103 = vmatpush1.bf16.msra.mxu0 0
        %2104 = vmatprep.subr.bf16.mxu0 0
        %2105 = vmatpush1.bf16.msra.mxu0 0
        %2106 = vmatprep.subr.bf16.mxu0 0
        %2107 = vmatpush1.bf16.msra.mxu0 0
        %2108 = vmatprep.subr.bf16.mxu0 0
        %2109 = vmatpush1.bf16.msra.mxu0 0
        %2110 = vmatprep.subr.bf16.mxu0 0
        %2111 = vmatpush1.bf16.msra.mxu0 0
        %2112 = vmatprep.subr.bf16.mxu0 0
        %2113 = vmatpush1.bf16.msra.mxu0 0
        %2114 = vmatprep.subr.bf16.mxu0 0
        %2115 = vmatpush1.bf16.msra.mxu0 0
        %2116 = vmatprep.subr.bf16.mxu0 0
        %2117 = vmatpush1.bf16.msra.mxu0 0
        %2118 = vmatprep.subr.bf16.mxu0 0
        %2119 = vmatpush1.bf16.msra.mxu0 0
        %2120 = vmatprep.subr.bf16.mxu0 0
        %2121 = vmatpush1.bf16.msra.mxu0 0
        %2122 = vmatprep.mubr.bf16.mxu0 0
        %2123 = vmatmul.mubr.bf16.gmra.mrb[0].mxu0 %v2067
        %v2124 = vpop.f32.mrb[0].mxu0
        %v2125 = vadd.f32 0.0, %v2124
        %v2126 = vpop.f32.mrb[0].mxu0
        %v2127 = vpop.f32.mrb[0].mxu0
        %v2128 = vadd.f32 0.0, %v2127
        %v2129 = vpop.f32.mrb[0].mxu0
        %2130 = vmatprep.mubr.bf16.mxu0 0
        %2131 = vmatmul.mubr.bf16.gmra.mrb[0].mxu0 %v2070
        %v2132 = vpop.f32.mrb[0].mxu0
        %v2133 = vadd.f32 0.0, %v2132
        %v2134 = vpop.f32.mrb[0].mxu0
        %v2135 = vpop.f32.mrb[0].mxu0
        %v2136 = vadd.f32 0.0, %v2135
        %v2137 = vpop.f32.mrb[0].mxu0
        %2138 = vmatprep.mubr.bf16.mxu0 0
        %2139 = vmatmul.mubr.bf16.gmra.mrb[0].mxu0 %v2073
        %v2140 = vpop.f32.mrb[0].mxu0
        %v2141 = vadd.f32 0.0, %v2140
        %v2142 = vpop.f32.mrb[0].mxu0
        %v2143 = vpop.f32.mrb[0].mxu0
        %v2144 = vadd.f32 0.0, %v2143
        %v2145 = vpop.f32.mrb[0].mxu0
        %2146 = vmatprep.mubr.bf16.mxu0 0
        %2147 = vmatmul.mubr.bf16.gmra.mrb[0].mxu0 %v2076
        %v2148 = vpop.f32.mrb[0].mxu0
        %v2149 = vadd.f32 0.0, %v2148
        %v2150 = vpop.f32.mrb[0].mxu0
        %v2151 = vpop.f32.mrb[0].mxu0
        %v2152 = vadd.f32 0.0, %v2151
        %v2153 = vpop.f32.mrb[0].mxu0
        %2154 = vmatprep.mubr.bf16.mxu0 0
        %2155 = vmatmul.mubr.bf16.gmra.mrb[0].mxu0 %v2079
        %v2156 = vpop.f32.mrb[0].mxu0
        %v2157 = vadd.f32 0.0, %v2156
        %v2158 = vpop.f32.mrb[0].mxu0
        %v2159 = vpop.f32.mrb[0].mxu0
        %v2160 = vadd.f32 0.0, %v2159
        %v2161 = vpop.f32.mrb[0].mxu0
        %2162 = vmatprep.mubr.bf16.mxu0 0
        %2163 = vmatmul.mubr.bf16.gmra.mrb[0].mxu0 %v2082
        %v2164 = vpop.f32.mrb[0].mxu0
        %v2165 = vadd.f32 0.0, %v2164
        %v2166 = vpop.f32.mrb[0].mxu0
        %v2167 = vpop.f32.mrb[0].mxu0
        %v2168 = vadd.f32 0.0, %v2167
        %v2169 = vpop.f32.mrb[0].mxu0
        %2170 = vmatprep.mubr.bf16.mxu0 0
        %2171 = vmatmul.mubr.bf16.gmra.mrb[0].mxu0 %v2085
        %v2172 = vpop.f32.mrb[0].mxu0
        %v2173 = vadd.f32 0.0, %v2172
        %v2174 = vpop.f32.mrb[0].mxu0
        %v2175 = vpop.f32.mrb[0].mxu0
        %v2176 = vadd.f32 0.0, %v2175
        %v2177 = vpop.f32.mrb[0].mxu0
        %2178 = vmatprep.mubr.bf16.mxu0 0
        %2179 = vmatmul.mubr.bf16.gmra.mrb[0].mxu0 %v2088
        %v2180 = vpop.f32.mrb[0].mxu0
        %v2181 = vadd.f32 0.0, %v2180
        %v2182 = vpop.f32.mrb[0].mxu0
        %v2183 = vpop.f32.mrb[0].mxu0
        %v2184 = vadd.f32 0.0, %v2183
        %v2185 = vpop.f32.mrb[0].mxu0
        %2186 = vdwg.mxu0
        %v2187 = vadd.f32 %v1905, %v2125
        %v2188 = vadd.f32 %v1906, %v2128
        %v2189 = vadd.f32 %v1907, %v2133
        %v2190 = vadd.f32 %v1908, %v2136
        %v2191 = vadd.f32 %v1909, %v2141
        %v2192 = vadd.f32 %v1910, %v2144
        %v2193 = vadd.f32 %v1911, %v2149
        %v2194 = vadd.f32 %v1912, %v2152
        %v2195 = vadd.f32 %v1913, %v2157
        %v2196 = vadd.f32 %v1914, %v2160
        %v2197 = vadd.f32 %v1915, %v2165
        %v2198 = vadd.f32 %v1916, %v2168
        %v2199 = vadd.f32 %v1917, %v2173
        %v2200 = vadd.f32 %v1918, %v2176
        %v2201 = vadd.f32 %v1919, %v2181
        %v2202 = vadd.f32 %v1920, %v2184
        %v2203 = vld [vmem:[%s724] sm:$0xc]
        %v2204 = vld [vmem:[%s724 + $0x8] sm:$0x3]
        %v2205 = vld [vmem:[%s724 + $0xc] sm:$0xc]
        %v2206 = vld [vmem:[%s724 + $0x14] sm:$0x3]
        %v2207 = vld [vmem:[%s724 + $0x18] sm:$0xc]
        %v2208 = vld [vmem:[%s724 + $0x20] sm:$0x3]
        %v2209 = vld [vmem:[%s724 + $0x24] sm:$0xc]
        %v2210 = vld [vmem:[%s724 + $0x2c] sm:$0x3]
        %v2211 = vld [vmem:[%s724 + $0x30] sm:$0xc]
        %v2212 = vld [vmem:[%s724 + $0x38] sm:$0x3]
        %v2213 = vld [vmem:[%s724 + $0x3c] sm:$0xc]
        %v2214 = vld [vmem:[%s724 + $0x44] sm:$0x3]
        %v2215 = vld [vmem:[%s724 + $0x48] sm:$0xc]
        %v2216 = vld [vmem:[%s724 + $0x50] sm:$0x3]
        %v2217 = vld [vmem:[%s724 + $0x54] sm:$0xc]
        %v2218 = vld [vmem:[%s724 + $0x5c] sm:$0x3]
        %v2235 = vrot.slane %v2203, 6
        %v2236 = vrot.slane %v2235, 4
        %v2237 = vrot.slane %v1922, 6
        %v2238 = vsel %vm1476, %v2236, %v2237
        %v2239 = vrot.slane %v2237, 4
        %v2240 = vrot.slane %v2204, 6
        %v2241 = vsel %vm1476, %v2239, %v2240
        %v2242 = vrot.slane %v2205, 6
        %v2243 = vrot.slane %v2242, 4
        %v2244 = vrot.slane %v1925, 6
        %v2245 = vsel %vm1476, %v2243, %v2244
        %v2246 = vrot.slane %v2244, 4
        %v2247 = vrot.slane %v2206, 6
        %v2248 = vsel %vm1476, %v2246, %v2247
        %v2249 = vrot.slane %v2207, 6
        %v2250 = vrot.slane %v2249, 4
        %v2251 = vrot.slane %v1928, 6
        %v2252 = vsel %vm1476, %v2250, %v2251
        %v2253 = vrot.slane %v2251, 4
        %v2254 = vrot.slane %v2208, 6
        %v2255 = vsel %vm1476, %v2253, %v2254
        %v2256 = vrot.slane %v2209, 6
        %v2257 = vrot.slane %v2256, 4
        %v2258 = vrot.slane %v1931, 6
        %v2259 = vsel %vm1476, %v2257, %v2258
        %v2260 = vrot.slane %v2258, 4
        %v2261 = vrot.slane %v2210, 6
        %v2262 = vsel %vm1476, %v2260, %v2261
        %v2263 = vrot.slane %v2211, 6
        %v2264 = vrot.slane %v2263, 4
        %v2265 = vrot.slane %v1934, 6
        %v2266 = vsel %vm1476, %v2264, %v2265
        %v2267 = vrot.slane %v2265, 4
        %v2268 = vrot.slane %v2212, 6
        %v2269 = vsel %vm1476, %v2267, %v2268
        %v2270 = vrot.slane %v2213, 6
        %v2271 = vrot.slane %v2270, 4
        %v2272 = vrot.slane %v1937, 6
        %v2273 = vsel %vm1476, %v2271, %v2272
        %v2274 = vrot.slane %v2272, 4
        %v2275 = vrot.slane %v2214, 6
        %v2276 = vsel %vm1476, %v2274, %v2275
        %v2277 = vrot.slane %v2215, 6
        %v2278 = vrot.slane %v2277, 4
        %v2279 = vrot.slane %v1940, 6
        %v2280 = vsel %vm1476, %v2278, %v2279
        %v2281 = vrot.slane %v2279, 4
        %v2282 = vrot.slane %v2216, 6
        %v2283 = vsel %vm1476, %v2281, %v2282
        %v2284 = vrot.slane %v2217, 6
        %v2285 = vrot.slane %v2284, 4
        %v2286 = vrot.slane %v1943, 6
        %v2287 = vsel %vm1476, %v2285, %v2286
        %v2288 = vrot.slane %v2286, 4
        %v2289 = vrot.slane %v2218, 6
        %v2290 = vsel %vm1476, %v2288, %v2289
        %s2291 = scalar_lea.vmem [#allocation8], 80
        %v2292 = vld [vmem:[%s2291] sm:$0xf]
        %v2293 = vld [vmem:[%s2291 + $0x4] sm:$0xf]
        %v2294 = vld [vmem:[%s2291 + $0x8] sm:$0xf]
        %v2295 = vld [vmem:[%s2291 + $0xc] sm:$0xf]
        %v2296 = vunpack.c.l.b16 %v2238
        %v2297 = vunpack.c.l.b16 %v2241
        %v2298 = vunpack.c.l.b16 %v2245
        %v2299 = vunpack.c.l.b16 %v2248
        %v2300 = vunpack.c.l.b16 %v2252
        %v2301 = vunpack.c.l.b16 %v2255
        %v2302 = vunpack.c.l.b16 %v2259
        %v2303 = vunpack.c.l.b16 %v2262
        %v2304 = vunpack.c.l.b16 %v2266
        %v2305 = vunpack.c.l.b16 %v2269
        %v2306 = vunpack.c.l.b16 %v2273
        %v2307 = vunpack.c.l.b16 %v2276
        %v2308 = vunpack.c.l.b16 %v2280
        %v2309 = vunpack.c.l.b16 %v2283
        %v2310 = vunpack.c.l.b16 %v2287
        %v2311 = vunpack.c.l.b16 %v2290
        %v2312 = vpack.c.b16 %v2297, %v2296
        %v2313 = vpack.c.b16 %v2299, %v2298
        %v2314 = vpack.c.b16 %v2301, %v2300
        %v2315 = vpack.c.b16 %v2303, %v2302
        %v2316 = vpack.c.b16 %v2305, %v2304
        %v2317 = vpack.c.b16 %v2307, %v2306
        %v2318 = vpack.c.b16 %v2309, %v2308
        %v2319 = vpack.c.b16 %v2311, %v2310
        %v2324 = vunpack.c.l.b16 %v2292
        %v2325 = vunpack.c.l.b16 %v2293
        %v2326 = vunpack.c.l.b16 %v2294
        %v2327 = vunpack.c.l.b16 %v2295
        %v2328 = vpack.c.b16 %v2325, %v2324
        %v2329 = vpack.c.b16 %v2327, %v2326
        %v2333 = vsel %vm1013, %v2312, 0
        %v2336 = vsel %vm1013, %v2313, 0
        %v2339 = vsel %vm1013, %v2314, 0
        %v2342 = vsel %vm1013, %v2315, 0
        %v2345 = vsel %vm1013, %v2316, 0
        %v2348 = vsel %vm1013, %v2317, 0
        %v2351 = vsel %vm1013, %v2318, 0
        %v2354 = vsel %vm1013, %v2319, 0
        %2356 = vmatprep.subr.bf16.mxu0 0
        %2357 = vmatpush1.bf16.msra.mxu0 %v2328
        %2358 = vmatprep.subr.bf16.mxu0 0
        %2359 = vmatpush1.bf16.msra.mxu0 %v2329
        %2360 = vmatprep.subr.bf16.mxu0 0
        %2361 = vmatpush1.bf16.msra.mxu0 0
        %2362 = vmatprep.subr.bf16.mxu0 0
        %2363 = vmatpush1.bf16.msra.mxu0 0
        %2364 = vmatprep.subr.bf16.mxu0 0
        %2365 = vmatpush1.bf16.msra.mxu0 0
        %2366 = vmatprep.subr.bf16.mxu0 0
        %2367 = vmatpush1.bf16.msra.mxu0 0
        %2368 = vmatprep.subr.bf16.mxu0 0
        %2369 = vmatpush1.bf16.msra.mxu0 0
        %2370 = vmatprep.subr.bf16.mxu0 0
        %2371 = vmatpush1.bf16.msra.mxu0 0
        %2372 = vmatprep.subr.bf16.mxu0 0
        %2373 = vmatpush1.bf16.msra.mxu0 0
        %2374 = vmatprep.subr.bf16.mxu0 0
        %2375 = vmatpush1.bf16.msra.mxu0 0
        %2376 = vmatprep.subr.bf16.mxu0 0
        %2377 = vmatpush1.bf16.msra.mxu0 0
        %2378 = vmatprep.subr.bf16.mxu0 0
        %2379 = vmatpush1.bf16.msra.mxu0 0
        %2380 = vmatprep.subr.bf16.mxu0 0
        %2381 = vmatpush1.bf16.msra.mxu0 0
        %2382 = vmatprep.subr.bf16.mxu0 0
        %2383 = vmatpush1.bf16.msra.mxu0 0
        %2384 = vmatprep.subr.bf16.mxu0 0
        %2385 = vmatpush1.bf16.msra.mxu0 0
        %2386 = vmatprep.subr.bf16.mxu0 0
        %2387 = vmatpush1.bf16.msra.mxu0 0
        %2388 = vmatprep.mubr.bf16.mxu0 0
        %2389 = vmatmul.mubr.bf16.gmra.mrb[0].mxu0 %v2333
        %v2390 = vpop.f32.mrb[0].mxu0
        %v2391 = vadd.f32 0.0, %v2390
        %v2392 = vpop.f32.mrb[0].mxu0
        %v2393 = vpop.f32.mrb[0].mxu0
        %v2394 = vadd.f32 0.0, %v2393
        %v2395 = vpop.f32.mrb[0].mxu0
        %2396 = vmatprep.mubr.bf16.mxu0 0
        %2397 = vmatmul.mubr.bf16.gmra.mrb[0].mxu0 %v2336
        %v2398 = vpop.f32.mrb[0].mxu0
        %v2399 = vadd.f32 0.0, %v2398
        %v2400 = vpop.f32.mrb[0].mxu0
        %v2401 = vpop.f32.mrb[0].mxu0
        %v2402 = vadd.f32 0.0, %v2401
        %v2403 = vpop.f32.mrb[0].mxu0
        %2404 = vmatprep.mubr.bf16.mxu0 0
        %2405 = vmatmul.mubr.bf16.gmra.mrb[0].mxu0 %v2339
        %v2406 = vpop.f32.mrb[0].mxu0
        %v2407 = vadd.f32 0.0, %v2406
        %v2408 = vpop.f32.mrb[0].mxu0
        %v2409 = vpop.f32.mrb[0].mxu0
        %v2410 = vadd.f32 0.0, %v2409
        %v2411 = vpop.f32.mrb[0].mxu0
        %2412 = vmatprep.mubr.bf16.mxu0 0
        %2413 = vmatmul.mubr.bf16.gmra.mrb[0].mxu0 %v2342
        %v2414 = vpop.f32.mrb[0].mxu0
        %v2415 = vadd.f32 0.0, %v2414
        %v2416 = vpop.f32.mrb[0].mxu0
        %v2417 = vpop.f32.mrb[0].mxu0
        %v2418 = vadd.f32 0.0, %v2417
        %v2419 = vpop.f32.mrb[0].mxu0
        %2420 = vmatprep.mubr.bf16.mxu0 0
        %2421 = vmatmul.mubr.bf16.gmra.mrb[0].mxu0 %v2345
        %v2422 = vpop.f32.mrb[0].mxu0
        %v2423 = vadd.f32 0.0, %v2422
        %v2424 = vpop.f32.mrb[0].mxu0
        %v2425 = vpop.f32.mrb[0].mxu0
        %v2426 = vadd.f32 0.0, %v2425
        %v2427 = vpop.f32.mrb[0].mxu0
        %2428 = vmatprep.mubr.bf16.mxu0 0
        %2429 = vmatmul.mubr.bf16.gmra.mrb[0].mxu0 %v2348
        %v2430 = vpop.f32.mrb[0].mxu0
        %v2431 = vadd.f32 0.0, %v2430
        %v2432 = vpop.f32.mrb[0].mxu0
        %v2433 = vpop.f32.mrb[0].mxu0
        %v2434 = vadd.f32 0.0, %v2433
        %v2435 = vpop.f32.mrb[0].mxu0
        %2436 = vmatprep.mubr.bf16.mxu0 0
        %2437 = vmatmul.mubr.bf16.gmra.mrb[0].mxu0 %v2351
        %v2438 = vpop.f32.mrb[0].mxu0
        %v2439 = vadd.f32 0.0, %v2438
        %v2440 = vpop.f32.mrb[0].mxu0
        %v2441 = vpop.f32.mrb[0].mxu0
        %v2442 = vadd.f32 0.0, %v2441
        %v2443 = vpop.f32.mrb[0].mxu0
        %2444 = vmatprep.mubr.bf16.mxu0 0
        %2445 = vmatmul.mubr.bf16.gmra.mrb[0].mxu0 %v2354
        %v2446 = vpop.f32.mrb[0].mxu0
        %v2447 = vadd.f32 0.0, %v2446
        %v2448 = vpop.f32.mrb[0].mxu0
        %v2449 = vpop.f32.mrb[0].mxu0
        %v2450 = vadd.f32 0.0, %v2449
        %v2451 = vpop.f32.mrb[0].mxu0
        %2452 = vdwg.mxu0
        %v2453 = vadd.f32 %v2187, %v2391
        %v2454 = vadd.f32 %v2188, %v2394
        %v2455 = vadd.f32 %v2189, %v2399
        %v2456 = vadd.f32 %v2190, %v2402
        %v2457 = vadd.f32 %v2191, %v2407
        %v2458 = vadd.f32 %v2192, %v2410
        %v2459 = vadd.f32 %v2193, %v2415
        %v2460 = vadd.f32 %v2194, %v2418
        %v2461 = vadd.f32 %v2195, %v2423
        %v2462 = vadd.f32 %v2196, %v2426
        %v2463 = vadd.f32 %v2197, %v2431
        %v2464 = vadd.f32 %v2198, %v2434
        %v2465 = vadd.f32 %v2199, %v2439
        %v2466 = vadd.f32 %v2200, %v2442
        %v2467 = vadd.f32 %v2201, %v2447
        %v2468 = vadd.f32 %v2202, %v2450
        %s2469 = scalar_lea.vmem [#allocation2], 48
        %v2470 = vld [vmem:[%s2469] sm:$0xf]
        %v2471 = vld [vmem:[%s2469 + $0x4] sm:$0xf]
        %v2472 = vld [vmem:[%s2469 + $0xc] sm:$0xf]
        %v2473 = vld [vmem:[%s2469 + $0x10] sm:$0xf]
        %v2474 = vld [vmem:[%s2469 + $0x18] sm:$0xf]
        %v2475 = vld [vmem:[%s2469 + $0x1c] sm:$0xf]
        %v2476 = vld [vmem:[%s2469 + $0x24] sm:$0xf]
        %v2477 = vld [vmem:[%s2469 + $0x28] sm:$0xf]
        %v2478 = vld [vmem:[%s2469 + $0x30] sm:$0xf]
        %v2479 = vld [vmem:[%s2469 + $0x34] sm:$0xf]
        %v2480 = vld [vmem:[%s2469 + $0x3c] sm:$0xf]
        %v2481 = vld [vmem:[%s2469 + $0x40] sm:$0xf]
        %v2482 = vld [vmem:[%s2469 + $0x48] sm:$0xf]
        %v2483 = vld [vmem:[%s2469 + $0x4c] sm:$0xf]
        %v2484 = vld [vmem:[%s2469 + $0x54] sm:$0xf]
        %v2485 = vld [vmem:[%s2469 + $0x58] sm:$0xf]
        %s2486 = scalar_lea.vmem [#allocation8], 96
        %v2487 = vld [vmem:[%s2486] sm:$0xf]
        %v2488 = vld [vmem:[%s2486 + $0x4] sm:$0xf]
        %v2489 = vld [vmem:[%s2486 + $0x8] sm:$0xf]
        %v2490 = vld [vmem:[%s2486 + $0xc] sm:$0xf]
        %v2507 = vunpack.c.l.b16 %v2470
        %v2508 = vunpack.c.l.b16 %v2471
        %v2509 = vunpack.c.l.b16 %v2472
        %v2510 = vunpack.c.l.b16 %v2473
        %v2511 = vunpack.c.l.b16 %v2474
        %v2512 = vunpack.c.l.b16 %v2475
        %v2513 = vunpack.c.l.b16 %v2476
        %v2514 = vunpack.c.l.b16 %v2477
        %v2515 = vunpack.c.l.b16 %v2478
        %v2516 = vunpack.c.l.b16 %v2479
        %v2517 = vunpack.c.l.b16 %v2480
        %v2518 = vunpack.c.l.b16 %v2481
        %v2519 = vunpack.c.l.b16 %v2482
        %v2520 = vunpack.c.l.b16 %v2483
        %v2521 = vunpack.c.l.b16 %v2484
        %v2522 = vunpack.c.l.b16 %v2485
        %v2523 = vpack.c.b16 %v2508, %v2507
        %v2524 = vpack.c.b16 %v2510, %v2509
        %v2525 = vpack.c.b16 %v2512, %v2511
        %v2526 = vpack.c.b16 %v2514, %v2513
        %v2527 = vpack.c.b16 %v2516, %v2515
        %v2528 = vpack.c.b16 %v2518, %v2517
        %v2529 = vpack.c.b16 %v2520, %v2519
        %v2530 = vpack.c.b16 %v2522, %v2521
        %v2535 = vunpack.c.l.b16 %v2487
        %v2536 = vunpack.c.l.b16 %v2488
        %v2537 = vunpack.c.l.b16 %v2489
        %v2538 = vunpack.c.l.b16 %v2490
        %v2539 = vpack.c.b16 %v2536, %v2535
        %v2540 = vpack.c.b16 %v2538, %v2537
        %v2544 = vsel %vm1013, %v2523, 0
        %v2547 = vsel %vm1013, %v2524, 0
        %v2550 = vsel %vm1013, %v2525, 0
        %v2553 = vsel %vm1013, %v2526, 0
        %v2556 = vsel %vm1013, %v2527, 0
        %v2559 = vsel %vm1013, %v2528, 0
        %v2562 = vsel %vm1013, %v2529, 0
        %v2565 = vsel %vm1013, %v2530, 0
        %2567 = vmatprep.subr.bf16.mxu0 0
        %2568 = vmatpush1.bf16.msra.mxu0 %v2539
        %2569 = vmatprep.subr.bf16.mxu0 0
        %2570 = vmatpush1.bf16.msra.mxu0 %v2540
        %2571 = vmatprep.subr.bf16.mxu0 0
        %2572 = vmatpush1.bf16.msra.mxu0 0
        %2573 = vmatprep.subr.bf16.mxu0 0
        %2574 = vmatpush1.bf16.msra.mxu0 0
        %2575 = vmatprep.subr.bf16.mxu0 0
        %2576 = vmatpush1.bf16.msra.mxu0 0
        %2577 = vmatprep.subr.bf16.mxu0 0
        %2578 = vmatpush1.bf16.msra.mxu0 0
        %2579 = vmatprep.subr.bf16.mxu0 0
        %2580 = vmatpush1.bf16.msra.mxu0 0
        %2581 = vmatprep.subr.bf16.mxu0 0
        %2582 = vmatpush1.bf16.msra.mxu0 0
        %2583 = vmatprep.subr.bf16.mxu0 0
        %2584 = vmatpush1.bf16.msra.mxu0 0
        %2585 = vmatprep.subr.bf16.mxu0 0
        %2586 = vmatpush1.bf16.msra.mxu0 0
        %2587 = vmatprep.subr.bf16.mxu0 0
        %2588 = vmatpush1.bf16.msra.mxu0 0
        %2589 = vmatprep.subr.bf16.mxu0 0
        %2590 = vmatpush1.bf16.msra.mxu0 0
        %2591 = vmatprep.subr.bf16.mxu0 0
        %2592 = vmatpush1.bf16.msra.mxu0 0
        %2593 = vmatprep.subr.bf16.mxu0 0
        %2594 = vmatpush1.bf16.msra.mxu0 0
        %2595 = vmatprep.subr.bf16.mxu0 0
        %2596 = vmatpush1.bf16.msra.mxu0 0
        %2597 = vmatprep.subr.bf16.mxu0 0
        %2598 = vmatpush1.bf16.msra.mxu0 0
        %2599 = vmatprep.mubr.bf16.mxu0 0
        %2600 = vmatmul.mubr.bf16.gmra.mrb[0].mxu0 %v2544
        %v2601 = vpop.f32.mrb[0].mxu0
        %v2602 = vadd.f32 0.0, %v2601
        %v2603 = vpop.f32.mrb[0].mxu0
        %v2604 = vpop.f32.mrb[0].mxu0
        %v2605 = vadd.f32 0.0, %v2604
        %v2606 = vpop.f32.mrb[0].mxu0
        %2607 = vmatprep.mubr.bf16.mxu0 0
        %2608 = vmatmul.mubr.bf16.gmra.mrb[0].mxu0 %v2547
        %v2609 = vpop.f32.mrb[0].mxu0
        %v2610 = vadd.f32 0.0, %v2609
        %v2611 = vpop.f32.mrb[0].mxu0
        %v2612 = vpop.f32.mrb[0].mxu0
        %v2613 = vadd.f32 0.0, %v2612
        %v2614 = vpop.f32.mrb[0].mxu0
        %2615 = vmatprep.mubr.bf16.mxu0 0
        %2616 = vmatmul.mubr.bf16.gmra.mrb[0].mxu0 %v2550
        %v2617 = vpop.f32.mrb[0].mxu0
        %v2618 = vadd.f32 0.0, %v2617
        %v2619 = vpop.f32.mrb[0].mxu0
        %v2620 = vpop.f32.mrb[0].mxu0
        %v2621 = vadd.f32 0.0, %v2620
        %v2622 = vpop.f32.mrb[0].mxu0
        %2623 = vmatprep.mubr.bf16.mxu0 0
        %2624 = vmatmul.mubr.bf16.gmra.mrb[0].mxu0 %v2553
        %v2625 = vpop.f32.mrb[0].mxu0
        %v2626 = vadd.f32 0.0, %v2625
        %v2627 = vpop.f32.mrb[0].mxu0
        %v2628 = vpop.f32.mrb[0].mxu0
        %v2629 = vadd.f32 0.0, %v2628
        %v2630 = vpop.f32.mrb[0].mxu0
        %2631 = vmatprep.mubr.bf16.mxu0 0
        %2632 = vmatmul.mubr.bf16.gmra.mrb[0].mxu0 %v2556
        %v2633 = vpop.f32.mrb[0].mxu0
        %v2634 = vadd.f32 0.0, %v2633
        %v2635 = vpop.f32.mrb[0].mxu0
        %v2636 = vpop.f32.mrb[0].mxu0
        %v2637 = vadd.f32 0.0, %v2636
        %v2638 = vpop.f32.mrb[0].mxu0
        %2639 = vmatprep.mubr.bf16.mxu0 0
        %2640 = vmatmul.mubr.bf16.gmra.mrb[0].mxu0 %v2559
        %v2641 = vpop.f32.mrb[0].mxu0
        %v2642 = vadd.f32 0.0, %v2641
        %v2643 = vpop.f32.mrb[0].mxu0
        %v2644 = vpop.f32.mrb[0].mxu0
        %v2645 = vadd.f32 0.0, %v2644
        %v2646 = vpop.f32.mrb[0].mxu0
        %2647 = vmatprep.mubr.bf16.mxu0 0
        %2648 = vmatmul.mubr.bf16.gmra.mrb[0].mxu0 %v2562
        %v2649 = vpop.f32.mrb[0].mxu0
        %v2650 = vadd.f32 0.0, %v2649
        %v2651 = vpop.f32.mrb[0].mxu0
        %v2652 = vpop.f32.mrb[0].mxu0
        %v2653 = vadd.f32 0.0, %v2652
        %v2654 = vpop.f32.mrb[0].mxu0
        %2655 = vmatprep.mubr.bf16.mxu0 0
        %2656 = vmatmul.mubr.bf16.gmra.mrb[0].mxu0 %v2565
        %v2657 = vpop.f32.mrb[0].mxu0
        %v2658 = vadd.f32 0.0, %v2657
        %v2659 = vpop.f32.mrb[0].mxu0
        %v2660 = vpop.f32.mrb[0].mxu0
        %v2661 = vadd.f32 0.0, %v2660
        %v2662 = vpop.f32.mrb[0].mxu0
        %2663 = vdwg.mxu0
        %v2664 = vadd.f32 %v2453, %v2602
        %v2665 = vadd.f32 %v2454, %v2605
        %v2666 = vadd.f32 %v2455, %v2610
        %v2667 = vadd.f32 %v2456, %v2613
        %v2668 = vadd.f32 %v2457, %v2618
        %v2669 = vadd.f32 %v2458, %v2621
        %v2670 = vadd.f32 %v2459, %v2626
        %v2671 = vadd.f32 %v2460, %v2629
        %v2672 = vadd.f32 %v2461, %v2634
        %v2673 = vadd.f32 %v2462, %v2637
        %v2674 = vadd.f32 %v2463, %v2642
        %v2675 = vadd.f32 %v2464, %v2645
        %v2676 = vadd.f32 %v2465, %v2650
        %v2677 = vadd.f32 %v2466, %v2653
        %v2678 = vadd.f32 %v2467, %v2658
        %v2679 = vadd.f32 %v2468, %v2661
        %v2680 = vld [vmem:[%s2469] sm:$0xe]
        %v2681 = vld [vmem:[%s2469 + $0x4] sm:$0xf]
        %v2682 = vld [vmem:[%s2469 + $0x8] sm:$0x1]
        %v2683 = vld [vmem:[%s2469 + $0xc] sm:$0xe]
        %v2684 = vld [vmem:[%s2469 + $0x10] sm:$0xf]
        %v2685 = vld [vmem:[%s2469 + $0x14] sm:$0x1]
        %v2686 = vld [vmem:[%s2469 + $0x18] sm:$0xe]
        %v2687 = vld [vmem:[%s2469 + $0x1c] sm:$0xf]
        %v2688 = vld [vmem:[%s2469 + $0x20] sm:$0x1]
        %v2689 = vld [vmem:[%s2469 + $0x24] sm:$0xe]
        %v2690 = vld [vmem:[%s2469 + $0x28] sm:$0xf]
        %v2691 = vld [vmem:[%s2469 + $0x2c] sm:$0x1]
        %v2692 = vld [vmem:[%s2469 + $0x30] sm:$0xe]
        %v2693 = vld [vmem:[%s2469 + $0x34] sm:$0xf]
        %v2694 = vld [vmem:[%s2469 + $0x38] sm:$0x1]
        %v2695 = vld [vmem:[%s2469 + $0x3c] sm:$0xe]
        %v2696 = vld [vmem:[%s2469 + $0x40] sm:$0xf]
        %v2697 = vld [vmem:[%s2469 + $0x44] sm:$0x1]
        %v2698 = vld [vmem:[%s2469 + $0x48] sm:$0xe]
        %v2699 = vld [vmem:[%s2469 + $0x4c] sm:$0xf]
        %v2700 = vld [vmem:[%s2469 + $0x50] sm:$0x1]
        %v2701 = vld [vmem:[%s2469 + $0x54] sm:$0xe]
        %v2702 = vld [vmem:[%s2469 + $0x58] sm:$0xf]
        %v2703 = vld [vmem:[%s2469 + $0x5c] sm:$0x1]
        %v2728 = vrot.slane %v2680, 5
        %v2729 = vrot.slane %v2728, 4
        %v2730 = vrot.slane %v2681, 5
        %v2731 = vsel %vm1207, %v2729, %v2730
        %v2732 = vrot.slane %v2730, 4
        %v2733 = vrot.slane %v2682, 5
        %v2734 = vsel %vm1207, %v2732, %v2733
        %v2735 = vrot.slane %v2683, 5
        %v2736 = vrot.slane %v2735, 4
        %v2737 = vrot.slane %v2684, 5
        %v2738 = vsel %vm1207, %v2736, %v2737
        %v2739 = vrot.slane %v2737, 4
        %v2740 = vrot.slane %v2685, 5
        %v2741 = vsel %vm1207, %v2739, %v2740
        %v2742 = vrot.slane %v2686, 5
        %v2743 = vrot.slane %v2742, 4
        %v2744 = vrot.slane %v2687, 5
        %v2745 = vsel %vm1207, %v2743, %v2744
        %v2746 = vrot.slane %v2744, 4
        %v2747 = vrot.slane %v2688, 5
        %v2748 = vsel %vm1207, %v2746, %v2747
        %v2749 = vrot.slane %v2689, 5
        %v2750 = vrot.slane %v2749, 4
        %v2751 = vrot.slane %v2690, 5
        %v2752 = vsel %vm1207, %v2750, %v2751
        %v2753 = vrot.slane %v2751, 4
        %v2754 = vrot.slane %v2691, 5
        %v2755 = vsel %vm1207, %v2753, %v2754
        %v2756 = vrot.slane %v2692, 5
        %v2757 = vrot.slane %v2756, 4
        %v2758 = vrot.slane %v2693, 5
        %v2759 = vsel %vm1207, %v2757, %v2758
        %v2760 = vrot.slane %v2758, 4
        %v2761 = vrot.slane %v2694, 5
        %v2762 = vsel %vm1207, %v2760, %v2761
        %v2763 = vrot.slane %v2695, 5
        %v2764 = vrot.slane %v2763, 4
        %v2765 = vrot.slane %v2696, 5
        %v2766 = vsel %vm1207, %v2764, %v2765
        %v2767 = vrot.slane %v2765, 4
        %v2768 = vrot.slane %v2697, 5
        %v2769 = vsel %vm1207, %v2767, %v2768
        %v2770 = vrot.slane %v2698, 5
        %v2771 = vrot.slane %v2770, 4
        %v2772 = vrot.slane %v2699, 5
        %v2773 = vsel %vm1207, %v2771, %v2772
        %v2774 = vrot.slane %v2772, 4
        %v2775 = vrot.slane %v2700, 5
        %v2776 = vsel %vm1207, %v2774, %v2775
        %v2777 = vrot.slane %v2701, 5
        %v2778 = vrot.slane %v2777, 4
        %v2779 = vrot.slane %v2702, 5
        %v2780 = vsel %vm1207, %v2778, %v2779
        %v2781 = vrot.slane %v2779, 4
        %v2782 = vrot.slane %v2703, 5
        %v2783 = vsel %vm1207, %v2781, %v2782
        %s2784 = scalar_lea.vmem [#allocation8], 112
        %v2785 = vld [vmem:[%s2784] sm:$0xf]
        %v2786 = vld [vmem:[%s2784 + $0x4] sm:$0xf]
        %v2787 = vld [vmem:[%s2784 + $0x8] sm:$0xf]
        %v2788 = vld [vmem:[%s2784 + $0xc] sm:$0xf]
        %v2789 = vunpack.c.l.b16 %v2731
        %v2790 = vunpack.c.l.b16 %v2734
        %v2791 = vunpack.c.l.b16 %v2738
        %v2792 = vunpack.c.l.b16 %v2741
        %v2793 = vunpack.c.l.b16 %v2745
        %v2794 = vunpack.c.l.b16 %v2748
        %v2795 = vunpack.c.l.b16 %v2752
        %v2796 = vunpack.c.l.b16 %v2755
        %v2797 = vunpack.c.l.b16 %v2759
        %v2798 = vunpack.c.l.b16 %v2762
        %v2799 = vunpack.c.l.b16 %v2766
        %v2800 = vunpack.c.l.b16 %v2769
        %v2801 = vunpack.c.l.b16 %v2773
        %v2802 = vunpack.c.l.b16 %v2776
        %v2803 = vunpack.c.l.b16 %v2780
        %v2804 = vunpack.c.l.b16 %v2783
        %v2805 = vpack.c.b16 %v2790, %v2789
        %v2806 = vpack.c.b16 %v2792, %v2791
        %v2807 = vpack.c.b16 %v2794, %v2793
        %v2808 = vpack.c.b16 %v2796, %v2795
        %v2809 = vpack.c.b16 %v2798, %v2797
        %v2810 = vpack.c.b16 %v2800, %v2799
        %v2811 = vpack.c.b16 %v2802, %v2801
        %v2812 = vpack.c.b16 %v2804, %v2803
        %v2817 = vunpack.c.l.b16 %v2785
        %v2818 = vunpack.c.l.b16 %v2786
        %v2819 = vunpack.c.l.b16 %v2787
        %v2820 = vunpack.c.l.b16 %v2788
        %v2821 = vpack.c.b16 %v2818, %v2817
        %v2822 = vpack.c.b16 %v2820, %v2819
        %v2826 = vsel %vm1013, %v2805, 0
        %v2829 = vsel %vm1013, %v2806, 0
        %v2832 = vsel %vm1013, %v2807, 0
        %v2835 = vsel %vm1013, %v2808, 0
        %v2838 = vsel %vm1013, %v2809, 0
        %v2841 = vsel %vm1013, %v2810, 0
        %v2844 = vsel %vm1013, %v2811, 0
        %v2847 = vsel %vm1013, %v2812, 0
        %2849 = vmatprep.subr.bf16.mxu0 0
        %2850 = vmatpush1.bf16.msra.mxu0 %v2821
        %2851 = vmatprep.subr.bf16.mxu0 0
        %2852 = vmatpush1.bf16.msra.mxu0 %v2822
        %2853 = vmatprep.subr.bf16.mxu0 0
        %2854 = vmatpush1.bf16.msra.mxu0 0
        %2855 = vmatprep.subr.bf16.mxu0 0
        %2856 = vmatpush1.bf16.msra.mxu0 0
        %2857 = vmatprep.subr.bf16.mxu0 0
        %2858 = vmatpush1.bf16.msra.mxu0 0
        %2859 = vmatprep.subr.bf16.mxu0 0
        %2860 = vmatpush1.bf16.msra.mxu0 0
        %2861 = vmatprep.subr.bf16.mxu0 0
        %2862 = vmatpush1.bf16.msra.mxu0 0
        %2863 = vmatprep.subr.bf16.mxu0 0
        %2864 = vmatpush1.bf16.msra.mxu0 0
        %2865 = vmatprep.subr.bf16.mxu0 0
        %2866 = vmatpush1.bf16.msra.mxu0 0
        %2867 = vmatprep.subr.bf16.mxu0 0
        %2868 = vmatpush1.bf16.msra.mxu0 0
        %2869 = vmatprep.subr.bf16.mxu0 0
        %2870 = vmatpush1.bf16.msra.mxu0 0
        %2871 = vmatprep.subr.bf16.mxu0 0
        %2872 = vmatpush1.bf16.msra.mxu0 0
        %2873 = vmatprep.subr.bf16.mxu0 0
        %2874 = vmatpush1.bf16.msra.mxu0 0
        %2875 = vmatprep.subr.bf16.mxu0 0
        %2876 = vmatpush1.bf16.msra.mxu0 0
        %2877 = vmatprep.subr.bf16.mxu0 0
        %2878 = vmatpush1.bf16.msra.mxu0 0
        %2879 = vmatprep.subr.bf16.mxu0 0
        %2880 = vmatpush1.bf16.msra.mxu0 0
        %2881 = vmatprep.mubr.bf16.mxu0 0
        %2882 = vmatmul.mubr.bf16.gmra.mrb[0].mxu0 %v2826
        %v2883 = vpop.f32.mrb[0].mxu0
        %v2884 = vadd.f32 0.0, %v2883
        %v2885 = vpop.f32.mrb[0].mxu0
        %v2886 = vpop.f32.mrb[0].mxu0
        %v2887 = vadd.f32 0.0, %v2886
        %v2888 = vpop.f32.mrb[0].mxu0
        %2889 = vmatprep.mubr.bf16.mxu0 0
        %2890 = vmatmul.mubr.bf16.gmra.mrb[0].mxu0 %v2829
        %v2891 = vpop.f32.mrb[0].mxu0
        %v2892 = vadd.f32 0.0, %v2891
        %v2893 = vpop.f32.mrb[0].mxu0
        %v2894 = vpop.f32.mrb[0].mxu0
        %v2895 = vadd.f32 0.0, %v2894
        %v2896 = vpop.f32.mrb[0].mxu0
        %2897 = vmatprep.mubr.bf16.mxu0 0
        %2898 = vmatmul.mubr.bf16.gmra.mrb[0].mxu0 %v2832
        %v2899 = vpop.f32.mrb[0].mxu0
        %v2900 = vadd.f32 0.0, %v2899
        %v2901 = vpop.f32.mrb[0].mxu0
        %v2902 = vpop.f32.mrb[0].mxu0
        %v2903 = vadd.f32 0.0, %v2902
        %v2904 = vpop.f32.mrb[0].mxu0
        %2905 = vmatprep.mubr.bf16.mxu0 0
        %2906 = vmatmul.mubr.bf16.gmra.mrb[0].mxu0 %v2835
        %v2907 = vpop.f32.mrb[0].mxu0
        %v2908 = vadd.f32 0.0, %v2907
        %v2909 = vpop.f32.mrb[0].mxu0
        %v2910 = vpop.f32.mrb[0].mxu0
        %v2911 = vadd.f32 0.0, %v2910
        %v2912 = vpop.f32.mrb[0].mxu0
        %2913 = vmatprep.mubr.bf16.mxu0 0
        %2914 = vmatmul.mubr.bf16.gmra.mrb[0].mxu0 %v2838
        %v2915 = vpop.f32.mrb[0].mxu0
        %v2916 = vadd.f32 0.0, %v2915
        %v2917 = vpop.f32.mrb[0].mxu0
        %v2918 = vpop.f32.mrb[0].mxu0
        %v2919 = vadd.f32 0.0, %v2918
        %v2920 = vpop.f32.mrb[0].mxu0
        %2921 = vmatprep.mubr.bf16.mxu0 0
        %2922 = vmatmul.mubr.bf16.gmra.mrb[0].mxu0 %v2841
        %v2923 = vpop.f32.mrb[0].mxu0
        %v2924 = vadd.f32 0.0, %v2923
        %v2925 = vpop.f32.mrb[0].mxu0
        %v2926 = vpop.f32.mrb[0].mxu0
        %v2927 = vadd.f32 0.0, %v2926
        %v2928 = vpop.f32.mrb[0].mxu0
        %2929 = vmatprep.mubr.bf16.mxu0 0
        %2930 = vmatmul.mubr.bf16.gmra.mrb[0].mxu0 %v2844
        %v2931 = vpop.f32.mrb[0].mxu0
        %v2932 = vadd.f32 0.0, %v2931
        %v2933 = vpop.f32.mrb[0].mxu0
        %v2934 = vpop.f32.mrb[0].mxu0
        %v2935 = vadd.f32 0.0, %v2934
        %v2936 = vpop.f32.mrb[0].mxu0
        %2937 = vmatprep.mubr.bf16.mxu0 0
        %2938 = vmatmul.mubr.bf16.gmra.mrb[0].mxu0 %v2847
        %v2939 = vpop.f32.mrb[0].mxu0
        %v2940 = vadd.f32 0.0, %v2939
        %v2941 = vpop.f32.mrb[0].mxu0
        %v2942 = vpop.f32.mrb[0].mxu0
        %v2943 = vadd.f32 0.0, %v2942
        %v2944 = vpop.f32.mrb[0].mxu0
        %2945 = vdwg.mxu0
        %v2946 = vadd.f32 %v2664, %v2884
        %v2947 = vadd.f32 %v2665, %v2887
        %v2948 = vadd.f32 %v2666, %v2892
        %v2949 = vadd.f32 %v2667, %v2895
        %v2950 = vadd.f32 %v2668, %v2900
        %v2951 = vadd.f32 %v2669, %v2903
        %v2952 = vadd.f32 %v2670, %v2908
        %v2953 = vadd.f32 %v2671, %v2911
        %v2954 = vadd.f32 %v2672, %v2916
        %v2955 = vadd.f32 %v2673, %v2919
        %v2956 = vadd.f32 %v2674, %v2924
        %v2957 = vadd.f32 %v2675, %v2927
        %v2958 = vadd.f32 %v2676, %v2932
        %v2959 = vadd.f32 %v2677, %v2935
        %v2960 = vadd.f32 %v2678, %v2940
        %v2961 = vadd.f32 %v2679, %v2943
        %v2962 = vld [vmem:[%s2469] sm:$0xc]
        %v2963 = vld [vmem:[%s2469 + $0x8] sm:$0x3]
        %v2964 = vld [vmem:[%s2469 + $0xc] sm:$0xc]
        %v2965 = vld [vmem:[%s2469 + $0x14] sm:$0x3]
        %v2966 = vld [vmem:[%s2469 + $0x18] sm:$0xc]
        %v2967 = vld [vmem:[%s2469 + $0x20] sm:$0x3]
        %v2968 = vld [vmem:[%s2469 + $0x24] sm:$0xc]
        %v2969 = vld [vmem:[%s2469 + $0x2c] sm:$0x3]
        %v2970 = vld [vmem:[%s2469 + $0x30] sm:$0xc]
        %v2971 = vld [vmem:[%s2469 + $0x38] sm:$0x3]
        %v2972 = vld [vmem:[%s2469 + $0x3c] sm:$0xc]
        %v2973 = vld [vmem:[%s2469 + $0x44] sm:$0x3]
        %v2974 = vld [vmem:[%s2469 + $0x48] sm:$0xc]
        %v2975 = vld [vmem:[%s2469 + $0x50] sm:$0x3]
        %v2976 = vld [vmem:[%s2469 + $0x54] sm:$0xc]
        %v2977 = vld [vmem:[%s2469 + $0x5c] sm:$0x3]
        %v2994 = vrot.slane %v2962, 6
        %v2995 = vrot.slane %v2994, 4
        %v2996 = vrot.slane %v2681, 6
        %v2997 = vsel %vm1476, %v2995, %v2996
        %v2998 = vrot.slane %v2996, 4
        %v2999 = vrot.slane %v2963, 6
        %v3000 = vsel %vm1476, %v2998, %v2999
        %v3001 = vrot.slane %v2964, 6
        %v3002 = vrot.slane %v3001, 4
        %v3003 = vrot.slane %v2684, 6
        %v3004 = vsel %vm1476, %v3002, %v3003
        %v3005 = vrot.slane %v3003, 4
        %v3006 = vrot.slane %v2965, 6
        %v3007 = vsel %vm1476, %v3005, %v3006
        %v3008 = vrot.slane %v2966, 6
        %v3009 = vrot.slane %v3008, 4
        %v3010 = vrot.slane %v2687, 6
        %v3011 = vsel %vm1476, %v3009, %v3010
        %v3012 = vrot.slane %v3010, 4
        %v3013 = vrot.slane %v2967, 6
        %v3014 = vsel %vm1476, %v3012, %v3013
        %v3015 = vrot.slane %v2968, 6
        %v3016 = vrot.slane %v3015, 4
        %v3017 = vrot.slane %v2690, 6
        %v3018 = vsel %vm1476, %v3016, %v3017
        %v3019 = vrot.slane %v3017, 4
        %v3020 = vrot.slane %v2969, 6
        %v3021 = vsel %vm1476, %v3019, %v3020
        %v3022 = vrot.slane %v2970, 6
        %v3023 = vrot.slane %v3022, 4
        %v3024 = vrot.slane %v2693, 6
        %v3025 = vsel %vm1476, %v3023, %v3024
        %v3026 = vrot.slane %v3024, 4
        %v3027 = vrot.slane %v2971, 6
        %v3028 = vsel %vm1476, %v3026, %v3027
        %v3029 = vrot.slane %v2972, 6
        %v3030 = vrot.slane %v3029, 4
        %v3031 = vrot.slane %v2696, 6
        %v3032 = vsel %vm1476, %v3030, %v3031
        %v3033 = vrot.slane %v3031, 4
        %v3034 = vrot.slane %v2973, 6
        %v3035 = vsel %vm1476, %v3033, %v3034
        %v3036 = vrot.slane %v2974, 6
        %v3037 = vrot.slane %v3036, 4
        %v3038 = vrot.slane %v2699, 6
        %v3039 = vsel %vm1476, %v3037, %v3038
        %v3040 = vrot.slane %v3038, 4
        %v3041 = vrot.slane %v2975, 6
        %v3042 = vsel %vm1476, %v3040, %v3041
        %v3043 = vrot.slane %v2976, 6
        %v3044 = vrot.slane %v3043, 4
        %v3045 = vrot.slane %v2702, 6
        %v3046 = vsel %vm1476, %v3044, %v3045
        %v3047 = vrot.slane %v3045, 4
        %v3048 = vrot.slane %v2977, 6
        %v3049 = vsel %vm1476, %v3047, %v3048
        %s3050 = scalar_lea.vmem [#allocation8], 128
        %v3051 = vld [vmem:[%s3050] sm:$0xf]
        %v3052 = vld [vmem:[%s3050 + $0x4] sm:$0xf]
        %v3053 = vld [vmem:[%s3050 + $0x8] sm:$0xf]
        %v3054 = vld [vmem:[%s3050 + $0xc] sm:$0xf]
        %v3055 = vunpack.c.l.b16 %v2997
        %v3056 = vunpack.c.l.b16 %v3000
        %v3057 = vunpack.c.l.b16 %v3004
        %v3058 = vunpack.c.l.b16 %v3007
        %v3059 = vunpack.c.l.b16 %v3011
        %v3060 = vunpack.c.l.b16 %v3014
        %v3061 = vunpack.c.l.b16 %v3018
        %v3062 = vunpack.c.l.b16 %v3021
        %v3063 = vunpack.c.l.b16 %v3025
        %v3064 = vunpack.c.l.b16 %v3028
        %v3065 = vunpack.c.l.b16 %v3032
        %v3066 = vunpack.c.l.b16 %v3035
        %v3067 = vunpack.c.l.b16 %v3039
        %v3068 = vunpack.c.l.b16 %v3042
        %v3069 = vunpack.c.l.b16 %v3046
        %v3070 = vunpack.c.l.b16 %v3049
        %v3071 = vpack.c.b16 %v3056, %v3055
        %v3072 = vpack.c.b16 %v3058, %v3057
        %v3073 = vpack.c.b16 %v3060, %v3059
        %v3074 = vpack.c.b16 %v3062, %v3061
        %v3075 = vpack.c.b16 %v3064, %v3063
        %v3076 = vpack.c.b16 %v3066, %v3065
        %v3077 = vpack.c.b16 %v3068, %v3067
        %v3078 = vpack.c.b16 %v3070, %v3069
        %v3083 = vunpack.c.l.b16 %v3051
        %v3084 = vunpack.c.l.b16 %v3052
        %v3085 = vunpack.c.l.b16 %v3053
        %v3086 = vunpack.c.l.b16 %v3054
        %v3087 = vpack.c.b16 %v3084, %v3083
        %v3088 = vpack.c.b16 %v3086, %v3085
        %v3092 = vsel %vm1013, %v3071, 0
        %v3095 = vsel %vm1013, %v3072, 0
        %v3098 = vsel %vm1013, %v3073, 0
        %v3101 = vsel %vm1013, %v3074, 0
        %v3104 = vsel %vm1013, %v3075, 0
        %v3107 = vsel %vm1013, %v3076, 0
        %v3110 = vsel %vm1013, %v3077, 0
        %v3113 = vsel %vm1013, %v3078, 0
        %3115 = vmatprep.subr.bf16.mxu0 0
        %3116 = vmatpush1.bf16.msra.mxu0 %v3087
        %3117 = vmatprep.subr.bf16.mxu0 0
        %3118 = vmatpush1.bf16.msra.mxu0 %v3088
        %3119 = vmatprep.subr.bf16.mxu0 0
        %3120 = vmatpush1.bf16.msra.mxu0 0
        %3121 = vmatprep.subr.bf16.mxu0 0
        %3122 = vmatpush1.bf16.msra.mxu0 0
        %3123 = vmatprep.subr.bf16.mxu0 0
        %3124 = vmatpush1.bf16.msra.mxu0 0
        %3125 = vmatprep.subr.bf16.mxu0 0
        %3126 = vmatpush1.bf16.msra.mxu0 0
        %3127 = vmatprep.subr.bf16.mxu0 0
        %3128 = vmatpush1.bf16.msra.mxu0 0
        %3129 = vmatprep.subr.bf16.mxu0 0
        %3130 = vmatpush1.bf16.msra.mxu0 0
        %3131 = vmatprep.subr.bf16.mxu0 0
        %3132 = vmatpush1.bf16.msra.mxu0 0
        %3133 = vmatprep.subr.bf16.mxu0 0
        %3134 = vmatpush1.bf16.msra.mxu0 0
        %3135 = vmatprep.subr.bf16.mxu0 0
        %3136 = vmatpush1.bf16.msra.mxu0 0
        %3137 = vmatprep.subr.bf16.mxu0 0
        %3138 = vmatpush1.bf16.msra.mxu0 0
        %3139 = vmatprep.subr.bf16.mxu0 0
        %3140 = vmatpush1.bf16.msra.mxu0 0
        %3141 = vmatprep.subr.bf16.mxu0 0
        %3142 = vmatpush1.bf16.msra.mxu0 0
        %3143 = vmatprep.subr.bf16.mxu0 0
        %3144 = vmatpush1.bf16.msra.mxu0 0
        %3145 = vmatprep.subr.bf16.mxu0 0
        %3146 = vmatpush1.bf16.msra.mxu0 0
        %3147 = vmatprep.mubr.bf16.mxu0 0
        %3148 = vmatmul.mubr.bf16.gmra.mrb[0].mxu0 %v3092
        %v3149 = vpop.f32.mrb[0].mxu0
        %v3150 = vadd.f32 0.0, %v3149
        %v3151 = vpop.f32.mrb[0].mxu0
        %v3152 = vpop.f32.mrb[0].mxu0
        %v3153 = vadd.f32 0.0, %v3152
        %v3154 = vpop.f32.mrb[0].mxu0
        %3155 = vmatprep.mubr.bf16.mxu0 0
        %3156 = vmatmul.mubr.bf16.gmra.mrb[0].mxu0 %v3095
        %v3157 = vpop.f32.mrb[0].mxu0
        %v3158 = vadd.f32 0.0, %v3157
        %v3159 = vpop.f32.mrb[0].mxu0
        %v3160 = vpop.f32.mrb[0].mxu0
        %v3161 = vadd.f32 0.0, %v3160
        %v3162 = vpop.f32.mrb[0].mxu0
        %3163 = vmatprep.mubr.bf16.mxu0 0
        %3164 = vmatmul.mubr.bf16.gmra.mrb[0].mxu0 %v3098
        %v3165 = vpop.f32.mrb[0].mxu0
        %v3166 = vadd.f32 0.0, %v3165
        %v3167 = vpop.f32.mrb[0].mxu0
        %v3168 = vpop.f32.mrb[0].mxu0
        %v3169 = vadd.f32 0.0, %v3168
        %v3170 = vpop.f32.mrb[0].mxu0
        %3171 = vmatprep.mubr.bf16.mxu0 0
        %3172 = vmatmul.mubr.bf16.gmra.mrb[0].mxu0 %v3101
        %v3173 = vpop.f32.mrb[0].mxu0
        %v3174 = vadd.f32 0.0, %v3173
        %v3175 = vpop.f32.mrb[0].mxu0
        %v3176 = vpop.f32.mrb[0].mxu0
        %v3177 = vadd.f32 0.0, %v3176
        %v3178 = vpop.f32.mrb[0].mxu0
        %3179 = vmatprep.mubr.bf16.mxu0 0
        %3180 = vmatmul.mubr.bf16.gmra.mrb[0].mxu0 %v3104
        %v3181 = vpop.f32.mrb[0].mxu0
        %v3182 = vadd.f32 0.0, %v3181
        %v3183 = vpop.f32.mrb[0].mxu0
        %v3184 = vpop.f32.mrb[0].mxu0
        %v3185 = vadd.f32 0.0, %v3184
        %v3186 = vpop.f32.mrb[0].mxu0
        %3187 = vmatprep.mubr.bf16.mxu0 0
        %3188 = vmatmul.mubr.bf16.gmra.mrb[0].mxu0 %v3107
        %v3189 = vpop.f32.mrb[0].mxu0
        %v3190 = vadd.f32 0.0, %v3189
        %v3191 = vpop.f32.mrb[0].mxu0
        %v3192 = vpop.f32.mrb[0].mxu0
        %v3193 = vadd.f32 0.0, %v3192
        %v3194 = vpop.f32.mrb[0].mxu0
        %3195 = vmatprep.mubr.bf16.mxu0 0
        %3196 = vmatmul.mubr.bf16.gmra.mrb[0].mxu0 %v3110
        %v3197 = vpop.f32.mrb[0].mxu0
        %v3198 = vadd.f32 0.0, %v3197
        %v3199 = vpop.f32.mrb[0].mxu0
        %v3200 = vpop.f32.mrb[0].mxu0
        %v3201 = vadd.f32 0.0, %v3200
        %v3202 = vpop.f32.mrb[0].mxu0
        %3203 = vmatprep.mubr.bf16.mxu0 0
        %3204 = vmatmul.mubr.bf16.gmra.mrb[0].mxu0 %v3113
        %v3205 = vpop.f32.mrb[0].mxu0
        %v3206 = vadd.f32 0.0, %v3205
        %v3207 = vpop.f32.mrb[0].mxu0
        %v3208 = vpop.f32.mrb[0].mxu0
        %v3209 = vadd.f32 0.0, %v3208
        %v3210 = vpop.f32.mrb[0].mxu0
        %3211 = vdwg.mxu0
        %v3212 = vadd.f32 %v2946, %v3150
        %v3213 = vadd.f32 %v2947, %v3153
        %v3214 = vadd.f32 %v2948, %v3158
        %v3215 = vadd.f32 %v2949, %v3161
        %v3216 = vadd.f32 %v2950, %v3166
        %v3217 = vadd.f32 %v2951, %v3169
        %v3218 = vadd.f32 %v2952, %v3174
        %v3219 = vadd.f32 %v2953, %v3177
        %v3220 = vadd.f32 %v2954, %v3182
        %v3221 = vadd.f32 %v2955, %v3185
        %v3222 = vadd.f32 %v2956, %v3190
        %v3223 = vadd.f32 %v2957, %v3193
        %v3224 = vadd.f32 %v2958, %v3198
        %v3225 = vadd.f32 %v2959, %v3201
        %v3226 = vadd.f32 %v2960, %v3206
        %v3227 = vadd.f32 %v2961, %v3209
        %v3228 = vmax.f32 %v3212, 0.0
        %v3229 = vmax.f32 %v3213, 0.0
        %v3230 = vmax.f32 %v3214, 0.0
        %v3231 = vmax.f32 %v3215, 0.0
        %v3232 = vmax.f32 %v3216, 0.0
        %v3233 = vmax.f32 %v3217, 0.0
        %v3234 = vmax.f32 %v3218, 0.0
        %v3235 = vmax.f32 %v3219, 0.0
        %v3236 = vmax.f32 %v3220, 0.0
        %v3237 = vmax.f32 %v3221, 0.0
        %v3238 = vmax.f32 %v3222, 0.0
        %v3239 = vmax.f32 %v3223, 0.0
        %v3240 = vmax.f32 %v3224, 0.0
        %v3241 = vmax.f32 %v3225, 0.0
        %v3242 = vmax.f32 %v3226, 0.0
        %v3243 = vmax.f32 %v3227, 0.0
        %v3244 = vpack.c.bf16 %v3229, %v3228
        %v3245 = vpack.c.bf16 %v3231, %v3230
        %v3246 = vpack.c.bf16 %v3233, %v3232
        %v3247 = vpack.c.bf16 %v3235, %v3234
        %v3248 = vpack.c.bf16 %v3237, %v3236
        %v3249 = vpack.c.bf16 %v3239, %v3238
        %v3250 = vpack.c.bf16 %v3241, %v3240
        %v3251 = vpack.c.bf16 %v3243, %v3242
        %v3252 = vld [vmem:[%s4] sm:$0xf]
        %v3253 = vld [vmem:[%s4 + $0x4] sm:$0xf]
        %v3254 = vld [vmem:[%s4 + $0x8] sm:$0xf]
        %v3255 = vld [vmem:[%s4 + $0xc] sm:$0xf]
        %v3256 = vld [vmem:[%s7] sm:$0x1]
        %v3258 = vlaneseq
        %v3259 = vshrl.u32 %v3258, 7
        %v3260 = vsub.s32 0, %v3259
        %v3261 = vrot.slane %v3256, %v3260
        %v3267 = vunpack.c.l.b16 %v3252
        %v3268 = vunpack.c.l.b16 %v3253
        %v3269 = vunpack.c.l.b16 %v3254
        %v3270 = vunpack.c.l.b16 %v3255
        %v3271 = vpack.c.b16 %v3268, %v3267
        %v3272 = vpack.c.b16 %v3270, %v3269
        %v3276 = vsel %vm1013, %v3244, 0
        %v3279 = vsel %vm1013, %v3245, 0
        %v3282 = vsel %vm1013, %v3246, 0
        %v3285 = vsel %vm1013, %v3247, 0
        %v3288 = vsel %vm1013, %v3248, 0
        %v3291 = vsel %vm1013, %v3249, 0
        %v3294 = vsel %vm1013, %v3250, 0
        %v3297 = vsel %vm1013, %v3251, 0
        %3299 = vmatprep.subr.bf16.mxu0 0
        %3300 = vmatpush1.bf16.msra.mxu0 %v3271
        %3301 = vmatprep.subr.bf16.mxu0 0
        %3302 = vmatpush1.bf16.msra.mxu0 %v3272
        %3303 = vmatprep.subr.bf16.mxu0 0
        %3304 = vmatpush1.bf16.msra.mxu0 0
        %3305 = vmatprep.subr.bf16.mxu0 0
        %3306 = vmatpush1.bf16.msra.mxu0 0
        %3307 = vmatprep.subr.bf16.mxu0 0
        %3308 = vmatpush1.bf16.msra.mxu0 0
        %3309 = vmatprep.subr.bf16.mxu0 0
        %3310 = vmatpush1.bf16.msra.mxu0 0
        %3311 = vmatprep.subr.bf16.mxu0 0
        %3312 = vmatpush1.bf16.msra.mxu0 0
        %3313 = vmatprep.subr.bf16.mxu0 0
        %3314 = vmatpush1.bf16.msra.mxu0 0
        %3315 = vmatprep.subr.bf16.mxu0 0
        %3316 = vmatpush1.bf16.msra.mxu0 0
        %3317 = vmatprep.subr.bf16.mxu0 0
        %3318 = vmatpush1.bf16.msra.mxu0 0
        %3319 = vmatprep.subr.bf16.mxu0 0
        %3320 = vmatpush1.bf16.msra.mxu0 0
        %3321 = vmatprep.subr.bf16.mxu0 0
        %3322 = vmatpush1.bf16.msra.mxu0 0
        %3323 = vmatprep.subr.bf16.mxu0 0
        %3324 = vmatpush1.bf16.msra.mxu0 0
        %3325 = vmatprep.subr.bf16.mxu0 0
        %3326 = vmatpush1.bf16.msra.mxu0 0
        %3327 = vmatprep.subr.bf16.mxu0 0
        %3328 = vmatpush1.bf16.msra.mxu0 0
        %3329 = vmatprep.subr.bf16.mxu0 0
        %3330 = vmatpush1.bf16.msra.mxu0 0
        %3331 = vmatprep.mubr.bf16.mxu0 0
        %3332 = vmatmul.mubr.bf16.gmra.mrb[0].mxu0 %v3276
        %v3333 = vpop.f32.mrb[0].mxu0
        %v3334 = vadd.f32 %v3261, %v3333
        %v3335 = vpop.f32.mrb[0].mxu0
        %v3336 = vpop.f32.mrb[0].mxu0
        %v3337 = vadd.f32 %v3261, %v3336
        %v3338 = vpop.f32.mrb[0].mxu0
        %3339 = vmatprep.mubr.bf16.mxu0 0
        %3340 = vmatmul.mubr.bf16.gmra.mrb[0].mxu0 %v3279
        %v3341 = vpop.f32.mrb[0].mxu0
        %v3342 = vadd.f32 %v3261, %v3341
        %v3343 = vpop.f32.mrb[0].mxu0
        %v3344 = vpop.f32.mrb[0].mxu0
        %v3345 = vadd.f32 %v3261, %v3344
        %v3346 = vpop.f32.mrb[0].mxu0
        %3347 = vmatprep.mubr.bf16.mxu0 0
        %3348 = vmatmul.mubr.bf16.gmra.mrb[0].mxu0 %v3282
        %v3349 = vpop.f32.mrb[0].mxu0
        %v3350 = vadd.f32 %v3261, %v3349
        %v3351 = vpop.f32.mrb[0].mxu0
        %v3352 = vpop.f32.mrb[0].mxu0
        %v3353 = vadd.f32 %v3261, %v3352
        %v3354 = vpop.f32.mrb[0].mxu0
        %3355 = vmatprep.mubr.bf16.mxu0 0
        %3356 = vmatmul.mubr.bf16.gmra.mrb[0].mxu0 %v3285
        %v3357 = vpop.f32.mrb[0].mxu0
        %v3358 = vadd.f32 %v3261, %v3357
        %v3359 = vpop.f32.mrb[0].mxu0
        %v3360 = vpop.f32.mrb[0].mxu0
        %v3361 = vadd.f32 %v3261, %v3360
        %v3362 = vpop.f32.mrb[0].mxu0
        %3363 = vmatprep.mubr.bf16.mxu0 0
        %3364 = vmatmul.mubr.bf16.gmra.mrb[0].mxu0 %v3288
        %v3365 = vpop.f32.mrb[0].mxu0
        %v3366 = vadd.f32 %v3261, %v3365
        %v3367 = vpop.f32.mrb[0].mxu0
        %v3368 = vpop.f32.mrb[0].mxu0
        %v3369 = vadd.f32 %v3261, %v3368
        %v3370 = vpop.f32.mrb[0].mxu0
        %3371 = vmatprep.mubr.bf16.mxu0 0
        %3372 = vmatmul.mubr.bf16.gmra.mrb[0].mxu0 %v3291
        %v3373 = vpop.f32.mrb[0].mxu0
        %v3374 = vadd.f32 %v3261, %v3373
        %v3375 = vpop.f32.mrb[0].mxu0
        %v3376 = vpop.f32.mrb[0].mxu0
        %v3377 = vadd.f32 %v3261, %v3376
        %v3378 = vpop.f32.mrb[0].mxu0
        %3379 = vmatprep.mubr.bf16.mxu0 0
        %3380 = vmatmul.mubr.bf16.gmra.mrb[0].mxu0 %v3294
        %v3381 = vpop.f32.mrb[0].mxu0
        %v3382 = vadd.f32 %v3261, %v3381
        %v3383 = vpop.f32.mrb[0].mxu0
        %v3384 = vpop.f32.mrb[0].mxu0
        %v3385 = vadd.f32 %v3261, %v3384
        %v3386 = vpop.f32.mrb[0].mxu0
        %3387 = vmatprep.mubr.bf16.mxu0 0
        %3388 = vmatmul.mubr.bf16.gmra.mrb[0].mxu0 %v3297
        %v3389 = vpop.f32.mrb[0].mxu0
        %v3390 = vadd.f32 %v3261, %v3389
        %v3391 = vpop.f32.mrb[0].mxu0
        %v3392 = vpop.f32.mrb[0].mxu0
        %v3393 = vadd.f32 %v3261, %v3392
        %v3394 = vpop.f32.mrb[0].mxu0
        %3395 = vdwg.mxu0
        %v3396 = vadd.f32 %v3334, %v418
        %v3397 = vadd.f32 %v3337, %v419
        %v3398 = vadd.f32 %v3342, %v420
        %v3399 = vadd.f32 %v3345, %v421
        %v3400 = vadd.f32 %v3350, %v422
        %v3401 = vadd.f32 %v3353, %v423
        %v3402 = vadd.f32 %v3358, %v424
        %v3403 = vadd.f32 %v3361, %v425
        %v3404 = vadd.f32 %v3366, %v426
        %v3405 = vadd.f32 %v3369, %v427
        %v3406 = vadd.f32 %v3374, %v428
        %v3407 = vadd.f32 %v3377, %v429
        %v3408 = vadd.f32 %v3382, %v430
        %v3409 = vadd.f32 %v3385, %v431
        %v3410 = vadd.f32 %v3390, %v432
        %v3411 = vadd.f32 %v3393, %v433
        %v3412 = vmax.f32 %v3396, 0.0
        %v3413 = vmax.f32 %v3397, 0.0
        %v3414 = vmax.f32 %v3398, 0.0
        %v3415 = vmax.f32 %v3399, 0.0
        %v3416 = vmax.f32 %v3400, 0.0
        %v3417 = vmax.f32 %v3401, 0.0
        %v3418 = vmax.f32 %v3402, 0.0
        %v3419 = vmax.f32 %v3403, 0.0
        %v3420 = vmax.f32 %v3404, 0.0
        %v3421 = vmax.f32 %v3405, 0.0
        %v3422 = vmax.f32 %v3406, 0.0
        %v3423 = vmax.f32 %v3407, 0.0
        %v3424 = vmax.f32 %v3408, 0.0
        %v3425 = vmax.f32 %v3409, 0.0
        %v3426 = vmax.f32 %v3410, 0.0
        %v3427 = vmax.f32 %v3411, 0.0
        %3428 = vst [vmem:[%s331] sm:$0xff] %v3412
        %3429 = vst [vmem:[%s331 + $0x8] sm:$0xff] %v3413
        %3430 = vst [vmem:[%s331 + $0x10] sm:$0xff] %v3414
        %3431 = vst [vmem:[%s331 + $0x18] sm:$0xff] %v3415
        %3432 = vst [vmem:[%s331 + $0x20] sm:$0xff] %v3416
        %3433 = vst [vmem:[%s331 + $0x28] sm:$0xff] %v3417
        %3434 = vst [vmem:[%s331 + $0x30] sm:$0xff] %v3418
        %3435 = vst [vmem:[%s331 + $0x38] sm:$0xff] %v3419
        %3436 = vst [vmem:[%s331 + $0x40] sm:$0xff] %v3420
        %3437 = vst [vmem:[%s331 + $0x48] sm:$0xff] %v3421
        %3438 = vst [vmem:[%s331 + $0x50] sm:$0xff] %v3422
        %3439 = vst [vmem:[%s331 + $0x58] sm:$0xff] %v3423
        %3440 = vst [vmem:[%s331 + $0x60] sm:$0xff] %v3424
        %3441 = vst [vmem:[%s331 + $0x68] sm:$0xff] %v3425
        %3442 = vst [vmem:[%s331 + $0x70] sm:$0xff] %v3426
        %3443 = vst [vmem:[%s331 + $0x78] sm:$0xff] %v3427
        %s3444 = sand.u32 %s202, 1
        %s3445 = scalar_lea.sflag [#allocation7], %s3444
        %s3446 = sand.u32 %s202, 1
        %s3447 = smul.addr %s3446, 128
        %s3448 = scalar_lea.vmem [#allocation10], %s3447
        // Predicated region
        $region81: #{tpu_custom_call.1} parent=47 // pred_check
          %p3449 = pneg %p212
        $region82: #{tpu_custom_call.1} parent=47 // pred_check_branch
          %3451 = sbr.rel (%p3449) target = $region84
        $region83: #{tpu_custom_call.1} parent=47 // pred_region
          %s3452 = smul.u32 8, %s31
          %s3454 = ssub.s32 2048, 2048
          %3455 = vsyncadd %s3445, %s3454
          %s3456 = smul.addr %s3452, 2
          %s3457 = smul.addr %s30, 32
          %s3458 = sadd.s32 %s3456, %s3457
          %s3459 = smul.addr %s3458, 128
          %s3460 = scalar_lea.hbm %s8, %s3459
          %s3461 = sshll.u32 %s3448, 4
          %s3462 = int_to_ptr.vmem [resolvable:$true] %s3461
          %3467 = dma.vmem_to_hbm [thread:$0]  %s3462, 2048, %s3460, %s3445, 128, 128, 8
        $region84: #{tpu_custom_call.1} parent=47 // pred_fallthru
          _
      $region48: #{tpu_custom_call.1} parent=5 // pred_fallthru
        _
      %p3468 = scmp.le.s32.totalorder 2, %s21
      // Predicated region
      $region85: #{tpu_custom_call.1} parent=5 // pred_check
        %p3469 = pneg %p3468
      $region86: #{tpu_custom_call.1} parent=5 // pred_check_branch
        %3471 = sbr.rel (%p3469) target = $region88
      $region87: #{tpu_custom_call.1} parent=5 // pred_region
        %s3472 = ssub.s32 %s21, 2
        // Predicated region
        $region89: #{tpu_custom_call.1} parent=87 // pred_check
          %p3473 = pneg %p218
        $region90: #{tpu_custom_call.1} parent=87 // pred_check_branch
          %3475 = sbr.rel (%p3473) target = $region92
        $region91: #{tpu_custom_call.1} parent=87 // pred_region
          %s3476 = sand.u32 %s203, 1
          %s3477 = scalar_lea.sflag [#allocation7], %s3476
          %s3478 = sand.u32 %s203, 1
          %s3479 = smul.addr %s3478, 128
          %s3480 = scalar_lea.vmem [#allocation10], %s3479
          %3481 = dma.done %s3477, 2048
        $region92: #{tpu_custom_call.1} parent=87 // pred_fallthru
          _
      $region88: #{tpu_custom_call.1} parent=5 // pred_fallthru
        _
    $region6: #{tpu_custom_call.1} parent=1 // loop_footer
      %s25 = sadd.s32 1, %s21
    $region7: #{tpu_custom_call.1} parent=1 // loop_footer_branch
      %20 = sbr.rel target = $region3
    $region8: #{tpu_custom_call.1} parent=1 // loop_exit
      _
    %3482 = vsyncpa [#allocation6], 1
    %s3483 = scalar_lea.sflag [#allocation6], 1
    %3484 = vsyncpa %s3483, 1
    %3485 = vsyncpa [#allocation9], 1
    %3486 = vsyncpa [#allocation7], 1
    %s3487 = scalar_lea.sflag [#allocation7], 1
    %3488 = vsyncpa %s3487, 1
  %3489 = vsyncmov [#allocation4]
  %s3490 = vpop.sfrf %3489
  %p3491 = scmp.eq.s32.totalorder %s3490, 0
  %p3492 = pneg %p3491
  %3494 = shalt.err (%p3492)
  %s3495 = scalar_lea.sflag [#allocation4], 1
  %3496 = vsyncmov %s3495
  %s3497 = vpop.sfrf %3496
  %p3498 = scmp.eq.s32.totalorder %s3497, 0
  %p3499 = pneg %p3498
  %3501 = shalt.err (%p3499)

// kernel: tpu_custom_call.1
$region0: #{tpu_custom_call.1}
  #allocation0 [shape = 'u32[]', space=smem, size = 0x4, offset = 0x4, fixed_abs, tag = 'smem constant byte address 0x4 - core index']
  #allocation1 [shape = 'u32[144,128]{1,0:T(1,128)}', space=vmem, size = 0x12000, scoped, tag = 'internal scratch']
  #allocation2 [shape = 'bf16[12,20,32]{2,1,0:T(8,128)(2,1)}', space=vmem, size = 0x12000, scoped, tag = 'scratch operand']
  #allocation3 [shape = 'f32[4,16,128]{2,1,0:T(8,128)}', space=vmem, size = 0x8000, scoped, tag = 'scratch operand']
  #allocation4 [shape = 's32[2]{0}', space=sflag, size = 0x8, scoped, tag = 'scratch operand']
  #allocation11 [shape = 's32[]', space=sflag, size = 0x4, offset = 0, fixed_abs, tag = 'sflag constant byte address 0x0 - dummy sync flag']
  #allocation12 [shape = 's32[]', space=sflag, size = 0x4, offset = 0, fixed_abs, tag = 'sflag constant byte address 0x0 - dummy sync flag']
  #allocation13 [shape = 'u32[]', space=smem, size = 0x4, offset = 0x44, fixed_abs, tag = 'smem constant byte address 0x44 - assertion arg 0']
  #allocation14 [shape = 'u32[]', space=smem, size = 0x4, offset = 0x48, fixed_abs, tag = 'smem constant byte address 0x48 - assertion arg 1']
  #allocation15 [shape = 's32[]', space=sflag, size = 0x4, offset = 0, fixed_abs, tag = 'sflag constant byte address 0x0 - dummy sync flag']
  #allocation16 [shape = 's32[]', space=sflag, size = 0x4, offset = 0, fixed_abs, tag = 'sflag constant byte address 0x0 - dummy sync flag']
  %s0 = inlined_call_operand.hbm [shape: f32[2,16,16,128], index: 0, kind: input, shape index: {}]
  %s1 = inlined_call_operand.hbm [shape: f32[2,16,16,128], index: 1, kind: input, shape index: {}]
  %s2 = inlined_call_operand.vmem [shape: bf16[128,32], index: 2, kind: input, shape index: {}]
  %s3 = inlined_call_operand.hbm [shape: bf16[9,32,32], index: 3, kind: input, shape index: {}]
  %s4 = inlined_call_operand.vmem [shape: bf16[32,128], index: 4, kind: input, shape index: {}]
  %s5 = inlined_call_operand.vmem [shape: f32[1,32], index: 5, kind: input, shape index: {}]
  %s6 = inlined_call_operand.vmem [shape: f32[1,32], index: 6, kind: input, shape index: {}]
  %s7 = inlined_call_operand.vmem [shape: f32[1,128], index: 7, kind: input, shape index: {}]
  %s8 = inlined_call_operand.hbm [shape: f32[2,16,16,128], index: 8, kind: output, shape index: {}]
  %s9 = sld [smem:[#allocation0]]
  $region93: #{tpu_custom_call.1} parent=0
    _
  %s11 = ssub.s32 1, %s9
  %s12 = scalar_select 0, %s11, %s9
  $region1: #{tpu_custom_call.1} parent=0
    #allocation5 [shape = 'u8[131072]{0}', space=vmem, size = 0x20000, scoped, tag = 'input window, operand 0']
    #allocation6 [shape = 's32[2]{0}', space=sflag, size = 0x8, scoped, tag = 'scoped memory for tpu_custom_call.1']
    #allocation7 [shape = 's32[2]{0}', space=sflag, size = 0x8, scoped, tag = 'scoped memory for tpu_custom_call.1']
    #allocation8 [shape = 'u8[73728]{0}', space=vmem, size = 0x12000, scoped, tag = 'input window, operand 3, single buffered']
    #allocation9 [shape = 's32[1]{0}', space=sflag, size = 0x4, scoped, tag = 'scoped memory for tpu_custom_call.1']
    #allocation10 [shape = 'u8[131072]{0}', space=vmem, size = 0x20000, scoped, tag = 'output window, operand 0']
    %13 = vsyncpa [#allocation6], 0
    %s14 = scalar_lea.sflag [#allocation6], 1
    %15 = vsyncpa %s14, 0
    %16 = vsyncpa [#allocation9], 0
    %17 = vsyncpa [#allocation7], 0
    %s18 = scalar_lea.sflag [#allocation7], 1
    %19 = vsyncpa %s18, 0
    loop: start=0, step=1, limit=6
    $region2: #{tpu_custom_call.1} parent=1 // loop_pre_header
      _
    $region3: #{tpu_custom_call.1} parent=1 // loop_header
      %s21 = sphi 0, %s25
      %p22 = scmp.ge.s32.totalorder %s21, 6
      %s28 = sphi 0, %s40
      %s29 = sphi 0, %s36
      %s30 = sphi 0, %s28
      %s31 = sphi 0, %s29
      %s32 = sphi 0, %s30
      %s33 = sphi 0, %s31
      %s45 = sphi 0, %s47
      %s48 = sphi 0, %s45
      %s49 = sphi 0, %s48
      %s65 = sphi 0, %s49
      %s69 = sphi 0, %s69
      %s71 = sphi 0, %s69
      %s72 = sphi 0, %s71
      %s86 = sphi 0, %s72
      %s90 = sphi 0, %s90
      %s92 = sphi 0, %s90
      %s93 = sphi 0, %s92
      %s107 = sphi 0, %s93
      %s111 = sphi 0, %s111
      %s113 = sphi 0, %s111
      %s114 = sphi 0, %s113
      %s128 = sphi 0, %s114
      %s132 = sphi 0, %s132
      %s134 = sphi 0, %s132
      %s135 = sphi 0, %s134
      %s149 = sphi 0, %s135
      %s153 = sphi 0, %s153
      %s155 = sphi 0, %s153
      %s156 = sphi 0, %s155
      %s170 = sphi 0, %s156
      %s174 = sphi 0, %s174
      %s176 = sphi 0, %s174
      %s177 = sphi 0, %s176
      %s191 = sphi 0, %s177
      %s199 = sphi 0, %s201
      %s202 = sphi 0, %s199
      %s203 = sphi 0, %s202
      %s219 = sphi 0, %s203
    $region4: #{tpu_custom_call.1} parent=1 // loop_header_branch
      %24 = sbr.rel (%p22) target = $region8
    $region5: #{tpu_custom_call.1} parent=1 // loop_body
      %s26 = ssub.s32 %s21, 1
      %s27 = ssub.s32 %s21, 2
      %s34 = sadd.s32 1, %s29
      %p35 = scmp.ge.s32.totalorder %s34, 2
      %s36 = scalar_select %p35, 0, %s34
      %s37 = sadd.s32 1, %s28
      %s38 = scalar_select %p35, %s37, %s28
      %p39 = scmp.ge.s32.totalorder %s38, 2
      %s40 = scalar_select %p39, 0, %s38
      %s41 = ssub.s32 %s28, %s40
      %s42 = ssub.s32 %s29, %s36
      %s43 = sor.u32 %s41, %s42
      %p44 = scmp.eq.s32.totalorder %s43, 0
      %s46 = sadd.s32 %s45, 1
      %s47 = scalar_select %p44, %s45, %s46
      %p50 = pneg %p44
      %p51 = scmp.eq.s32.totalorder %s21, 3
      %p52 = por %p50, %p51
      %p53 = scmp.ne.s32.totalorder %s45, %s48
      %p54 = scmp.eq.s32.totalorder %s21, 0
      %p55 = por %p53, %p54
      %p56 = scmp.ne.s32.totalorder %s45, %s48
      %p57 = scmp.eq.s32.totalorder %s26, 3
      %p58 = por %p56, %p57
      %p59 = scmp.ne.s32.totalorder %s48, %s49
      %p60 = scmp.eq.s32.totalorder %s26, 0
      %p61 = por %p59, %p60
      %p62 = scmp.ne.s32.totalorder %s48, %s49
      %p63 = scmp.eq.s32.totalorder %s27, 3
      %p64 = por %p62, %p63
      %p66 = scmp.ne.s32.totalorder %s49, %s65
      %p67 = scmp.eq.s32.totalorder %s27, 0
      %p68 = por %p66, %p67
      %s70 = sadd.s32 %s69, 1
      %p73 = scmp.eq.s32.totalorder %s21, 3
      %p74 = scmp.ne.s32.totalorder %s69, %s71
      %p75 = scmp.eq.s32.totalorder %s21, 0
      %p76 = por %p74, %p75
      %p77 = scmp.ne.s32.totalorder %s69, %s71
      %p78 = scmp.eq.s32.totalorder %s26, 3
      %p79 = por %p77, %p78
      %p80 = scmp.ne.s32.totalorder %s71, %s72
      %p81 = scmp.eq.s32.totalorder %s26, 0
      %p82 = por %p80, %p81
      %p83 = scmp.ne.s32.totalorder %s71, %s72
      %p84 = scmp.eq.s32.totalorder %s27, 3
      %p85 = por %p83, %p84
      %p87 = scmp.ne.s32.totalorder %s72, %s86
      %p88 = scmp.eq.s32.totalorder %s27, 0
      %p89 = por %p87, %p88
      %s91 = sadd.s32 %s90, 1
      %p94 = scmp.eq.s32.totalorder %s21, 3
      %p95 = scmp.ne.s32.totalorder %s90, %s92
      %p96 = scmp.eq.s32.totalorder %s21, 0
      %p97 = por %p95, %p96
      %p98 = scmp.ne.s32.totalorder %s90, %s92
      %p99 = scmp.eq.s32.totalorder %s26, 3
      %p100 = por %p98, %p99
      %p101 = scmp.ne.s32.totalorder %s92, %s93
      %p102 = scmp.eq.s32.totalorder %s26, 0
      %p103 = por %p101, %p102
      %p104 = scmp.ne.s32.totalorder %s92, %s93
      %p105 = scmp.eq.s32.totalorder %s27, 3
      %p106 = por %p104, %p105
      %p108 = scmp.ne.s32.totalorder %s93, %s107
      %p109 = scmp.eq.s32.totalorder %s27, 0
      %p110 = por %p108, %p109
      %s112 = sadd.s32 %s111, 1
      %p115 = scmp.eq.s32.totalorder %s21, 3
      %p116 = scmp.ne.s32.totalorder %s111, %s113
      %p117 = scmp.eq.s32.totalorder %s21, 0
      %p118 = por %p116, %p117
      %p119 = scmp.ne.s32.totalorder %s111, %s113
      %p120 = scmp.eq.s32.totalorder %s26, 3
      %p121 = por %p119, %p120
      %p122 = scmp.ne.s32.totalorder %s113, %s114
      %p123 = scmp.eq.s32.totalorder %s26, 0
      %p124 = por %p122, %p123
      %p125 = scmp.ne.s32.totalorder %s113, %s114
      %p126 = scmp.eq.s32.totalorder %s27, 3
      %p127 = por %p125, %p126
      %p129 = scmp.ne.s32.totalorder %s114, %s128
      %p130 = scmp.eq.s32.totalorder %s27, 0
      %p131 = por %p129, %p130
      %s133 = sadd.s32 %s132, 1
      %p136 = scmp.eq.s32.totalorder %s21, 3
      %p137 = scmp.ne.s32.totalorder %s132, %s134
      %p138 = scmp.eq.s32.totalorder %s21, 0
      %p139 = por %p137, %p138
      %p140 = scmp.ne.s32.totalorder %s132, %s134
      %p141 = scmp.eq.s32.totalorder %s26, 3
      %p142 = por %p140, %p141
      %p143 = scmp.ne.s32.totalorder %s134, %s135
      %p144 = scmp.eq.s32.totalorder %s26, 0
      %p145 = por %p143, %p144
      %p146 = scmp.ne.s32.totalorder %s134, %s135
      %p147 = scmp.eq.s32.totalorder %s27, 3
      %p148 = por %p146, %p147
      %p150 = scmp.ne.s32.totalorder %s135, %s149
      %p151 = scmp.eq.s32.totalorder %s27, 0
      %p152 = por %p150, %p151
      %s154 = sadd.s32 %s153, 1
      %p157 = scmp.eq.s32.totalorder %s21, 3
      %p158 = scmp.ne.s32.totalorder %s153, %s155
      %p159 = scmp.eq.s32.totalorder %s21, 0
      %p160 = por %p158, %p159
      %p161 = scmp.ne.s32.totalorder %s153, %s155
      %p162 = scmp.eq.s32.totalorder %s26, 3
      %p163 = por %p161, %p162
      %p164 = scmp.ne.s32.totalorder %s155, %s156
      %p165 = scmp.eq.s32.totalorder %s26, 0
      %p166 = por %p164, %p165
      %p167 = scmp.ne.s32.totalorder %s155, %s156
      %p168 = scmp.eq.s32.totalorder %s27, 3
      %p169 = por %p167, %p168
      %p171 = scmp.ne.s32.totalorder %s156, %s170
      %p172 = scmp.eq.s32.totalorder %s27, 0
      %p173 = por %p171, %p172
      %s175 = sadd.s32 %s174, 1
      %p178 = scmp.eq.s32.totalorder %s21, 3
      %p179 = scmp.ne.s32.totalorder %s174, %s176
      %p180 = scmp.eq.s32.totalorder %s21, 0
      %p181 = por %p179, %p180
      %p182 = scmp.ne.s32.totalorder %s174, %s176
      %p183 = scmp.eq.s32.totalorder %s26, 3
      %p184 = por %p182, %p183
      %p185 = scmp.ne.s32.totalorder %s176, %s177
      %p186 = scmp.eq.s32.totalorder %s26, 0
      %p187 = por %p185, %p186
      %p188 = scmp.ne.s32.totalorder %s176, %s177
      %p189 = scmp.eq.s32.totalorder %s27, 3
      %p190 = por %p188, %p189
      %p192 = scmp.ne.s32.totalorder %s177, %s191
      %p193 = scmp.eq.s32.totalorder %s27, 0
      %p194 = por %p192, %p193
      %s195 = ssub.s32 %s28, %s40
      %s196 = ssub.s32 %s29, %s36
      %s197 = sor.u32 %s195, %s196
      %p198 = scmp.eq.s32.totalorder %s197, 0
      %s200 = sadd.s32 %s199, 1
      %s201 = scalar_select %p198, %s199, %s200
      %p204 = pneg %p198
      %p205 = scmp.eq.s32.totalorder %s21, 3
      %p206 = por %p204, %p205
      %p207 = scmp.ne.s32.totalorder %s199, %s202
      %p208 = scmp.eq.s32.totalorder %s21, 0
      %p209 = por %p207, %p208
      %p210 = scmp.ne.s32.totalorder %s199, %s202
      %p211 = scmp.eq.s32.totalorder %s26, 3
      %p212 = por %p210, %p211
      %p213 = scmp.ne.s32.totalorder %s202, %s203
      %p214 = scmp.eq.s32.totalorder %s26, 0
      %p215 = por %p213, %p214
      %p216 = scmp.ne.s32.totalorder %s202, %s203
      %p217 = scmp.eq.s32.totalorder %s27, 3
      %p218 = por %p216, %p217
      %p220 = scmp.ne.s32.totalorder %s203, %s219
      %p221 = scmp.eq.s32.totalorder %s27, 0
      %p222 = por %p220, %p221
      %p223 = scmp.le.s32.totalorder 1, %s21
      %p224 = scmp.lt.s32.totalorder %s21, 5
      %p225 = pnand %p223, %p224
      %p226 = pneg %p225
      // Predicated region
      $region9: #{tpu_custom_call.1} parent=5 // pred_check
        _
      $region10: #{tpu_custom_call.1} parent=5 // pred_check_branch
        %228 = sbr.rel (%p225) target = $region12
      $region11: #{tpu_custom_call.1} parent=5 // pred_region
        %s229 = ssub.s32 %s21, 1
        // Predicated region
        $region13: #{tpu_custom_call.1} parent=11 // pred_check
          %p230 = pneg %p82
        $region14: #{tpu_custom_call.1} parent=11 // pred_check_branch
          %232 = sbr.rel (%p230) target = $region16
        $region15: #{tpu_custom_call.1} parent=11 // pred_region
          _
        $region16: #{tpu_custom_call.1} parent=11 // pred_fallthru
          _
        // Predicated region
        $region17: #{tpu_custom_call.1} parent=11 // pred_check
          %p233 = pneg %p103
        $region18: #{tpu_custom_call.1} parent=11 // pred_check_branch
          %235 = sbr.rel (%p233) target = $region20
        $region19: #{tpu_custom_call.1} parent=11 // pred_region
          %s237 = ssub.s32 2304, 2304
          %238 = vsyncadd [#allocation9], %s237
          %s239 = sshll.u32 [#allocation8], 4
          %s240 = int_to_ptr.vmem [resolvable:$true] %s239
          %245 = dma.hbm_to_vmem [thread:$0]  %s3, 2304, %s240, [#allocation9], 64, 64, 4
        $region20: #{tpu_custom_call.1} parent=11 // pred_fallthru
          _
        // Predicated region
        $region21: #{tpu_custom_call.1} parent=11 // pred_check
          %p246 = pneg %p124
        $region22: #{tpu_custom_call.1} parent=11 // pred_check_branch
          %248 = sbr.rel (%p246) target = $region24
        $region23: #{tpu_custom_call.1} parent=11 // pred_region
          _
        $region24: #{tpu_custom_call.1} parent=11 // pred_fallthru
          _
        // Predicated region
        $region25: #{tpu_custom_call.1} parent=11 // pred_check
          %p249 = pneg %p145
        $region26: #{tpu_custom_call.1} parent=11 // pred_check_branch
          %251 = sbr.rel (%p249) target = $region28
        $region27: #{tpu_custom_call.1} parent=11 // pred_region
          _
        $region28: #{tpu_custom_call.1} parent=11 // pred_fallthru
          _
        // Predicated region
        $region29: #{tpu_custom_call.1} parent=11 // pred_check
          %p252 = pneg %p166
        $region30: #{tpu_custom_call.1} parent=11 // pred_check_branch
          %254 = sbr.rel (%p252) target = $region32
        $region31: #{tpu_custom_call.1} parent=11 // pred_region
          _
        $region32: #{tpu_custom_call.1} parent=11 // pred_fallthru
          _
        // Predicated region
        $region33: #{tpu_custom_call.1} parent=11 // pred_check
          %p255 = pneg %p187
        $region34: #{tpu_custom_call.1} parent=11 // pred_check_branch
          %257 = sbr.rel (%p255) target = $region36
        $region35: #{tpu_custom_call.1} parent=11 // pred_region
          _
        $region36: #{tpu_custom_call.1} parent=11 // pred_fallthru
          _
      $region12: #{tpu_custom_call.1} parent=5 // pred_fallthru
        _
      %p258 = scmp.lt.s32.totalorder %s21, 4
      // Predicated region
      $region37: #{tpu_custom_call.1} parent=5 // pred_check
        %p259 = pneg %p258
      $region38: #{tpu_custom_call.1} parent=5 // pred_check_branch
        %261 = sbr.rel (%p259) target = $region40
      $region39: #{tpu_custom_call.1} parent=5 // pred_region
        // Predicated region
        $region41: #{tpu_custom_call.1} parent=39 // pred_check
          %p262 = pneg %p55
        $region42: #{tpu_custom_call.1} parent=39 // pred_check_branch
          %264 = sbr.rel (%p262) target = $region44
        $region43: #{tpu_custom_call.1} parent=39 // pred_region
          %s265 = sand.u32 %s45, 1
          %s266 = scalar_lea.sflag [#allocation6], %s265
          %s267 = sand.u32 %s45, 1
          %s268 = smul.addr %s267, 128
          %s269 = scalar_lea.vmem [#allocation5], %s268
          %s270 = smul.u32 8, %s29
          %s272 = ssub.s32 2048, 2048
          %273 = vsyncadd %s266, %s272
          %s274 = smul.addr %s270, 2
          %s275 = smul.addr %s28, 32
          %s276 = sadd.s32 %s274, %s275
          %s277 = smul.addr %s276, 128
          %s278 = scalar_lea.hbm %s0, %s277
          %s279 = sshll.u32 %s269, 4
          %s280 = int_to_ptr.vmem [resolvable:$true] %s279
          %285 = dma.hbm_to_vmem [thread:$0]  %s278, 2048, %s280, %s266, 128, 128, 8
        $region44: #{tpu_custom_call.1} parent=39 // pred_fallthru
          _
      $region40: #{tpu_custom_call.1} parent=5 // pred_fallthru
        _
      %p286 = scmp.le.s32.totalorder 1, %s21
      %p287 = scmp.lt.s32.totalorder %s21, 5
      %p288 = pnand %p286, %p287
      %p289 = pneg %p288
      // Predicated region
      $region45: #{tpu_custom_call.1} parent=5 // pred_check
        _
      $region46: #{tpu_custom_call.1} parent=5 // pred_check_branch
        %291 = sbr.rel (%p288) target = $region48
      $region47: #{tpu_custom_call.1} parent=5 // pred_region
        %s292 = ssub.s32 %s21, 1
        %s293 = sand.u32 %s48, 1
        %s294 = scalar_lea.sflag [#allocation6], %s293
        %s295 = sand.u32 %s48, 1
        %s296 = smul.addr %s295, 128
        %s297 = scalar_lea.vmem [#allocation5], %s296
        // Predicated region
        $region49: #{tpu_custom_call.1} parent=47 // pred_check
          %p298 = pneg %p61
        $region50: #{tpu_custom_call.1} parent=47 // pred_check_branch
          %300 = sbr.rel (%p298) target = $region52
        $region51: #{tpu_custom_call.1} parent=47 // pred_region
          %301 = dma.done %s294, 2048
        $region52: #{tpu_custom_call.1} parent=47 // pred_fallthru
          _
        // Predicated region
        $region53: #{tpu_custom_call.1} parent=47 // pred_check
          %p302 = pneg %p103
        $region54: #{tpu_custom_call.1} parent=47 // pred_check_branch
          %304 = sbr.rel (%p302) target = $region56
        $region55: #{tpu_custom_call.1} parent=47 // pred_region
          %305 = dma.done [#allocation9], 2304
        $region56: #{tpu_custom_call.1} parent=47 // pred_fallthru
          _
        %s306 = sand.u32 %s48, 1
        %s307 = scalar_lea.sflag [#allocation6], %s306
        %s308 = sand.u32 %s48, 1
        %s309 = smul.addr %s308, 128
        %s310 = scalar_lea.vmem [#allocation5], %s309
        %p311 = pneg %p61
        %p312 = pneg %p58
        %p313 = pneg %p82
        %p314 = pneg %p79
        %p315 = pneg %p103
        %p316 = pneg %p100
        %p317 = pneg %p124
        %p318 = pneg %p121
        %p319 = pneg %p145
        %p320 = pneg %p142
        %p321 = pneg %p166
        %p322 = pneg %p163
        %p323 = pneg %p187
        %p324 = pneg %p184
        %p325 = pneg %p215
        %p326 = pneg %p212
        %s327 = sand.u32 %s202, 1
        %s328 = scalar_lea.sflag [#allocation7], %s327
        %s329 = sand.u32 %s202, 1
        %s330 = smul.addr %s329, 128
        %s331 = scalar_lea.vmem [#allocation10], %s330
        %s332 = smul.u32 8, %s31
        %s333 = smul.u32 8, %s31
        %s335 = smul.u32 %s31, 8
        %s336 = ssub.s32 %s335, 2
        %p337 = scmp.gt.s32.totalorder %s336, 0
        %s338 = scalar_select %p337, %s336, 0
        %s339 = sadd.s32 %s335, 8
        %p340 = scmp.lt.s32.totalorder %s339, 14
        %s341 = scalar_select %p340, %s339, 14
        %s342 = smul.u32 %s338, 16
        %s343 = smul.u32 %s30, 256
        %s344 = sadd.s32 %s342, %s343
        %s345 = smul.addr %s344, 16
        %s346 = scalar_lea.hbm %s1, %s345
        // Predicated region
        $region57: #{tpu_custom_call.1} parent=47 // pred_check
          _
        $region58: #{tpu_custom_call.1} parent=47 // pred_check_branch
          %348 = sbr.rel target = $region60
        $region59: #{tpu_custom_call.1} parent=47 // pred_region
          %349 = sst [smem:[#allocation13]] [#allocation12]
          %350 = sst [smem:[#allocation14]] [#allocation11]
        $region60: #{tpu_custom_call.1} parent=47 // pred_fallthru
          _
        %352 = shalt.err (0)
        %s354 = sshll.u32 [#allocation3], 4
        %s355 = int_to_ptr.vmem [resolvable:$true] %s354
        %357 = dma.hbm_to_vmem [thread:$0]  %s346, 512, %s355, [#allocation4]
        %s358 = smul.u32 %s341, 16
        %s359 = sadd.s32 %s358, %s343
        %s360 = smul.addr %s359, 16
        %s361 = scalar_lea.hbm %s1, %s360
        %s362 = scalar_lea.vmem [#allocation3], 32
        %s363 = scalar_lea.sflag [#allocation4], 1
        // Predicated region
        $region61: #{tpu_custom_call.1} parent=47 // pred_check
          _
        $region62: #{tpu_custom_call.1} parent=47 // pred_check_branch
          %365 = sbr.rel target = $region64
        $region63: #{tpu_custom_call.1} parent=47 // pred_region
          %366 = sst [smem:[#allocation13]] [#allocation16]
          %367 = sst [smem:[#allocation14]] [#allocation15]
        $region64: #{tpu_custom_call.1} parent=47 // pred_fallthru
          _
        %369 = shalt.err (0)
        %s371 = sshll.u32 %s362, 4
        %s372 = int_to_ptr.vmem [resolvable:$true] %s371
        %374 = dma.hbm_to_vmem [thread:$0]  %s361, 512, %s372, %s363
        %v375 = vld [vmem:[%s2] sm:$0xf]
        %v376 = vld [vmem:[%s2 + $0x4] sm:$0xf]
        %v377 = vld [vmem:[%s2 + $0x8] sm:$0xf]
        %v378 = vld [vmem:[%s2 + $0xc] sm:$0xf]
        %v379 = vld [vmem:[%s2 + $0x10] sm:$0xf]
        %v380 = vld [vmem:[%s2 + $0x14] sm:$0xf]
        %v381 = vld [vmem:[%s2 + $0x18] sm:$0xf]
        %v382 = vld [vmem:[%s2 + $0x1c] sm:$0xf]
        %v383 = vld [vmem:[%s2 + $0x20] sm:$0xf]
        %v384 = vld [vmem:[%s2 + $0x24] sm:$0xf]
        %v385 = vld [vmem:[%s2 + $0x28] sm:$0xf]
        %v386 = vld [vmem:[%s2 + $0x2c] sm:$0xf]
        %v387 = vld [vmem:[%s2 + $0x30] sm:$0xf]
        %v388 = vld [vmem:[%s2 + $0x34] sm:$0xf]
        %v389 = vld [vmem:[%s2 + $0x38] sm:$0xf]
        %v390 = vld [vmem:[%s2 + $0x3c] sm:$0xf]
        %v391 = vld [vmem:[%s5] sm:$0x1]
        %vm392 = vcmask 253952
        %393 = vst.msk [vmem:[#allocation2] sm:$0x1] %vm392, 0
        %394 = vst.msk [vmem:[#allocation2 + $0xc] sm:$0x1] %vm392, 0
        %395 = vst.msk [vmem:[#allocation2 + $0x18] sm:$0x1] %vm392, 0
        %396 = vst.msk [vmem:[#allocation2 + $0x24] sm:$0x1] %vm392, 0
        %397 = vst.msk [vmem:[#allocation2 + $0x30] sm:$0x1] %vm392, 0
        %398 = vst.msk [vmem:[#allocation2 + $0x3c] sm:$0x1] %vm392, 0
        %399 = vst.msk [vmem:[#allocation2 + $0x48] sm:$0x1] %vm392, 0
        %400 = vst.msk [vmem:[#allocation2 + $0x54] sm:$0x1] %vm392, 0
        %401 = vst.msk [vmem:[#allocation2 + $0x60] sm:$0x1] %vm392, 0
        %402 = vst.msk [vmem:[#allocation2 + $0x6c] sm:$0x1] %vm392, 0
        %403 = vst.msk [vmem:[#allocation2 + $0x78] sm:$0x1] %vm392, 0
        %404 = vst.msk [vmem:[#allocation2 + $0x84] sm:$0x1] %vm392, 0
        %vm405 = vcmask 254977
        %406 = vst.msk [vmem:[#allocation2 + $0x8] sm:$0x2] %vm405, 0
        %407 = vst.msk [vmem:[#allocation2 + $0x14] sm:$0x2] %vm405, 0
        %408 = vst.msk [vmem:[#allocation2 + $0x20] sm:$0x2] %vm405, 0
        %409 = vst.msk [vmem:[#allocation2 + $0x2c] sm:$0x2] %vm405, 0
        %410 = vst.msk [vmem:[#allocation2 + $0x38] sm:$0x2] %vm405, 0
        %411 = vst.msk [vmem:[#allocation2 + $0x44] sm:$0x2] %vm405, 0
        %412 = vst.msk [vmem:[#allocation2 + $0x50] sm:$0x2] %vm405, 0
        %413 = vst.msk [vmem:[#allocation2 + $0x5c] sm:$0x2] %vm405, 0
        %414 = vst.msk [vmem:[#allocation2 + $0x68] sm:$0x2] %vm405, 0
        %415 = vst.msk [vmem:[#allocation2 + $0x74] sm:$0x2] %vm405, 0
        %416 = vst.msk [vmem:[#allocation2 + $0x80] sm:$0x2] %vm405, 0
        %417 = vst.msk [vmem:[#allocation2 + $0x8c] sm:$0x2] %vm405, 0
        %v418 = vld [vmem:[%s297] sm:$0xff]
        %v419 = vld [vmem:[%s297 + $0x8] sm:$0xff]
        %v420 = vld [vmem:[%s297 + $0x10] sm:$0xff]
        %v421 = vld [vmem:[%s297 + $0x18] sm:$0xff]
        %v422 = vld [vmem:[%s297 + $0x20] sm:$0xff]
        %v423 = vld [vmem:[%s297 + $0x28] sm:$0xff]
        %v424 = vld [vmem:[%s297 + $0x30] sm:$0xff]
        %v425 = vld [vmem:[%s297 + $0x38] sm:$0xff]
        %v426 = vld [vmem:[%s297 + $0x40] sm:$0xff]
        %v427 = vld [vmem:[%s297 + $0x48] sm:$0xff]
        %v428 = vld [vmem:[%s297 + $0x50] sm:$0xff]
        %v429 = vld [vmem:[%s297 + $0x58] sm:$0xff]
        %v430 = vld [vmem:[%s297 + $0x60] sm:$0xff]
        %v431 = vld [vmem:[%s297 + $0x68] sm:$0xff]
        %v432 = vld [vmem:[%s297 + $0x70] sm:$0xff]
        %v433 = vld [vmem:[%s297 + $0x78] sm:$0xff]
        %v434 = vpack.c.bf16 %v419, %v418
        %v435 = vpack.c.bf16 %v421, %v420
        %v436 = vpack.c.bf16 %v423, %v422
        %v437 = vpack.c.bf16 %v425, %v424
        %v438 = vpack.c.bf16 %v427, %v426
        %v439 = vpack.c.bf16 %v429, %v428
        %v440 = vpack.c.bf16 %v431, %v430
        %v441 = vpack.c.bf16 %v433, %v432
        %v443 = vlaneseq
        %v444 = vshrl.u32 %v443, 7
        %v445 = vsub.s32 0, %v444
        %v446 = vrot.slane %v391, %v445
        %v464 = vunpack.c.l.b16 %v375
        %v465 = vunpack.c.l.b16 %v376
        %v466 = vunpack.c.l.b16 %v377
        %v467 = vunpack.c.l.b16 %v378
        %v468 = vunpack.c.l.b16 %v379
        %v469 = vunpack.c.l.b16 %v380
        %v470 = vunpack.c.l.b16 %v381
        %v471 = vunpack.c.l.b16 %v382
        %v472 = vunpack.c.l.b16 %v383
        %v473 = vunpack.c.l.b16 %v384
        %v474 = vunpack.c.l.b16 %v385
        %v475 = vunpack.c.l.b16 %v386
        %v476 = vunpack.c.l.b16 %v387
        %v477 = vunpack.c.l.b16 %v388
        %v478 = vunpack.c.l.b16 %v389
        %v479 = vunpack.c.l.b16 %v390
        %v480 = vpack.c.b16 %v465, %v464
        %v481 = vpack.c.b16 %v467, %v466
        %v482 = vpack.c.b16 %v469, %v468
        %v483 = vpack.c.b16 %v471, %v470
        %v484 = vpack.c.b16 %v473, %v472
        %v485 = vpack.c.b16 %v475, %v474
        %v486 = vpack.c.b16 %v477, %v476
        %v487 = vpack.c.b16 %v479, %v478
        %496 = vmatprep.subr.bf16.mxu0 0
        %497 = vmatpush1.bf16.msra.mxu0 %v480
        %498 = vmatprep.subr.bf16.mxu0 0
        %499 = vmatpush1.bf16.msra.mxu0 %v481
        %500 = vmatprep.subr.bf16.mxu0 0
        %501 = vmatpush1.bf16.msra.mxu0 %v482
        %502 = vmatprep.subr.bf16.mxu0 0
        %503 = vmatpush1.bf16.msra.mxu0 %v483
        %504 = vmatprep.subr.bf16.mxu0 0
        %505 = vmatpush1.bf16.msra.mxu0 %v484
        %506 = vmatprep.subr.bf16.mxu0 0
        %507 = vmatpush1.bf16.msra.mxu0 %v485
        %508 = vmatprep.subr.bf16.mxu0 0
        %509 = vmatpush1.bf16.msra.mxu0 %v486
        %510 = vmatprep.subr.bf16.mxu0 0
        %511 = vmatpush1.bf16.msra.mxu0 %v487
        %512 = vmatprep.subr.bf16.mxu0 0
        %513 = vmatpush1.bf16.msra.mxu0 0
        %514 = vmatprep.subr.bf16.mxu0 0
        %515 = vmatpush1.bf16.msra.mxu0 0
        %516 = vmatprep.subr.bf16.mxu0 0
        %517 = vmatpush1.bf16.msra.mxu0 0
        %518 = vmatprep.subr.bf16.mxu0 0
        %519 = vmatpush1.bf16.msra.mxu0 0
        %520 = vmatprep.subr.bf16.mxu0 0
        %521 = vmatpush1.bf16.msra.mxu0 0
        %522 = vmatprep.subr.bf16.mxu0 0
        %523 = vmatpush1.bf16.msra.mxu0 0
        %524 = vmatprep.subr.bf16.mxu0 0
        %525 = vmatpush1.bf16.msra.mxu0 0
        %526 = vmatprep.subr.bf16.mxu0 0
        %527 = vmatpush1.bf16.msra.mxu0 0
        %528 = vmatprep.mubr.bf16.mxu0 0
        %529 = vmatmul.mubr.bf16.gmra.mrb[0].mxu0 %v434
        %v530 = vpop.f32.mrb[0].mxu0
        %v531 = vadd.f32 %v446, %v530
        %v532 = vpop.f32.mrb[0].mxu0
        %v533 = vpop.f32.mrb[0].mxu0
        %v534 = vadd.f32 %v446, %v533
        %v535 = vpop.f32.mrb[0].mxu0
        %536 = vmatprep.mubr.bf16.mxu0 0
        %537 = vmatmul.mubr.bf16.gmra.mrb[0].mxu0 %v435
        %v538 = vpop.f32.mrb[0].mxu0
        %v539 = vadd.f32 %v446, %v538
        %v540 = vpop.f32.mrb[0].mxu0
        %v541 = vpop.f32.mrb[0].mxu0
        %v542 = vadd.f32 %v446, %v541
        %v543 = vpop.f32.mrb[0].mxu0
        %544 = vmatprep.mubr.bf16.mxu0 0
        %545 = vmatmul.mubr.bf16.gmra.mrb[0].mxu0 %v436
        %v546 = vpop.f32.mrb[0].mxu0
        %v547 = vadd.f32 %v446, %v546
        %v548 = vpop.f32.mrb[0].mxu0
        %v549 = vpop.f32.mrb[0].mxu0
        %v550 = vadd.f32 %v446, %v549
        %v551 = vpop.f32.mrb[0].mxu0
        %552 = vmatprep.mubr.bf16.mxu0 0
        %553 = vmatmul.mubr.bf16.gmra.mrb[0].mxu0 %v437
        %v554 = vpop.f32.mrb[0].mxu0
        %v555 = vadd.f32 %v446, %v554
        %v556 = vpop.f32.mrb[0].mxu0
        %v557 = vpop.f32.mrb[0].mxu0
        %v558 = vadd.f32 %v446, %v557
        %v559 = vpop.f32.mrb[0].mxu0
        %560 = vmatprep.mubr.bf16.mxu0 0
        %561 = vmatmul.mubr.bf16.gmra.mrb[0].mxu0 %v438
        %v562 = vpop.f32.mrb[0].mxu0
        %v563 = vadd.f32 %v446, %v562
        %v564 = vpop.f32.mrb[0].mxu0
        %v565 = vpop.f32.mrb[0].mxu0
        %v566 = vadd.f32 %v446, %v565
        %v567 = vpop.f32.mrb[0].mxu0
        %568 = vmatprep.mubr.bf16.mxu0 0
        %569 = vmatmul.mubr.bf16.gmra.mrb[0].mxu0 %v439
        %v570 = vpop.f32.mrb[0].mxu0
        %v571 = vadd.f32 %v446, %v570
        %v572 = vpop.f32.mrb[0].mxu0
        %v573 = vpop.f32.mrb[0].mxu0
        %v574 = vadd.f32 %v446, %v573
        %v575 = vpop.f32.mrb[0].mxu0
        %576 = vmatprep.mubr.bf16.mxu0 0
        %577 = vmatmul.mubr.bf16.gmra.mrb[0].mxu0 %v440
        %v578 = vpop.f32.mrb[0].mxu0
        %v579 = vadd.f32 %v446, %v578
        %v580 = vpop.f32.mrb[0].mxu0
        %v581 = vpop.f32.mrb[0].mxu0
        %v582 = vadd.f32 %v446, %v581
        %v583 = vpop.f32.mrb[0].mxu0
        %584 = vmatprep.mubr.bf16.mxu0 0
        %585 = vmatmul.mubr.bf16.gmra.mrb[0].mxu0 %v441
        %v586 = vpop.f32.mrb[0].mxu0
        %v587 = vadd.f32 %v446, %v586
        %v588 = vpop.f32.mrb[0].mxu0
        %v589 = vpop.f32.mrb[0].mxu0
        %v590 = vadd.f32 %v446, %v589
        %v591 = vpop.f32.mrb[0].mxu0
        %592 = vdwg.mxu0
        %v593 = vmax.f32 %v531, 0.0
        %v594 = vmax.f32 %v534, 0.0
        %v595 = vmax.f32 %v539, 0.0
        %v596 = vmax.f32 %v542, 0.0
        %v597 = vmax.f32 %v547, 0.0
        %v598 = vmax.f32 %v550, 0.0
        %v599 = vmax.f32 %v555, 0.0
        %v600 = vmax.f32 %v558, 0.0
        %v601 = vmax.f32 %v563, 0.0
        %v602 = vmax.f32 %v566, 0.0
        %v603 = vmax.f32 %v571, 0.0
        %v604 = vmax.f32 %v574, 0.0
        %v605 = vmax.f32 %v579, 0.0
        %v606 = vmax.f32 %v582, 0.0
        %v607 = vmax.f32 %v587, 0.0
        %v608 = vmax.f32 %v590, 0.0
        %v609 = vpack.c.bf16 %v594, %v593
        %v610 = vpack.c.bf16 %v596, %v595
        %v611 = vpack.c.bf16 %v598, %v597
        %v612 = vpack.c.bf16 %v600, %v599
        %v613 = vpack.c.bf16 %v602, %v601
        %v614 = vpack.c.bf16 %v604, %v603
        %v615 = vpack.c.bf16 %v606, %v605
        %v616 = vpack.c.bf16 %v608, %v607
        %v625 = vunpack.c.l.b16 %v609
        %v626 = vunpack.c.h.b16 %v609
        %v627 = vunpack.c.l.b16 %v610
        %v628 = vunpack.c.h.b16 %v610
        %v629 = vunpack.c.l.b16 %v611
        %v630 = vunpack.c.h.b16 %v611
        %v631 = vunpack.c.l.b16 %v612
        %v632 = vunpack.c.h.b16 %v612
        %v633 = vunpack.c.l.b16 %v613
        %v634 = vunpack.c.h.b16 %v613
        %v635 = vunpack.c.l.b16 %v614
        %v636 = vunpack.c.h.b16 %v614
        %v637 = vunpack.c.l.b16 %v615
        %v638 = vunpack.c.h.b16 %v615
        %v639 = vunpack.c.l.b16 %v616
        %v640 = vunpack.c.h.b16 %v616
        %v641 = vpack.c.b16 %v625, %v625
        %v642 = vpack.c.b16 %v626, %v626
        %v643 = vpack.c.b16 %v627, %v627
        %v644 = vpack.c.b16 %v628, %v628
        %v645 = vpack.c.b16 %v629, %v629
        %v646 = vpack.c.b16 %v630, %v630
        %v647 = vpack.c.b16 %v631, %v631
        %v648 = vpack.c.b16 %v632, %v632
        %v649 = vpack.c.b16 %v633, %v633
        %v650 = vpack.c.b16 %v634, %v634
        %v651 = vpack.c.b16 %v635, %v635
        %v652 = vpack.c.b16 %v636, %v636
        %v653 = vpack.c.b16 %v637, %v637
        %v654 = vpack.c.b16 %v638, %v638
        %v655 = vpack.c.b16 %v639, %v639
        %v656 = vpack.c.b16 %v640, %v640
        %vm657 = vcmask 1040384
        %vm658 = vcmask 1044484
        %vm659 = vmor %vm657, %vm658
        %v660 = vrot.slane %v641, 7
        %v661 = vrot.slane %v660, 4
        %v662 = vrot.slane %v642, 7
        %v663 = vsel %vm659, %v661, %v662
        %v664 = vrot.slane %v662, 4
        %v665 = vrot.slane %v643, 7
        %v666 = vrot.slane %v665, 4
        %v667 = vrot.slane %v644, 7
        %v668 = vsel %vm659, %v666, %v667
        %v669 = vrot.slane %v667, 4
        %v670 = vrot.slane %v645, 7
        %v671 = vrot.slane %v670, 4
        %v672 = vrot.slane %v646, 7
        %v673 = vsel %vm659, %v671, %v672
        %v674 = vrot.slane %v672, 4
        %v675 = vrot.slane %v647, 7
        %v676 = vrot.slane %v675, 4
        %v677 = vrot.slane %v648, 7
        %v678 = vsel %vm659, %v676, %v677
        %v679 = vrot.slane %v677, 4
        %v680 = vrot.slane %v649, 7
        %v681 = vrot.slane %v680, 4
        %v682 = vrot.slane %v650, 7
        %v683 = vsel %vm659, %v681, %v682
        %v684 = vrot.slane %v682, 4
        %v685 = vrot.slane %v651, 7
        %v686 = vrot.slane %v685, 4
        %v687 = vrot.slane %v652, 7
        %v688 = vsel %vm659, %v686, %v687
        %v689 = vrot.slane %v687, 4
        %v690 = vrot.slane %v653, 7
        %v691 = vrot.slane %v690, 4
        %v692 = vrot.slane %v654, 7
        %v693 = vsel %vm659, %v691, %v692
        %v694 = vrot.slane %v692, 4
        %v695 = vrot.slane %v655, 7
        %v696 = vrot.slane %v695, 4
        %v697 = vrot.slane %v656, 7
        %v698 = vsel %vm659, %v696, %v697
        %v699 = vrot.slane %v697, 4
        %s724 = scalar_lea.vmem [#allocation2], 24
        %vm725 = vcmask 257025
        %726 = vst.msk [vmem:[%s724] sm:$0xe] %vm725, %v660
        %vm727 = vcmask 257024
        %728 = vst.msk [vmem:[%s724 + $0x4] sm:$0xf] %vm727, %v663
        %729 = vst.msk [vmem:[%s724 + $0x8] sm:$0x1] %vm392, %v664
        %730 = vst.msk [vmem:[%s724 + $0xc] sm:$0xe] %vm725, %v665
        %731 = vst.msk [vmem:[%s724 + $0x10] sm:$0xf] %vm727, %v668
        %732 = vst.msk [vmem:[%s724 + $0x14] sm:$0x1] %vm392, %v669
        %733 = vst.msk [vmem:[%s724 + $0x18] sm:$0xe] %vm725, %v670
        %734 = vst.msk [vmem:[%s724 + $0x1c] sm:$0xf] %vm727, %v673
        %735 = vst.msk [vmem:[%s724 + $0x20] sm:$0x1] %vm392, %v674
        %736 = vst.msk [vmem:[%s724 + $0x24] sm:$0xe] %vm725, %v675
        %737 = vst.msk [vmem:[%s724 + $0x28] sm:$0xf] %vm727, %v678
        %738 = vst.msk [vmem:[%s724 + $0x2c] sm:$0x1] %vm392, %v679
        %739 = vst.msk [vmem:[%s724 + $0x30] sm:$0xe] %vm725, %v680
        %740 = vst.msk [vmem:[%s724 + $0x34] sm:$0xf] %vm727, %v683
        %741 = vst.msk [vmem:[%s724 + $0x38] sm:$0x1] %vm392, %v684
        %742 = vst.msk [vmem:[%s724 + $0x3c] sm:$0xe] %vm725, %v685
        %743 = vst.msk [vmem:[%s724 + $0x40] sm:$0xf] %vm727, %v688
        %744 = vst.msk [vmem:[%s724 + $0x44] sm:$0x1] %vm392, %v689
        %745 = vst.msk [vmem:[%s724 + $0x48] sm:$0xe] %vm725, %v690
        %746 = vst.msk [vmem:[%s724 + $0x4c] sm:$0xf] %vm727, %v693
        %747 = vst.msk [vmem:[%s724 + $0x50] sm:$0x1] %vm392, %v694
        %748 = vst.msk [vmem:[%s724 + $0x54] sm:$0xe] %vm725, %v695
        %749 = vst.msk [vmem:[%s724 + $0x58] sm:$0xf] %vm727, %v698
        %750 = vst.msk [vmem:[%s724 + $0x5c] sm:$0x1] %vm392, %v699
        %s751 = smul.u32 2, 16
        %s752 = smul.u32 %s751, 1
        %s753 = sshll.u32 %s752, 4
        %754 = dma.done [#allocation4], %s753
        %s755 = sshll.u32 %s752, 4
        %756 = dma.done %s363, %s755
        %v757 = vld [vmem:[#allocation3] sm:$0xff]
        %v758 = vld [vmem:[#allocation3 + $0x8] sm:$0xff]
        %v759 = vld [vmem:[#allocation3 + $0x10] sm:$0xff]
        %v760 = vld [vmem:[#allocation3 + $0x18] sm:$0xff]
        %v761 = vld [vmem:[#allocation3 + $0x20] sm:$0xff]
        %v762 = vld [vmem:[#allocation3 + $0x28] sm:$0xff]
        %v763 = vld [vmem:[#allocation3 + $0x30] sm:$0xff]
        %v764 = vld [vmem:[#allocation3 + $0x38] sm:$0xff]
        %v765 = vpack.c.bf16 %v758, %v757
        %v766 = vpack.c.bf16 %v760, %v759
        %v767 = vpack.c.bf16 %v762, %v761
        %v768 = vpack.c.bf16 %v764, %v763
        %769 = vmatprep.subr.bf16.mxu0 0
        %770 = vmatpush1.bf16.msra.mxu0 %v480
        %771 = vmatprep.subr.bf16.mxu0 0
        %772 = vmatpush1.bf16.msra.mxu0 %v481
        %773 = vmatprep.subr.bf16.mxu0 0
        %774 = vmatpush1.bf16.msra.mxu0 %v482
        %775 = vmatprep.subr.bf16.mxu0 0
        %776 = vmatpush1.bf16.msra.mxu0 %v483
        %777 = vmatprep.subr.bf16.mxu0 0
        %778 = vmatpush1.bf16.msra.mxu0 %v484
        %779 = vmatprep.subr.bf16.mxu0 0
        %780 = vmatpush1.bf16.msra.mxu0 %v485
        %781 = vmatprep.subr.bf16.mxu0 0
        %782 = vmatpush1.bf16.msra.mxu0 %v486
        %783 = vmatprep.subr.bf16.mxu0 0
        %784 = vmatpush1.bf16.msra.mxu0 %v487
        %785 = vmatprep.subr.bf16.mxu0 0
        %786 = vmatpush1.bf16.msra.mxu0 0
        %787 = vmatprep.subr.bf16.mxu0 0
        %788 = vmatpush1.bf16.msra.mxu0 0
        %789 = vmatprep.subr.bf16.mxu0 0
        %790 = vmatpush1.bf16.msra.mxu0 0
        %791 = vmatprep.subr.bf16.mxu0 0
        %792 = vmatpush1.bf16.msra.mxu0 0
        %793 = vmatprep.subr.bf16.mxu0 0
        %794 = vmatpush1.bf16.msra.mxu0 0
        %795 = vmatprep.subr.bf16.mxu0 0
        %796 = vmatpush1.bf16.msra.mxu0 0
        %797 = vmatprep.subr.bf16.mxu0 0
        %798 = vmatpush1.bf16.msra.mxu0 0
        %799 = vmatprep.subr.bf16.mxu0 0
        %800 = vmatpush1.bf16.msra.mxu0 0
        %801 = vmatprep.mubr.bf16.mxu0 0
        %802 = vmatmul.mubr.bf16.gmra.mrb[0].mxu0 %v765
        %v803 = vpop.f32.mrb[0].mxu0
        %v804 = vadd.f32 %v446, %v803
        %v805 = vpop.f32.mrb[0].mxu0
        %v806 = vpop.f32.mrb[0].mxu0
        %v807 = vadd.f32 %v446, %v806
        %v808 = vpop.f32.mrb[0].mxu0
        %809 = vmatprep.mubr.bf16.mxu0 0
        %810 = vmatmul.mubr.bf16.gmra.mrb[0].mxu0 %v766
        %v811 = vpop.f32.mrb[0].mxu0
        %v812 = vadd.f32 %v446, %v811
        %v813 = vpop.f32.mrb[0].mxu0
        %v814 = vpop.f32.mrb[0].mxu0
        %v815 = vadd.f32 %v446, %v814
        %v816 = vpop.f32.mrb[0].mxu0
        %817 = vmatprep.mubr.bf16.mxu0 0
        %818 = vmatmul.mubr.bf16.gmra.mrb[0].mxu0 %v767
        %v819 = vpop.f32.mrb[0].mxu0
        %v820 = vadd.f32 %v446, %v819
        %v821 = vpop.f32.mrb[0].mxu0
        %v822 = vpop.f32.mrb[0].mxu0
        %v823 = vadd.f32 %v446, %v822
        %v824 = vpop.f32.mrb[0].mxu0
        %825 = vmatprep.mubr.bf16.mxu0 0
        %826 = vmatmul.mubr.bf16.gmra.mrb[0].mxu0 %v768
        %v827 = vpop.f32.mrb[0].mxu0
        %v828 = vadd.f32 %v446, %v827
        %v829 = vpop.f32.mrb[0].mxu0
        %v830 = vpop.f32.mrb[0].mxu0
        %v831 = vadd.f32 %v446, %v830
        %v832 = vpop.f32.mrb[0].mxu0
        %833 = vdwg.mxu0
        %v834 = vmax.f32 %v804, 0.0
        %v835 = vmax.f32 %v807, 0.0
        %v836 = vmax.f32 %v812, 0.0
        %v837 = vmax.f32 %v815, 0.0
        %v838 = vmax.f32 %v820, 0.0
        %v839 = vmax.f32 %v823, 0.0
        %v840 = vmax.f32 %v828, 0.0
        %v841 = vmax.f32 %v831, 0.0
        %v842 = vpack.c.bf16 %v835, %v834
        %v843 = vpack.c.bf16 %v837, %v836
        %v844 = vpack.c.bf16 %v839, %v838
        %v845 = vpack.c.bf16 %v841, %v840
        %p846 = scmp.gt.s32.totalorder %s31, 0
        // Predicated region
        $region65: #{tpu_custom_call.1} parent=47 // pred_check
          %p847 = pneg %p846
        $region66: #{tpu_custom_call.1} parent=47 // pred_check_branch
          %849 = sbr.rel (%p847) target = $region68
        $region67: #{tpu_custom_call.1} parent=47 // pred_region
          %v852 = vunpack.c.l.b16 %v842
          %v853 = vunpack.c.h.b16 %v842
          %v854 = vunpack.c.l.b16 %v843
          %v855 = vunpack.c.h.b16 %v843
          %v856 = vpack.c.b16 %v852, %v852
          %v857 = vpack.c.b16 %v853, %v853
          %v858 = vpack.c.b16 %v854, %v854
          %v859 = vpack.c.b16 %v855, %v855
          %v860 = vrot.slane %v856, 7
          %v861 = vrot.slane %v860, 4
          %v862 = vrot.slane %v857, 7
          %v863 = vsel %vm659, %v861, %v862
          %v864 = vrot.slane %v862, 4
          %v865 = vrot.slane %v858, 7
          %v866 = vrot.slane %v865, 4
          %v867 = vrot.slane %v859, 7
          %v868 = vsel %vm659, %v866, %v867
          %v869 = vrot.slane %v867, 4
          %876 = vst.msk [vmem:[#allocation2] sm:$0xe] %vm725, %v860
          %877 = vst.msk [vmem:[#allocation2 + $0x4] sm:$0xf] %vm727, %v863
          %878 = vst.msk [vmem:[#allocation2 + $0x8] sm:$0x1] %vm392, %v864
          %879 = vst.msk [vmem:[#allocation2 + $0xc] sm:$0xe] %vm725, %v865
          %880 = vst.msk [vmem:[#allocation2 + $0x10] sm:$0xf] %vm727, %v868
          %881 = vst.msk [vmem:[#allocation2 + $0x14] sm:$0x1] %vm392, %v869
        $region68: #{tpu_custom_call.1} parent=47 // pred_fallthru
          _
        %p882 = scmp.eq.s32.totalorder %s31, 0
        // Predicated region
        $region69: #{tpu_custom_call.1} parent=47 // pred_check
          %p883 = pneg %p882
        $region70: #{tpu_custom_call.1} parent=47 // pred_check_branch
          %885 = sbr.rel (%p883) target = $region72
        $region71: #{tpu_custom_call.1} parent=47 // pred_region
          %886 = vst.msk [vmem:[#allocation2] sm:$0xe] %vm725, 0
          %887 = vst.msk [vmem:[#allocation2 + $0x4] sm:$0xf] %vm727, 0
          %888 = vst.msk [vmem:[#allocation2 + $0x8] sm:$0x1] %vm392, 0
          %889 = vst.msk [vmem:[#allocation2 + $0xc] sm:$0xe] %vm725, 0
          %890 = vst.msk [vmem:[#allocation2 + $0x10] sm:$0xf] %vm727, 0
          %891 = vst.msk [vmem:[#allocation2 + $0x14] sm:$0x1] %vm392, 0
        $region72: #{tpu_custom_call.1} parent=47 // pred_fallthru
          _
        %p892 = scmp.lt.s32.totalorder %s31, 1
        // Predicated region
        $region73: #{tpu_custom_call.1} parent=47 // pred_check
          %p893 = pneg %p892
        $region74: #{tpu_custom_call.1} parent=47 // pred_check_branch
          %895 = sbr.rel (%p893) target = $region76
        $region75: #{tpu_custom_call.1} parent=47 // pred_region
          %v898 = vunpack.c.l.b16 %v844
          %v899 = vunpack.c.h.b16 %v844
          %v900 = vunpack.c.l.b16 %v845
          %v901 = vunpack.c.h.b16 %v845
          %v902 = vpack.c.b16 %v898, %v898
          %v903 = vpack.c.b16 %v899, %v899
          %v904 = vpack.c.b16 %v900, %v900
          %v905 = vpack.c.b16 %v901, %v901
          %v906 = vrot.slane %v902, 7
          %v907 = vrot.slane %v906, 4
          %v908 = vrot.slane %v903, 7
          %v909 = vsel %vm659, %v907, %v908
          %v910 = vrot.slane %v908, 4
          %v911 = vrot.slane %v904, 7
          %v912 = vrot.slane %v911, 4
          %v913 = vrot.slane %v905, 7
          %v914 = vsel %vm659, %v912, %v913
          %v915 = vrot.slane %v913, 4
          %s922 = scalar_lea.vmem [#allocation2], 120
          %923 = vst.msk [vmem:[%s922] sm:$0xe] %vm725, %v906
          %924 = vst.msk [vmem:[%s922 + $0x4] sm:$0xf] %vm727, %v909
          %925 = vst.msk [vmem:[%s922 + $0x8] sm:$0x1] %vm392, %v910
          %926 = vst.msk [vmem:[%s922 + $0xc] sm:$0xe] %vm725, %v911
          %927 = vst.msk [vmem:[%s922 + $0x10] sm:$0xf] %vm727, %v914
          %928 = vst.msk [vmem:[%s922 + $0x14] sm:$0x1] %vm392, %v915
        $region76: #{tpu_custom_call.1} parent=47 // pred_fallthru
          _
        %p929 = scmp.eq.s32.totalorder %s31, 1
        // Predicated region
        $region77: #{tpu_custom_call.1} parent=47 // pred_check
          %p930 = pneg %p929
        $region78: #{tpu_custom_call.1} parent=47 // pred_check_branch
          %932 = sbr.rel (%p930) target = $region80
        $region79: #{tpu_custom_call.1} parent=47 // pred_region
          %s933 = scalar_lea.vmem [#allocation2], 120
          %934 = vst.msk [vmem:[%s933] sm:$0xe] %vm725, 0
          %935 = vst.msk [vmem:[%s933 + $0x4] sm:$0xf] %vm727, 0
          %936 = vst.msk [vmem:[%s933 + $0x8] sm:$0x1] %vm392, 0
          %937 = vst.msk [vmem:[%s933 + $0xc] sm:$0xe] %vm725, 0
          %938 = vst.msk [vmem:[%s933 + $0x10] sm:$0xf] %vm727, 0
          %939 = vst.msk [vmem:[%s933 + $0x14] sm:$0x1] %vm392, 0
        $region80: #{tpu_custom_call.1} parent=47 // pred_fallthru
          _
        %v940 = vld [vmem:[%s6] sm:$0x1]
        %v941 = vld [vmem:[#allocation2] sm:$0xf]
        %v942 = vld [vmem:[#allocation2 + $0x4] sm:$0xf]
        %v943 = vld [vmem:[#allocation2 + $0xc] sm:$0xf]
        %v944 = vld [vmem:[#allocation2 + $0x10] sm:$0xf]
        %v945 = vld [vmem:[#allocation2 + $0x18] sm:$0xf]
        %v946 = vld [vmem:[#allocation2 + $0x1c] sm:$0xf]
        %v947 = vld [vmem:[#allocation2 + $0x24] sm:$0xf]
        %v948 = vld [vmem:[#allocation2 + $0x28] sm:$0xf]
        %v949 = vld [vmem:[#allocation2 + $0x30] sm:$0xf]
        %v950 = vld [vmem:[#allocation2 + $0x34] sm:$0xf]
        %v951 = vld [vmem:[#allocation2 + $0x3c] sm:$0xf]
        %v952 = vld [vmem:[#allocation2 + $0x40] sm:$0xf]
        %v953 = vld [vmem:[#allocation2 + $0x48] sm:$0xf]
        %v954 = vld [vmem:[#allocation2 + $0x4c] sm:$0xf]
        %v955 = vld [vmem:[#allocation2 + $0x54] sm:$0xf]
        %v956 = vld [vmem:[#allocation2 + $0x58] sm:$0xf]
        %v957 = vld [vmem:[#allocation8] sm:$0xf]
        %v958 = vld [vmem:[#allocation8 + $0x4] sm:$0xf]
        %v959 = vld [vmem:[#allocation8 + $0x8] sm:$0xf]
        %v960 = vld [vmem:[#allocation8 + $0xc] sm:$0xf]
        %v977 = vunpack.c.l.b16 %v941
        %v978 = vunpack.c.l.b16 %v942
        %v979 = vunpack.c.l.b16 %v943
        %v980 = vunpack.c.l.b16 %v944
        %v981 = vunpack.c.l.b16 %v945
        %v982 = vunpack.c.l.b16 %v946
        %v983 = vunpack.c.l.b16 %v947
        %v984 = vunpack.c.l.b16 %v948
        %v985 = vunpack.c.l.b16 %v949
        %v986 = vunpack.c.l.b16 %v950
        %v987 = vunpack.c.l.b16 %v951
        %v988 = vunpack.c.l.b16 %v952
        %v989 = vunpack.c.l.b16 %v953
        %v990 = vunpack.c.l.b16 %v954
        %v991 = vunpack.c.l.b16 %v955
        %v992 = vunpack.c.l.b16 %v956
        %v993 = vpack.c.b16 %v978, %v977
        %v994 = vpack.c.b16 %v980, %v979
        %v995 = vpack.c.b16 %v982, %v981
        %v996 = vpack.c.b16 %v984, %v983
        %v997 = vpack.c.b16 %v986, %v985
        %v998 = vpack.c.b16 %v988, %v987
        %v999 = vpack.c.b16 %v990, %v989
        %v1000 = vpack.c.b16 %v992, %v991
        %v1005 = vunpack.c.l.b16 %v957
        %v1006 = vunpack.c.l.b16 %v958
        %v1007 = vunpack.c.l.b16 %v959
        %v1008 = vunpack.c.l.b16 %v960
        %v1009 = vpack.c.b16 %v1006, %v1005
        %v1010 = vpack.c.b16 %v1008, %v1007
        %vm1013 = vcmask 261120
        %v1015 = vsel %vm1013, %v993, 0
        %v1018 = vsel %vm1013, %v994, 0
        %v1021 = vsel %vm1013, %v995, 0
        %v1024 = vsel %vm1013, %v996, 0
        %v1027 = vsel %vm1013, %v997, 0
        %v1030 = vsel %vm1013, %v998, 0
        %v1033 = vsel %vm1013, %v999, 0
        %v1036 = vsel %vm1013, %v1000, 0
        %1038 = vmatprep.subr.bf16.mxu0 0
        %1039 = vmatpush1.bf16.msra.mxu0 %v1009
        %1040 = vmatprep.subr.bf16.mxu0 0
        %1041 = vmatpush1.bf16.msra.mxu0 %v1010
        %1042 = vmatprep.subr.bf16.mxu0 0
        %1043 = vmatpush1.bf16.msra.mxu0 0
        %1044 = vmatprep.subr.bf16.mxu0 0
        %1045 = vmatpush1.bf16.msra.mxu0 0
        %1046 = vmatprep.subr.bf16.mxu0 0
        %1047 = vmatpush1.bf16.msra.mxu0 0
        %1048 = vmatprep.subr.bf16.mxu0 0
        %1049 = vmatpush1.bf16.msra.mxu0 0
        %1050 = vmatprep.subr.bf16.mxu0 0
        %1051 = vmatpush1.bf16.msra.mxu0 0
        %1052 = vmatprep.subr.bf16.mxu0 0
        %1053 = vmatpush1.bf16.msra.mxu0 0
        %1054 = vmatprep.subr.bf16.mxu0 0
        %1055 = vmatpush1.bf16.msra.mxu0 0
        %1056 = vmatprep.subr.bf16.mxu0 0
        %1057 = vmatpush1.bf16.msra.mxu0 0
        %1058 = vmatprep.subr.bf16.mxu0 0
        %1059 = vmatpush1.bf16.msra.mxu0 0
        %1060 = vmatprep.subr.bf16.mxu0 0
        %1061 = vmatpush1.bf16.msra.mxu0 0
        %1062 = vmatprep.subr.bf16.mxu0 0
        %1063 = vmatpush1.bf16.msra.mxu0 0
        %1064 = vmatprep.subr.bf16.mxu0 0
        %1065 = vmatpush1.bf16.msra.mxu0 0
        %1066 = vmatprep.subr.bf16.mxu0 0
        %1067 = vmatpush1.bf16.msra.mxu0 0
        %1068 = vmatprep.subr.bf16.mxu0 0
        %1069 = vmatpush1.bf16.msra.mxu0 0
        %1070 = vmatprep.mubr.bf16.mxu0 0
        %1071 = vmatmul.mubr.bf16.gmra.mrb[0].mxu0 %v1015
        %v1072 = vpop.f32.mrb[0].mxu0
        %v1073 = vadd.f32 0.0, %v1072
        %v1074 = vpop.f32.mrb[0].mxu0
        %v1075 = vpop.f32.mrb[0].mxu0
        %v1076 = vadd.f32 0.0, %v1075
        %v1077 = vpop.f32.mrb[0].mxu0
        %1078 = vmatprep.mubr.bf16.mxu0 0
        %1079 = vmatmul.mubr.bf16.gmra.mrb[0].mxu0 %v1018
        %v1080 = vpop.f32.mrb[0].mxu0
        %v1081 = vadd.f32 0.0, %v1080
        %v1082 = vpop.f32.mrb[0].mxu0
        %v1083 = vpop.f32.mrb[0].mxu0
        %v1084 = vadd.f32 0.0, %v1083
        %v1085 = vpop.f32.mrb[0].mxu0
        %1086 = vmatprep.mubr.bf16.mxu0 0
        %1087 = vmatmul.mubr.bf16.gmra.mrb[0].mxu0 %v1021
        %v1088 = vpop.f32.mrb[0].mxu0
        %v1089 = vadd.f32 0.0, %v1088
        %v1090 = vpop.f32.mrb[0].mxu0
        %v1091 = vpop.f32.mrb[0].mxu0
        %v1092 = vadd.f32 0.0, %v1091
        %v1093 = vpop.f32.mrb[0].mxu0
        %1094 = vmatprep.mubr.bf16.mxu0 0
        %1095 = vmatmul.mubr.bf16.gmra.mrb[0].mxu0 %v1024
        %v1096 = vpop.f32.mrb[0].mxu0
        %v1097 = vadd.f32 0.0, %v1096
        %v1098 = vpop.f32.mrb[0].mxu0
        %v1099 = vpop.f32.mrb[0].mxu0
        %v1100 = vadd.f32 0.0, %v1099
        %v1101 = vpop.f32.mrb[0].mxu0
        %1102 = vmatprep.mubr.bf16.mxu0 0
        %1103 = vmatmul.mubr.bf16.gmra.mrb[0].mxu0 %v1027
        %v1104 = vpop.f32.mrb[0].mxu0
        %v1105 = vadd.f32 0.0, %v1104
        %v1106 = vpop.f32.mrb[0].mxu0
        %v1107 = vpop.f32.mrb[0].mxu0
        %v1108 = vadd.f32 0.0, %v1107
        %v1109 = vpop.f32.mrb[0].mxu0
        %1110 = vmatprep.mubr.bf16.mxu0 0
        %1111 = vmatmul.mubr.bf16.gmra.mrb[0].mxu0 %v1030
        %v1112 = vpop.f32.mrb[0].mxu0
        %v1113 = vadd.f32 0.0, %v1112
        %v1114 = vpop.f32.mrb[0].mxu0
        %v1115 = vpop.f32.mrb[0].mxu0
        %v1116 = vadd.f32 0.0, %v1115
        %v1117 = vpop.f32.mrb[0].mxu0
        %1118 = vmatprep.mubr.bf16.mxu0 0
        %1119 = vmatmul.mubr.bf16.gmra.mrb[0].mxu0 %v1033
        %v1120 = vpop.f32.mrb[0].mxu0
        %v1121 = vadd.f32 0.0, %v1120
        %v1122 = vpop.f32.mrb[0].mxu0
        %v1123 = vpop.f32.mrb[0].mxu0
        %v1124 = vadd.f32 0.0, %v1123
        %v1125 = vpop.f32.mrb[0].mxu0
        %1126 = vmatprep.mubr.bf16.mxu0 0
        %1127 = vmatmul.mubr.bf16.gmra.mrb[0].mxu0 %v1036
        %v1128 = vpop.f32.mrb[0].mxu0
        %v1129 = vadd.f32 0.0, %v1128
        %v1130 = vpop.f32.mrb[0].mxu0
        %v1131 = vpop.f32.mrb[0].mxu0
        %v1132 = vadd.f32 0.0, %v1131
        %v1133 = vpop.f32.mrb[0].mxu0
        %1134 = vdwg.mxu0
        %v1136 = vlaneseq
        %v1137 = vshrl.u32 %v1136, 7
        %v1138 = vsub.s32 0, %v1137
        %v1139 = vrot.slane %v940, %v1138
        %v1141 = vadd.f32 %v1139, %v1073
        %v1142 = vadd.f32 %v1139, %v1076
        %v1143 = vadd.f32 %v1139, %v1081
        %v1144 = vadd.f32 %v1139, %v1084
        %v1145 = vadd.f32 %v1139, %v1089
        %v1146 = vadd.f32 %v1139, %v1092
        %v1147 = vadd.f32 %v1139, %v1097
        %v1148 = vadd.f32 %v1139, %v1100
        %v1149 = vadd.f32 %v1139, %v1105
        %v1150 = vadd.f32 %v1139, %v1108
        %v1151 = vadd.f32 %v1139, %v1113
        %v1152 = vadd.f32 %v1139, %v1116
        %v1153 = vadd.f32 %v1139, %v1121
        %v1154 = vadd.f32 %v1139, %v1124
        %v1155 = vadd.f32 %v1139, %v1129
        %v1156 = vadd.f32 %v1139, %v1132
        %v1157 = vld [vmem:[#allocation2] sm:$0xe]
        %v1158 = vld [vmem:[#allocation2 + $0x4] sm:$0xf]
        %v1159 = vld [vmem:[#allocation2 + $0x8] sm:$0x1]
        %v1160 = vld [vmem:[#allocation2 + $0xc] sm:$0xe]
        %v1161 = vld [vmem:[#allocation2 + $0x10] sm:$0xf]
        %v1162 = vld [vmem:[#allocation2 + $0x14] sm:$0x1]
        %v1163 = vld [vmem:[#allocation2 + $0x18] sm:$0xe]
        %v1164 = vld [vmem:[#allocation2 + $0x1c] sm:$0xf]
        %v1165 = vld [vmem:[#allocation2 + $0x20] sm:$0x1]
        %v1166 = vld [vmem:[#allocation2 + $0x24] sm:$0xe]
        %v1167 = vld [vmem:[#allocation2 + $0x28] sm:$0xf]
        %v1168 = vld [vmem:[#allocation2 + $0x2c] sm:$0x1]
        %v1169 = vld [vmem:[#allocation2 + $0x30] sm:$0xe]
        %v1170 = vld [vmem:[#allocation2 + $0x34] sm:$0xf]
        %v1171 = vld [vmem:[#allocation2 + $0x38] sm:$0x1]
        %v1172 = vld [vmem:[#allocation2 + $0x3c] sm:$0xe]
        %v1173 = vld [vmem:[#allocation2 + $0x40] sm:$0xf]
        %v1174 = vld [vmem:[#allocation2 + $0x44] sm:$0x1]
        %v1175 = vld [vmem:[#allocation2 + $0x48] sm:$0xe]
        %v1176 = vld [vmem:[#allocation2 + $0x4c] sm:$0xf]
        %v1177 = vld [vmem:[#allocation2 + $0x50] sm:$0x1]
        %v1178 = vld [vmem:[#allocation2 + $0x54] sm:$0xe]
        %v1179 = vld [vmem:[#allocation2 + $0x58] sm:$0xf]
        %v1180 = vld [vmem:[#allocation2 + $0x5c] sm:$0x1]
        %vm1205 = vcmask 1042432
        %vm1206 = vcmask 1046532
        %vm1207 = vmor %vm1205, %vm1206
        %v1208 = vrot.slane %v1157, 5
        %v1209 = vrot.slane %v1208, 4
        %v1210 = vrot.slane %v1158, 5
        %v1211 = vsel %vm1207, %v1209, %v1210
        %v1212 = vrot.slane %v1210, 4
        %v1213 = vrot.slane %v1159, 5
        %v1214 = vsel %vm1207, %v1212, %v1213
        %v1215 = vrot.slane %v1160, 5
        %v1216 = vrot.slane %v1215, 4
        %v1217 = vrot.slane %v1161, 5
        %v1218 = vsel %vm1207, %v1216, %v1217
        %v1219 = vrot.slane %v1217, 4
        %v1220 = vrot.slane %v1162, 5
        %v1221 = vsel %vm1207, %v1219, %v1220
        %v1222 = vrot.slane %v1163, 5
        %v1223 = vrot.slane %v1222, 4
        %v1224 = vrot.slane %v1164, 5
        %v1225 = vsel %vm1207, %v1223, %v1224
        %v1226 = vrot.slane %v1224, 4
        %v1227 = vrot.slane %v1165, 5
        %v1228 = vsel %vm1207, %v1226, %v1227
        %v1229 = vrot.slane %v1166, 5
        %v1230 = vrot.slane %v1229, 4
        %v1231 = vrot.slane %v1167, 5
        %v1232 = vsel %vm1207, %v1230, %v1231
        %v1233 = vrot.slane %v1231, 4
        %v1234 = vrot.slane %v1168, 5
        %v1235 = vsel %vm1207, %v1233, %v1234
        %v1236 = vrot.slane %v1169, 5
        %v1237 = vrot.slane %v1236, 4
        %v1238 = vrot.slane %v1170, 5
        %v1239 = vsel %vm1207, %v1237, %v1238
        %v1240 = vrot.slane %v1238, 4
        %v1241 = vrot.slane %v1171, 5
        %v1242 = vsel %vm1207, %v1240, %v1241
        %v1243 = vrot.slane %v1172, 5
        %v1244 = vrot.slane %v1243, 4
        %v1245 = vrot.slane %v1173, 5
        %v1246 = vsel %vm1207, %v1244, %v1245
        %v1247 = vrot.slane %v1245, 4
        %v1248 = vrot.slane %v1174, 5
        %v1249 = vsel %vm1207, %v1247, %v1248
        %v1250 = vrot.slane %v1175, 5
        %v1251 = vrot.slane %v1250, 4
        %v1252 = vrot.slane %v1176, 5
        %v1253 = vsel %vm1207, %v1251, %v1252
        %v1254 = vrot.slane %v1252, 4
        %v1255 = vrot.slane %v1177, 5
        %v1256 = vsel %vm1207, %v1254, %v1255
        %v1257 = vrot.slane %v1178, 5
        %v1258 = vrot.slane %v1257, 4
        %v1259 = vrot.slane %v1179, 5
        %v1260 = vsel %vm1207, %v1258, %v1259
        %v1261 = vrot.slane %v1259, 4
        %v1262 = vrot.slane %v1180, 5
        %v1263 = vsel %vm1207, %v1261, %v1262
        %s1264 = scalar_lea.vmem [#allocation8], 16
        %v1265 = vld [vmem:[%s1264] sm:$0xf]
        %v1266 = vld [vmem:[%s1264 + $0x4] sm:$0xf]
        %v1267 = vld [vmem:[%s1264 + $0x8] sm:$0xf]
        %v1268 = vld [vmem:[%s1264 + $0xc] sm:$0xf]
        %v1269 = vunpack.c.l.b16 %v1211
        %v1270 = vunpack.c.l.b16 %v1214
        %v1271 = vunpack.c.l.b16 %v1218
        %v1272 = vunpack.c.l.b16 %v1221
        %v1273 = vunpack.c.l.b16 %v1225
        %v1274 = vunpack.c.l.b16 %v1228
        %v1275 = vunpack.c.l.b16 %v1232
        %v1276 = vunpack.c.l.b16 %v1235
        %v1277 = vunpack.c.l.b16 %v1239
        %v1278 = vunpack.c.l.b16 %v1242
        %v1279 = vunpack.c.l.b16 %v1246
        %v1280 = vunpack.c.l.b16 %v1249
        %v1281 = vunpack.c.l.b16 %v1253
        %v1282 = vunpack.c.l.b16 %v1256
        %v1283 = vunpack.c.l.b16 %v1260
        %v1284 = vunpack.c.l.b16 %v1263
        %v1285 = vpack.c.b16 %v1270, %v1269
        %v1286 = vpack.c.b16 %v1272, %v1271
        %v1287 = vpack.c.b16 %v1274, %v1273
        %v1288 = vpack.c.b16 %v1276, %v1275
        %v1289 = vpack.c.b16 %v1278, %v1277
        %v1290 = vpack.c.b16 %v1280, %v1279
        %v1291 = vpack.c.b16 %v1282, %v1281
        %v1292 = vpack.c.b16 %v1284, %v1283
        %v1297 = vunpack.c.l.b16 %v1265
        %v1298 = vunpack.c.l.b16 %v1266
        %v1299 = vunpack.c.l.b16 %v1267
        %v1300 = vunpack.c.l.b16 %v1268
        %v1301 = vpack.c.b16 %v1298, %v1297
        %v1302 = vpack.c.b16 %v1300, %v1299
        %v1306 = vsel %vm1013, %v1285, 0
        %v1309 = vsel %vm1013, %v1286, 0
        %v1312 = vsel %vm1013, %v1287, 0
        %v1315 = vsel %vm1013, %v1288, 0
        %v1318 = vsel %vm1013, %v1289, 0
        %v1321 = vsel %vm1013, %v1290, 0
        %v1324 = vsel %vm1013, %v1291, 0
        %v1327 = vsel %vm1013, %v1292, 0
        %1329 = vmatprep.subr.bf16.mxu0 0
        %1330 = vmatpush1.bf16.msra.mxu0 %v1301
        %1331 = vmatprep.subr.bf16.mxu0 0
        %1332 = vmatpush1.bf16.msra.mxu0 %v1302
        %1333 = vmatprep.subr.bf16.mxu0 0
        %1334 = vmatpush1.bf16.msra.mxu0 0
        %1335 = vmatprep.subr.bf16.mxu0 0
        %1336 = vmatpush1.bf16.msra.mxu0 0
        %1337 = vmatprep.subr.bf16.mxu0 0
        %1338 = vmatpush1.bf16.msra.mxu0 0
        %1339 = vmatprep.subr.bf16.mxu0 0
        %1340 = vmatpush1.bf16.msra.mxu0 0
        %1341 = vmatprep.subr.bf16.mxu0 0
        %1342 = vmatpush1.bf16.msra.mxu0 0
        %1343 = vmatprep.subr.bf16.mxu0 0
        %1344 = vmatpush1.bf16.msra.mxu0 0
        %1345 = vmatprep.subr.bf16.mxu0 0
        %1346 = vmatpush1.bf16.msra.mxu0 0
        %1347 = vmatprep.subr.bf16.mxu0 0
        %1348 = vmatpush1.bf16.msra.mxu0 0
        %1349 = vmatprep.subr.bf16.mxu0 0
        %1350 = vmatpush1.bf16.msra.mxu0 0
        %1351 = vmatprep.subr.bf16.mxu0 0
        %1352 = vmatpush1.bf16.msra.mxu0 0
        %1353 = vmatprep.subr.bf16.mxu0 0
        %1354 = vmatpush1.bf16.msra.mxu0 0
        %1355 = vmatprep.subr.bf16.mxu0 0
        %1356 = vmatpush1.bf16.msra.mxu0 0
        %1357 = vmatprep.subr.bf16.mxu0 0
        %1358 = vmatpush1.bf16.msra.mxu0 0
        %1359 = vmatprep.subr.bf16.mxu0 0
        %1360 = vmatpush1.bf16.msra.mxu0 0
        %1361 = vmatprep.mubr.bf16.mxu0 0
        %1362 = vmatmul.mubr.bf16.gmra.mrb[0].mxu0 %v1306
        %v1363 = vpop.f32.mrb[0].mxu0
        %v1364 = vadd.f32 0.0, %v1363
        %v1365 = vpop.f32.mrb[0].mxu0
        %v1366 = vpop.f32.mrb[0].mxu0
        %v1367 = vadd.f32 0.0, %v1366
        %v1368 = vpop.f32.mrb[0].mxu0
        %1369 = vmatprep.mubr.bf16.mxu0 0
        %1370 = vmatmul.mubr.bf16.gmra.mrb[0].mxu0 %v1309
        %v1371 = vpop.f32.mrb[0].mxu0
        %v1372 = vadd.f32 0.0, %v1371
        %v1373 = vpop.f32.mrb[0].mxu0
        %v1374 = vpop.f32.mrb[0].mxu0
        %v1375 = vadd.f32 0.0, %v1374
        %v1376 = vpop.f32.mrb[0].mxu0
        %1377 = vmatprep.mubr.bf16.mxu0 0
        %1378 = vmatmul.mubr.bf16.gmra.mrb[0].mxu0 %v1312
        %v1379 = vpop.f32.mrb[0].mxu0
        %v1380 = vadd.f32 0.0, %v1379
        %v1381 = vpop.f32.mrb[0].mxu0
        %v1382 = vpop.f32.mrb[0].mxu0
        %v1383 = vadd.f32 0.0, %v1382
        %v1384 = vpop.f32.mrb[0].mxu0
        %1385 = vmatprep.mubr.bf16.mxu0 0
        %1386 = vmatmul.mubr.bf16.gmra.mrb[0].mxu0 %v1315
        %v1387 = vpop.f32.mrb[0].mxu0
        %v1388 = vadd.f32 0.0, %v1387
        %v1389 = vpop.f32.mrb[0].mxu0
        %v1390 = vpop.f32.mrb[0].mxu0
        %v1391 = vadd.f32 0.0, %v1390
        %v1392 = vpop.f32.mrb[0].mxu0
        %1393 = vmatprep.mubr.bf16.mxu0 0
        %1394 = vmatmul.mubr.bf16.gmra.mrb[0].mxu0 %v1318
        %v1395 = vpop.f32.mrb[0].mxu0
        %v1396 = vadd.f32 0.0, %v1395
        %v1397 = vpop.f32.mrb[0].mxu0
        %v1398 = vpop.f32.mrb[0].mxu0
        %v1399 = vadd.f32 0.0, %v1398
        %v1400 = vpop.f32.mrb[0].mxu0
        %1401 = vmatprep.mubr.bf16.mxu0 0
        %1402 = vmatmul.mubr.bf16.gmra.mrb[0].mxu0 %v1321
        %v1403 = vpop.f32.mrb[0].mxu0
        %v1404 = vadd.f32 0.0, %v1403
        %v1405 = vpop.f32.mrb[0].mxu0
        %v1406 = vpop.f32.mrb[0].mxu0
        %v1407 = vadd.f32 0.0, %v1406
        %v1408 = vpop.f32.mrb[0].mxu0
        %1409 = vmatprep.mubr.bf16.mxu0 0
        %1410 = vmatmul.mubr.bf16.gmra.mrb[0].mxu0 %v1324
        %v1411 = vpop.f32.mrb[0].mxu0
        %v1412 = vadd.f32 0.0, %v1411
        %v1413 = vpop.f32.mrb[0].mxu0
        %v1414 = vpop.f32.mrb[0].mxu0
        %v1415 = vadd.f32 0.0, %v1414
        %v1416 = vpop.f32.mrb[0].mxu0
        %1417 = vmatprep.mubr.bf16.mxu0 0
        %1418 = vmatmul.mubr.bf16.gmra.mrb[0].mxu0 %v1327
        %v1419 = vpop.f32.mrb[0].mxu0
        %v1420 = vadd.f32 0.0, %v1419
        %v1421 = vpop.f32.mrb[0].mxu0
        %v1422 = vpop.f32.mrb[0].mxu0
        %v1423 = vadd.f32 0.0, %v1422
        %v1424 = vpop.f32.mrb[0].mxu0
        %1425 = vdwg.mxu0
        %v1426 = vadd.f32 %v1141, %v1364
        %v1427 = vadd.f32 %v1142, %v1367
        %v1428 = vadd.f32 %v1143, %v1372
        %v1429 = vadd.f32 %v1144, %v1375
        %v1430 = vadd.f32 %v1145, %v1380
        %v1431 = vadd.f32 %v1146, %v1383
        %v1432 = vadd.f32 %v1147, %v1388
        %v1433 = vadd.f32 %v1148, %v1391
        %v1434 = vadd.f32 %v1149, %v1396
        %v1435 = vadd.f32 %v1150, %v1399
        %v1436 = vadd.f32 %v1151, %v1404
        %v1437 = vadd.f32 %v1152, %v1407
        %v1438 = vadd.f32 %v1153, %v1412
        %v1439 = vadd.f32 %v1154, %v1415
        %v1440 = vadd.f32 %v1155, %v1420
        %v1441 = vadd.f32 %v1156, %v1423
        %v1442 = vld [vmem:[#allocation2] sm:$0xc]
        %v1443 = vld [vmem:[#allocation2 + $0x8] sm:$0x3]
        %v1444 = vld [vmem:[#allocation2 + $0xc] sm:$0xc]
        %v1445 = vld [vmem:[#allocation2 + $0x14] sm:$0x3]
        %v1446 = vld [vmem:[#allocation2 + $0x18] sm:$0xc]
        %v1447 = vld [vmem:[#allocation2 + $0x20] sm:$0x3]
        %v1448 = vld [vmem:[#allocation2 + $0x24] sm:$0xc]
        %v1449 = vld [vmem:[#allocation2 + $0x2c] sm:$0x3]
        %v1450 = vld [vmem:[#allocation2 + $0x30] sm:$0xc]
        %v1451 = vld [vmem:[#allocation2 + $0x38] sm:$0x3]
        %v1452 = vld [vmem:[#allocation2 + $0x3c] sm:$0xc]
        %v1453 = vld [vmem:[#allocation2 + $0x44] sm:$0x3]
        %v1454 = vld [vmem:[#allocation2 + $0x48] sm:$0xc]
        %v1455 = vld [vmem:[#allocation2 + $0x50] sm:$0x3]
        %v1456 = vld [vmem:[#allocation2 + $0x54] sm:$0xc]
        %v1457 = vld [vmem:[#allocation2 + $0x5c] sm:$0x3]
        %vm1474 = vcmask 1041408
        %vm1475 = vcmask 1045508
        %vm1476 = vmor %vm1474, %vm1475
        %v1477 = vrot.slane %v1442, 6
        %v1478 = vrot.slane %v1477, 4
        %v1479 = vrot.slane %v1158, 6
        %v1480 = vsel %vm1476, %v1478, %v1479
        %v1481 = vrot.slane %v1479, 4
        %v1482 = vrot.slane %v1443, 6
        %v1483 = vsel %vm1476, %v1481, %v1482
        %v1484 = vrot.slane %v1444, 6
        %v1485 = vrot.slane %v1484, 4
        %v1486 = vrot.slane %v1161, 6
        %v1487 = vsel %vm1476, %v1485, %v1486
        %v1488 = vrot.slane %v1486, 4
        %v1489 = vrot.slane %v1445, 6
        %v1490 = vsel %vm1476, %v1488, %v1489
        %v1491 = vrot.slane %v1446, 6
        %v1492 = vrot.slane %v1491, 4
        %v1493 = vrot.slane %v1164, 6
        %v1494 = vsel %vm1476, %v1492, %v1493
        %v1495 = vrot.slane %v1493, 4
        %v1496 = vrot.slane %v1447, 6
        %v1497 = vsel %vm1476, %v1495, %v1496
        %v1498 = vrot.slane %v1448, 6
        %v1499 = vrot.slane %v1498, 4
        %v1500 = vrot.slane %v1167, 6
        %v1501 = vsel %vm1476, %v1499, %v1500
        %v1502 = vrot.slane %v1500, 4
        %v1503 = vrot.slane %v1449, 6
        %v1504 = vsel %vm1476, %v1502, %v1503
        %v1505 = vrot.slane %v1450, 6
        %v1506 = vrot.slane %v1505, 4
        %v1507 = vrot.slane %v1170, 6
        %v1508 = vsel %vm1476, %v1506, %v1507
        %v1509 = vrot.slane %v1507, 4
        %v1510 = vrot.slane %v1451, 6
        %v1511 = vsel %vm1476, %v1509, %v1510
        %v1512 = vrot.slane %v1452, 6
        %v1513 = vrot.slane %v1512, 4
        %v1514 = vrot.slane %v1173, 6
        %v1515 = vsel %vm1476, %v1513, %v1514
        %v1516 = vrot.slane %v1514, 4
        %v1517 = vrot.slane %v1453, 6
        %v1518 = vsel %vm1476, %v1516, %v1517
        %v1519 = vrot.slane %v1454, 6
        %v1520 = vrot.slane %v1519, 4
        %v1521 = vrot.slane %v1176, 6
        %v1522 = vsel %vm1476, %v1520, %v1521
        %v1523 = vrot.slane %v1521, 4
        %v1524 = vrot.slane %v1455, 6
        %v1525 = vsel %vm1476, %v1523, %v1524
        %v1526 = vrot.slane %v1456, 6
        %v1527 = vrot.slane %v1526, 4
        %v1528 = vrot.slane %v1179, 6
        %v1529 = vsel %vm1476, %v1527, %v1528
        %v1530 = vrot.slane %v1528, 4
        %v1531 = vrot.slane %v1457, 6
        %v1532 = vsel %vm1476, %v1530, %v1531
        %s1533 = scalar_lea.vmem [#allocation8], 32
        %v1534 = vld [vmem:[%s1533] sm:$0xf]
        %v1535 = vld [vmem:[%s1533 + $0x4] sm:$0xf]
        %v1536 = vld [vmem:[%s1533 + $0x8] sm:$0xf]
        %v1537 = vld [vmem:[%s1533 + $0xc] sm:$0xf]
        %v1538 = vunpack.c.l.b16 %v1480
        %v1539 = vunpack.c.l.b16 %v1483
        %v1540 = vunpack.c.l.b16 %v1487
        %v1541 = vunpack.c.l.b16 %v1490
        %v1542 = vunpack.c.l.b16 %v1494
        %v1543 = vunpack.c.l.b16 %v1497
        %v1544 = vunpack.c.l.b16 %v1501
        %v1545 = vunpack.c.l.b16 %v1504
        %v1546 = vunpack.c.l.b16 %v1508
        %v1547 = vunpack.c.l.b16 %v1511
        %v1548 = vunpack.c.l.b16 %v1515
        %v1549 = vunpack.c.l.b16 %v1518
        %v1550 = vunpack.c.l.b16 %v1522
        %v1551 = vunpack.c.l.b16 %v1525
        %v1552 = vunpack.c.l.b16 %v1529
        %v1553 = vunpack.c.l.b16 %v1532
        %v1554 = vpack.c.b16 %v1539, %v1538
        %v1555 = vpack.c.b16 %v1541, %v1540
        %v1556 = vpack.c.b16 %v1543, %v1542
        %v1557 = vpack.c.b16 %v1545, %v1544
        %v1558 = vpack.c.b16 %v1547, %v1546
        %v1559 = vpack.c.b16 %v1549, %v1548
        %v1560 = vpack.c.b16 %v1551, %v1550
        %v1561 = vpack.c.b16 %v1553, %v1552
        %v1566 = vunpack.c.l.b16 %v1534
        %v1567 = vunpack.c.l.b16 %v1535
        %v1568 = vunpack.c.l.b16 %v1536
        %v1569 = vunpack.c.l.b16 %v1537
        %v1570 = vpack.c.b16 %v1567, %v1566
        %v1571 = vpack.c.b16 %v1569, %v1568
        %v1575 = vsel %vm1013, %v1554, 0
        %v1578 = vsel %vm1013, %v1555, 0
        %v1581 = vsel %vm1013, %v1556, 0
        %v1584 = vsel %vm1013, %v1557, 0
        %v1587 = vsel %vm1013, %v1558, 0
        %v1590 = vsel %vm1013, %v1559, 0
        %v1593 = vsel %vm1013, %v1560, 0
        %v1596 = vsel %vm1013, %v1561, 0
        %1598 = vmatprep.subr.bf16.mxu0 0
        %1599 = vmatpush1.bf16.msra.mxu0 %v1570
        %1600 = vmatprep.subr.bf16.mxu0 0
        %1601 = vmatpush1.bf16.msra.mxu0 %v1571
        %1602 = vmatprep.subr.bf16.mxu0 0
        %1603 = vmatpush1.bf16.msra.mxu0 0
        %1604 = vmatprep.subr.bf16.mxu0 0
        %1605 = vmatpush1.bf16.msra.mxu0 0
        %1606 = vmatprep.subr.bf16.mxu0 0
        %1607 = vmatpush1.bf16.msra.mxu0 0
        %1608 = vmatprep.subr.bf16.mxu0 0
        %1609 = vmatpush1.bf16.msra.mxu0 0
        %1610 = vmatprep.subr.bf16.mxu0 0
        %1611 = vmatpush1.bf16.msra.mxu0 0
        %1612 = vmatprep.subr.bf16.mxu0 0
        %1613 = vmatpush1.bf16.msra.mxu0 0
        %1614 = vmatprep.subr.bf16.mxu0 0
        %1615 = vmatpush1.bf16.msra.mxu0 0
        %1616 = vmatprep.subr.bf16.mxu0 0
        %1617 = vmatpush1.bf16.msra.mxu0 0
        %1618 = vmatprep.subr.bf16.mxu0 0
        %1619 = vmatpush1.bf16.msra.mxu0 0
        %1620 = vmatprep.subr.bf16.mxu0 0
        %1621 = vmatpush1.bf16.msra.mxu0 0
        %1622 = vmatprep.subr.bf16.mxu0 0
        %1623 = vmatpush1.bf16.msra.mxu0 0
        %1624 = vmatprep.subr.bf16.mxu0 0
        %1625 = vmatpush1.bf16.msra.mxu0 0
        %1626 = vmatprep.subr.bf16.mxu0 0
        %1627 = vmatpush1.bf16.msra.mxu0 0
        %1628 = vmatprep.subr.bf16.mxu0 0
        %1629 = vmatpush1.bf16.msra.mxu0 0
        %1630 = vmatprep.mubr.bf16.mxu0 0
        %1631 = vmatmul.mubr.bf16.gmra.mrb[0].mxu0 %v1575
        %v1632 = vpop.f32.mrb[0].mxu0
        %v1633 = vadd.f32 0.0, %v1632
        %v1634 = vpop.f32.mrb[0].mxu0
        %v1635 = vpop.f32.mrb[0].mxu0
        %v1636 = vadd.f32 0.0, %v1635
        %v1637 = vpop.f32.mrb[0].mxu0
        %1638 = vmatprep.mubr.bf16.mxu0 0
        %1639 = vmatmul.mubr.bf16.gmra.mrb[0].mxu0 %v1578
        %v1640 = vpop.f32.mrb[0].mxu0
        %v1641 = vadd.f32 0.0, %v1640
        %v1642 = vpop.f32.mrb[0].mxu0
        %v1643 = vpop.f32.mrb[0].mxu0
        %v1644 = vadd.f32 0.0, %v1643
        %v1645 = vpop.f32.mrb[0].mxu0
        %1646 = vmatprep.mubr.bf16.mxu0 0
        %1647 = vmatmul.mubr.bf16.gmra.mrb[0].mxu0 %v1581
        %v1648 = vpop.f32.mrb[0].mxu0
        %v1649 = vadd.f32 0.0, %v1648
        %v1650 = vpop.f32.mrb[0].mxu0
        %v1651 = vpop.f32.mrb[0].mxu0
        %v1652 = vadd.f32 0.0, %v1651
        %v1653 = vpop.f32.mrb[0].mxu0
        %1654 = vmatprep.mubr.bf16.mxu0 0
        %1655 = vmatmul.mubr.bf16.gmra.mrb[0].mxu0 %v1584
        %v1656 = vpop.f32.mrb[0].mxu0
        %v1657 = vadd.f32 0.0, %v1656
        %v1658 = vpop.f32.mrb[0].mxu0
        %v1659 = vpop.f32.mrb[0].mxu0
        %v1660 = vadd.f32 0.0, %v1659
        %v1661 = vpop.f32.mrb[0].mxu0
        %1662 = vmatprep.mubr.bf16.mxu0 0
        %1663 = vmatmul.mubr.bf16.gmra.mrb[0].mxu0 %v1587
        %v1664 = vpop.f32.mrb[0].mxu0
        %v1665 = vadd.f32 0.0, %v1664
        %v1666 = vpop.f32.mrb[0].mxu0
        %v1667 = vpop.f32.mrb[0].mxu0
        %v1668 = vadd.f32 0.0, %v1667
        %v1669 = vpop.f32.mrb[0].mxu0
        %1670 = vmatprep.mubr.bf16.mxu0 0
        %1671 = vmatmul.mubr.bf16.gmra.mrb[0].mxu0 %v1590
        %v1672 = vpop.f32.mrb[0].mxu0
        %v1673 = vadd.f32 0.0, %v1672
        %v1674 = vpop.f32.mrb[0].mxu0
        %v1675 = vpop.f32.mrb[0].mxu0
        %v1676 = vadd.f32 0.0, %v1675
        %v1677 = vpop.f32.mrb[0].mxu0
        %1678 = vmatprep.mubr.bf16.mxu0 0
        %1679 = vmatmul.mubr.bf16.gmra.mrb[0].mxu0 %v1593
        %v1680 = vpop.f32.mrb[0].mxu0
        %v1681 = vadd.f32 0.0, %v1680
        %v1682 = vpop.f32.mrb[0].mxu0
        %v1683 = vpop.f32.mrb[0].mxu0
        %v1684 = vadd.f32 0.0, %v1683
        %v1685 = vpop.f32.mrb[0].mxu0
        %1686 = vmatprep.mubr.bf16.mxu0 0
        %1687 = vmatmul.mubr.bf16.gmra.mrb[0].mxu0 %v1596
        %v1688 = vpop.f32.mrb[0].mxu0
        %v1689 = vadd.f32 0.0, %v1688
        %v1690 = vpop.f32.mrb[0].mxu0
        %v1691 = vpop.f32.mrb[0].mxu0
        %v1692 = vadd.f32 0.0, %v1691
        %v1693 = vpop.f32.mrb[0].mxu0
        %1694 = vdwg.mxu0
        %v1695 = vadd.f32 %v1426, %v1633
        %v1696 = vadd.f32 %v1427, %v1636
        %v1697 = vadd.f32 %v1428, %v1641
        %v1698 = vadd.f32 %v1429, %v1644
        %v1699 = vadd.f32 %v1430, %v1649
        %v1700 = vadd.f32 %v1431, %v1652
        %v1701 = vadd.f32 %v1432, %v1657
        %v1702 = vadd.f32 %v1433, %v1660
        %v1703 = vadd.f32 %v1434, %v1665
        %v1704 = vadd.f32 %v1435, %v1668
        %v1705 = vadd.f32 %v1436, %v1673
        %v1706 = vadd.f32 %v1437, %v1676
        %v1707 = vadd.f32 %v1438, %v1681
        %v1708 = vadd.f32 %v1439, %v1684
        %v1709 = vadd.f32 %v1440, %v1689
        %v1710 = vadd.f32 %v1441, %v1692
        %v1711 = vld [vmem:[%s724] sm:$0xf]
        %v1712 = vld [vmem:[%s724 + $0x4] sm:$0xf]
        %v1713 = vld [vmem:[%s724 + $0xc] sm:$0xf]
        %v1714 = vld [vmem:[%s724 + $0x10] sm:$0xf]
        %v1715 = vld [vmem:[%s724 + $0x18] sm:$0xf]
        %v1716 = vld [vmem:[%s724 + $0x1c] sm:$0xf]
        %v1717 = vld [vmem:[%s724 + $0x24] sm:$0xf]
        %v1718 = vld [vmem:[%s724 + $0x28] sm:$0xf]
        %v1719 = vld [vmem:[%s724 + $0x30] sm:$0xf]
        %v1720 = vld [vmem:[%s724 + $0x34] sm:$0xf]
        %v1721 = vld [vmem:[%s724 + $0x3c] sm:$0xf]
        %v1722 = vld [vmem:[%s724 + $0x40] sm:$0xf]
        %v1723 = vld [vmem:[%s724 + $0x48] sm:$0xf]
        %v1724 = vld [vmem:[%s724 + $0x4c] sm:$0xf]
        %v1725 = vld [vmem:[%s724 + $0x54] sm:$0xf]
        %v1726 = vld [vmem:[%s724 + $0x58] sm:$0xf]
        %s1727 = scalar_lea.vmem [#allocation8], 48
        %v1728 = vld [vmem:[%s1727] sm:$0xf]
        %v1729 = vld [vmem:[%s1727 + $0x4] sm:$0xf]
        %v1730 = vld [vmem:[%s1727 + $0x8] sm:$0xf]
        %v1731 = vld [vmem:[%s1727 + $0xc] sm:$0xf]
        %v1748 = vunpack.c.l.b16 %v1711
        %v1749 = vunpack.c.l.b16 %v1712
        %v1750 = vunpack.c.l.b16 %v1713
        %v1751 = vunpack.c.l.b16 %v1714
        %v1752 = vunpack.c.l.b16 %v1715
        %v1753 = vunpack.c.l.b16 %v1716
        %v1754 = vunpack.c.l.b16 %v1717
        %v1755 = vunpack.c.l.b16 %v1718
        %v1756 = vunpack.c.l.b16 %v1719
        %v1757 = vunpack.c.l.b16 %v1720
        %v1758 = vunpack.c.l.b16 %v1721
        %v1759 = vunpack.c.l.b16 %v1722
        %v1760 = vunpack.c.l.b16 %v1723
        %v1761 = vunpack.c.l.b16 %v1724
        %v1762 = vunpack.c.l.b16 %v1725
        %v1763 = vunpack.c.l.b16 %v1726
        %v1764 = vpack.c.b16 %v1749, %v1748
        %v1765 = vpack.c.b16 %v1751, %v1750
        %v1766 = vpack.c.b16 %v1753, %v1752
        %v1767 = vpack.c.b16 %v1755, %v1754
        %v1768 = vpack.c.b16 %v1757, %v1756
        %v1769 = vpack.c.b16 %v1759, %v1758
        %v1770 = vpack.c.b16 %v1761, %v1760
        %v1771 = vpack.c.b16 %v1763, %v1762
        %v1776 = vunpack.c.l.b16 %v1728
        %v1777 = vunpack.c.l.b16 %v1729
        %v1778 = vunpack.c.l.b16 %v1730
        %v1779 = vunpack.c.l.b16 %v1731
        %v1780 = vpack.c.b16 %v1777, %v1776
        %v1781 = vpack.c.b16 %v1779, %v1778
        %v1785 = vsel %vm1013, %v1764, 0
        %v1788 = vsel %vm1013, %v1765, 0
        %v1791 = vsel %vm1013, %v1766, 0
        %v1794 = vsel %vm1013, %v1767, 0
        %v1797 = vsel %vm1013, %v1768, 0
        %v1800 = vsel %vm1013, %v1769, 0
        %v1803 = vsel %vm1013, %v1770, 0
        %v1806 = vsel %vm1013, %v1771, 0
        %1808 = vmatprep.subr.bf16.mxu0 0
        %1809 = vmatpush1.bf16.msra.mxu0 %v1780
        %1810 = vmatprep.subr.bf16.mxu0 0
        %1811 = vmatpush1.bf16.msra.mxu0 %v1781
        %1812 = vmatprep.subr.bf16.mxu0 0
        %1813 = vmatpush1.bf16.msra.mxu0 0
        %1814 = vmatprep.subr.bf16.mxu0 0
        %1815 = vmatpush1.bf16.msra.mxu0 0
        %1816 = vmatprep.subr.bf16.mxu0 0
        %1817 = vmatpush1.bf16.msra.mxu0 0
        %1818 = vmatprep.subr.bf16.mxu0 0
        %1819 = vmatpush1.bf16.msra.mxu0 0
        %1820 = vmatprep.subr.bf16.mxu0 0
        %1821 = vmatpush1.bf16.msra.mxu0 0
        %1822 = vmatprep.subr.bf16.mxu0 0
        %1823 = vmatpush1.bf16.msra.mxu0 0
        %1824 = vmatprep.subr.bf16.mxu0 0
        %1825 = vmatpush1.bf16.msra.mxu0 0
        %1826 = vmatprep.subr.bf16.mxu0 0
        %1827 = vmatpush1.bf16.msra.mxu0 0
        %1828 = vmatprep.subr.bf16.mxu0 0
        %1829 = vmatpush1.bf16.msra.mxu0 0
        %1830 = vmatprep.subr.bf16.mxu0 0
        %1831 = vmatpush1.bf16.msra.mxu0 0
        %1832 = vmatprep.subr.bf16.mxu0 0
        %1833 = vmatpush1.bf16.msra.mxu0 0
        %1834 = vmatprep.subr.bf16.mxu0 0
        %1835 = vmatpush1.bf16.msra.mxu0 0
        %1836 = vmatprep.subr.bf16.mxu0 0
        %1837 = vmatpush1.bf16.msra.mxu0 0
        %1838 = vmatprep.subr.bf16.mxu0 0
        %1839 = vmatpush1.bf16.msra.mxu0 0
        %1840 = vmatprep.mubr.bf16.mxu0 0
        %1841 = vmatmul.mubr.bf16.gmra.mrb[0].mxu0 %v1785
        %v1842 = vpop.f32.mrb[0].mxu0
        %v1843 = vadd.f32 0.0, %v1842
        %v1844 = vpop.f32.mrb[0].mxu0
        %v1845 = vpop.f32.mrb[0].mxu0
        %v1846 = vadd.f32 0.0, %v1845
        %v1847 = vpop.f32.mrb[0].mxu0
        %1848 = vmatprep.mubr.bf16.mxu0 0
        %1849 = vmatmul.mubr.bf16.gmra.mrb[0].mxu0 %v1788
        %v1850 = vpop.f32.mrb[0].mxu0
        %v1851 = vadd.f32 0.0, %v1850
        %v1852 = vpop.f32.mrb[0].mxu0
        %v1853 = vpop.f32.mrb[0].mxu0
        %v1854 = vadd.f32 0.0, %v1853
        %v1855 = vpop.f32.mrb[0].mxu0
        %1856 = vmatprep.mubr.bf16.mxu0 0
        %1857 = vmatmul.mubr.bf16.gmra.mrb[0].mxu0 %v1791
        %v1858 = vpop.f32.mrb[0].mxu0
        %v1859 = vadd.f32 0.0, %v1858
        %v1860 = vpop.f32.mrb[0].mxu0
        %v1861 = vpop.f32.mrb[0].mxu0
        %v1862 = vadd.f32 0.0, %v1861
        %v1863 = vpop.f32.mrb[0].mxu0
        %1864 = vmatprep.mubr.bf16.mxu0 0
        %1865 = vmatmul.mubr.bf16.gmra.mrb[0].mxu0 %v1794
        %v1866 = vpop.f32.mrb[0].mxu0
        %v1867 = vadd.f32 0.0, %v1866
        %v1868 = vpop.f32.mrb[0].mxu0
        %v1869 = vpop.f32.mrb[0].mxu0
        %v1870 = vadd.f32 0.0, %v1869
        %v1871 = vpop.f32.mrb[0].mxu0
        %1872 = vmatprep.mubr.bf16.mxu0 0
        %1873 = vmatmul.mubr.bf16.gmra.mrb[0].mxu0 %v1797
        %v1874 = vpop.f32.mrb[0].mxu0
        %v1875 = vadd.f32 0.0, %v1874
        %v1876 = vpop.f32.mrb[0].mxu0
        %v1877 = vpop.f32.mrb[0].mxu0
        %v1878 = vadd.f32 0.0, %v1877
        %v1879 = vpop.f32.mrb[0].mxu0
        %1880 = vmatprep.mubr.bf16.mxu0 0
        %1881 = vmatmul.mubr.bf16.gmra.mrb[0].mxu0 %v1800
        %v1882 = vpop.f32.mrb[0].mxu0
        %v1883 = vadd.f32 0.0, %v1882
        %v1884 = vpop.f32.mrb[0].mxu0
        %v1885 = vpop.f32.mrb[0].mxu0
        %v1886 = vadd.f32 0.0, %v1885
        %v1887 = vpop.f32.mrb[0].mxu0
        %1888 = vmatprep.mubr.bf16.mxu0 0
        %1889 = vmatmul.mubr.bf16.gmra.mrb[0].mxu0 %v1803
        %v1890 = vpop.f32.mrb[0].mxu0
        %v1891 = vadd.f32 0.0, %v1890
        %v1892 = vpop.f32.mrb[0].mxu0
        %v1893 = vpop.f32.mrb[0].mxu0
        %v1894 = vadd.f32 0.0, %v1893
        %v1895 = vpop.f32.mrb[0].mxu0
        %1896 = vmatprep.mubr.bf16.mxu0 0
        %1897 = vmatmul.mubr.bf16.gmra.mrb[0].mxu0 %v1806
        %v1898 = vpop.f32.mrb[0].mxu0
        %v1899 = vadd.f32 0.0, %v1898
        %v1900 = vpop.f32.mrb[0].mxu0
        %v1901 = vpop.f32.mrb[0].mxu0
        %v1902 = vadd.f32 0.0, %v1901
        %v1903 = vpop.f32.mrb[0].mxu0
        %1904 = vdwg.mxu0
        %v1905 = vadd.f32 %v1695, %v1843
        %v1906 = vadd.f32 %v1696, %v1846
        %v1907 = vadd.f32 %v1697, %v1851
        %v1908 = vadd.f32 %v1698, %v1854
        %v1909 = vadd.f32 %v1699, %v1859
        %v1910 = vadd.f32 %v1700, %v1862
        %v1911 = vadd.f32 %v1701, %v1867
        %v1912 = vadd.f32 %v1702, %v1870
        %v1913 = vadd.f32 %v1703, %v1875
        %v1914 = vadd.f32 %v1704, %v1878
        %v1915 = vadd.f32 %v1705, %v1883
        %v1916 = vadd.f32 %v1706, %v1886
        %v1917 = vadd.f32 %v1707, %v1891
        %v1918 = vadd.f32 %v1708, %v1894
        %v1919 = vadd.f32 %v1709, %v1899
        %v1920 = vadd.f32 %v1710, %v1902
        %v1921 = vld [vmem:[%s724] sm:$0xe]
        %v1922 = vld [vmem:[%s724 + $0x4] sm:$0xf]
        %v1923 = vld [vmem:[%s724 + $0x8] sm:$0x1]
        %v1924 = vld [vmem:[%s724 + $0xc] sm:$0xe]
        %v1925 = vld [vmem:[%s724 + $0x10] sm:$0xf]
        %v1926 = vld [vmem:[%s724 + $0x14] sm:$0x1]
        %v1927 = vld [vmem:[%s724 + $0x18] sm:$0xe]
        %v1928 = vld [vmem:[%s724 + $0x1c] sm:$0xf]
        %v1929 = vld [vmem:[%s724 + $0x20] sm:$0x1]
        %v1930 = vld [vmem:[%s724 + $0x24] sm:$0xe]
        %v1931 = vld [vmem:[%s724 + $0x28] sm:$0xf]
        %v1932 = vld [vmem:[%s724 + $0x2c] sm:$0x1]
        %v1933 = vld [vmem:[%s724 + $0x30] sm:$0xe]
        %v1934 = vld [vmem:[%s724 + $0x34] sm:$0xf]
        %v1935 = vld [vmem:[%s724 + $0x38] sm:$0x1]
        %v1936 = vld [vmem:[%s724 + $0x3c] sm:$0xe]
        %v1937 = vld [vmem:[%s724 + $0x40] sm:$0xf]
        %v1938 = vld [vmem:[%s724 + $0x44] sm:$0x1]
        %v1939 = vld [vmem:[%s724 + $0x48] sm:$0xe]
        %v1940 = vld [vmem:[%s724 + $0x4c] sm:$0xf]
        %v1941 = vld [vmem:[%s724 + $0x50] sm:$0x1]
        %v1942 = vld [vmem:[%s724 + $0x54] sm:$0xe]
        %v1943 = vld [vmem:[%s724 + $0x58] sm:$0xf]
        %v1944 = vld [vmem:[%s724 + $0x5c] sm:$0x1]
        %v1969 = vrot.slane %v1921, 5
        %v1970 = vrot.slane %v1969, 4
        %v1971 = vrot.slane %v1922, 5
        %v1972 = vsel %vm1207, %v1970, %v1971
        %v1973 = vrot.slane %v1971, 4
        %v1974 = vrot.slane %v1923, 5
        %v1975 = vsel %vm1207, %v1973, %v1974
        %v1976 = vrot.slane %v1924, 5
        %v1977 = vrot.slane %v1976, 4
        %v1978 = vrot.slane %v1925, 5
        %v1979 = vsel %vm1207, %v1977, %v1978
        %v1980 = vrot.slane %v1978, 4
        %v1981 = vrot.slane %v1926, 5
        %v1982 = vsel %vm1207, %v1980, %v1981
        %v1983 = vrot.slane %v1927, 5
        %v1984 = vrot.slane %v1983, 4
        %v1985 = vrot.slane %v1928, 5
        %v1986 = vsel %vm1207, %v1984, %v1985
        %v1987 = vrot.slane %v1985, 4
        %v1988 = vrot.slane %v1929, 5
        %v1989 = vsel %vm1207, %v1987, %v1988
        %v1990 = vrot.slane %v1930, 5
        %v1991 = vrot.slane %v1990, 4
        %v1992 = vrot.slane %v1931, 5
        %v1993 = vsel %vm1207, %v1991, %v1992
        %v1994 = vrot.slane %v1992, 4
        %v1995 = vrot.slane %v1932, 5
        %v1996 = vsel %vm1207, %v1994, %v1995
        %v1997 = vrot.slane %v1933, 5
        %v1998 = vrot.slane %v1997, 4
        %v1999 = vrot.slane %v1934, 5
        %v2000 = vsel %vm1207, %v1998, %v1999
        %v2001 = vrot.slane %v1999, 4
        %v2002 = vrot.slane %v1935, 5
        %v2003 = vsel %vm1207, %v2001, %v2002
        %v2004 = vrot.slane %v1936, 5
        %v2005 = vrot.slane %v2004, 4
        %v2006 = vrot.slane %v1937, 5
        %v2007 = vsel %vm1207, %v2005, %v2006
        %v2008 = vrot.slane %v2006, 4
        %v2009 = vrot.slane %v1938, 5
        %v2010 = vsel %vm1207, %v2008, %v2009
        %v2011 = vrot.slane %v1939, 5
        %v2012 = vrot.slane %v2011, 4
        %v2013 = vrot.slane %v1940, 5
        %v2014 = vsel %vm1207, %v2012, %v2013
        %v2015 = vrot.slane %v2013, 4
        %v2016 = vrot.slane %v1941, 5
        %v2017 = vsel %vm1207, %v2015, %v2016
        %v2018 = vrot.slane %v1942, 5
        %v2019 = vrot.slane %v2018, 4
        %v2020 = vrot.slane %v1943, 5
        %v2021 = vsel %vm1207, %v2019, %v2020
        %v2022 = vrot.slane %v2020, 4
        %v2023 = vrot.slane %v1944, 5
        %v2024 = vsel %vm1207, %v2022, %v2023
        %s2025 = scalar_lea.vmem [#allocation8], 64
        %v2026 = vld [vmem:[%s2025] sm:$0xf]
        %v2027 = vld [vmem:[%s2025 + $0x4] sm:$0xf]
        %v2028 = vld [vmem:[%s2025 + $0x8] sm:$0xf]
        %v2029 = vld [vmem:[%s2025 + $0xc] sm:$0xf]
        %v2030 = vunpack.c.l.b16 %v1972
        %v2031 = vunpack.c.l.b16 %v1975
        %v2032 = vunpack.c.l.b16 %v1979
        %v2033 = vunpack.c.l.b16 %v1982
        %v2034 = vunpack.c.l.b16 %v1986
        %v2035 = vunpack.c.l.b16 %v1989
        %v2036 = vunpack.c.l.b16 %v1993
        %v2037 = vunpack.c.l.b16 %v1996
        %v2038 = vunpack.c.l.b16 %v2000
        %v2039 = vunpack.c.l.b16 %v2003
        %v2040 = vunpack.c.l.b16 %v2007
        %v2041 = vunpack.c.l.b16 %v2010
        %v2042 = vunpack.c.l.b16 %v2014
        %v2043 = vunpack.c.l.b16 %v2017
        %v2044 = vunpack.c.l.b16 %v2021
        %v2045 = vunpack.c.l.b16 %v2024
        %v2046 = vpack.c.b16 %v2031, %v2030
        %v2047 = vpack.c.b16 %v2033, %v2032
        %v2048 = vpack.c.b16 %v2035, %v2034
        %v2049 = vpack.c.b16 %v2037, %v2036
        %v2050 = vpack.c.b16 %v2039, %v2038
        %v2051 = vpack.c.b16 %v2041, %v2040
        %v2052 = vpack.c.b16 %v2043, %v2042
        %v2053 = vpack.c.b16 %v2045, %v2044
        %v2058 = vunpack.c.l.b16 %v2026
        %v2059 = vunpack.c.l.b16 %v2027
        %v2060 = vunpack.c.l.b16 %v2028
        %v2061 = vunpack.c.l.b16 %v2029
        %v2062 = vpack.c.b16 %v2059, %v2058
        %v2063 = vpack.c.b16 %v2061, %v2060
        %v2067 = vsel %vm1013, %v2046, 0
        %v2070 = vsel %vm1013, %v2047, 0
        %v2073 = vsel %vm1013, %v2048, 0
        %v2076 = vsel %vm1013, %v2049, 0
        %v2079 = vsel %vm1013, %v2050, 0
        %v2082 = vsel %vm1013, %v2051, 0
        %v2085 = vsel %vm1013, %v2052, 0
        %v2088 = vsel %vm1013, %v2053, 0
        %2090 = vmatprep.subr.bf16.mxu0 0
        %2091 = vmatpush1.bf16.msra.mxu0 %v2062
        %2092 = vmatprep.subr.bf16.mxu0 0
        %2093 = vmatpush1.bf16.msra.mxu0 %v2063
        %2094 = vmatprep.subr.bf16.mxu0 0
        %2095 = vmatpush1.bf16.msra.mxu0 0
        %2096 = vmatprep.subr.bf16.mxu0 0
        %2097 = vmatpush1.bf16.msra.mxu0 0
        %2098 = vmatprep.subr.bf16.mxu0 0
        %2099 = vmatpush1.bf16.msra.mxu0 0
        %2100 = vmatprep.subr.bf16.mxu0 0
        %2101 = vmatpush1.bf16.msra.mxu0 0
        %2102 = vmatprep.subr.bf16.mxu0 0
        %2103 = vmatpush1.bf16.msra.mxu0 0
        %2104 = vmatprep.subr.bf16.mxu0 0
        %2105 = vmatpush1.bf16.msra.mxu0 0
        %2106 = vmatprep.subr.bf16.mxu0 0
        %2107 = vmatpush1.bf16.msra.mxu0 0
        %2108 = vmatprep.subr.bf16.mxu0 0
        %2109 = vmatpush1.bf16.msra.mxu0 0
        %2110 = vmatprep.subr.bf16.mxu0 0
        %2111 = vmatpush1.bf16.msra.mxu0 0
        %2112 = vmatprep.subr.bf16.mxu0 0
        %2113 = vmatpush1.bf16.msra.mxu0 0
        %2114 = vmatprep.subr.bf16.mxu0 0
        %2115 = vmatpush1.bf16.msra.mxu0 0
        %2116 = vmatprep.subr.bf16.mxu0 0
        %2117 = vmatpush1.bf16.msra.mxu0 0
        %2118 = vmatprep.subr.bf16.mxu0 0
        %2119 = vmatpush1.bf16.msra.mxu0 0
        %2120 = vmatprep.subr.bf16.mxu0 0
        %2121 = vmatpush1.bf16.msra.mxu0 0
        %2122 = vmatprep.mubr.bf16.mxu0 0
        %2123 = vmatmul.mubr.bf16.gmra.mrb[0].mxu0 %v2067
        %v2124 = vpop.f32.mrb[0].mxu0
        %v2125 = vadd.f32 0.0, %v2124
        %v2126 = vpop.f32.mrb[0].mxu0
        %v2127 = vpop.f32.mrb[0].mxu0
        %v2128 = vadd.f32 0.0, %v2127
        %v2129 = vpop.f32.mrb[0].mxu0
        %2130 = vmatprep.mubr.bf16.mxu0 0
        %2131 = vmatmul.mubr.bf16.gmra.mrb[0].mxu0 %v2070
        %v2132 = vpop.f32.mrb[0].mxu0
        %v2133 = vadd.f32 0.0, %v2132
        %v2134 = vpop.f32.mrb[0].mxu0
        %v2135 = vpop.f32.mrb[0].mxu0
        %v2136 = vadd.f32 0.0, %v2135
        %v2137 = vpop.f32.mrb[0].mxu0
        %2138 = vmatprep.mubr.bf16.mxu0 0
        %2139 = vmatmul.mubr.bf16.gmra.mrb[0].mxu0 %v2073
        %v2140 = vpop.f32.mrb[0].mxu0
        %v2141 = vadd.f32 0.0, %v2140
        %v2142 = vpop.f32.mrb[0].mxu0
        %v2143 = vpop.f32.mrb[0].mxu0
        %v2144 = vadd.f32 0.0, %v2143
        %v2145 = vpop.f32.mrb[0].mxu0
        %2146 = vmatprep.mubr.bf16.mxu0 0
        %2147 = vmatmul.mubr.bf16.gmra.mrb[0].mxu0 %v2076
        %v2148 = vpop.f32.mrb[0].mxu0
        %v2149 = vadd.f32 0.0, %v2148
        %v2150 = vpop.f32.mrb[0].mxu0
        %v2151 = vpop.f32.mrb[0].mxu0
        %v2152 = vadd.f32 0.0, %v2151
        %v2153 = vpop.f32.mrb[0].mxu0
        %2154 = vmatprep.mubr.bf16.mxu0 0
        %2155 = vmatmul.mubr.bf16.gmra.mrb[0].mxu0 %v2079
        %v2156 = vpop.f32.mrb[0].mxu0
        %v2157 = vadd.f32 0.0, %v2156
        %v2158 = vpop.f32.mrb[0].mxu0
        %v2159 = vpop.f32.mrb[0].mxu0
        %v2160 = vadd.f32 0.0, %v2159
        %v2161 = vpop.f32.mrb[0].mxu0
        %2162 = vmatprep.mubr.bf16.mxu0 0
        %2163 = vmatmul.mubr.bf16.gmra.mrb[0].mxu0 %v2082
        %v2164 = vpop.f32.mrb[0].mxu0
        %v2165 = vadd.f32 0.0, %v2164
        %v2166 = vpop.f32.mrb[0].mxu0
        %v2167 = vpop.f32.mrb[0].mxu0
        %v2168 = vadd.f32 0.0, %v2167
        %v2169 = vpop.f32.mrb[0].mxu0
        %2170 = vmatprep.mubr.bf16.mxu0 0
        %2171 = vmatmul.mubr.bf16.gmra.mrb[0].mxu0 %v2085
        %v2172 = vpop.f32.mrb[0].mxu0
        %v2173 = vadd.f32 0.0, %v2172
        %v2174 = vpop.f32.mrb[0].mxu0
        %v2175 = vpop.f32.mrb[0].mxu0
        %v2176 = vadd.f32 0.0, %v2175
        %v2177 = vpop.f32.mrb[0].mxu0
        %2178 = vmatprep.mubr.bf16.mxu0 0
        %2179 = vmatmul.mubr.bf16.gmra.mrb[0].mxu0 %v2088
        %v2180 = vpop.f32.mrb[0].mxu0
        %v2181 = vadd.f32 0.0, %v2180
        %v2182 = vpop.f32.mrb[0].mxu0
        %v2183 = vpop.f32.mrb[0].mxu0
        %v2184 = vadd.f32 0.0, %v2183
        %v2185 = vpop.f32.mrb[0].mxu0
        %2186 = vdwg.mxu0
        %v2187 = vadd.f32 %v1905, %v2125
        %v2188 = vadd.f32 %v1906, %v2128
        %v2189 = vadd.f32 %v1907, %v2133
        %v2190 = vadd.f32 %v1908, %v2136
        %v2191 = vadd.f32 %v1909, %v2141
        %v2192 = vadd.f32 %v1910, %v2144
        %v2193 = vadd.f32 %v1911, %v2149
        %v2194 = vadd.f32 %v1912, %v2152
        %v2195 = vadd.f32 %v1913, %v2157
        %v2196 = vadd.f32 %v1914, %v2160
        %v2197 = vadd.f32 %v1915, %v2165
        %v2198 = vadd.f32 %v1916, %v2168
        %v2199 = vadd.f32 %v1917, %v2173
        %v2200 = vadd.f32 %v1918, %v2176
        %v2201 = vadd.f32 %v1919, %v2181
        %v2202 = vadd.f32 %v1920, %v2184
        %v2203 = vld [vmem:[%s724] sm:$0xc]
        %v2204 = vld [vmem:[%s724 + $0x8] sm:$0x3]
        %v2205 = vld [vmem:[%s724 + $0xc] sm:$0xc]
        %v2206 = vld [vmem:[%s724 + $0x14] sm:$0x3]
        %v2207 = vld [vmem:[%s724 + $0x18] sm:$0xc]
        %v2208 = vld [vmem:[%s724 + $0x20] sm:$0x3]
        %v2209 = vld [vmem:[%s724 + $0x24] sm:$0xc]
        %v2210 = vld [vmem:[%s724 + $0x2c] sm:$0x3]
        %v2211 = vld [vmem:[%s724 + $0x30] sm:$0xc]
        %v2212 = vld [vmem:[%s724 + $0x38] sm:$0x3]
        %v2213 = vld [vmem:[%s724 + $0x3c] sm:$0xc]
        %v2214 = vld [vmem:[%s724 + $0x44] sm:$0x3]
        %v2215 = vld [vmem:[%s724 + $0x48] sm:$0xc]
        %v2216 = vld [vmem:[%s724 + $0x50] sm:$0x3]
        %v2217 = vld [vmem:[%s724 + $0x54] sm:$0xc]
        %v2218 = vld [vmem:[%s724 + $0x5c] sm:$0x3]
        %v2235 = vrot.slane %v2203, 6
        %v2236 = vrot.slane %v2235, 4
        %v2237 = vrot.slane %v1922, 6
        %v2238 = vsel %vm1476, %v2236, %v2237
        %v2239 = vrot.slane %v2237, 4
        %v2240 = vrot.slane %v2204, 6
        %v2241 = vsel %vm1476, %v2239, %v2240
        %v2242 = vrot.slane %v2205, 6
        %v2243 = vrot.slane %v2242, 4
        %v2244 = vrot.slane %v1925, 6
        %v2245 = vsel %vm1476, %v2243, %v2244
        %v2246 = vrot.slane %v2244, 4
        %v2247 = vrot.slane %v2206, 6
        %v2248 = vsel %vm1476, %v2246, %v2247
        %v2249 = vrot.slane %v2207, 6
        %v2250 = vrot.slane %v2249, 4
        %v2251 = vrot.slane %v1928, 6
        %v2252 = vsel %vm1476, %v2250, %v2251
        %v2253 = vrot.slane %v2251, 4
        %v2254 = vrot.slane %v2208, 6
        %v2255 = vsel %vm1476, %v2253, %v2254
        %v2256 = vrot.slane %v2209, 6
        %v2257 = vrot.slane %v2256, 4
        %v2258 = vrot.slane %v1931, 6
        %v2259 = vsel %vm1476, %v2257, %v2258
        %v2260 = vrot.slane %v2258, 4
        %v2261 = vrot.slane %v2210, 6
        %v2262 = vsel %vm1476, %v2260, %v2261
        %v2263 = vrot.slane %v2211, 6
        %v2264 = vrot.slane %v2263, 4
        %v2265 = vrot.slane %v1934, 6
        %v2266 = vsel %vm1476, %v2264, %v2265
        %v2267 = vrot.slane %v2265, 4
        %v2268 = vrot.slane %v2212, 6
        %v2269 = vsel %vm1476, %v2267, %v2268
        %v2270 = vrot.slane %v2213, 6
        %v2271 = vrot.slane %v2270, 4
        %v2272 = vrot.slane %v1937, 6
        %v2273 = vsel %vm1476, %v2271, %v2272
        %v2274 = vrot.slane %v2272, 4
        %v2275 = vrot.slane %v2214, 6
        %v2276 = vsel %vm1476, %v2274, %v2275
        %v2277 = vrot.slane %v2215, 6
        %v2278 = vrot.slane %v2277, 4
        %v2279 = vrot.slane %v1940, 6
        %v2280 = vsel %vm1476, %v2278, %v2279
        %v2281 = vrot.slane %v2279, 4
        %v2282 = vrot.slane %v2216, 6
        %v2283 = vsel %vm1476, %v2281, %v2282
        %v2284 = vrot.slane %v2217, 6
        %v2285 = vrot.slane %v2284, 4
        %v2286 = vrot.slane %v1943, 6
        %v2287 = vsel %vm1476, %v2285, %v2286
        %v2288 = vrot.slane %v2286, 4
        %v2289 = vrot.slane %v2218, 6
        %v2290 = vsel %vm1476, %v2288, %v2289
        %s2291 = scalar_lea.vmem [#allocation8], 80
        %v2292 = vld [vmem:[%s2291] sm:$0xf]
        %v2293 = vld [vmem:[%s2291 + $0x4] sm:$0xf]
        %v2294 = vld [vmem:[%s2291 + $0x8] sm:$0xf]
        %v2295 = vld [vmem:[%s2291 + $0xc] sm:$0xf]
        %v2296 = vunpack.c.l.b16 %v2238
        %v2297 = vunpack.c.l.b16 %v2241
        %v2298 = vunpack.c.l.b16 %v2245
        %v2299 = vunpack.c.l.b16 %v2248
        %v2300 = vunpack.c.l.b16 %v2252
        %v2301 = vunpack.c.l.b16 %v2255
        %v2302 = vunpack.c.l.b16 %v2259
        %v2303 = vunpack.c.l.b16 %v2262
        %v2304 = vunpack.c.l.b16 %v2266
        %v2305 = vunpack.c.l.b16 %v2269
        %v2306 = vunpack.c.l.b16 %v2273
        %v2307 = vunpack.c.l.b16 %v2276
        %v2308 = vunpack.c.l.b16 %v2280
        %v2309 = vunpack.c.l.b16 %v2283
        %v2310 = vunpack.c.l.b16 %v2287
        %v2311 = vunpack.c.l.b16 %v2290
        %v2312 = vpack.c.b16 %v2297, %v2296
        %v2313 = vpack.c.b16 %v2299, %v2298
        %v2314 = vpack.c.b16 %v2301, %v2300
        %v2315 = vpack.c.b16 %v2303, %v2302
        %v2316 = vpack.c.b16 %v2305, %v2304
        %v2317 = vpack.c.b16 %v2307, %v2306
        %v2318 = vpack.c.b16 %v2309, %v2308
        %v2319 = vpack.c.b16 %v2311, %v2310
        %v2324 = vunpack.c.l.b16 %v2292
        %v2325 = vunpack.c.l.b16 %v2293
        %v2326 = vunpack.c.l.b16 %v2294
        %v2327 = vunpack.c.l.b16 %v2295
        %v2328 = vpack.c.b16 %v2325, %v2324
        %v2329 = vpack.c.b16 %v2327, %v2326
        %v2333 = vsel %vm1013, %v2312, 0
        %v2336 = vsel %vm1013, %v2313, 0
        %v2339 = vsel %vm1013, %v2314, 0
        %v2342 = vsel %vm1013, %v2315, 0
        %v2345 = vsel %vm1013, %v2316, 0
        %v2348 = vsel %vm1013, %v2317, 0
        %v2351 = vsel %vm1013, %v2318, 0
        %v2354 = vsel %vm1013, %v2319, 0
        %2356 = vmatprep.subr.bf16.mxu0 0
        %2357 = vmatpush1.bf16.msra.mxu0 %v2328
        %2358 = vmatprep.subr.bf16.mxu0 0
        %2359 = vmatpush1.bf16.msra.mxu0 %v2329
        %2360 = vmatprep.subr.bf16.mxu0 0
        %2361 = vmatpush1.bf16.msra.mxu0 0
        %2362 = vmatprep.subr.bf16.mxu0 0
        %2363 = vmatpush1.bf16.msra.mxu0 0
        %2364 = vmatprep.subr.bf16.mxu0 0
        %2365 = vmatpush1.bf16.msra.mxu0 0
        %2366 = vmatprep.subr.bf16.mxu0 0
        %2367 = vmatpush1.bf16.msra.mxu0 0
        %2368 = vmatprep.subr.bf16.mxu0 0
        %2369 = vmatpush1.bf16.msra.mxu0 0
        %2370 = vmatprep.subr.bf16.mxu0 0
        %2371 = vmatpush1.bf16.msra.mxu0 0
        %2372 = vmatprep.subr.bf16.mxu0 0
        %2373 = vmatpush1.bf16.msra.mxu0 0
        %2374 = vmatprep.subr.bf16.mxu0 0
        %2375 = vmatpush1.bf16.msra.mxu0 0
        %2376 = vmatprep.subr.bf16.mxu0 0
        %2377 = vmatpush1.bf16.msra.mxu0 0
        %2378 = vmatprep.subr.bf16.mxu0 0
        %2379 = vmatpush1.bf16.msra.mxu0 0
        %2380 = vmatprep.subr.bf16.mxu0 0
        %2381 = vmatpush1.bf16.msra.mxu0 0
        %2382 = vmatprep.subr.bf16.mxu0 0
        %2383 = vmatpush1.bf16.msra.mxu0 0
        %2384 = vmatprep.subr.bf16.mxu0 0
        %2385 = vmatpush1.bf16.msra.mxu0 0
        %2386 = vmatprep.subr.bf16.mxu0 0
        %2387 = vmatpush1.bf16.msra.mxu0 0
        %2388 = vmatprep.mubr.bf16.mxu0 0
        %2389 = vmatmul.mubr.bf16.gmra.mrb[0].mxu0 %v2333
        %v2390 = vpop.f32.mrb[0].mxu0
        %v2391 = vadd.f32 0.0, %v2390
        %v2392 = vpop.f32.mrb[0].mxu0
        %v2393 = vpop.f32.mrb[0].mxu0
        %v2394 = vadd.f32 0.0, %v2393
        %v2395 = vpop.f32.mrb[0].mxu0
        %2396 = vmatprep.mubr.bf16.mxu0 0
        %2397 = vmatmul.mubr.bf16.gmra.mrb[0].mxu0 %v2336
        %v2398 = vpop.f32.mrb[0].mxu0
        %v2399 = vadd.f32 0.0, %v2398
        %v2400 = vpop.f32.mrb[0].mxu0
        %v2401 = vpop.f32.mrb[0].mxu0
        %v2402 = vadd.f32 0.0, %v2401
        %v2403 = vpop.f32.mrb[0].mxu0
        %2404 = vmatprep.mubr.bf16.mxu0 0
        %2405 = vmatmul.mubr.bf16.gmra.mrb[0].mxu0 %v2339
        %v2406 = vpop.f32.mrb[0].mxu0
        %v2407 = vadd.f32 0.0, %v2406
        %v2408 = vpop.f32.mrb[0].mxu0
        %v2409 = vpop.f32.mrb[0].mxu0
        %v2410 = vadd.f32 0.0, %v2409
        %v2411 = vpop.f32.mrb[0].mxu0
        %2412 = vmatprep.mubr.bf16.mxu0 0
        %2413 = vmatmul.mubr.bf16.gmra.mrb[0].mxu0 %v2342
        %v2414 = vpop.f32.mrb[0].mxu0
        %v2415 = vadd.f32 0.0, %v2414
        %v2416 = vpop.f32.mrb[0].mxu0
        %v2417 = vpop.f32.mrb[0].mxu0
        %v2418 = vadd.f32 0.0, %v2417
        %v2419 = vpop.f32.mrb[0].mxu0
        %2420 = vmatprep.mubr.bf16.mxu0 0
        %2421 = vmatmul.mubr.bf16.gmra.mrb[0].mxu0 %v2345
        %v2422 = vpop.f32.mrb[0].mxu0
        %v2423 = vadd.f32 0.0, %v2422
        %v2424 = vpop.f32.mrb[0].mxu0
        %v2425 = vpop.f32.mrb[0].mxu0
        %v2426 = vadd.f32 0.0, %v2425
        %v2427 = vpop.f32.mrb[0].mxu0
        %2428 = vmatprep.mubr.bf16.mxu0 0
        %2429 = vmatmul.mubr.bf16.gmra.mrb[0].mxu0 %v2348
        %v2430 = vpop.f32.mrb[0].mxu0
        %v2431 = vadd.f32 0.0, %v2430
        %v2432 = vpop.f32.mrb[0].mxu0
        %v2433 = vpop.f32.mrb[0].mxu0
        %v2434 = vadd.f32 0.0, %v2433
        %v2435 = vpop.f32.mrb[0].mxu0
        %2436 = vmatprep.mubr.bf16.mxu0 0
        %2437 = vmatmul.mubr.bf16.gmra.mrb[0].mxu0 %v2351
        %v2438 = vpop.f32.mrb[0].mxu0
        %v2439 = vadd.f32 0.0, %v2438
        %v2440 = vpop.f32.mrb[0].mxu0
        %v2441 = vpop.f32.mrb[0].mxu0
        %v2442 = vadd.f32 0.0, %v2441
        %v2443 = vpop.f32.mrb[0].mxu0
        %2444 = vmatprep.mubr.bf16.mxu0 0
        %2445 = vmatmul.mubr.bf16.gmra.mrb[0].mxu0 %v2354
        %v2446 = vpop.f32.mrb[0].mxu0
        %v2447 = vadd.f32 0.0, %v2446
        %v2448 = vpop.f32.mrb[0].mxu0
        %v2449 = vpop.f32.mrb[0].mxu0
        %v2450 = vadd.f32 0.0, %v2449
        %v2451 = vpop.f32.mrb[0].mxu0
        %2452 = vdwg.mxu0
        %v2453 = vadd.f32 %v2187, %v2391
        %v2454 = vadd.f32 %v2188, %v2394
        %v2455 = vadd.f32 %v2189, %v2399
        %v2456 = vadd.f32 %v2190, %v2402
        %v2457 = vadd.f32 %v2191, %v2407
        %v2458 = vadd.f32 %v2192, %v2410
        %v2459 = vadd.f32 %v2193, %v2415
        %v2460 = vadd.f32 %v2194, %v2418
        %v2461 = vadd.f32 %v2195, %v2423
        %v2462 = vadd.f32 %v2196, %v2426
        %v2463 = vadd.f32 %v2197, %v2431
        %v2464 = vadd.f32 %v2198, %v2434
        %v2465 = vadd.f32 %v2199, %v2439
        %v2466 = vadd.f32 %v2200, %v2442
        %v2467 = vadd.f32 %v2201, %v2447
        %v2468 = vadd.f32 %v2202, %v2450
        %s2469 = scalar_lea.vmem [#allocation2], 48
        %v2470 = vld [vmem:[%s2469] sm:$0xf]
        %v2471 = vld [vmem:[%s2469 + $0x4] sm:$0xf]
        %v2472 = vld [vmem:[%s2469 + $0xc] sm:$0xf]
        %v2473 = vld [vmem:[%s2469 + $0x10] sm:$0xf]
        %v2474 = vld [vmem:[%s2469 + $0x18] sm:$0xf]
        %v2475 = vld [vmem:[%s2469 + $0x1c] sm:$0xf]
        %v2476 = vld [vmem:[%s2469 + $0x24] sm:$0xf]
        %v2477 = vld [vmem:[%s2469 + $0x28] sm:$0xf]
        %v2478 = vld [vmem:[%s2469 + $0x30] sm:$0xf]
        %v2479 = vld [vmem:[%s2469 + $0x34] sm:$0xf]
        %v2480 = vld [vmem:[%s2469 + $0x3c] sm:$0xf]
        %v2481 = vld [vmem:[%s2469 + $0x40] sm:$0xf]
        %v2482 = vld [vmem:[%s2469 + $0x48] sm:$0xf]
        %v2483 = vld [vmem:[%s2469 + $0x4c] sm:$0xf]
        %v2484 = vld [vmem:[%s2469 + $0x54] sm:$0xf]
        %v2485 = vld [vmem:[%s2469 + $0x58] sm:$0xf]
        %s2486 = scalar_lea.vmem [#allocation8], 96
        %v2487 = vld [vmem:[%s2486] sm:$0xf]
        %v2488 = vld [vmem:[%s2486 + $0x4] sm:$0xf]
        %v2489 = vld [vmem:[%s2486 + $0x8] sm:$0xf]
        %v2490 = vld [vmem:[%s2486 + $0xc] sm:$0xf]
        %v2507 = vunpack.c.l.b16 %v2470
        %v2508 = vunpack.c.l.b16 %v2471
        %v2509 = vunpack.c.l.b16 %v2472
        %v2510 = vunpack.c.l.b16 %v2473
        %v2511 = vunpack.c.l.b16 %v2474
        %v2512 = vunpack.c.l.b16 %v2475
        %v2513 = vunpack.c.l.b16 %v2476
        %v2514 = vunpack.c.l.b16 %v2477
        %v2515 = vunpack.c.l.b16 %v2478
        %v2516 = vunpack.c.l.b16 %v2479
        %v2517 = vunpack.c.l.b16 %v2480
        %v2518 = vunpack.c.l.b16 %v2481
        %v2519 = vunpack.c.l.b16 %v2482
        %v2520 = vunpack.c.l.b16 %v2483
        %v2521 = vunpack.c.l.b16 %v2484
        %v2522 = vunpack.c.l.b16 %v2485
        %v2523 = vpack.c.b16 %v2508, %v2507
        %v2524 = vpack.c.b16 %v2510, %v2509
        %v2525 = vpack.c.b16 %v2512, %v2511
        %v2526 = vpack.c.b16 %v2514, %v2513
        %v2527 = vpack.c.b16 %v2516, %v2515
        %v2528 = vpack.c.b16 %v2518, %v2517
        %v2529 = vpack.c.b16 %v2520, %v2519
        %v2530 = vpack.c.b16 %v2522, %v2521
        %v2535 = vunpack.c.l.b16 %v2487
        %v2536 = vunpack.c.l.b16 %v2488
        %v2537 = vunpack.c.l.b16 %v2489
        %v2538 = vunpack.c.l.b16 %v2490
        %v2539 = vpack.c.b16 %v2536, %v2535
        %v2540 = vpack.c.b16 %v2538, %v2537
        %v2544 = vsel %vm1013, %v2523, 0
        %v2547 = vsel %vm1013, %v2524, 0
        %v2550 = vsel %vm1013, %v2525, 0
        %v2553 = vsel %vm1013, %v2526, 0
        %v2556 = vsel %vm1013, %v2527, 0
        %v2559 = vsel %vm1013, %v2528, 0
        %v2562 = vsel %vm1013, %v2529, 0
        %v2565 = vsel %vm1013, %v2530, 0
        %2567 = vmatprep.subr.bf16.mxu0 0
        %2568 = vmatpush1.bf16.msra.mxu0 %v2539
        %2569 = vmatprep.subr.bf16.mxu0 0
        %2570 = vmatpush1.bf16.msra.mxu0 %v2540
        %2571 = vmatprep.subr.bf16.mxu0 0
        %2572 = vmatpush1.bf16.msra.mxu0 0
        %2573 = vmatprep.subr.bf16.mxu0 0
        %2574 = vmatpush1.bf16.msra.mxu0 0
        %2575 = vmatprep.subr.bf16.mxu0 0
        %2576 = vmatpush1.bf16.msra.mxu0 0
        %2577 = vmatprep.subr.bf16.mxu0 0
        %2578 = vmatpush1.bf16.msra.mxu0 0
        %2579 = vmatprep.subr.bf16.mxu0 0
        %2580 = vmatpush1.bf16.msra.mxu0 0
        %2581 = vmatprep.subr.bf16.mxu0 0
        %2582 = vmatpush1.bf16.msra.mxu0 0
        %2583 = vmatprep.subr.bf16.mxu0 0
        %2584 = vmatpush1.bf16.msra.mxu0 0
        %2585 = vmatprep.subr.bf16.mxu0 0
        %2586 = vmatpush1.bf16.msra.mxu0 0
        %2587 = vmatprep.subr.bf16.mxu0 0
        %2588 = vmatpush1.bf16.msra.mxu0 0
        %2589 = vmatprep.subr.bf16.mxu0 0
        %2590 = vmatpush1.bf16.msra.mxu0 0
        %2591 = vmatprep.subr.bf16.mxu0 0
        %2592 = vmatpush1.bf16.msra.mxu0 0
        %2593 = vmatprep.subr.bf16.mxu0 0
        %2594 = vmatpush1.bf16.msra.mxu0 0
        %2595 = vmatprep.subr.bf16.mxu0 0
        %2596 = vmatpush1.bf16.msra.mxu0 0
        %2597 = vmatprep.subr.bf16.mxu0 0
        %2598 = vmatpush1.bf16.msra.mxu0 0
        %2599 = vmatprep.mubr.bf16.mxu0 0
        %2600 = vmatmul.mubr.bf16.gmra.mrb[0].mxu0 %v2544
        %v2601 = vpop.f32.mrb[0].mxu0
        %v2602 = vadd.f32 0.0, %v2601
        %v2603 = vpop.f32.mrb[0].mxu0
        %v2604 = vpop.f32.mrb[0].mxu0
        %v2605 = vadd.f32 0.0, %v2604
        %v2606 = vpop.f32.mrb[0].mxu0
        %2607 = vmatprep.mubr.bf16.mxu0 0
        %2608 = vmatmul.mubr.bf16.gmra.mrb[0].mxu0 %v2547
        %v2609 = vpop.f32.mrb[0].mxu0
        %v2610 = vadd.f32 0.0, %v2609
        %v2611 = vpop.f32.mrb[0].mxu0
        %v2612 = vpop.f32.mrb[0].mxu0
        %v2613 = vadd.f32 0.0, %v2612
        %v2614 = vpop.f32.mrb[0].mxu0
        %2615 = vmatprep.mubr.bf16.mxu0 0
        %2616 = vmatmul.mubr.bf16.gmra.mrb[0].mxu0 %v2550
        %v2617 = vpop.f32.mrb[0].mxu0
        %v2618 = vadd.f32 0.0, %v2617
        %v2619 = vpop.f32.mrb[0].mxu0
        %v2620 = vpop.f32.mrb[0].mxu0
        %v2621 = vadd.f32 0.0, %v2620
        %v2622 = vpop.f32.mrb[0].mxu0
        %2623 = vmatprep.mubr.bf16.mxu0 0
        %2624 = vmatmul.mubr.bf16.gmra.mrb[0].mxu0 %v2553
        %v2625 = vpop.f32.mrb[0].mxu0
        %v2626 = vadd.f32 0.0, %v2625
        %v2627 = vpop.f32.mrb[0].mxu0
        %v2628 = vpop.f32.mrb[0].mxu0
        %v2629 = vadd.f32 0.0, %v2628
        %v2630 = vpop.f32.mrb[0].mxu0
        %2631 = vmatprep.mubr.bf16.mxu0 0
        %2632 = vmatmul.mubr.bf16.gmra.mrb[0].mxu0 %v2556
        %v2633 = vpop.f32.mrb[0].mxu0
        %v2634 = vadd.f32 0.0, %v2633
        %v2635 = vpop.f32.mrb[0].mxu0
        %v2636 = vpop.f32.mrb[0].mxu0
        %v2637 = vadd.f32 0.0, %v2636
        %v2638 = vpop.f32.mrb[0].mxu0
        %2639 = vmatprep.mubr.bf16.mxu0 0
        %2640 = vmatmul.mubr.bf16.gmra.mrb[0].mxu0 %v2559
        %v2641 = vpop.f32.mrb[0].mxu0
        %v2642 = vadd.f32 0.0, %v2641
        %v2643 = vpop.f32.mrb[0].mxu0
        %v2644 = vpop.f32.mrb[0].mxu0
        %v2645 = vadd.f32 0.0, %v2644
        %v2646 = vpop.f32.mrb[0].mxu0
        %2647 = vmatprep.mubr.bf16.mxu0 0
        %2648 = vmatmul.mubr.bf16.gmra.mrb[0].mxu0 %v2562
        %v2649 = vpop.f32.mrb[0].mxu0
        %v2650 = vadd.f32 0.0, %v2649
        %v2651 = vpop.f32.mrb[0].mxu0
        %v2652 = vpop.f32.mrb[0].mxu0
        %v2653 = vadd.f32 0.0, %v2652
        %v2654 = vpop.f32.mrb[0].mxu0
        %2655 = vmatprep.mubr.bf16.mxu0 0
        %2656 = vmatmul.mubr.bf16.gmra.mrb[0].mxu0 %v2565
        %v2657 = vpop.f32.mrb[0].mxu0
        %v2658 = vadd.f32 0.0, %v2657
        %v2659 = vpop.f32.mrb[0].mxu0
        %v2660 = vpop.f32.mrb[0].mxu0
        %v2661 = vadd.f32 0.0, %v2660
        %v2662 = vpop.f32.mrb[0].mxu0
        %2663 = vdwg.mxu0
        %v2664 = vadd.f32 %v2453, %v2602
        %v2665 = vadd.f32 %v2454, %v2605
        %v2666 = vadd.f32 %v2455, %v2610
        %v2667 = vadd.f32 %v2456, %v2613
        %v2668 = vadd.f32 %v2457, %v2618
        %v2669 = vadd.f32 %v2458, %v2621
        %v2670 = vadd.f32 %v2459, %v2626
        %v2671 = vadd.f32 %v2460, %v2629
        %v2672 = vadd.f32 %v2461, %v2634
        %v2673 = vadd.f32 %v2462, %v2637
        %v2674 = vadd.f32 %v2463, %v2642
        %v2675 = vadd.f32 %v2464, %v2645
        %v2676 = vadd.f32 %v2465, %v2650
        %v2677 = vadd.f32 %v2466, %v2653
        %v2678 = vadd.f32 %v2467, %v2658
        %v2679 = vadd.f32 %v2468, %v2661
        %v2680 = vld [vmem:[%s2469] sm:$0xe]
        %v2681 = vld [vmem:[%s2469 + $0x4] sm:$0xf]
        %v2682 = vld [vmem:[%s2469 + $0x8] sm:$0x1]
        %v2683 = vld [vmem:[%s2469 + $0xc] sm:$0xe]
        %v2684 = vld [vmem:[%s2469 + $0x10] sm:$0xf]
        %v2685 = vld [vmem:[%s2469 + $0x14] sm:$0x1]
        %v2686 = vld [vmem:[%s2469 + $0x18] sm:$0xe]
        %v2687 = vld [vmem:[%s2469 + $0x1c] sm:$0xf]
        %v2688 = vld [vmem:[%s2469 + $0x20] sm:$0x1]
        %v2689 = vld [vmem:[%s2469 + $0x24] sm:$0xe]
        %v2690 = vld [vmem:[%s2469 + $0x28] sm:$0xf]
        %v2691 = vld [vmem:[%s2469 + $0x2c] sm:$0x1]
        %v2692 = vld [vmem:[%s2469 + $0x30] sm:$0xe]
        %v2693 = vld [vmem:[%s2469 + $0x34] sm:$0xf]
        %v2694 = vld [vmem:[%s2469 + $0x38] sm:$0x1]
        %v2695 = vld [vmem:[%s2469 + $0x3c] sm:$0xe]
        %v2696 = vld [vmem:[%s2469 + $0x40] sm:$0xf]
        %v2697 = vld [vmem:[%s2469 + $0x44] sm:$0x1]
        %v2698 = vld [vmem:[%s2469 + $0x48] sm:$0xe]
        %v2699 = vld [vmem:[%s2469 + $0x4c] sm:$0xf]
        %v2700 = vld [vmem:[%s2469 + $0x50] sm:$0x1]
        %v2701 = vld [vmem:[%s2469 + $0x54] sm:$0xe]
        %v2702 = vld [vmem:[%s2469 + $0x58] sm:$0xf]
        %v2703 = vld [vmem:[%s2469 + $0x5c] sm:$0x1]
        %v2728 = vrot.slane %v2680, 5
        %v2729 = vrot.slane %v2728, 4
        %v2730 = vrot.slane %v2681, 5
        %v2731 = vsel %vm1207, %v2729, %v2730
        %v2732 = vrot.slane %v2730, 4
        %v2733 = vrot.slane %v2682, 5
        %v2734 = vsel %vm1207, %v2732, %v2733
        %v2735 = vrot.slane %v2683, 5
        %v2736 = vrot.slane %v2735, 4
        %v2737 = vrot.slane %v2684, 5
        %v2738 = vsel %vm1207, %v2736, %v2737
        %v2739 = vrot.slane %v2737, 4
        %v2740 = vrot.slane %v2685, 5
        %v2741 = vsel %vm1207, %v2739, %v2740
        %v2742 = vrot.slane %v2686, 5
        %v2743 = vrot.slane %v2742, 4
        %v2744 = vrot.slane %v2687, 5
        %v2745 = vsel %vm1207, %v2743, %v2744
        %v2746 = vrot.slane %v2744, 4
        %v2747 = vrot.slane %v2688, 5
        %v2748 = vsel %vm1207, %v2746, %v2747
        %v2749 = vrot.slane %v2689, 5
        %v2750 = vrot.slane %v2749, 4
        %v2751 = vrot.slane %v2690, 5
        %v2752 = vsel %vm1207, %v2750, %v2751
        %v2753 = vrot.slane %v2751, 4
        %v2754 = vrot.slane %v2691, 5
        %v2755 = vsel %vm1207, %v2753, %v2754
        %v2756 = vrot.slane %v2692, 5
        %v2757 = vrot.slane %v2756, 4
        %v2758 = vrot.slane %v2693, 5
        %v2759 = vsel %vm1207, %v2757, %v2758
        %v2760 = vrot.slane %v2758, 4
        %v2761 = vrot.slane %v2694, 5
        %v2762 = vsel %vm1207, %v2760, %v2761
        %v2763 = vrot.slane %v2695, 5
        %v2764 = vrot.slane %v2763, 4
        %v2765 = vrot.slane %v2696, 5
        %v2766 = vsel %vm1207, %v2764, %v2765
        %v2767 = vrot.slane %v2765, 4
        %v2768 = vrot.slane %v2697, 5
        %v2769 = vsel %vm1207, %v2767, %v2768
        %v2770 = vrot.slane %v2698, 5
        %v2771 = vrot.slane %v2770, 4
        %v2772 = vrot.slane %v2699, 5
        %v2773 = vsel %vm1207, %v2771, %v2772
        %v2774 = vrot.slane %v2772, 4
        %v2775 = vrot.slane %v2700, 5
        %v2776 = vsel %vm1207, %v2774, %v2775
        %v2777 = vrot.slane %v2701, 5
        %v2778 = vrot.slane %v2777, 4
        %v2779 = vrot.slane %v2702, 5
        %v2780 = vsel %vm1207, %v2778, %v2779
        %v2781 = vrot.slane %v2779, 4
        %v2782 = vrot.slane %v2703, 5
        %v2783 = vsel %vm1207, %v2781, %v2782
        %s2784 = scalar_lea.vmem [#allocation8], 112
        %v2785 = vld [vmem:[%s2784] sm:$0xf]
        %v2786 = vld [vmem:[%s2784 + $0x4] sm:$0xf]
        %v2787 = vld [vmem:[%s2784 + $0x8] sm:$0xf]
        %v2788 = vld [vmem:[%s2784 + $0xc] sm:$0xf]
        %v2789 = vunpack.c.l.b16 %v2731
        %v2790 = vunpack.c.l.b16 %v2734
        %v2791 = vunpack.c.l.b16 %v2738
        %v2792 = vunpack.c.l.b16 %v2741
        %v2793 = vunpack.c.l.b16 %v2745
        %v2794 = vunpack.c.l.b16 %v2748
        %v2795 = vunpack.c.l.b16 %v2752
        %v2796 = vunpack.c.l.b16 %v2755
        %v2797 = vunpack.c.l.b16 %v2759
        %v2798 = vunpack.c.l.b16 %v2762
        %v2799 = vunpack.c.l.b16 %v2766
        %v2800 = vunpack.c.l.b16 %v2769
        %v2801 = vunpack.c.l.b16 %v2773
        %v2802 = vunpack.c.l.b16 %v2776
        %v2803 = vunpack.c.l.b16 %v2780
        %v2804 = vunpack.c.l.b16 %v2783
        %v2805 = vpack.c.b16 %v2790, %v2789
        %v2806 = vpack.c.b16 %v2792, %v2791
        %v2807 = vpack.c.b16 %v2794, %v2793
        %v2808 = vpack.c.b16 %v2796, %v2795
        %v2809 = vpack.c.b16 %v2798, %v2797
        %v2810 = vpack.c.b16 %v2800, %v2799
        %v2811 = vpack.c.b16 %v2802, %v2801
        %v2812 = vpack.c.b16 %v2804, %v2803
        %v2817 = vunpack.c.l.b16 %v2785
        %v2818 = vunpack.c.l.b16 %v2786
        %v2819 = vunpack.c.l.b16 %v2787
        %v2820 = vunpack.c.l.b16 %v2788
        %v2821 = vpack.c.b16 %v2818, %v2817
        %v2822 = vpack.c.b16 %v2820, %v2819
        %v2826 = vsel %vm1013, %v2805, 0
        %v2829 = vsel %vm1013, %v2806, 0
        %v2832 = vsel %vm1013, %v2807, 0
        %v2835 = vsel %vm1013, %v2808, 0
        %v2838 = vsel %vm1013, %v2809, 0
        %v2841 = vsel %vm1013, %v2810, 0
        %v2844 = vsel %vm1013, %v2811, 0
        %v2847 = vsel %vm1013, %v2812, 0
        %2849 = vmatprep.subr.bf16.mxu0 0
        %2850 = vmatpush1.bf16.msra.mxu0 %v2821
        %2851 = vmatprep.subr.bf16.mxu0 0
        %2852 = vmatpush1.bf16.msra.mxu0 %v2822
        %2853 = vmatprep.subr.bf16.mxu0 0
        %2854 = vmatpush1.bf16.msra.mxu0 0
        %2855 = vmatprep.subr.bf16.mxu0 0
        %2856 = vmatpush1.bf16.msra.mxu0 0
        %2857 = vmatprep.subr.bf16.mxu0 0
        %2858 = vmatpush1.bf16.msra.mxu0 0
        %2859 = vmatprep.subr.bf16.mxu0 0
        %2860 = vmatpush1.bf16.msra.mxu0 0
        %2861 = vmatprep.subr.bf16.mxu0 0
        %2862 = vmatpush1.bf16.msra.mxu0 0
        %2863 = vmatprep.subr.bf16.mxu0 0
        %2864 = vmatpush1.bf16.msra.mxu0 0
        %2865 = vmatprep.subr.bf16.mxu0 0
        %2866 = vmatpush1.bf16.msra.mxu0 0
        %2867 = vmatprep.subr.bf16.mxu0 0
        %2868 = vmatpush1.bf16.msra.mxu0 0
        %2869 = vmatprep.subr.bf16.mxu0 0
        %2870 = vmatpush1.bf16.msra.mxu0 0
        %2871 = vmatprep.subr.bf16.mxu0 0
        %2872 = vmatpush1.bf16.msra.mxu0 0
        %2873 = vmatprep.subr.bf16.mxu0 0
        %2874 = vmatpush1.bf16.msra.mxu0 0
        %2875 = vmatprep.subr.bf16.mxu0 0
        %2876 = vmatpush1.bf16.msra.mxu0 0
        %2877 = vmatprep.subr.bf16.mxu0 0
        %2878 = vmatpush1.bf16.msra.mxu0 0
        %2879 = vmatprep.subr.bf16.mxu0 0
        %2880 = vmatpush1.bf16.msra.mxu0 0
        %2881 = vmatprep.mubr.bf16.mxu0 0
        %2882 = vmatmul.mubr.bf16.gmra.mrb[0].mxu0 %v2826
        %v2883 = vpop.f32.mrb[0].mxu0
        %v2884 = vadd.f32 0.0, %v2883
        %v2885 = vpop.f32.mrb[0].mxu0
        %v2886 = vpop.f32.mrb[0].mxu0
        %v2887 = vadd.f32 0.0, %v2886
        %v2888 = vpop.f32.mrb[0].mxu0
        %2889 = vmatprep.mubr.bf16.mxu0 0
        %2890 = vmatmul.mubr.bf16.gmra.mrb[0].mxu0 %v2829
        %v2891 = vpop.f32.mrb[0].mxu0
        %v2892 = vadd.f32 0.0, %v2891
        %v2893 = vpop.f32.mrb[0].mxu0
        %v2894 = vpop.f32.mrb[0].mxu0
        %v2895 = vadd.f32 0.0, %v2894
        %v2896 = vpop.f32.mrb[0].mxu0
        %2897 = vmatprep.mubr.bf16.mxu0 0
        %2898 = vmatmul.mubr.bf16.gmra.mrb[0].mxu0 %v2832
        %v2899 = vpop.f32.mrb[0].mxu0
        %v2900 = vadd.f32 0.0, %v2899
        %v2901 = vpop.f32.mrb[0].mxu0
        %v2902 = vpop.f32.mrb[0].mxu0
        %v2903 = vadd.f32 0.0, %v2902
        %v2904 = vpop.f32.mrb[0].mxu0
        %2905 = vmatprep.mubr.bf16.mxu0 0
        %2906 = vmatmul.mubr.bf16.gmra.mrb[0].mxu0 %v2835
        %v2907 = vpop.f32.mrb[0].mxu0
        %v2908 = vadd.f32 0.0, %v2907
        %v2909 = vpop.f32.mrb[0].mxu0
        %v2910 = vpop.f32.mrb[0].mxu0
        %v2911 = vadd.f32 0.0, %v2910
        %v2912 = vpop.f32.mrb[0].mxu0
        %2913 = vmatprep.mubr.bf16.mxu0 0
        %2914 = vmatmul.mubr.bf16.gmra.mrb[0].mxu0 %v2838
        %v2915 = vpop.f32.mrb[0].mxu0
        %v2916 = vadd.f32 0.0, %v2915
        %v2917 = vpop.f32.mrb[0].mxu0
        %v2918 = vpop.f32.mrb[0].mxu0
        %v2919 = vadd.f32 0.0, %v2918
        %v2920 = vpop.f32.mrb[0].mxu0
        %2921 = vmatprep.mubr.bf16.mxu0 0
        %2922 = vmatmul.mubr.bf16.gmra.mrb[0].mxu0 %v2841
        %v2923 = vpop.f32.mrb[0].mxu0
        %v2924 = vadd.f32 0.0, %v2923
        %v2925 = vpop.f32.mrb[0].mxu0
        %v2926 = vpop.f32.mrb[0].mxu0
        %v2927 = vadd.f32 0.0, %v2926
        %v2928 = vpop.f32.mrb[0].mxu0
        %2929 = vmatprep.mubr.bf16.mxu0 0
        %2930 = vmatmul.mubr.bf16.gmra.mrb[0].mxu0 %v2844
        %v2931 = vpop.f32.mrb[0].mxu0
        %v2932 = vadd.f32 0.0, %v2931
        %v2933 = vpop.f32.mrb[0].mxu0
        %v2934 = vpop.f32.mrb[0].mxu0
        %v2935 = vadd.f32 0.0, %v2934
        %v2936 = vpop.f32.mrb[0].mxu0
        %2937 = vmatprep.mubr.bf16.mxu0 0
        %2938 = vmatmul.mubr.bf16.gmra.mrb[0].mxu0 %v2847
        %v2939 = vpop.f32.mrb[0].mxu0
        %v2940 = vadd.f32 0.0, %v2939
        %v2941 = vpop.f32.mrb[0].mxu0
        %v2942 = vpop.f32.mrb[0].mxu0
        %v2943 = vadd.f32 0.0, %v2942
        %v2944 = vpop.f32.mrb[0].mxu0
        %2945 = vdwg.mxu0
        %v2946 = vadd.f32 %v2664, %v2884
        %v2947 = vadd.f32 %v2665, %v2887
        %v2948 = vadd.f32 %v2666, %v2892
        %v2949 = vadd.f32 %v2667, %v2895
        %v2950 = vadd.f32 %v2668, %v2900
        %v2951 = vadd.f32 %v2669, %v2903
        %v2952 = vadd.f32 %v2670, %v2908
        %v2953 = vadd.f32 %v2671, %v2911
        %v2954 = vadd.f32 %v2672, %v2916
        %v2955 = vadd.f32 %v2673, %v2919
        %v2956 = vadd.f32 %v2674, %v2924
        %v2957 = vadd.f32 %v2675, %v2927
        %v2958 = vadd.f32 %v2676, %v2932
        %v2959 = vadd.f32 %v2677, %v2935
        %v2960 = vadd.f32 %v2678, %v2940
        %v2961 = vadd.f32 %v2679, %v2943
        %v2962 = vld [vmem:[%s2469] sm:$0xc]
        %v2963 = vld [vmem:[%s2469 + $0x8] sm:$0x3]
        %v2964 = vld [vmem:[%s2469 + $0xc] sm:$0xc]
        %v2965 = vld [vmem:[%s2469 + $0x14] sm:$0x3]
        %v2966 = vld [vmem:[%s2469 + $0x18] sm:$0xc]
        %v2967 = vld [vmem:[%s2469 + $0x20] sm:$0x3]
        %v2968 = vld [vmem:[%s2469 + $0x24] sm:$0xc]
        %v2969 = vld [vmem:[%s2469 + $0x2c] sm:$0x3]
        %v2970 = vld [vmem:[%s2469 + $0x30] sm:$0xc]
        %v2971 = vld [vmem:[%s2469 + $0x38] sm:$0x3]
        %v2972 = vld [vmem:[%s2469 + $0x3c] sm:$0xc]
        %v2973 = vld [vmem:[%s2469 + $0x44] sm:$0x3]
        %v2974 = vld [vmem:[%s2469 + $0x48] sm:$0xc]
        %v2975 = vld [vmem:[%s2469 + $0x50] sm:$0x3]
        %v2976 = vld [vmem:[%s2469 + $0x54] sm:$0xc]
        %v2977 = vld [vmem:[%s2469 + $0x5c] sm:$0x3]
        %v2994 = vrot.slane %v2962, 6
        %v2995 = vrot.slane %v2994, 4
        %v2996 = vrot.slane %v2681, 6
        %v2997 = vsel %vm1476, %v2995, %v2996
        %v2998 = vrot.slane %v2996, 4
        %v2999 = vrot.slane %v2963, 6
        %v3000 = vsel %vm1476, %v2998, %v2999
        %v3001 = vrot.slane %v2964, 6
        %v3002 = vrot.slane %v3001, 4
        %v3003 = vrot.slane %v2684, 6
        %v3004 = vsel %vm1476, %v3002, %v3003
        %v3005 = vrot.slane %v3003, 4
        %v3006 = vrot.slane %v2965, 6
        %v3007 = vsel %vm1476, %v3005, %v3006
        %v3008 = vrot.slane %v2966, 6
        %v3009 = vrot.slane %v3008, 4
        %v3010 = vrot.slane %v2687, 6
        %v3011 = vsel %vm1476, %v3009, %v3010
        %v3012 = vrot.slane %v3010, 4
        %v3013 = vrot.slane %v2967, 6
        %v3014 = vsel %vm1476, %v3012, %v3013
        %v3015 = vrot.slane %v2968, 6
        %v3016 = vrot.slane %v3015, 4
        %v3017 = vrot.slane %v2690, 6
        %v3018 = vsel %vm1476, %v3016, %v3017
        %v3019 = vrot.slane %v3017, 4
        %v3020 = vrot.slane %v2969, 6
        %v3021 = vsel %vm1476, %v3019, %v3020
        %v3022 = vrot.slane %v2970, 6
        %v3023 = vrot.slane %v3022, 4
        %v3024 = vrot.slane %v2693, 6
        %v3025 = vsel %vm1476, %v3023, %v3024
        %v3026 = vrot.slane %v3024, 4
        %v3027 = vrot.slane %v2971, 6
        %v3028 = vsel %vm1476, %v3026, %v3027
        %v3029 = vrot.slane %v2972, 6
        %v3030 = vrot.slane %v3029, 4
        %v3031 = vrot.slane %v2696, 6
        %v3032 = vsel %vm1476, %v3030, %v3031
        %v3033 = vrot.slane %v3031, 4
        %v3034 = vrot.slane %v2973, 6
        %v3035 = vsel %vm1476, %v3033, %v3034
        %v3036 = vrot.slane %v2974, 6
        %v3037 = vrot.slane %v3036, 4
        %v3038 = vrot.slane %v2699, 6
        %v3039 = vsel %vm1476, %v3037, %v3038
        %v3040 = vrot.slane %v3038, 4
        %v3041 = vrot.slane %v2975, 6
        %v3042 = vsel %vm1476, %v3040, %v3041
        %v3043 = vrot.slane %v2976, 6
        %v3044 = vrot.slane %v3043, 4
        %v3045 = vrot.slane %v2702, 6
        %v3046 = vsel %vm1476, %v3044, %v3045
        %v3047 = vrot.slane %v3045, 4
        %v3048 = vrot.slane %v2977, 6
        %v3049 = vsel %vm1476, %v3047, %v3048
        %s3050 = scalar_lea.vmem [#allocation8], 128
        %v3051 = vld [vmem:[%s3050] sm:$0xf]
        %v3052 = vld [vmem:[%s3050 + $0x4] sm:$0xf]
        %v3053 = vld [vmem:[%s3050 + $0x8] sm:$0xf]
        %v3054 = vld [vmem:[%s3050 + $0xc] sm:$0xf]
        %v3055 = vunpack.c.l.b16 %v2997
        %v3056 = vunpack.c.l.b16 %v3000
        %v3057 = vunpack.c.l.b16 %v3004
        %v3058 = vunpack.c.l.b16 %v3007
        %v3059 = vunpack.c.l.b16 %v3011
        %v3060 = vunpack.c.l.b16 %v3014
        %v3061 = vunpack.c.l.b16 %v3018
        %v3062 = vunpack.c.l.b16 %v3021
        %v3063 = vunpack.c.l.b16 %v3025
        %v3064 = vunpack.c.l.b16 %v3028
        %v3065 = vunpack.c.l.b16 %v3032
        %v3066 = vunpack.c.l.b16 %v3035
        %v3067 = vunpack.c.l.b16 %v3039
        %v3068 = vunpack.c.l.b16 %v3042
        %v3069 = vunpack.c.l.b16 %v3046
        %v3070 = vunpack.c.l.b16 %v3049
        %v3071 = vpack.c.b16 %v3056, %v3055
        %v3072 = vpack.c.b16 %v3058, %v3057
        %v3073 = vpack.c.b16 %v3060, %v3059
        %v3074 = vpack.c.b16 %v3062, %v3061
        %v3075 = vpack.c.b16 %v3064, %v3063
        %v3076 = vpack.c.b16 %v3066, %v3065
        %v3077 = vpack.c.b16 %v3068, %v3067
        %v3078 = vpack.c.b16 %v3070, %v3069
        %v3083 = vunpack.c.l.b16 %v3051
        %v3084 = vunpack.c.l.b16 %v3052
        %v3085 = vunpack.c.l.b16 %v3053
        %v3086 = vunpack.c.l.b16 %v3054
        %v3087 = vpack.c.b16 %v3084, %v3083
        %v3088 = vpack.c.b16 %v3086, %v3085
        %v3092 = vsel %vm1013, %v3071, 0
        %v3095 = vsel %vm1013, %v3072, 0
        %v3098 = vsel %vm1013, %v3073, 0
        %v3101 = vsel %vm1013, %v3074, 0
        %v3104 = vsel %vm1013, %v3075, 0
        %v3107 = vsel %vm1013, %v3076, 0
        %v3110 = vsel %vm1013, %v3077, 0
        %v3113 = vsel %vm1013, %v3078, 0
        %3115 = vmatprep.subr.bf16.mxu0 0
        %3116 = vmatpush1.bf16.msra.mxu0 %v3087
        %3117 = vmatprep.subr.bf16.mxu0 0
        %3118 = vmatpush1.bf16.msra.mxu0 %v3088
        %3119 = vmatprep.subr.bf16.mxu0 0
        %3120 = vmatpush1.bf16.msra.mxu0 0
        %3121 = vmatprep.subr.bf16.mxu0 0
        %3122 = vmatpush1.bf16.msra.mxu0 0
        %3123 = vmatprep.subr.bf16.mxu0 0
        %3124 = vmatpush1.bf16.msra.mxu0 0
        %3125 = vmatprep.subr.bf16.mxu0 0
        %3126 = vmatpush1.bf16.msra.mxu0 0
        %3127 = vmatprep.subr.bf16.mxu0 0
        %3128 = vmatpush1.bf16.msra.mxu0 0
        %3129 = vmatprep.subr.bf16.mxu0 0
        %3130 = vmatpush1.bf16.msra.mxu0 0
        %3131 = vmatprep.subr.bf16.mxu0 0
        %3132 = vmatpush1.bf16.msra.mxu0 0
        %3133 = vmatprep.subr.bf16.mxu0 0
        %3134 = vmatpush1.bf16.msra.mxu0 0
        %3135 = vmatprep.subr.bf16.mxu0 0
        %3136 = vmatpush1.bf16.msra.mxu0 0
        %3137 = vmatprep.subr.bf16.mxu0 0
        %3138 = vmatpush1.bf16.msra.mxu0 0
        %3139 = vmatprep.subr.bf16.mxu0 0
        %3140 = vmatpush1.bf16.msra.mxu0 0
        %3141 = vmatprep.subr.bf16.mxu0 0
        %3142 = vmatpush1.bf16.msra.mxu0 0
        %3143 = vmatprep.subr.bf16.mxu0 0
        %3144 = vmatpush1.bf16.msra.mxu0 0
        %3145 = vmatprep.subr.bf16.mxu0 0
        %3146 = vmatpush1.bf16.msra.mxu0 0
        %3147 = vmatprep.mubr.bf16.mxu0 0
        %3148 = vmatmul.mubr.bf16.gmra.mrb[0].mxu0 %v3092
        %v3149 = vpop.f32.mrb[0].mxu0
        %v3150 = vadd.f32 0.0, %v3149
        %v3151 = vpop.f32.mrb[0].mxu0
        %v3152 = vpop.f32.mrb[0].mxu0
        %v3153 = vadd.f32 0.0, %v3152
        %v3154 = vpop.f32.mrb[0].mxu0
        %3155 = vmatprep.mubr.bf16.mxu0 0
        %3156 = vmatmul.mubr.bf16.gmra.mrb[0].mxu0 %v3095
        %v3157 = vpop.f32.mrb[0].mxu0
        %v3158 = vadd.f32 0.0, %v3157
        %v3159 = vpop.f32.mrb[0].mxu0
        %v3160 = vpop.f32.mrb[0].mxu0
        %v3161 = vadd.f32 0.0, %v3160
        %v3162 = vpop.f32.mrb[0].mxu0
        %3163 = vmatprep.mubr.bf16.mxu0 0
        %3164 = vmatmul.mubr.bf16.gmra.mrb[0].mxu0 %v3098
        %v3165 = vpop.f32.mrb[0].mxu0
        %v3166 = vadd.f32 0.0, %v3165
        %v3167 = vpop.f32.mrb[0].mxu0
        %v3168 = vpop.f32.mrb[0].mxu0
        %v3169 = vadd.f32 0.0, %v3168
        %v3170 = vpop.f32.mrb[0].mxu0
        %3171 = vmatprep.mubr.bf16.mxu0 0
        %3172 = vmatmul.mubr.bf16.gmra.mrb[0].mxu0 %v3101
        %v3173 = vpop.f32.mrb[0].mxu0
        %v3174 = vadd.f32 0.0, %v3173
        %v3175 = vpop.f32.mrb[0].mxu0
        %v3176 = vpop.f32.mrb[0].mxu0
        %v3177 = vadd.f32 0.0, %v3176
        %v3178 = vpop.f32.mrb[0].mxu0
        %3179 = vmatprep.mubr.bf16.mxu0 0
        %3180 = vmatmul.mubr.bf16.gmra.mrb[0].mxu0 %v3104
        %v3181 = vpop.f32.mrb[0].mxu0
        %v3182 = vadd.f32 0.0, %v3181
        %v3183 = vpop.f32.mrb[0].mxu0
        %v3184 = vpop.f32.mrb[0].mxu0
        %v3185 = vadd.f32 0.0, %v3184
        %v3186 = vpop.f32.mrb[0].mxu0
        %3187 = vmatprep.mubr.bf16.mxu0 0
        %3188 = vmatmul.mubr.bf16.gmra.mrb[0].mxu0 %v3107
        %v3189 = vpop.f32.mrb[0].mxu0
        %v3190 = vadd.f32 0.0, %v3189
        %v3191 = vpop.f32.mrb[0].mxu0
        %v3192 = vpop.f32.mrb[0].mxu0
        %v3193 = vadd.f32 0.0, %v3192
        %v3194 = vpop.f32.mrb[0].mxu0
        %3195 = vmatprep.mubr.bf16.mxu0 0
        %3196 = vmatmul.mubr.bf16.gmra.mrb[0].mxu0 %v3110
        %v3197 = vpop.f32.mrb[0].mxu0
        %v3198 = vadd.f32 0.0, %v3197
        %v3199 = vpop.f32.mrb[0].mxu0
        %v3200 = vpop.f32.mrb[0].mxu0
        %v3201 = vadd.f32 0.0, %v3200
        %v3202 = vpop.f32.mrb[0].mxu0
        %3203 = vmatprep.mubr.bf16.mxu0 0
        %3204 = vmatmul.mubr.bf16.gmra.mrb[0].mxu0 %v3113
        %v3205 = vpop.f32.mrb[0].mxu0
        %v3206 = vadd.f32 0.0, %v3205
        %v3207 = vpop.f32.mrb[0].mxu0
        %v3208 = vpop.f32.mrb[0].mxu0
        %v3209 = vadd.f32 0.0, %v3208
        %v3210 = vpop.f32.mrb[0].mxu0
        %3211 = vdwg.mxu0
        %v3212 = vadd.f32 %v2946, %v3150
        %v3213 = vadd.f32 %v2947, %v3153
        %v3214 = vadd.f32 %v2948, %v3158
        %v3215 = vadd.f32 %v2949, %v3161
        %v3216 = vadd.f32 %v2950, %v3166
        %v3217 = vadd.f32 %v2951, %v3169
        %v3218 = vadd.f32 %v2952, %v3174
        %v3219 = vadd.f32 %v2953, %v3177
        %v3220 = vadd.f32 %v2954, %v3182
        %v3221 = vadd.f32 %v2955, %v3185
        %v3222 = vadd.f32 %v2956, %v3190
        %v3223 = vadd.f32 %v2957, %v3193
        %v3224 = vadd.f32 %v2958, %v3198
        %v3225 = vadd.f32 %v2959, %v3201
        %v3226 = vadd.f32 %v2960, %v3206
        %v3227 = vadd.f32 %v2961, %v3209
        %v3228 = vmax.f32 %v3212, 0.0
        %v3229 = vmax.f32 %v3213, 0.0
        %v3230 = vmax.f32 %v3214, 0.0
        %v3231 = vmax.f32 %v3215, 0.0
        %v3232 = vmax.f32 %v3216, 0.0
        %v3233 = vmax.f32 %v3217, 0.0
        %v3234 = vmax.f32 %v3218, 0.0
        %v3235 = vmax.f32 %v3219, 0.0
        %v3236 = vmax.f32 %v3220, 0.0
        %v3237 = vmax.f32 %v3221, 0.0
        %v3238 = vmax.f32 %v3222, 0.0
        %v3239 = vmax.f32 %v3223, 0.0
        %v3240 = vmax.f32 %v3224, 0.0
        %v3241 = vmax.f32 %v3225, 0.0
        %v3242 = vmax.f32 %v3226, 0.0
        %v3243 = vmax.f32 %v3227, 0.0
        %v3244 = vpack.c.bf16 %v3229, %v3228
        %v3245 = vpack.c.bf16 %v3231, %v3230
        %v3246 = vpack.c.bf16 %v3233, %v3232
        %v3247 = vpack.c.bf16 %v3235, %v3234
        %v3248 = vpack.c.bf16 %v3237, %v3236
        %v3249 = vpack.c.bf16 %v3239, %v3238
        %v3250 = vpack.c.bf16 %v3241, %v3240
        %v3251 = vpack.c.bf16 %v3243, %v3242
        %v3252 = vld [vmem:[%s4] sm:$0xf]
        %v3253 = vld [vmem:[%s4 + $0x4] sm:$0xf]
        %v3254 = vld [vmem:[%s4 + $0x8] sm:$0xf]
        %v3255 = vld [vmem:[%s4 + $0xc] sm:$0xf]
        %v3256 = vld [vmem:[%s7] sm:$0x1]
        %v3258 = vlaneseq
        %v3259 = vshrl.u32 %v3258, 7
        %v3260 = vsub.s32 0, %v3259
        %v3261 = vrot.slane %v3256, %v3260
        %v3267 = vunpack.c.l.b16 %v3252
        %v3268 = vunpack.c.l.b16 %v3253
        %v3269 = vunpack.c.l.b16 %v3254
        %v3270 = vunpack.c.l.b16 %v3255
        %v3271 = vpack.c.b16 %v3268, %v3267
        %v3272 = vpack.c.b16 %v3270, %v3269
        %v3276 = vsel %vm1013, %v3244, 0
        %v3279 = vsel %vm1013, %v3245, 0
        %v3282 = vsel %vm1013, %v3246, 0
        %v3285 = vsel %vm1013, %v3247, 0
        %v3288 = vsel %vm1013, %v3248, 0
        %v3291 = vsel %vm1013, %v3249, 0
        %v3294 = vsel %vm1013, %v3250, 0
        %v3297 = vsel %vm1013, %v3251, 0
        %3299 = vmatprep.subr.bf16.mxu0 0
        %3300 = vmatpush1.bf16.msra.mxu0 %v3271
        %3301 = vmatprep.subr.bf16.mxu0 0
        %3302 = vmatpush1.bf16.msra.mxu0 %v3272
        %3303 = vmatprep.subr.bf16.mxu0 0
        %3304 = vmatpush1.bf16.msra.mxu0 0
        %3305 = vmatprep.subr.bf16.mxu0 0
        %3306 = vmatpush1.bf16.msra.mxu0 0
        %3307 = vmatprep.subr.bf16.mxu0 0
        %3308 = vmatpush1.bf16.msra.mxu0 0
        %3309 = vmatprep.subr.bf16.mxu0 0
        %3310 = vmatpush1.bf16.msra.mxu0 0
        %3311 = vmatprep.subr.bf16.mxu0 0
        %3312 = vmatpush1.bf16.msra.mxu0 0
        %3313 = vmatprep.subr.bf16.mxu0 0
        %3314 = vmatpush1.bf16.msra.mxu0 0
        %3315 = vmatprep.subr.bf16.mxu0 0
        %3316 = vmatpush1.bf16.msra.mxu0 0
        %3317 = vmatprep.subr.bf16.mxu0 0
        %3318 = vmatpush1.bf16.msra.mxu0 0
        %3319 = vmatprep.subr.bf16.mxu0 0
        %3320 = vmatpush1.bf16.msra.mxu0 0
        %3321 = vmatprep.subr.bf16.mxu0 0
        %3322 = vmatpush1.bf16.msra.mxu0 0
        %3323 = vmatprep.subr.bf16.mxu0 0
        %3324 = vmatpush1.bf16.msra.mxu0 0
        %3325 = vmatprep.subr.bf16.mxu0 0
        %3326 = vmatpush1.bf16.msra.mxu0 0
        %3327 = vmatprep.subr.bf16.mxu0 0
        %3328 = vmatpush1.bf16.msra.mxu0 0
        %3329 = vmatprep.subr.bf16.mxu0 0
        %3330 = vmatpush1.bf16.msra.mxu0 0
        %3331 = vmatprep.mubr.bf16.mxu0 0
        %3332 = vmatmul.mubr.bf16.gmra.mrb[0].mxu0 %v3276
        %v3333 = vpop.f32.mrb[0].mxu0
        %v3334 = vadd.f32 %v3261, %v3333
        %v3335 = vpop.f32.mrb[0].mxu0
        %v3336 = vpop.f32.mrb[0].mxu0
        %v3337 = vadd.f32 %v3261, %v3336
        %v3338 = vpop.f32.mrb[0].mxu0
        %3339 = vmatprep.mubr.bf16.mxu0 0
        %3340 = vmatmul.mubr.bf16.gmra.mrb[0].mxu0 %v3279
        %v3341 = vpop.f32.mrb[0].mxu0
        %v3342 = vadd.f32 %v3261, %v3341
        %v3343 = vpop.f32.mrb[0].mxu0
        %v3344 = vpop.f32.mrb[0].mxu0
        %v3345 = vadd.f32 %v3261, %v3344
        %v3346 = vpop.f32.mrb[0].mxu0
        %3347 = vmatprep.mubr.bf16.mxu0 0
        %3348 = vmatmul.mubr.bf16.gmra.mrb[0].mxu0 %v3282
        %v3349 = vpop.f32.mrb[0].mxu0
        %v3350 = vadd.f32 %v3261, %v3349
        %v3351 = vpop.f32.mrb[0].mxu0
        %v3352 = vpop.f32.mrb[0].mxu0
        %v3353 = vadd.f32 %v3261, %v3352
        %v3354 = vpop.f32.mrb[0].mxu0
        %3355 = vmatprep.mubr.bf16.mxu0 0
        %3356 = vmatmul.mubr.bf16.gmra.mrb[0].mxu0 %v3285
        %v3357 = vpop.f32.mrb[0].mxu0
        %v3358 = vadd.f32 %v3261, %v3357
        %v3359 = vpop.f32.mrb[0].mxu0
        %v3360 = vpop.f32.mrb[0].mxu0
        %v3361 = vadd.f32 %v3261, %v3360
        %v3362 = vpop.f32.mrb[0].mxu0
        %3363 = vmatprep.mubr.bf16.mxu0 0
        %3364 = vmatmul.mubr.bf16.gmra.mrb[0].mxu0 %v3288
        %v3365 = vpop.f32.mrb[0].mxu0
        %v3366 = vadd.f32 %v3261, %v3365
        %v3367 = vpop.f32.mrb[0].mxu0
        %v3368 = vpop.f32.mrb[0].mxu0
        %v3369 = vadd.f32 %v3261, %v3368
        %v3370 = vpop.f32.mrb[0].mxu0
        %3371 = vmatprep.mubr.bf16.mxu0 0
        %3372 = vmatmul.mubr.bf16.gmra.mrb[0].mxu0 %v3291
        %v3373 = vpop.f32.mrb[0].mxu0
        %v3374 = vadd.f32 %v3261, %v3373
        %v3375 = vpop.f32.mrb[0].mxu0
        %v3376 = vpop.f32.mrb[0].mxu0
        %v3377 = vadd.f32 %v3261, %v3376
        %v3378 = vpop.f32.mrb[0].mxu0
        %3379 = vmatprep.mubr.bf16.mxu0 0
        %3380 = vmatmul.mubr.bf16.gmra.mrb[0].mxu0 %v3294
        %v3381 = vpop.f32.mrb[0].mxu0
        %v3382 = vadd.f32 %v3261, %v3381
        %v3383 = vpop.f32.mrb[0].mxu0
        %v3384 = vpop.f32.mrb[0].mxu0
        %v3385 = vadd.f32 %v3261, %v3384
        %v3386 = vpop.f32.mrb[0].mxu0
        %3387 = vmatprep.mubr.bf16.mxu0 0
        %3388 = vmatmul.mubr.bf16.gmra.mrb[0].mxu0 %v3297
        %v3389 = vpop.f32.mrb[0].mxu0
        %v3390 = vadd.f32 %v3261, %v3389
        %v3391 = vpop.f32.mrb[0].mxu0
        %v3392 = vpop.f32.mrb[0].mxu0
        %v3393 = vadd.f32 %v3261, %v3392
        %v3394 = vpop.f32.mrb[0].mxu0
        %3395 = vdwg.mxu0
        %v3396 = vadd.f32 %v3334, %v418
        %v3397 = vadd.f32 %v3337, %v419
        %v3398 = vadd.f32 %v3342, %v420
        %v3399 = vadd.f32 %v3345, %v421
        %v3400 = vadd.f32 %v3350, %v422
        %v3401 = vadd.f32 %v3353, %v423
        %v3402 = vadd.f32 %v3358, %v424
        %v3403 = vadd.f32 %v3361, %v425
        %v3404 = vadd.f32 %v3366, %v426
        %v3405 = vadd.f32 %v3369, %v427
        %v3406 = vadd.f32 %v3374, %v428
        %v3407 = vadd.f32 %v3377, %v429
        %v3408 = vadd.f32 %v3382, %v430
        %v3409 = vadd.f32 %v3385, %v431
        %v3410 = vadd.f32 %v3390, %v432
        %v3411 = vadd.f32 %v3393, %v433
        %v3412 = vmax.f32 %v3396, 0.0
        %v3413 = vmax.f32 %v3397, 0.0
        %v3414 = vmax.f32 %v3398, 0.0
        %v3415 = vmax.f32 %v3399, 0.0
        %v3416 = vmax.f32 %v3400, 0.0
        %v3417 = vmax.f32 %v3401, 0.0
        %v3418 = vmax.f32 %v3402, 0.0
        %v3419 = vmax.f32 %v3403, 0.0
        %v3420 = vmax.f32 %v3404, 0.0
        %v3421 = vmax.f32 %v3405, 0.0
        %v3422 = vmax.f32 %v3406, 0.0
        %v3423 = vmax.f32 %v3407, 0.0
        %v3424 = vmax.f32 %v3408, 0.0
        %v3425 = vmax.f32 %v3409, 0.0
        %v3426 = vmax.f32 %v3410, 0.0
        %v3427 = vmax.f32 %v3411, 0.0
        %3428 = vst [vmem:[%s331] sm:$0xff] %v3412
        %3429 = vst [vmem:[%s331 + $0x8] sm:$0xff] %v3413
        %3430 = vst [vmem:[%s331 + $0x10] sm:$0xff] %v3414
        %3431 = vst [vmem:[%s331 + $0x18] sm:$0xff] %v3415
        %3432 = vst [vmem:[%s331 + $0x20] sm:$0xff] %v3416
        %3433 = vst [vmem:[%s331 + $0x28] sm:$0xff] %v3417
        %3434 = vst [vmem:[%s331 + $0x30] sm:$0xff] %v3418
        %3435 = vst [vmem:[%s331 + $0x38] sm:$0xff] %v3419
        %3436 = vst [vmem:[%s331 + $0x40] sm:$0xff] %v3420
        %3437 = vst [vmem:[%s331 + $0x48] sm:$0xff] %v3421
        %3438 = vst [vmem:[%s331 + $0x50] sm:$0xff] %v3422
        %3439 = vst [vmem:[%s331 + $0x58] sm:$0xff] %v3423
        %3440 = vst [vmem:[%s331 + $0x60] sm:$0xff] %v3424
        %3441 = vst [vmem:[%s331 + $0x68] sm:$0xff] %v3425
        %3442 = vst [vmem:[%s331 + $0x70] sm:$0xff] %v3426
        %3443 = vst [vmem:[%s331 + $0x78] sm:$0xff] %v3427
        %s3444 = sand.u32 %s202, 1
        %s3445 = scalar_lea.sflag [#allocation7], %s3444
        %s3446 = sand.u32 %s202, 1
        %s3447 = smul.addr %s3446, 128
        %s3448 = scalar_lea.vmem [#allocation10], %s3447
        // Predicated region
        $region81: #{tpu_custom_call.1} parent=47 // pred_check
          %p3449 = pneg %p212
        $region82: #{tpu_custom_call.1} parent=47 // pred_check_branch
          %3451 = sbr.rel (%p3449) target = $region84
        $region83: #{tpu_custom_call.1} parent=47 // pred_region
          %s3452 = smul.u32 8, %s31
          %s3454 = ssub.s32 2048, 2048
          %3455 = vsyncadd %s3445, %s3454
          %s3456 = smul.addr %s3452, 2
          %s3457 = smul.addr %s30, 32
          %s3458 = sadd.s32 %s3456, %s3457
          %s3459 = smul.addr %s3458, 128
          %s3460 = scalar_lea.hbm %s8, %s3459
          %s3461 = sshll.u32 %s3448, 4
          %s3462 = int_to_ptr.vmem [resolvable:$true] %s3461
          %3467 = dma.vmem_to_hbm [thread:$0]  %s3462, 2048, %s3460, %s3445, 128, 128, 8
        $region84: #{tpu_custom_call.1} parent=47 // pred_fallthru
          _
      $region48: #{tpu_custom_call.1} parent=5 // pred_fallthru
        _
      %p3468 = scmp.le.s32.totalorder 2, %s21
      // Predicated region
      $region85: #{tpu_custom_call.1} parent=5 // pred_check
        %p3469 = pneg %p3468
      $region86: #{tpu_custom_call.1} parent=5 // pred_check_branch
        %3471 = sbr.rel (%p3469) target = $region88
      $region87: #{tpu_custom_call.1} parent=5 // pred_region
        %s3472 = ssub.s32 %s21, 2
        // Predicated region
        $region89: #{tpu_custom_call.1} parent=87 // pred_check
          %p3473 = pneg %p218
        $region90: #{tpu_custom_call.1} parent=87 // pred_check_branch
          %3475 = sbr.rel (%p3473) target = $region92
        $region91: #{tpu_custom_call.1} parent=87 // pred_region
          %s3476 = sand.u32 %s203, 1
          %s3477 = scalar_lea.sflag [#allocation7], %s3476
          %s3478 = sand.u32 %s203, 1
          %s3479 = smul.addr %s3478, 128
          %s3480 = scalar_lea.vmem [#allocation10], %s3479
          %3481 = dma.done %s3477, 2048
        $region92: #{tpu_custom_call.1} parent=87 // pred_fallthru
          _
      $region88: #{tpu_custom_call.1} parent=5 // pred_fallthru
        _
    $region6: #{tpu_custom_call.1} parent=1 // loop_footer
      %s25 = sadd.s32 1, %s21
    $region7: #{tpu_custom_call.1} parent=1 // loop_footer_branch
      %20 = sbr.rel target = $region3
    $region8: #{tpu_custom_call.1} parent=1 // loop_exit
      _
    %3482 = vsyncpa [#allocation6], 1
    %s3483 = scalar_lea.sflag [#allocation6], 1
    %3484 = vsyncpa %s3483, 1
    %3485 = vsyncpa [#allocation9], 1
    %3486 = vsyncpa [#allocation7], 1
    %s3487 = scalar_lea.sflag [#allocation7], 1
    %3488 = vsyncpa %s3487, 1
  %3489 = vsyncmov [#allocation4]
  %s3490 = vpop.sfrf %3489
  %p3491 = scmp.eq.s32.totalorder %s3490, 0
  %p3492 = pneg %p3491
  %3494 = shalt.err (%p3492)
  %s3495 = scalar_lea.sflag [#allocation4], 1
  %3496 = vsyncmov %s3495
  %s3497 = vpop.sfrf %3496
  %p3498 = scmp.eq.s32.totalorder %s3497, 0
  %p3499 = pneg %p3498
  %3501 = shalt.err (%p3499)

</llo_original>
